<compile_context>
chip_gen: v6e
topology: v6e:2x2x1
jax: 0.10.0
libtpu: 0.0.40
codegen_flags: <defaults>
</compile_context>

<pallas_src>
import functools

import jax
import jax.numpy as jnp
from jax import lax
from jax.experimental import pallas as pl
from jax.experimental.pallas import tpu as pltpu

# Primes from the PyTorch module, re-expressed as int32 bit patterns so that
# int32 wrap-around multiplication reproduces the low 32 bits of torch's int64
# math (exact because hash_table_size is a power of two -> only low bits matter).
_PRIMES = (1, 2654435761, 805459861, 3674653429)
_PRIMES_I32 = tuple(p if p < 2**31 else p - 2**32 for p in _PRIMES)

_LANE = 128       # TPU vreg lane width
_T_CHUNK = 512    # hash-table rows handled per one-hot/matmul step (bounds VMEM)


def _hash_encoding_kernel(coords_ref, tables_ref, out_ref, *,
                          resolutions, table_size, t_chunk,
                          n_levels, n_features, coords_dim):
    """One batch tile, all resolution levels fused.

    coords_ref : (TB, D)    f32  batch on sublanes (the module's natural layout)
    tables_ref : (T, L*F)   f32  level tables packed along the lane axis
    out_ref    : (TB, L*F)  f32  batch-major, matches the module's output layout
    """
    tb = out_ref.shape[0]
    coords = coords_ref[...]                                   # (TB, D)
    n_chunks = table_size // t_chunk

    # Loop-invariant lane iota for the one-hot, hoisted out of both loops
    # (previously re-materialized L * n_chunks times per batch tile).
    lanes = lax.broadcasted_iota(jnp.int32, (tb, t_chunk), 1)  # (TB, Tc)

    for level in range(n_levels):
        res = float(resolutions[level])                        # static hyper-param

        # floor(coords * resolution); int32 wrap-around products + XOR +
        # power-of-two mask reproduce torch's int64 hash modulo table_size.
        grid_c = jnp.floor(coords * res).astype(jnp.int32)     # (TB, D)
        h = grid_c[:, 0:1] * jnp.int32(_PRIMES_I32[0])         # (TB, 1)
        for i in range(1, coords_dim):
            h = h ^ (grid_c[:, i:i + 1] * jnp.int32(_PRIMES_I32[i]))
        idx = h & jnp.int32(table_size - 1)                    # (TB, 1) in [0, T)

        # Chunked one-hot gather on the MXU.  The small (Tc, F) table slice is
        # the latched RHS; the (TB, Tc) one-hot streams TB rows per weight latch.
        # Exact row selection up to the MXU's f32 pass rounding (one-hot entries
        # are exactly 0/1); the live intermediate is bounded by t_chunk.
        acc = jnp.zeros((tb, n_features), jnp.float32)
        for c in range(n_chunks):
            onehot = (lanes == (idx - jnp.int32(c * t_chunk))).astype(jnp.float32)
            tab = tables_ref[c * t_chunk:(c + 1) * t_chunk,
                             level * n_features:(level + 1) * n_features]  # (Tc, F)
            acc = acc + jnp.dot(onehot, tab, preferred_element_type=jnp.float32)

        # Static column-range store of this level's features: no place-matmul,
        # no fused register accumulator, output already in the module's layout.
        out_ref[:, level * n_features:(level + 1) * n_features] = acc


@functools.partial(jax.jit, static_argnames=("resolutions",))
def multi_resolution_hash_encoding(coords, hash_tables, resolutions):
    """coords: (B, D) f32; hash_tables: (L, T, F) f32; resolutions: tuple of L ints.

    Returns (B, L * F) f32, matching MultiResolutionHashEncoding.forward.
    """
    B, D = coords.shape
    L, T, F = hash_tables.shape
    assert len(resolutions) == L
    assert D <= len(_PRIMES_I32)
    assert (T & (T - 1)) == 0, "hash_table_size must be a power of two"

    t_chunk = min(T, _T_CHUNK)

    # Batch tile: multiple of 128 so every block stays (8,128)-aligned; up to
    # 1024 rows per grid step keeps per-step overhead small and the (tb, Tc)
    # one-hot at <= 2 MiB.
    tb = min(1024, pl.cdiv(B, _LANE) * _LANE)
    b_pad = pl.cdiv(B, tb) * tb
    coords_p = jnp.pad(coords, ((0, b_pad - B), (0, 0)))          # (B_pad, D)

    # Pack all level tables along the lane axis: (L, T, F) -> (T, L*F).  In a
    # real pipeline the parameters would simply live in this layout; here it is
    # one cheap XLA op.  Lane padding of the resident VMEM copy is 128/(L*F)x
    # instead of 128/F x, and the per-(level, chunk) RHS is a static 2-D slice.
    tables_packed = jnp.transpose(hash_tables, (1, 0, 2)).reshape(T, L * F)

    kernel = functools.partial(
        _hash_encoding_kernel,
        resolutions=tuple(int(r) for r in resolutions),
        table_size=T, t_chunk=t_chunk,
        n_levels=L, n_features=F, coords_dim=D)

    # Explicit VMEM budget: double-buffered blocks + one-hot/iota intermediates
    # + headroom for compiler scratch.  (Resident tables only make sense at
    # demo/small T; see the streaming TODO at the top for production / v7x.)
    def _lane_pad(n):
        return pl.cdiv(n, _LANE) * _LANE
    tables_bytes = T * _lane_pad(L * F) * 4
    coords_bytes = tb * _lane_pad(D) * 4
    out_bytes = tb * _lane_pad(L * F) * 4
    scratch_bytes = 4 * tb * t_chunk * 4
    vmem_limit = 2 * (tables_bytes + coords_bytes + out_bytes) + scratch_bytes + (8 << 20)

    out = pl.pallas_call(
        kernel,
        out_shape=jax.ShapeDtypeStruct((b_pad, L * F), jnp.float32),
        grid=(b_pad // tb,),
        in_specs=[
            # Coords tile for this batch step (re-used across all levels).
            pl.BlockSpec((tb, D), lambda i: (i, 0)),
            # All level tables resident in VMEM (~0.5 MiB padded at demo sizes).
            pl.BlockSpec((T, L * F), lambda i: (0, 0)),
        ],
        out_specs=pl.BlockSpec((tb, L * F), lambda i: (i, 0)),
        compiler_params=pltpu.CompilerParams(
            dimension_semantics=("parallel",),
            vmem_limit_bytes=int(vmem_limit)),
    )(coords_p, tables_packed)

    # Output is already batch-major (B_pad, L*F): just drop the padded rows.
    return out[:B]


def _reference(coords, hash_tables, resolutions):
    """Pure-JAX reference mirroring the PyTorch forward (int32 hash is exact vs
    torch's int64 hash because hash_table_size is a power of two)."""
    B, D = coords.shape
    L, T, F = hash_tables.shape
    feats = []
    for l in range(L):
        grid_c = jnp.floor(coords * float(resolutions[l])).astype(jnp.int32)
        h = jnp.zeros((B,), jnp.int32)
        for i in range(D):
            h = h ^ (grid_c[:, i] * jnp.int32(_PRIMES_I32[i]))
        idx = h & jnp.int32(T - 1)
        feats.append(hash_tables[l][idx])
    return jnp.concatenate(feats, axis=-1)


if __name__ == "__main__":
    # Small, deterministic config.
    n_levels = 4
    n_features_per_level = 4
    resolutions = (16, 32, 64, 128)
    hash_table_size = 1024          # power of two
    coords_dim = 3
    batch = 64

    key = jax.random.PRNGKey(0)
    k_coords, k_tables = jax.random.split(key)

    coords = jax.random.uniform(k_coords, (batch, coords_dim), dtype=jnp.float32)
    # nn.init.uniform_(table.weight, -1e-4, 1e-4) for each level's Embedding(T, F).
    hash_tables = jax.random.uniform(
        k_tables,
        (n_levels, hash_table_size, n_features_per_level),
        dtype=jnp.float32,
        minval=-1e-4,
        maxval=1e-4,
    )

    out = multi_resolution_hash_encoding(coords, hash_tables, resolutions)
    out = jax.block_until_ready(out)

    ref = _reference(coords, hash_tables, resolutions)
    assert out.shape == (batch, n_levels * n_features_per_level)
    # atol=1e-6 on values of magnitude <=1e-4: covers the MXU's bf16-pass
    # rounding of the f32 gather matmul (worst-case abs err ~2e-7).
    assert jnp.allclose(out, ref, atol=1e-6), "mismatch vs reference"

    print("KERNEL_OK")
</pallas_src>

<mosaic_0001>
module attributes {stable_mosaic.version = 11 : i64} {
  func.func @_hash_encoding_kernel(%arg0: i32, %arg1: memref<128x3xf32, #tpu.memory_space<vmem>>, %arg2: memref<1024x16xf32, #tpu.memory_space<vmem>>, %arg3: memref<128x16xf32, #tpu.memory_space<vmem>>) attributes {dimension_semantics = [#tpu.dimension_semantics<parallel>], iteration_bounds = array<i64: 1>, scalar_prefetch = 0 : i64, scratch_operands = 0 : i64, tpu.core_type = #tpu.core_type<tc>, window_params = [{transform_indices = @transform_0, window_bounds = array<i64: 128, 3>}, {pipeline_mode = #tpu.pipeline_mode<synchronous>, transform_indices = @transform_1, window_bounds = array<i64: 1024, 16>}, {transform_indices = @transform_2, window_bounds = array<i64: 128, 16>}]} {
    %c0 = arith.constant 0 : index
    %c0_0 = arith.constant 0 : index
    %0 = vector.load %arg1[%c0, %c0_0] : memref<128x3xf32, #tpu.memory_space<vmem>>, vector<128x3xf32>
    %1 = tpu.iota {dimensions = array<i32: 1>} : vector<128x512xi32>
    %cst = arith.constant 1.600000e+01 : f32
    %2 = vector.broadcast %cst : f32 to vector<128x3xf32>
    %3 = arith.mulf %0, %2 : vector<128x3xf32>
    %4 = math.floor %3 : vector<128x3xf32>
    %5 = arith.fptosi %4 : vector<128x3xf32> to vector<128x3xi32>
    %6 = vector.extract_strided_slice %5 {offsets = [0, 0], sizes = [128, 1], strides = [1, 1]} : vector<128x3xi32> to vector<128x1xi32>
    %c1_i32 = arith.constant 1 : i32
    %7 = vector.broadcast %c1_i32 : i32 to vector<128x1xi32>
    %8 = arith.muli %6, %7 : vector<128x1xi32>
    %9 = vector.extract_strided_slice %5 {offsets = [0, 1], sizes = [128, 1], strides = [1, 1]} : vector<128x3xi32> to vector<128x1xi32>
    %c-1640531535_i32 = arith.constant -1640531535 : i32
    %10 = vector.broadcast %c-1640531535_i32 : i32 to vector<128x1xi32>
    %11 = arith.muli %9, %10 : vector<128x1xi32>
    %12 = arith.xori %8, %11 : vector<128x1xi32>
    %13 = vector.extract_strided_slice %5 {offsets = [0, 2], sizes = [128, 1], strides = [1, 1]} : vector<128x3xi32> to vector<128x1xi32>
    %c805459861_i32 = arith.constant 805459861 : i32
    %14 = vector.broadcast %c805459861_i32 : i32 to vector<128x1xi32>
    %15 = arith.muli %13, %14 : vector<128x1xi32>
    %16 = arith.xori %12, %15 : vector<128x1xi32>
    %c1023_i32 = arith.constant 1023 : i32
    %17 = vector.broadcast %c1023_i32 : i32 to vector<128x1xi32>
    %18 = arith.andi %16, %17 : vector<128x1xi32>
    %cst_1 = arith.constant 0.000000e+00 : f32
    %19 = vector.broadcast %cst_1 : f32 to vector<128x4xf32>
    %c0_i32 = arith.constant 0 : i32
    %20 = vector.broadcast %c0_i32 : i32 to vector<128x1xi32>
    %21 = arith.subi %18, %20 : vector<128x1xi32>
    %22 = vector.broadcast %21 : vector<128x1xi32> to vector<128x512xi32>
    %23 = arith.cmpi eq, %1, %22 : vector<128x512xi32>
    %24 = arith.extui %23 : vector<128x512xi1> to vector<128x512xi32>
    %25 = arith.sitofp %24 : vector<128x512xi32> to vector<128x512xf32>
    %c0_2 = arith.constant 0 : index
    %c0_3 = arith.constant 0 : index
    %26 = vector.load %arg2[%c0_2, %c0_3] : memref<1024x16xf32, #tpu.memory_space<vmem>>, vector<512x4xf32>
    %cst_4 = arith.constant dense<0.000000e+00> : vector<128x4xf32>
    %27 = tpu.matmul %25, %26, %cst_4 {dimension_numbers = #tpu.dot_dimension_numbers<[1], [0], [0], [1], [0, 0, 1, 1], [], []>} : vector<128x512xf32>, vector<512x4xf32>, vector<128x4xf32> -> vector<128x4xf32>
    %28 = arith.addf %19, %27 : vector<128x4xf32>
    %c512_i32 = arith.constant 512 : i32
    %29 = vector.broadcast %c512_i32 : i32 to vector<128x1xi32>
    %30 = arith.subi %18, %29 : vector<128x1xi32>
    %31 = vector.broadcast %30 : vector<128x1xi32> to vector<128x512xi32>
    %32 = arith.cmpi eq, %1, %31 : vector<128x512xi32>
    %33 = arith.extui %32 : vector<128x512xi1> to vector<128x512xi32>
    %34 = arith.sitofp %33 : vector<128x512xi32> to vector<128x512xf32>
    %c512 = arith.constant 512 : index
    %c0_5 = arith.constant 0 : index
    %35 = vector.load %arg2[%c512, %c0_5] : memref<1024x16xf32, #tpu.memory_space<vmem>>, vector<512x4xf32>
    %cst_6 = arith.constant dense<0.000000e+00> : vector<128x4xf32>
    %36 = tpu.matmul %34, %35, %cst_6 {dimension_numbers = #tpu.dot_dimension_numbers<[1], [0], [0], [1], [0, 0, 1, 1], [], []>} : vector<128x512xf32>, vector<512x4xf32>, vector<128x4xf32> -> vector<128x4xf32>
    %37 = arith.addf %28, %36 : vector<128x4xf32>
    %c0_7 = arith.constant 0 : index
    %c0_8 = arith.constant 0 : index
    %38 = vector.load %arg3[%c0_7, %c0_8] : memref<128x16xf32, #tpu.memory_space<vmem>>, vector<128x4xf32>
    tpu.vector_store %arg3[%c0_7, %c0_8], %37 {strides = array<i32>} : memref<128x16xf32, #tpu.memory_space<vmem>>, vector<128x4xf32>,
    %cst_9 = arith.constant 3.200000e+01 : f32
    %39 = vector.broadcast %cst_9 : f32 to vector<128x3xf32>
    %40 = arith.mulf %0, %39 : vector<128x3xf32>
    %41 = math.floor %40 : vector<128x3xf32>
    %42 = arith.fptosi %41 : vector<128x3xf32> to vector<128x3xi32>
    %43 = vector.extract_strided_slice %42 {offsets = [0, 0], sizes = [128, 1], strides = [1, 1]} : vector<128x3xi32> to vector<128x1xi32>
    %c1_i32_10 = arith.constant 1 : i32
    %44 = vector.broadcast %c1_i32_10 : i32 to vector<128x1xi32>
    %45 = arith.muli %43, %44 : vector<128x1xi32>
    %46 = vector.extract_strided_slice %42 {offsets = [0, 1], sizes = [128, 1], strides = [1, 1]} : vector<128x3xi32> to vector<128x1xi32>
    %c-1640531535_i32_11 = arith.constant -1640531535 : i32
    %47 = vector.broadcast %c-1640531535_i32_11 : i32 to vector<128x1xi32>
    %48 = arith.muli %46, %47 : vector<128x1xi32>
    %49 = arith.xori %45, %48 : vector<128x1xi32>
    %50 = vector.extract_strided_slice %42 {offsets = [0, 2], sizes = [128, 1], strides = [1, 1]} : vector<128x3xi32> to vector<128x1xi32>
    %c805459861_i32_12 = arith.constant 805459861 : i32
    %51 = vector.broadcast %c805459861_i32_12 : i32 to vector<128x1xi32>
    %52 = arith.muli %50, %51 : vector<128x1xi32>
    %53 = arith.xori %49, %52 : vector<128x1xi32>
    %c1023_i32_13 = arith.constant 1023 : i32
    %54 = vector.broadcast %c1023_i32_13 : i32 to vector<128x1xi32>
    %55 = arith.andi %53, %54 : vector<128x1xi32>
    %cst_14 = arith.constant 0.000000e+00 : f32
    %56 = vector.broadcast %cst_14 : f32 to vector<128x4xf32>
    %c0_i32_15 = arith.constant 0 : i32
    %57 = vector.broadcast %c0_i32_15 : i32 to vector<128x1xi32>
    %58 = arith.subi %55, %57 : vector<128x1xi32>
    %59 = vector.broadcast %58 : vector<128x1xi32> to vector<128x512xi32>
    %60 = arith.cmpi eq, %1, %59 : vector<128x512xi32>
    %61 = arith.extui %60 : vector<128x512xi1> to vector<128x512xi32>
    %62 = arith.sitofp %61 : vector<128x512xi32> to vector<128x512xf32>
    %c0_16 = arith.constant 0 : index
    %c4 = arith.constant 4 : index
    %63 = vector.load %arg2[%c0_16, %c4] : memref<1024x16xf32, #tpu.memory_space<vmem>>, vector<512x4xf32>
    %cst_17 = arith.constant dense<0.000000e+00> : vector<128x4xf32>
    %64 = tpu.matmul %62, %63, %cst_17 {dimension_numbers = #tpu.dot_dimension_numbers<[1], [0], [0], [1], [0, 0, 1, 1], [], []>} : vector<128x512xf32>, vector<512x4xf32>, vector<128x4xf32> -> vector<128x4xf32>
    %65 = arith.addf %56, %64 : vector<128x4xf32>
    %c512_i32_18 = arith.constant 512 : i32
    %66 = vector.broadcast %c512_i32_18 : i32 to vector<128x1xi32>
    %67 = arith.subi %55, %66 : vector<128x1xi32>
    %68 = vector.broadcast %67 : vector<128x1xi32> to vector<128x512xi32>
    %69 = arith.cmpi eq, %1, %68 : vector<128x512xi32>
    %70 = arith.extui %69 : vector<128x512xi1> to vector<128x512xi32>
    %71 = arith.sitofp %70 : vector<128x512xi32> to vector<128x512xf32>
    %c512_19 = arith.constant 512 : index
    %c4_20 = arith.constant 4 : index
    %72 = vector.load %arg2[%c512_19, %c4_20] : memref<1024x16xf32, #tpu.memory_space<vmem>>, vector<512x4xf32>
    %cst_21 = arith.constant dense<0.000000e+00> : vector<128x4xf32>
    %73 = tpu.matmul %71, %72, %cst_21 {dimension_numbers = #tpu.dot_dimension_numbers<[1], [0], [0], [1], [0, 0, 1, 1], [], []>} : vector<128x512xf32>, vector<512x4xf32>, vector<128x4xf32> -> vector<128x4xf32>
    %74 = arith.addf %65, %73 : vector<128x4xf32>
    %c0_22 = arith.constant 0 : index
    %c4_23 = arith.constant 4 : index
    %75 = vector.load %arg3[%c0_22, %c4_23] : memref<128x16xf32, #tpu.memory_space<vmem>>, vector<128x4xf32>
    tpu.vector_store %arg3[%c0_22, %c4_23], %74 {strides = array<i32>} : memref<128x16xf32, #tpu.memory_space<vmem>>, vector<128x4xf32>,
    %cst_24 = arith.constant 6.400000e+01 : f32
    %76 = vector.broadcast %cst_24 : f32 to vector<128x3xf32>
    %77 = arith.mulf %0, %76 : vector<128x3xf32>
    %78 = math.floor %77 : vector<128x3xf32>
    %79 = arith.fptosi %78 : vector<128x3xf32> to vector<128x3xi32>
    %80 = vector.extract_strided_slice %79 {offsets = [0, 0], sizes = [128, 1], strides = [1, 1]} : vector<128x3xi32> to vector<128x1xi32>
    %c1_i32_25 = arith.constant 1 : i32
    %81 = vector.broadcast %c1_i32_25 : i32 to vector<128x1xi32>
    %82 = arith.muli %80, %81 : vector<128x1xi32>
    %83 = vector.extract_strided_slice %79 {offsets = [0, 1], sizes = [128, 1], strides = [1, 1]} : vector<128x3xi32> to vector<128x1xi32>
    %c-1640531535_i32_26 = arith.constant -1640531535 : i32
    %84 = vector.broadcast %c-1640531535_i32_26 : i32 to vector<128x1xi32>
    %85 = arith.muli %83, %84 : vector<128x1xi32>
    %86 = arith.xori %82, %85 : vector<128x1xi32>
    %87 = vector.extract_strided_slice %79 {offsets = [0, 2], sizes = [128, 1], strides = [1, 1]} : vector<128x3xi32> to vector<128x1xi32>
    %c805459861_i32_27 = arith.constant 805459861 : i32
    %88 = vector.broadcast %c805459861_i32_27 : i32 to vector<128x1xi32>
    %89 = arith.muli %87, %88 : vector<128x1xi32>
    %90 = arith.xori %86, %89 : vector<128x1xi32>
    %c1023_i32_28 = arith.constant 1023 : i32
    %91 = vector.broadcast %c1023_i32_28 : i32 to vector<128x1xi32>
    %92 = arith.andi %90, %91 : vector<128x1xi32>
    %cst_29 = arith.constant 0.000000e+00 : f32
    %93 = vector.broadcast %cst_29 : f32 to vector<128x4xf32>
    %c0_i32_30 = arith.constant 0 : i32
    %94 = vector.broadcast %c0_i32_30 : i32 to vector<128x1xi32>
    %95 = arith.subi %92, %94 : vector<128x1xi32>
    %96 = vector.broadcast %95 : vector<128x1xi32> to vector<128x512xi32>
    %97 = arith.cmpi eq, %1, %96 : vector<128x512xi32>
    %98 = arith.extui %97 : vector<128x512xi1> to vector<128x512xi32>
    %99 = arith.sitofp %98 : vector<128x512xi32> to vector<128x512xf32>
    %c0_31 = arith.constant 0 : index
    %c8 = arith.constant 8 : index
    %100 = vector.load %arg2[%c0_31, %c8] : memref<1024x16xf32, #tpu.memory_space<vmem>>, vector<512x4xf32>
    %cst_32 = arith.constant dense<0.000000e+00> : vector<128x4xf32>
    %101 = tpu.matmul %99, %100, %cst_32 {dimension_numbers = #tpu.dot_dimension_numbers<[1], [0], [0], [1], [0, 0, 1, 1], [], []>} : vector<128x512xf32>, vector<512x4xf32>, vector<128x4xf32> -> vector<128x4xf32>
    %102 = arith.addf %93, %101 : vector<128x4xf32>
    %c512_i32_33 = arith.constant 512 : i32
    %103 = vector.broadcast %c512_i32_33 : i32 to vector<128x1xi32>
    %104 = arith.subi %92, %103 : vector<128x1xi32>
    %105 = vector.broadcast %104 : vector<128x1xi32> to vector<128x512xi32>
    %106 = arith.cmpi eq, %1, %105 : vector<128x512xi32>
    %107 = arith.extui %106 : vector<128x512xi1> to vector<128x512xi32>
    %108 = arith.sitofp %107 : vector<128x512xi32> to vector<128x512xf32>
    %c512_34 = arith.constant 512 : index
    %c8_35 = arith.constant 8 : index
    %109 = vector.load %arg2[%c512_34, %c8_35] : memref<1024x16xf32, #tpu.memory_space<vmem>>, vector<512x4xf32>
    %cst_36 = arith.constant dense<0.000000e+00> : vector<128x4xf32>
    %110 = tpu.matmul %108, %109, %cst_36 {dimension_numbers = #tpu.dot_dimension_numbers<[1], [0], [0], [1], [0, 0, 1, 1], [], []>} : vector<128x512xf32>, vector<512x4xf32>, vector<128x4xf32> -> vector<128x4xf32>
    %111 = arith.addf %102, %110 : vector<128x4xf32>
    %c0_37 = arith.constant 0 : index
    %c8_38 = arith.constant 8 : index
    %112 = vector.load %arg3[%c0_37, %c8_38] : memref<128x16xf32, #tpu.memory_space<vmem>>, vector<128x4xf32>
    tpu.vector_store %arg3[%c0_37, %c8_38], %111 {strides = array<i32>} : memref<128x16xf32, #tpu.memory_space<vmem>>, vector<128x4xf32>,
    %cst_39 = arith.constant 1.280000e+02 : f32
    %113 = vector.broadcast %cst_39 : f32 to vector<128x3xf32>
    %114 = arith.mulf %0, %113 : vector<128x3xf32>
    %115 = math.floor %114 : vector<128x3xf32>
    %116 = arith.fptosi %115 : vector<128x3xf32> to vector<128x3xi32>
    %117 = vector.extract_strided_slice %116 {offsets = [0, 0], sizes = [128, 1], strides = [1, 1]} : vector<128x3xi32> to vector<128x1xi32>
    %c1_i32_40 = arith.constant 1 : i32
    %118 = vector.broadcast %c1_i32_40 : i32 to vector<128x1xi32>
    %119 = arith.muli %117, %118 : vector<128x1xi32>
    %120 = vector.extract_strided_slice %116 {offsets = [0, 1], sizes = [128, 1], strides = [1, 1]} : vector<128x3xi32> to vector<128x1xi32>
    %c-1640531535_i32_41 = arith.constant -1640531535 : i32
    %121 = vector.broadcast %c-1640531535_i32_41 : i32 to vector<128x1xi32>
    %122 = arith.muli %120, %121 : vector<128x1xi32>
    %123 = arith.xori %119, %122 : vector<128x1xi32>
    %124 = vector.extract_strided_slice %116 {offsets = [0, 2], sizes = [128, 1], strides = [1, 1]} : vector<128x3xi32> to vector<128x1xi32>
    %c805459861_i32_42 = arith.constant 805459861 : i32
    %125 = vector.broadcast %c805459861_i32_42 : i32 to vector<128x1xi32>
    %126 = arith.muli %124, %125 : vector<128x1xi32>
    %127 = arith.xori %123, %126 : vector<128x1xi32>
    %c1023_i32_43 = arith.constant 1023 : i32
    %128 = vector.broadcast %c1023_i32_43 : i32 to vector<128x1xi32>
    %129 = arith.andi %127, %128 : vector<128x1xi32>
    %cst_44 = arith.constant 0.000000e+00 : f32
    %130 = vector.broadcast %cst_44 : f32 to vector<128x4xf32>
    %c0_i32_45 = arith.constant 0 : i32
    %131 = vector.broadcast %c0_i32_45 : i32 to vector<128x1xi32>
    %132 = arith.subi %129, %131 : vector<128x1xi32>
    %133 = vector.broadcast %132 : vector<128x1xi32> to vector<128x512xi32>
    %134 = arith.cmpi eq, %1, %133 : vector<128x512xi32>
    %135 = arith.extui %134 : vector<128x512xi1> to vector<128x512xi32>
    %136 = arith.sitofp %135 : vector<128x512xi32> to vector<128x512xf32>
    %c0_46 = arith.constant 0 : index
    %c12 = arith.constant 12 : index
    %137 = vector.load %arg2[%c0_46, %c12] : memref<1024x16xf32, #tpu.memory_space<vmem>>, vector<512x4xf32>
    %cst_47 = arith.constant dense<0.000000e+00> : vector<128x4xf32>
    %138 = tpu.matmul %136, %137, %cst_47 {dimension_numbers = #tpu.dot_dimension_numbers<[1], [0], [0], [1], [0, 0, 1, 1], [], []>} : vector<128x512xf32>, vector<512x4xf32>, vector<128x4xf32> -> vector<128x4xf32>
    %139 = arith.addf %130, %138 : vector<128x4xf32>
    %c512_i32_48 = arith.constant 512 : i32
    %140 = vector.broadcast %c512_i32_48 : i32 to vector<128x1xi32>
    %141 = arith.subi %129, %140 : vector<128x1xi32>
    %142 = vector.broadcast %141 : vector<128x1xi32> to vector<128x512xi32>
    %143 = arith.cmpi eq, %1, %142 : vector<128x512xi32>
    %144 = arith.extui %143 : vector<128x512xi1> to vector<128x512xi32>
    %145 = arith.sitofp %144 : vector<128x512xi32> to vector<128x512xf32>
    %c512_49 = arith.constant 512 : index
    %c12_50 = arith.constant 12 : index
    %146 = vector.load %arg2[%c512_49, %c12_50] : memref<1024x16xf32, #tpu.memory_space<vmem>>, vector<512x4xf32>
    %cst_51 = arith.constant dense<0.000000e+00> : vector<128x4xf32>
    %147 = tpu.matmul %145, %146, %cst_51 {dimension_numbers = #tpu.dot_dimension_numbers<[1], [0], [0], [1], [0, 0, 1, 1], [], []>} : vector<128x512xf32>, vector<512x4xf32>, vector<128x4xf32> -> vector<128x4xf32>
    %148 = arith.addf %139, %147 : vector<128x4xf32>
    %c0_52 = arith.constant 0 : index
    %c12_53 = arith.constant 12 : index
    %149 = vector.load %arg3[%c0_52, %c12_53] : memref<128x16xf32, #tpu.memory_space<vmem>>, vector<128x4xf32>
    tpu.vector_store %arg3[%c0_52, %c12_53], %148 {strides = array<i32>} : memref<128x16xf32, #tpu.memory_space<vmem>>, vector<128x4xf32>,
    return
  }
  func.func @transform_0(%arg0: i32) -> (i32, i32) {
    %c0_i32 = arith.constant 0 : i32
    %c0_i32_0 = arith.constant 0 : i32
    return %arg0, %c0_i32 : i32, i32
  }
  func.func @transform_1(%arg0: i32) -> (i32, i32) {
    %c0_i32 = arith.constant 0 : i32
    %c0_i32_0 = arith.constant 0 : i32
    %c0_i32_1 = arith.constant 0 : i32
    return %c0_i32, %c0_i32_0 : i32, i32
  }
  func.func @transform_2(%arg0: i32) -> (i32, i32) {
    %c0_i32 = arith.constant 0 : i32
    %c0_i32_0 = arith.constant 0 : i32
    return %arg0, %c0_i32 : i32, i32
  }
}

</mosaic_0001>

<llo_original>
// kernel: multi_resolution_hash_encoding.1
$region0: #{multi_resolution_hash_encoding.1}
  #allocation0 [shape = 'u32[]', space=smem, size = 0x4, offset = 0x4, fixed_abs, tag = 'smem constant byte address 0x4 - core index']
  #allocation1 [shape = 'u32[144,128]{1,0:T(1,128)}', space=vmem, size = 0x12000, scoped, tag = 'internal scratch']
  %s0 = inlined_call_operand.vmem [shape: f32[128,3], index: 0, kind: input, shape index: {}]
  %s1 = inlined_call_operand.vmem [shape: f32[1024,16], index: 1, kind: input, shape index: {}]
  %s2 = inlined_call_operand.vmem [shape: f32[128,16], index: 2, kind: output, shape index: {}]
  %s3 = sld [smem:[#allocation0]]
  $region18: #{multi_resolution_hash_encoding.1} parent=0
    _
  %s5 = ssub.s32 1, %s3
  %s6 = scalar_select 0, %s5, %s3
  // Predicated region
  $region2: #{multi_resolution_hash_encoding.1} parent=0 // pred_check
    _
  $region3: #{multi_resolution_hash_encoding.1} parent=0 // pred_check_branch
    %8 = sbr.rel (0) target = $region5
  $region4: #{multi_resolution_hash_encoding.1} parent=0 // pred_region
    _
  $region5: #{multi_resolution_hash_encoding.1} parent=0 // pred_fallthru
    _
  // Predicated region
  $region6: #{multi_resolution_hash_encoding.1} parent=0 // pred_check
    _
  $region7: #{multi_resolution_hash_encoding.1} parent=0 // pred_check_branch
    %10 = sbr.rel (0) target = $region9
  $region8: #{multi_resolution_hash_encoding.1} parent=0 // pred_region
    _
  $region9: #{multi_resolution_hash_encoding.1} parent=0 // pred_fallthru
    _
  %v11 = vld [vmem:[%s0] sm:$0xff]
  %v12 = vld [vmem:[%s0 + $0x8] sm:$0xff]
  %v13 = vld [vmem:[%s0 + $0x10] sm:$0xff]
  %v14 = vld [vmem:[%s0 + $0x18] sm:$0xff]
  %v15 = vld [vmem:[%s0 + $0x20] sm:$0xff]
  %v16 = vld [vmem:[%s0 + $0x28] sm:$0xff]
  %v17 = vld [vmem:[%s0 + $0x30] sm:$0xff]
  %v18 = vld [vmem:[%s0 + $0x38] sm:$0xff]
  %v19 = vld [vmem:[%s0 + $0x40] sm:$0xff]
  %v20 = vld [vmem:[%s0 + $0x48] sm:$0xff]
  %v21 = vld [vmem:[%s0 + $0x50] sm:$0xff]
  %v22 = vld [vmem:[%s0 + $0x58] sm:$0xff]
  %v23 = vld [vmem:[%s0 + $0x60] sm:$0xff]
  %v24 = vld [vmem:[%s0 + $0x68] sm:$0xff]
  %v25 = vld [vmem:[%s0 + $0x70] sm:$0xff]
  %v26 = vld [vmem:[%s0 + $0x78] sm:$0xff]
  %v27 = vlaneseq
  %v28 = vand.u32 %v27, 127
  %v29 = vadd.s32 %v28, 128
  %v30 = vadd.s32 %v28, 256
  %v31 = vadd.s32 %v28, 384
  %v32 = vmul.f32 %v11, 16.0
  %v33 = vmul.f32 %v12, 16.0
  %v34 = vmul.f32 %v13, 16.0
  %v35 = vmul.f32 %v14, 16.0
  %v36 = vmul.f32 %v15, 16.0
  %v37 = vmul.f32 %v16, 16.0
  %v38 = vmul.f32 %v17, 16.0
  %v39 = vmul.f32 %v18, 16.0
  %v40 = vmul.f32 %v19, 16.0
  %v41 = vmul.f32 %v20, 16.0
  %v42 = vmul.f32 %v21, 16.0
  %v43 = vmul.f32 %v22, 16.0
  %v44 = vmul.f32 %v23, 16.0
  %v45 = vmul.f32 %v24, 16.0
  %v46 = vmul.f32 %v25, 16.0
  %v47 = vmul.f32 %v26, 16.0
  %v48 = vfloor.f32 %v32
  %v49 = vfloor.f32 %v33
  %v50 = vfloor.f32 %v34
  %v51 = vfloor.f32 %v35
  %v52 = vfloor.f32 %v36
  %v53 = vfloor.f32 %v37
  %v54 = vfloor.f32 %v38
  %v55 = vfloor.f32 %v39
  %v56 = vfloor.f32 %v40
  %v57 = vfloor.f32 %v41
  %v58 = vfloor.f32 %v42
  %v59 = vfloor.f32 %v43
  %v60 = vfloor.f32 %v44
  %v61 = vfloor.f32 %v45
  %v62 = vfloor.f32 %v46
  %v63 = vfloor.f32 %v47
  %v64 = vcvt.f32.s32.to.zero.pseudo %v48
  %v65 = vcvt.f32.s32.to.zero.pseudo %v49
  %v66 = vcvt.f32.s32.to.zero.pseudo %v50
  %v67 = vcvt.f32.s32.to.zero.pseudo %v51
  %v68 = vcvt.f32.s32.to.zero.pseudo %v52
  %v69 = vcvt.f32.s32.to.zero.pseudo %v53
  %v70 = vcvt.f32.s32.to.zero.pseudo %v54
  %v71 = vcvt.f32.s32.to.zero.pseudo %v55
  %v72 = vcvt.f32.s32.to.zero.pseudo %v56
  %v73 = vcvt.f32.s32.to.zero.pseudo %v57
  %v74 = vcvt.f32.s32.to.zero.pseudo %v58
  %v75 = vcvt.f32.s32.to.zero.pseudo %v59
  %v76 = vcvt.f32.s32.to.zero.pseudo %v60
  %v77 = vcvt.f32.s32.to.zero.pseudo %v61
  %v78 = vcvt.f32.s32.to.zero.pseudo %v62
  %v79 = vcvt.f32.s32.to.zero.pseudo %v63
  %v80 = vmul.u32 %v64, 2654435761
  %v81 = vmul.u32 %v65, 2654435761
  %v82 = vmul.u32 %v66, 2654435761
  %v83 = vmul.u32 %v67, 2654435761
  %v84 = vmul.u32 %v68, 2654435761
  %v85 = vmul.u32 %v69, 2654435761
  %v86 = vmul.u32 %v70, 2654435761
  %v87 = vmul.u32 %v71, 2654435761
  %v88 = vmul.u32 %v72, 2654435761
  %v89 = vmul.u32 %v73, 2654435761
  %v90 = vmul.u32 %v74, 2654435761
  %v91 = vmul.u32 %v75, 2654435761
  %v92 = vmul.u32 %v76, 2654435761
  %v93 = vmul.u32 %v77, 2654435761
  %v94 = vmul.u32 %v78, 2654435761
  %v95 = vmul.u32 %v79, 2654435761
  %96 = vrot.lane.b32.xlu0 %v80, 127
  %v97 = vpop.permute.xlu0 %96
  %98 = vrot.lane.b32.xlu0 %v81, 127
  %v99 = vpop.permute.xlu0 %98
  %100 = vrot.lane.b32.xlu0 %v82, 127
  %v101 = vpop.permute.xlu0 %100
  %102 = vrot.lane.b32.xlu0 %v83, 127
  %v103 = vpop.permute.xlu0 %102
  %104 = vrot.lane.b32.xlu0 %v84, 127
  %v105 = vpop.permute.xlu0 %104
  %106 = vrot.lane.b32.xlu0 %v85, 127
  %v107 = vpop.permute.xlu0 %106
  %108 = vrot.lane.b32.xlu0 %v86, 127
  %v109 = vpop.permute.xlu0 %108
  %110 = vrot.lane.b32.xlu0 %v87, 127
  %v111 = vpop.permute.xlu0 %110
  %112 = vrot.lane.b32.xlu0 %v88, 127
  %v113 = vpop.permute.xlu0 %112
  %114 = vrot.lane.b32.xlu0 %v89, 127
  %v115 = vpop.permute.xlu0 %114
  %116 = vrot.lane.b32.xlu0 %v90, 127
  %v117 = vpop.permute.xlu0 %116
  %118 = vrot.lane.b32.xlu0 %v91, 127
  %v119 = vpop.permute.xlu0 %118
  %120 = vrot.lane.b32.xlu0 %v92, 127
  %v121 = vpop.permute.xlu0 %120
  %122 = vrot.lane.b32.xlu0 %v93, 127
  %v123 = vpop.permute.xlu0 %122
  %124 = vrot.lane.b32.xlu0 %v94, 127
  %v125 = vpop.permute.xlu0 %124
  %126 = vrot.lane.b32.xlu0 %v95, 127
  %v127 = vpop.permute.xlu0 %126
  %v128 = vxor.u32 %v64, %v97
  %v129 = vxor.u32 %v65, %v99
  %v130 = vxor.u32 %v66, %v101
  %v131 = vxor.u32 %v67, %v103
  %v132 = vxor.u32 %v68, %v105
  %v133 = vxor.u32 %v69, %v107
  %v134 = vxor.u32 %v70, %v109
  %v135 = vxor.u32 %v71, %v111
  %v136 = vxor.u32 %v72, %v113
  %v137 = vxor.u32 %v73, %v115
  %v138 = vxor.u32 %v74, %v117
  %v139 = vxor.u32 %v75, %v119
  %v140 = vxor.u32 %v76, %v121
  %v141 = vxor.u32 %v77, %v123
  %v142 = vxor.u32 %v78, %v125
  %v143 = vxor.u32 %v79, %v127
  %v144 = vmul.u32 %v64, 805459861
  %v145 = vmul.u32 %v65, 805459861
  %v146 = vmul.u32 %v66, 805459861
  %v147 = vmul.u32 %v67, 805459861
  %v148 = vmul.u32 %v68, 805459861
  %v149 = vmul.u32 %v69, 805459861
  %v150 = vmul.u32 %v70, 805459861
  %v151 = vmul.u32 %v71, 805459861
  %v152 = vmul.u32 %v72, 805459861
  %v153 = vmul.u32 %v73, 805459861
  %v154 = vmul.u32 %v74, 805459861
  %v155 = vmul.u32 %v75, 805459861
  %v156 = vmul.u32 %v76, 805459861
  %v157 = vmul.u32 %v77, 805459861
  %v158 = vmul.u32 %v78, 805459861
  %v159 = vmul.u32 %v79, 805459861
  %160 = vrot.lane.b32.xlu0 %v144, 126
  %v161 = vpop.permute.xlu0 %160
  %162 = vrot.lane.b32.xlu0 %v145, 126
  %v163 = vpop.permute.xlu0 %162
  %164 = vrot.lane.b32.xlu0 %v146, 126
  %v165 = vpop.permute.xlu0 %164
  %166 = vrot.lane.b32.xlu0 %v147, 126
  %v167 = vpop.permute.xlu0 %166
  %168 = vrot.lane.b32.xlu0 %v148, 126
  %v169 = vpop.permute.xlu0 %168
  %170 = vrot.lane.b32.xlu0 %v149, 126
  %v171 = vpop.permute.xlu0 %170
  %172 = vrot.lane.b32.xlu0 %v150, 126
  %v173 = vpop.permute.xlu0 %172
  %174 = vrot.lane.b32.xlu0 %v151, 126
  %v175 = vpop.permute.xlu0 %174
  %176 = vrot.lane.b32.xlu0 %v152, 126
  %v177 = vpop.permute.xlu0 %176
  %178 = vrot.lane.b32.xlu0 %v153, 126
  %v179 = vpop.permute.xlu0 %178
  %180 = vrot.lane.b32.xlu0 %v154, 126
  %v181 = vpop.permute.xlu0 %180
  %182 = vrot.lane.b32.xlu0 %v155, 126
  %v183 = vpop.permute.xlu0 %182
  %184 = vrot.lane.b32.xlu0 %v156, 126
  %v185 = vpop.permute.xlu0 %184
  %186 = vrot.lane.b32.xlu0 %v157, 126
  %v187 = vpop.permute.xlu0 %186
  %188 = vrot.lane.b32.xlu0 %v158, 126
  %v189 = vpop.permute.xlu0 %188
  %190 = vrot.lane.b32.xlu0 %v159, 126
  %v191 = vpop.permute.xlu0 %190
  %v192 = vxor.u32 %v128, %v161
  %v193 = vxor.u32 %v129, %v163
  %v194 = vxor.u32 %v130, %v165
  %v195 = vxor.u32 %v131, %v167
  %v196 = vxor.u32 %v132, %v169
  %v197 = vxor.u32 %v133, %v171
  %v198 = vxor.u32 %v134, %v173
  %v199 = vxor.u32 %v135, %v175
  %v200 = vxor.u32 %v136, %v177
  %v201 = vxor.u32 %v137, %v179
  %v202 = vxor.u32 %v138, %v181
  %v203 = vxor.u32 %v139, %v183
  %v204 = vxor.u32 %v140, %v185
  %v205 = vxor.u32 %v141, %v187
  %v206 = vxor.u32 %v142, %v189
  %v207 = vxor.u32 %v143, %v191
  %v208 = vand.u32 %v192, 1023
  %v209 = vand.u32 %v193, 1023
  %v210 = vand.u32 %v194, 1023
  %v211 = vand.u32 %v195, 1023
  %v212 = vand.u32 %v196, 1023
  %v213 = vand.u32 %v197, 1023
  %v214 = vand.u32 %v198, 1023
  %v215 = vand.u32 %v199, 1023
  %v216 = vand.u32 %v200, 1023
  %v217 = vand.u32 %v201, 1023
  %v218 = vand.u32 %v202, 1023
  %v219 = vand.u32 %v203, 1023
  %v220 = vand.u32 %v204, 1023
  %v221 = vand.u32 %v205, 1023
  %v222 = vand.u32 %v206, 1023
  %v223 = vand.u32 %v207, 1023
  %224 = vset.pattern.permute.xlu0 0
  %225 = vperm.xlu0 %224, %v208
  %v226 = vpop.permute.xlu0 %225
  %227 = vset.pattern.permute.xlu0 0
  %228 = vperm.xlu0 %227, %v209
  %v229 = vpop.permute.xlu0 %228
  %230 = vset.pattern.permute.xlu0 0
  %231 = vperm.xlu0 %230, %v210
  %v232 = vpop.permute.xlu0 %231
  %233 = vset.pattern.permute.xlu0 0
  %234 = vperm.xlu0 %233, %v211
  %v235 = vpop.permute.xlu0 %234
  %236 = vset.pattern.permute.xlu0 0
  %237 = vperm.xlu0 %236, %v212
  %v238 = vpop.permute.xlu0 %237
  %239 = vset.pattern.permute.xlu0 0
  %240 = vperm.xlu0 %239, %v213
  %v241 = vpop.permute.xlu0 %240
  %242 = vset.pattern.permute.xlu0 0
  %243 = vperm.xlu0 %242, %v214
  %v244 = vpop.permute.xlu0 %243
  %245 = vset.pattern.permute.xlu0 0
  %246 = vperm.xlu0 %245, %v215
  %v247 = vpop.permute.xlu0 %246
  %248 = vset.pattern.permute.xlu0 0
  %249 = vperm.xlu0 %248, %v216
  %v250 = vpop.permute.xlu0 %249
  %251 = vset.pattern.permute.xlu0 0
  %252 = vperm.xlu0 %251, %v217
  %v253 = vpop.permute.xlu0 %252
  %254 = vset.pattern.permute.xlu0 0
  %255 = vperm.xlu0 %254, %v218
  %v256 = vpop.permute.xlu0 %255
  %257 = vset.pattern.permute.xlu0 0
  %258 = vperm.xlu0 %257, %v219
  %v259 = vpop.permute.xlu0 %258
  %260 = vset.pattern.permute.xlu0 0
  %261 = vperm.xlu0 %260, %v220
  %v262 = vpop.permute.xlu0 %261
  %263 = vset.pattern.permute.xlu0 0
  %264 = vperm.xlu0 %263, %v221
  %v265 = vpop.permute.xlu0 %264
  %266 = vset.pattern.permute.xlu0 0
  %267 = vperm.xlu0 %266, %v222
  %v268 = vpop.permute.xlu0 %267
  %269 = vset.pattern.permute.xlu0 0
  %270 = vperm.xlu0 %269, %v223
  %v271 = vpop.permute.xlu0 %270
  %vm272 = vcmp.eq.s32.totalorder %v28, %v226
  %vm273 = vcmp.eq.s32.totalorder %v29, %v226
  %vm274 = vcmp.eq.s32.totalorder %v30, %v226
  %vm275 = vcmp.eq.s32.totalorder %v31, %v226
  %vm276 = vcmp.eq.s32.totalorder %v28, %v229
  %vm277 = vcmp.eq.s32.totalorder %v29, %v229
  %vm278 = vcmp.eq.s32.totalorder %v30, %v229
  %vm279 = vcmp.eq.s32.totalorder %v31, %v229
  %vm280 = vcmp.eq.s32.totalorder %v28, %v232
  %vm281 = vcmp.eq.s32.totalorder %v29, %v232
  %vm282 = vcmp.eq.s32.totalorder %v30, %v232
  %vm283 = vcmp.eq.s32.totalorder %v31, %v232
  %vm284 = vcmp.eq.s32.totalorder %v28, %v235
  %vm285 = vcmp.eq.s32.totalorder %v29, %v235
  %vm286 = vcmp.eq.s32.totalorder %v30, %v235
  %vm287 = vcmp.eq.s32.totalorder %v31, %v235
  %vm288 = vcmp.eq.s32.totalorder %v28, %v238
  %vm289 = vcmp.eq.s32.totalorder %v29, %v238
  %vm290 = vcmp.eq.s32.totalorder %v30, %v238
  %vm291 = vcmp.eq.s32.totalorder %v31, %v238
  %vm292 = vcmp.eq.s32.totalorder %v28, %v241
  %vm293 = vcmp.eq.s32.totalorder %v29, %v241
  %vm294 = vcmp.eq.s32.totalorder %v30, %v241
  %vm295 = vcmp.eq.s32.totalorder %v31, %v241
  %vm296 = vcmp.eq.s32.totalorder %v28, %v244
  %vm297 = vcmp.eq.s32.totalorder %v29, %v244
  %vm298 = vcmp.eq.s32.totalorder %v30, %v244
  %vm299 = vcmp.eq.s32.totalorder %v31, %v244
  %vm300 = vcmp.eq.s32.totalorder %v28, %v247
  %vm301 = vcmp.eq.s32.totalorder %v29, %v247
  %vm302 = vcmp.eq.s32.totalorder %v30, %v247
  %vm303 = vcmp.eq.s32.totalorder %v31, %v247
  %vm304 = vcmp.eq.s32.totalorder %v28, %v250
  %vm305 = vcmp.eq.s32.totalorder %v29, %v250
  %vm306 = vcmp.eq.s32.totalorder %v30, %v250
  %vm307 = vcmp.eq.s32.totalorder %v31, %v250
  %vm308 = vcmp.eq.s32.totalorder %v28, %v253
  %vm309 = vcmp.eq.s32.totalorder %v29, %v253
  %vm310 = vcmp.eq.s32.totalorder %v30, %v253
  %vm311 = vcmp.eq.s32.totalorder %v31, %v253
  %vm312 = vcmp.eq.s32.totalorder %v28, %v256
  %vm313 = vcmp.eq.s32.totalorder %v29, %v256
  %vm314 = vcmp.eq.s32.totalorder %v30, %v256
  %vm315 = vcmp.eq.s32.totalorder %v31, %v256
  %vm316 = vcmp.eq.s32.totalorder %v28, %v259
  %vm317 = vcmp.eq.s32.totalorder %v29, %v259
  %vm318 = vcmp.eq.s32.totalorder %v30, %v259
  %vm319 = vcmp.eq.s32.totalorder %v31, %v259
  %vm320 = vcmp.eq.s32.totalorder %v28, %v262
  %vm321 = vcmp.eq.s32.totalorder %v29, %v262
  %vm322 = vcmp.eq.s32.totalorder %v30, %v262
  %vm323 = vcmp.eq.s32.totalorder %v31, %v262
  %vm324 = vcmp.eq.s32.totalorder %v28, %v265
  %vm325 = vcmp.eq.s32.totalorder %v29, %v265
  %vm326 = vcmp.eq.s32.totalorder %v30, %v265
  %vm327 = vcmp.eq.s32.totalorder %v31, %v265
  %vm328 = vcmp.eq.s32.totalorder %v28, %v268
  %vm329 = vcmp.eq.s32.totalorder %v29, %v268
  %vm330 = vcmp.eq.s32.totalorder %v30, %v268
  %vm331 = vcmp.eq.s32.totalorder %v31, %v268
  %vm332 = vcmp.eq.s32.totalorder %v28, %v271
  %vm333 = vcmp.eq.s32.totalorder %v29, %v271
  %vm334 = vcmp.eq.s32.totalorder %v30, %v271
  %vm335 = vcmp.eq.s32.totalorder %v31, %v271
  %v336 = vsel %vm272, 1, 0
  %v337 = vsel %vm273, 1, 0
  %v338 = vsel %vm274, 1, 0
  %v339 = vsel %vm275, 1, 0
  %v340 = vsel %vm276, 1, 0
  %v341 = vsel %vm277, 1, 0
  %v342 = vsel %vm278, 1, 0
  %v343 = vsel %vm279, 1, 0
  %v344 = vsel %vm280, 1, 0
  %v345 = vsel %vm281, 1, 0
  %v346 = vsel %vm282, 1, 0
  %v347 = vsel %vm283, 1, 0
  %v348 = vsel %vm284, 1, 0
  %v349 = vsel %vm285, 1, 0
  %v350 = vsel %vm286, 1, 0
  %v351 = vsel %vm287, 1, 0
  %v352 = vsel %vm288, 1, 0
  %v353 = vsel %vm289, 1, 0
  %v354 = vsel %vm290, 1, 0
  %v355 = vsel %vm291, 1, 0
  %v356 = vsel %vm292, 1, 0
  %v357 = vsel %vm293, 1, 0
  %v358 = vsel %vm294, 1, 0
  %v359 = vsel %vm295, 1, 0
  %v360 = vsel %vm296, 1, 0
  %v361 = vsel %vm297, 1, 0
  %v362 = vsel %vm298, 1, 0
  %v363 = vsel %vm299, 1, 0
  %v364 = vsel %vm300, 1, 0
  %v365 = vsel %vm301, 1, 0
  %v366 = vsel %vm302, 1, 0
  %v367 = vsel %vm303, 1, 0
  %v368 = vsel %vm304, 1, 0
  %v369 = vsel %vm305, 1, 0
  %v370 = vsel %vm306, 1, 0
  %v371 = vsel %vm307, 1, 0
  %v372 = vsel %vm308, 1, 0
  %v373 = vsel %vm309, 1, 0
  %v374 = vsel %vm310, 1, 0
  %v375 = vsel %vm311, 1, 0
  %v376 = vsel %vm312, 1, 0
  %v377 = vsel %vm313, 1, 0
  %v378 = vsel %vm314, 1, 0
  %v379 = vsel %vm315, 1, 0
  %v380 = vsel %vm316, 1, 0
  %v381 = vsel %vm317, 1, 0
  %v382 = vsel %vm318, 1, 0
  %v383 = vsel %vm319, 1, 0
  %v384 = vsel %vm320, 1, 0
  %v385 = vsel %vm321, 1, 0
  %v386 = vsel %vm322, 1, 0
  %v387 = vsel %vm323, 1, 0
  %v388 = vsel %vm324, 1, 0
  %v389 = vsel %vm325, 1, 0
  %v390 = vsel %vm326, 1, 0
  %v391 = vsel %vm327, 1, 0
  %v392 = vsel %vm328, 1, 0
  %v393 = vsel %vm329, 1, 0
  %v394 = vsel %vm330, 1, 0
  %v395 = vsel %vm331, 1, 0
  %v396 = vsel %vm332, 1, 0
  %v397 = vsel %vm333, 1, 0
  %v398 = vsel %vm334, 1, 0
  %v399 = vsel %vm335, 1, 0
  %v400 = vcvt.s32.f32 %v336
  %v401 = vcvt.s32.f32 %v337
  %v402 = vcvt.s32.f32 %v338
  %v403 = vcvt.s32.f32 %v339
  %v404 = vcvt.s32.f32 %v340
  %v405 = vcvt.s32.f32 %v341
  %v406 = vcvt.s32.f32 %v342
  %v407 = vcvt.s32.f32 %v343
  %v408 = vcvt.s32.f32 %v344
  %v409 = vcvt.s32.f32 %v345
  %v410 = vcvt.s32.f32 %v346
  %v411 = vcvt.s32.f32 %v347
  %v412 = vcvt.s32.f32 %v348
  %v413 = vcvt.s32.f32 %v349
  %v414 = vcvt.s32.f32 %v350
  %v415 = vcvt.s32.f32 %v351
  %v416 = vcvt.s32.f32 %v352
  %v417 = vcvt.s32.f32 %v353
  %v418 = vcvt.s32.f32 %v354
  %v419 = vcvt.s32.f32 %v355
  %v420 = vcvt.s32.f32 %v356
  %v421 = vcvt.s32.f32 %v357
  %v422 = vcvt.s32.f32 %v358
  %v423 = vcvt.s32.f32 %v359
  %v424 = vcvt.s32.f32 %v360
  %v425 = vcvt.s32.f32 %v361
  %v426 = vcvt.s32.f32 %v362
  %v427 = vcvt.s32.f32 %v363
  %v428 = vcvt.s32.f32 %v364
  %v429 = vcvt.s32.f32 %v365
  %v430 = vcvt.s32.f32 %v366
  %v431 = vcvt.s32.f32 %v367
  %v432 = vcvt.s32.f32 %v368
  %v433 = vcvt.s32.f32 %v369
  %v434 = vcvt.s32.f32 %v370
  %v435 = vcvt.s32.f32 %v371
  %v436 = vcvt.s32.f32 %v372
  %v437 = vcvt.s32.f32 %v373
  %v438 = vcvt.s32.f32 %v374
  %v439 = vcvt.s32.f32 %v375
  %v440 = vcvt.s32.f32 %v376
  %v441 = vcvt.s32.f32 %v377
  %v442 = vcvt.s32.f32 %v378
  %v443 = vcvt.s32.f32 %v379
  %v444 = vcvt.s32.f32 %v380
  %v445 = vcvt.s32.f32 %v381
  %v446 = vcvt.s32.f32 %v382
  %v447 = vcvt.s32.f32 %v383
  %v448 = vcvt.s32.f32 %v384
  %v449 = vcvt.s32.f32 %v385
  %v450 = vcvt.s32.f32 %v386
  %v451 = vcvt.s32.f32 %v387
  %v452 = vcvt.s32.f32 %v388
  %v453 = vcvt.s32.f32 %v389
  %v454 = vcvt.s32.f32 %v390
  %v455 = vcvt.s32.f32 %v391
  %v456 = vcvt.s32.f32 %v392
  %v457 = vcvt.s32.f32 %v393
  %v458 = vcvt.s32.f32 %v394
  %v459 = vcvt.s32.f32 %v395
  %v460 = vcvt.s32.f32 %v396
  %v461 = vcvt.s32.f32 %v397
  %v462 = vcvt.s32.f32 %v398
  %v463 = vcvt.s32.f32 %v399
  %v464 = vld [vmem:[%s1] sm:$0xff]
  %v465 = vld [vmem:[%s1 + $0x8] sm:$0xff]
  %v466 = vld [vmem:[%s1 + $0x10] sm:$0xff]
  %v467 = vld [vmem:[%s1 + $0x18] sm:$0xff]
  %v468 = vld [vmem:[%s1 + $0x20] sm:$0xff]
  %v469 = vld [vmem:[%s1 + $0x28] sm:$0xff]
  %v470 = vld [vmem:[%s1 + $0x30] sm:$0xff]
  %v471 = vld [vmem:[%s1 + $0x38] sm:$0xff]
  %v472 = vld [vmem:[%s1 + $0x40] sm:$0xff]
  %v473 = vld [vmem:[%s1 + $0x48] sm:$0xff]
  %v474 = vld [vmem:[%s1 + $0x50] sm:$0xff]
  %v475 = vld [vmem:[%s1 + $0x58] sm:$0xff]
  %v476 = vld [vmem:[%s1 + $0x60] sm:$0xff]
  %v477 = vld [vmem:[%s1 + $0x68] sm:$0xff]
  %v478 = vld [vmem:[%s1 + $0x70] sm:$0xff]
  %v479 = vld [vmem:[%s1 + $0x78] sm:$0xff]
  %v480 = vld [vmem:[%s1 + $0x80] sm:$0xff]
  %v481 = vld [vmem:[%s1 + $0x88] sm:$0xff]
  %v482 = vld [vmem:[%s1 + $0x90] sm:$0xff]
  %v483 = vld [vmem:[%s1 + $0x98] sm:$0xff]
  %v484 = vld [vmem:[%s1 + $0xa0] sm:$0xff]
  %v485 = vld [vmem:[%s1 + $0xa8] sm:$0xff]
  %v486 = vld [vmem:[%s1 + $0xb0] sm:$0xff]
  %v487 = vld [vmem:[%s1 + $0xb8] sm:$0xff]
  %v488 = vld [vmem:[%s1 + $0xc0] sm:$0xff]
  %v489 = vld [vmem:[%s1 + $0xc8] sm:$0xff]
  %v490 = vld [vmem:[%s1 + $0xd0] sm:$0xff]
  %v491 = vld [vmem:[%s1 + $0xd8] sm:$0xff]
  %v492 = vld [vmem:[%s1 + $0xe0] sm:$0xff]
  %v493 = vld [vmem:[%s1 + $0xe8] sm:$0xff]
  %v494 = vld [vmem:[%s1 + $0xf0] sm:$0xff]
  %v495 = vld [vmem:[%s1 + $0xf8] sm:$0xff]
  %v496 = vld [vmem:[%s1 + $0x100] sm:$0xff]
  %v497 = vld [vmem:[%s1 + $0x108] sm:$0xff]
  %v498 = vld [vmem:[%s1 + $0x110] sm:$0xff]
  %v499 = vld [vmem:[%s1 + $0x118] sm:$0xff]
  %v500 = vld [vmem:[%s1 + $0x120] sm:$0xff]
  %v501 = vld [vmem:[%s1 + $0x128] sm:$0xff]
  %v502 = vld [vmem:[%s1 + $0x130] sm:$0xff]
  %v503 = vld [vmem:[%s1 + $0x138] sm:$0xff]
  %v504 = vld [vmem:[%s1 + $0x140] sm:$0xff]
  %v505 = vld [vmem:[%s1 + $0x148] sm:$0xff]
  %v506 = vld [vmem:[%s1 + $0x150] sm:$0xff]
  %v507 = vld [vmem:[%s1 + $0x158] sm:$0xff]
  %v508 = vld [vmem:[%s1 + $0x160] sm:$0xff]
  %v509 = vld [vmem:[%s1 + $0x168] sm:$0xff]
  %v510 = vld [vmem:[%s1 + $0x170] sm:$0xff]
  %v511 = vld [vmem:[%s1 + $0x178] sm:$0xff]
  %v512 = vld [vmem:[%s1 + $0x180] sm:$0xff]
  %v513 = vld [vmem:[%s1 + $0x188] sm:$0xff]
  %v514 = vld [vmem:[%s1 + $0x190] sm:$0xff]
  %v515 = vld [vmem:[%s1 + $0x198] sm:$0xff]
  %v516 = vld [vmem:[%s1 + $0x1a0] sm:$0xff]
  %v517 = vld [vmem:[%s1 + $0x1a8] sm:$0xff]
  %v518 = vld [vmem:[%s1 + $0x1b0] sm:$0xff]
  %v519 = vld [vmem:[%s1 + $0x1b8] sm:$0xff]
  %v520 = vld [vmem:[%s1 + $0x1c0] sm:$0xff]
  %v521 = vld [vmem:[%s1 + $0x1c8] sm:$0xff]
  %v522 = vld [vmem:[%s1 + $0x1d0] sm:$0xff]
  %v523 = vld [vmem:[%s1 + $0x1d8] sm:$0xff]
  %v524 = vld [vmem:[%s1 + $0x1e0] sm:$0xff]
  %v525 = vld [vmem:[%s1 + $0x1e8] sm:$0xff]
  %v526 = vld [vmem:[%s1 + $0x1f0] sm:$0xff]
  %v527 = vld [vmem:[%s1 + $0x1f8] sm:$0xff]
  %v528 = vsub.s32 %v208, 512
  %v529 = vsub.s32 %v209, 512
  %v530 = vsub.s32 %v210, 512
  %v531 = vsub.s32 %v211, 512
  %v532 = vsub.s32 %v212, 512
  %v533 = vsub.s32 %v213, 512
  %v534 = vsub.s32 %v214, 512
  %v535 = vsub.s32 %v215, 512
  %v536 = vsub.s32 %v216, 512
  %v537 = vsub.s32 %v217, 512
  %v538 = vsub.s32 %v218, 512
  %v539 = vsub.s32 %v219, 512
  %v540 = vsub.s32 %v220, 512
  %v541 = vsub.s32 %v221, 512
  %v542 = vsub.s32 %v222, 512
  %v543 = vsub.s32 %v223, 512
  %544 = vset.pattern.permute.xlu0 0
  %545 = vperm.xlu0 %544, %v528
  %v546 = vpop.permute.xlu0 %545
  %547 = vset.pattern.permute.xlu0 0
  %548 = vperm.xlu0 %547, %v529
  %v549 = vpop.permute.xlu0 %548
  %550 = vset.pattern.permute.xlu0 0
  %551 = vperm.xlu0 %550, %v530
  %v552 = vpop.permute.xlu0 %551
  %553 = vset.pattern.permute.xlu0 0
  %554 = vperm.xlu0 %553, %v531
  %v555 = vpop.permute.xlu0 %554
  %556 = vset.pattern.permute.xlu0 0
  %557 = vperm.xlu0 %556, %v532
  %v558 = vpop.permute.xlu0 %557
  %559 = vset.pattern.permute.xlu0 0
  %560 = vperm.xlu0 %559, %v533
  %v561 = vpop.permute.xlu0 %560
  %562 = vset.pattern.permute.xlu0 0
  %563 = vperm.xlu0 %562, %v534
  %v564 = vpop.permute.xlu0 %563
  %565 = vset.pattern.permute.xlu0 0
  %566 = vperm.xlu0 %565, %v535
  %v567 = vpop.permute.xlu0 %566
  %568 = vset.pattern.permute.xlu0 0
  %569 = vperm.xlu0 %568, %v536
  %v570 = vpop.permute.xlu0 %569
  %571 = vset.pattern.permute.xlu0 0
  %572 = vperm.xlu0 %571, %v537
  %v573 = vpop.permute.xlu0 %572
  %574 = vset.pattern.permute.xlu0 0
  %575 = vperm.xlu0 %574, %v538
  %v576 = vpop.permute.xlu0 %575
  %577 = vset.pattern.permute.xlu0 0
  %578 = vperm.xlu0 %577, %v539
  %v579 = vpop.permute.xlu0 %578
  %580 = vset.pattern.permute.xlu0 0
  %581 = vperm.xlu0 %580, %v540
  %v582 = vpop.permute.xlu0 %581
  %583 = vset.pattern.permute.xlu0 0
  %584 = vperm.xlu0 %583, %v541
  %v585 = vpop.permute.xlu0 %584
  %586 = vset.pattern.permute.xlu0 0
  %587 = vperm.xlu0 %586, %v542
  %v588 = vpop.permute.xlu0 %587
  %589 = vset.pattern.permute.xlu0 0
  %590 = vperm.xlu0 %589, %v543
  %v591 = vpop.permute.xlu0 %590
  %vm592 = vcmp.eq.s32.totalorder %v28, %v546
  %vm593 = vcmp.eq.s32.totalorder %v29, %v546
  %vm594 = vcmp.eq.s32.totalorder %v30, %v546
  %vm595 = vcmp.eq.s32.totalorder %v31, %v546
  %vm596 = vcmp.eq.s32.totalorder %v28, %v549
  %vm597 = vcmp.eq.s32.totalorder %v29, %v549
  %vm598 = vcmp.eq.s32.totalorder %v30, %v549
  %vm599 = vcmp.eq.s32.totalorder %v31, %v549
  %vm600 = vcmp.eq.s32.totalorder %v28, %v552
  %vm601 = vcmp.eq.s32.totalorder %v29, %v552
  %vm602 = vcmp.eq.s32.totalorder %v30, %v552
  %vm603 = vcmp.eq.s32.totalorder %v31, %v552
  %vm604 = vcmp.eq.s32.totalorder %v28, %v555
  %vm605 = vcmp.eq.s32.totalorder %v29, %v555
  %vm606 = vcmp.eq.s32.totalorder %v30, %v555
  %vm607 = vcmp.eq.s32.totalorder %v31, %v555
  %vm608 = vcmp.eq.s32.totalorder %v28, %v558
  %vm609 = vcmp.eq.s32.totalorder %v29, %v558
  %vm610 = vcmp.eq.s32.totalorder %v30, %v558
  %vm611 = vcmp.eq.s32.totalorder %v31, %v558
  %vm612 = vcmp.eq.s32.totalorder %v28, %v561
  %vm613 = vcmp.eq.s32.totalorder %v29, %v561
  %vm614 = vcmp.eq.s32.totalorder %v30, %v561
  %vm615 = vcmp.eq.s32.totalorder %v31, %v561
  %vm616 = vcmp.eq.s32.totalorder %v28, %v564
  %vm617 = vcmp.eq.s32.totalorder %v29, %v564
  %vm618 = vcmp.eq.s32.totalorder %v30, %v564
  %vm619 = vcmp.eq.s32.totalorder %v31, %v564
  %vm620 = vcmp.eq.s32.totalorder %v28, %v567
  %vm621 = vcmp.eq.s32.totalorder %v29, %v567
  %vm622 = vcmp.eq.s32.totalorder %v30, %v567
  %vm623 = vcmp.eq.s32.totalorder %v31, %v567
  %vm624 = vcmp.eq.s32.totalorder %v28, %v570
  %vm625 = vcmp.eq.s32.totalorder %v29, %v570
  %vm626 = vcmp.eq.s32.totalorder %v30, %v570
  %vm627 = vcmp.eq.s32.totalorder %v31, %v570
  %vm628 = vcmp.eq.s32.totalorder %v28, %v573
  %vm629 = vcmp.eq.s32.totalorder %v29, %v573
  %vm630 = vcmp.eq.s32.totalorder %v30, %v573
  %vm631 = vcmp.eq.s32.totalorder %v31, %v573
  %vm632 = vcmp.eq.s32.totalorder %v28, %v576
  %vm633 = vcmp.eq.s32.totalorder %v29, %v576
  %vm634 = vcmp.eq.s32.totalorder %v30, %v576
  %vm635 = vcmp.eq.s32.totalorder %v31, %v576
  %vm636 = vcmp.eq.s32.totalorder %v28, %v579
  %vm637 = vcmp.eq.s32.totalorder %v29, %v579
  %vm638 = vcmp.eq.s32.totalorder %v30, %v579
  %vm639 = vcmp.eq.s32.totalorder %v31, %v579
  %vm640 = vcmp.eq.s32.totalorder %v28, %v582
  %vm641 = vcmp.eq.s32.totalorder %v29, %v582
  %vm642 = vcmp.eq.s32.totalorder %v30, %v582
  %vm643 = vcmp.eq.s32.totalorder %v31, %v582
  %vm644 = vcmp.eq.s32.totalorder %v28, %v585
  %vm645 = vcmp.eq.s32.totalorder %v29, %v585
  %vm646 = vcmp.eq.s32.totalorder %v30, %v585
  %vm647 = vcmp.eq.s32.totalorder %v31, %v585
  %vm648 = vcmp.eq.s32.totalorder %v28, %v588
  %vm649 = vcmp.eq.s32.totalorder %v29, %v588
  %vm650 = vcmp.eq.s32.totalorder %v30, %v588
  %vm651 = vcmp.eq.s32.totalorder %v31, %v588
  %vm652 = vcmp.eq.s32.totalorder %v28, %v591
  %vm653 = vcmp.eq.s32.totalorder %v29, %v591
  %vm654 = vcmp.eq.s32.totalorder %v30, %v591
  %vm655 = vcmp.eq.s32.totalorder %v31, %v591
  %v656 = vsel %vm592, 1, 0
  %v657 = vsel %vm593, 1, 0
  %v658 = vsel %vm594, 1, 0
  %v659 = vsel %vm595, 1, 0
  %v660 = vsel %vm596, 1, 0
  %v661 = vsel %vm597, 1, 0
  %v662 = vsel %vm598, 1, 0
  %v663 = vsel %vm599, 1, 0
  %v664 = vsel %vm600, 1, 0
  %v665 = vsel %vm601, 1, 0
  %v666 = vsel %vm602, 1, 0
  %v667 = vsel %vm603, 1, 0
  %v668 = vsel %vm604, 1, 0
  %v669 = vsel %vm605, 1, 0
  %v670 = vsel %vm606, 1, 0
  %v671 = vsel %vm607, 1, 0
  %v672 = vsel %vm608, 1, 0
  %v673 = vsel %vm609, 1, 0
  %v674 = vsel %vm610, 1, 0
  %v675 = vsel %vm611, 1, 0
  %v676 = vsel %vm612, 1, 0
  %v677 = vsel %vm613, 1, 0
  %v678 = vsel %vm614, 1, 0
  %v679 = vsel %vm615, 1, 0
  %v680 = vsel %vm616, 1, 0
  %v681 = vsel %vm617, 1, 0
  %v682 = vsel %vm618, 1, 0
  %v683 = vsel %vm619, 1, 0
  %v684 = vsel %vm620, 1, 0
  %v685 = vsel %vm621, 1, 0
  %v686 = vsel %vm622, 1, 0
  %v687 = vsel %vm623, 1, 0
  %v688 = vsel %vm624, 1, 0
  %v689 = vsel %vm625, 1, 0
  %v690 = vsel %vm626, 1, 0
  %v691 = vsel %vm627, 1, 0
  %v692 = vsel %vm628, 1, 0
  %v693 = vsel %vm629, 1, 0
  %v694 = vsel %vm630, 1, 0
  %v695 = vsel %vm631, 1, 0
  %v696 = vsel %vm632, 1, 0
  %v697 = vsel %vm633, 1, 0
  %v698 = vsel %vm634, 1, 0
  %v699 = vsel %vm635, 1, 0
  %v700 = vsel %vm636, 1, 0
  %v701 = vsel %vm637, 1, 0
  %v702 = vsel %vm638, 1, 0
  %v703 = vsel %vm639, 1, 0
  %v704 = vsel %vm640, 1, 0
  %v705 = vsel %vm641, 1, 0
  %v706 = vsel %vm642, 1, 0
  %v707 = vsel %vm643, 1, 0
  %v708 = vsel %vm644, 1, 0
  %v709 = vsel %vm645, 1, 0
  %v710 = vsel %vm646, 1, 0
  %v711 = vsel %vm647, 1, 0
  %v712 = vsel %vm648, 1, 0
  %v713 = vsel %vm649, 1, 0
  %v714 = vsel %vm650, 1, 0
  %v715 = vsel %vm651, 1, 0
  %v716 = vsel %vm652, 1, 0
  %v717 = vsel %vm653, 1, 0
  %v718 = vsel %vm654, 1, 0
  %v719 = vsel %vm655, 1, 0
  %v720 = vcvt.s32.f32 %v656
  %v721 = vcvt.s32.f32 %v657
  %v722 = vcvt.s32.f32 %v658
  %v723 = vcvt.s32.f32 %v659
  %v724 = vcvt.s32.f32 %v660
  %v725 = vcvt.s32.f32 %v661
  %v726 = vcvt.s32.f32 %v662
  %v727 = vcvt.s32.f32 %v663
  %v728 = vcvt.s32.f32 %v664
  %v729 = vcvt.s32.f32 %v665
  %v730 = vcvt.s32.f32 %v666
  %v731 = vcvt.s32.f32 %v667
  %v732 = vcvt.s32.f32 %v668
  %v733 = vcvt.s32.f32 %v669
  %v734 = vcvt.s32.f32 %v670
  %v735 = vcvt.s32.f32 %v671
  %v736 = vcvt.s32.f32 %v672
  %v737 = vcvt.s32.f32 %v673
  %v738 = vcvt.s32.f32 %v674
  %v739 = vcvt.s32.f32 %v675
  %v740 = vcvt.s32.f32 %v676
  %v741 = vcvt.s32.f32 %v677
  %v742 = vcvt.s32.f32 %v678
  %v743 = vcvt.s32.f32 %v679
  %v744 = vcvt.s32.f32 %v680
  %v745 = vcvt.s32.f32 %v681
  %v746 = vcvt.s32.f32 %v682
  %v747 = vcvt.s32.f32 %v683
  %v748 = vcvt.s32.f32 %v684
  %v749 = vcvt.s32.f32 %v685
  %v750 = vcvt.s32.f32 %v686
  %v751 = vcvt.s32.f32 %v687
  %v752 = vcvt.s32.f32 %v688
  %v753 = vcvt.s32.f32 %v689
  %v754 = vcvt.s32.f32 %v690
  %v755 = vcvt.s32.f32 %v691
  %v756 = vcvt.s32.f32 %v692
  %v757 = vcvt.s32.f32 %v693
  %v758 = vcvt.s32.f32 %v694
  %v759 = vcvt.s32.f32 %v695
  %v760 = vcvt.s32.f32 %v696
  %v761 = vcvt.s32.f32 %v697
  %v762 = vcvt.s32.f32 %v698
  %v763 = vcvt.s32.f32 %v699
  %v764 = vcvt.s32.f32 %v700
  %v765 = vcvt.s32.f32 %v701
  %v766 = vcvt.s32.f32 %v702
  %v767 = vcvt.s32.f32 %v703
  %v768 = vcvt.s32.f32 %v704
  %v769 = vcvt.s32.f32 %v705
  %v770 = vcvt.s32.f32 %v706
  %v771 = vcvt.s32.f32 %v707
  %v772 = vcvt.s32.f32 %v708
  %v773 = vcvt.s32.f32 %v709
  %v774 = vcvt.s32.f32 %v710
  %v775 = vcvt.s32.f32 %v711
  %v776 = vcvt.s32.f32 %v712
  %v777 = vcvt.s32.f32 %v713
  %v778 = vcvt.s32.f32 %v714
  %v779 = vcvt.s32.f32 %v715
  %v780 = vcvt.s32.f32 %v716
  %v781 = vcvt.s32.f32 %v717
  %v782 = vcvt.s32.f32 %v718
  %v783 = vcvt.s32.f32 %v719
  %v784 = vld [vmem:[%s1 + $0x200] sm:$0xff]
  %v785 = vld [vmem:[%s1 + $0x208] sm:$0xff]
  %v786 = vld [vmem:[%s1 + $0x210] sm:$0xff]
  %v787 = vld [vmem:[%s1 + $0x218] sm:$0xff]
  %v788 = vld [vmem:[%s1 + $0x220] sm:$0xff]
  %v789 = vld [vmem:[%s1 + $0x228] sm:$0xff]
  %v790 = vld [vmem:[%s1 + $0x230] sm:$0xff]
  %v791 = vld [vmem:[%s1 + $0x238] sm:$0xff]
  %v792 = vld [vmem:[%s1 + $0x240] sm:$0xff]
  %v793 = vld [vmem:[%s1 + $0x248] sm:$0xff]
  %v794 = vld [vmem:[%s1 + $0x250] sm:$0xff]
  %v795 = vld [vmem:[%s1 + $0x258] sm:$0xff]
  %v796 = vld [vmem:[%s1 + $0x260] sm:$0xff]
  %v797 = vld [vmem:[%s1 + $0x268] sm:$0xff]
  %v798 = vld [vmem:[%s1 + $0x270] sm:$0xff]
  %v799 = vld [vmem:[%s1 + $0x278] sm:$0xff]
  %v800 = vld [vmem:[%s1 + $0x280] sm:$0xff]
  %v801 = vld [vmem:[%s1 + $0x288] sm:$0xff]
  %v802 = vld [vmem:[%s1 + $0x290] sm:$0xff]
  %v803 = vld [vmem:[%s1 + $0x298] sm:$0xff]
  %v804 = vld [vmem:[%s1 + $0x2a0] sm:$0xff]
  %v805 = vld [vmem:[%s1 + $0x2a8] sm:$0xff]
  %v806 = vld [vmem:[%s1 + $0x2b0] sm:$0xff]
  %v807 = vld [vmem:[%s1 + $0x2b8] sm:$0xff]
  %v808 = vld [vmem:[%s1 + $0x2c0] sm:$0xff]
  %v809 = vld [vmem:[%s1 + $0x2c8] sm:$0xff]
  %v810 = vld [vmem:[%s1 + $0x2d0] sm:$0xff]
  %v811 = vld [vmem:[%s1 + $0x2d8] sm:$0xff]
  %v812 = vld [vmem:[%s1 + $0x2e0] sm:$0xff]
  %v813 = vld [vmem:[%s1 + $0x2e8] sm:$0xff]
  %v814 = vld [vmem:[%s1 + $0x2f0] sm:$0xff]
  %v815 = vld [vmem:[%s1 + $0x2f8] sm:$0xff]
  %v816 = vld [vmem:[%s1 + $0x300] sm:$0xff]
  %v817 = vld [vmem:[%s1 + $0x308] sm:$0xff]
  %v818 = vld [vmem:[%s1 + $0x310] sm:$0xff]
  %v819 = vld [vmem:[%s1 + $0x318] sm:$0xff]
  %v820 = vld [vmem:[%s1 + $0x320] sm:$0xff]
  %v821 = vld [vmem:[%s1 + $0x328] sm:$0xff]
  %v822 = vld [vmem:[%s1 + $0x330] sm:$0xff]
  %v823 = vld [vmem:[%s1 + $0x338] sm:$0xff]
  %v824 = vld [vmem:[%s1 + $0x340] sm:$0xff]
  %v825 = vld [vmem:[%s1 + $0x348] sm:$0xff]
  %v826 = vld [vmem:[%s1 + $0x350] sm:$0xff]
  %v827 = vld [vmem:[%s1 + $0x358] sm:$0xff]
  %v828 = vld [vmem:[%s1 + $0x360] sm:$0xff]
  %v829 = vld [vmem:[%s1 + $0x368] sm:$0xff]
  %v830 = vld [vmem:[%s1 + $0x370] sm:$0xff]
  %v831 = vld [vmem:[%s1 + $0x378] sm:$0xff]
  %v832 = vld [vmem:[%s1 + $0x380] sm:$0xff]
  %v833 = vld [vmem:[%s1 + $0x388] sm:$0xff]
  %v834 = vld [vmem:[%s1 + $0x390] sm:$0xff]
  %v835 = vld [vmem:[%s1 + $0x398] sm:$0xff]
  %v836 = vld [vmem:[%s1 + $0x3a0] sm:$0xff]
  %v837 = vld [vmem:[%s1 + $0x3a8] sm:$0xff]
  %v838 = vld [vmem:[%s1 + $0x3b0] sm:$0xff]
  %v839 = vld [vmem:[%s1 + $0x3b8] sm:$0xff]
  %v840 = vld [vmem:[%s1 + $0x3c0] sm:$0xff]
  %v841 = vld [vmem:[%s1 + $0x3c8] sm:$0xff]
  %v842 = vld [vmem:[%s1 + $0x3d0] sm:$0xff]
  %v843 = vld [vmem:[%s1 + $0x3d8] sm:$0xff]
  %v844 = vld [vmem:[%s1 + $0x3e0] sm:$0xff]
  %v845 = vld [vmem:[%s1 + $0x3e8] sm:$0xff]
  %v846 = vld [vmem:[%s1 + $0x3f0] sm:$0xff]
  %v847 = vld [vmem:[%s1 + $0x3f8] sm:$0xff]
  %848 = vmatprep.subr.mxu0 0.0
  %849 = vmatpush1.msra.mxu0 %v799
  %850 = vmatprep.subr.mxu0 0.0
  %851 = vmatpush1.msra.mxu0 %v798
  %852 = vmatprep.subr.mxu0 0.0
  %853 = vmatpush1.msra.mxu0 %v797
  %854 = vmatprep.subr.mxu0 0.0
  %855 = vmatpush1.msra.mxu0 %v796
  %856 = vmatprep.subr.mxu0 0.0
  %857 = vmatpush1.msra.mxu0 %v795
  %858 = vmatprep.subr.mxu0 0.0
  %859 = vmatpush1.msra.mxu0 %v794
  %860 = vmatprep.subr.mxu0 0.0
  %861 = vmatpush1.msra.mxu0 %v793
  %862 = vmatprep.subr.mxu0 0.0
  %863 = vmatpush1.msra.mxu0 %v792
  %864 = vmatprep.subr.mxu0 0.0
  %865 = vmatpush1.msra.mxu0 %v791
  %866 = vmatprep.subr.mxu0 0.0
  %867 = vmatpush1.msra.mxu0 %v790
  %868 = vmatprep.subr.mxu0 0.0
  %869 = vmatpush1.msra.mxu0 %v789
  %870 = vmatprep.subr.mxu0 0.0
  %871 = vmatpush1.msra.mxu0 %v788
  %872 = vmatprep.subr.mxu0 0.0
  %873 = vmatpush1.msra.mxu0 %v787
  %874 = vmatprep.subr.mxu0 0.0
  %875 = vmatpush1.msra.mxu0 %v786
  %876 = vmatprep.subr.mxu0 0.0
  %877 = vmatpush1.msra.mxu0 %v785
  %878 = vmatprep.subr.mxu0 0.0
  %879 = vmatpush1.msra.mxu0 %v784
  %880 = vmatprep.subr.mxu0 0.0
  %881 = vmatpush2.msra.mxu0 %v815
  %882 = vmatprep.subr.mxu0 0.0
  %883 = vmatpush2.msra.mxu0 %v814
  %884 = vmatprep.subr.mxu0 0.0
  %885 = vmatpush2.msra.mxu0 %v813
  %886 = vmatprep.subr.mxu0 0.0
  %887 = vmatpush2.msra.mxu0 %v812
  %888 = vmatprep.subr.mxu0 0.0
  %889 = vmatpush2.msra.mxu0 %v811
  %890 = vmatprep.subr.mxu0 0.0
  %891 = vmatpush2.msra.mxu0 %v810
  %892 = vmatprep.subr.mxu0 0.0
  %893 = vmatpush2.msra.mxu0 %v809
  %894 = vmatprep.subr.mxu0 0.0
  %895 = vmatpush2.msra.mxu0 %v808
  %896 = vmatprep.subr.mxu0 0.0
  %897 = vmatpush2.msra.mxu0 %v807
  %898 = vmatprep.subr.mxu0 0.0
  %899 = vmatpush2.msra.mxu0 %v806
  %900 = vmatprep.subr.mxu0 0.0
  %901 = vmatpush2.msra.mxu0 %v805
  %902 = vmatprep.subr.mxu0 0.0
  %903 = vmatpush2.msra.mxu0 %v804
  %904 = vmatprep.subr.mxu0 0.0
  %905 = vmatpush2.msra.mxu0 %v803
  %906 = vmatprep.subr.mxu0 0.0
  %907 = vmatpush2.msra.mxu0 %v802
  %908 = vmatprep.subr.mxu0 0.0
  %909 = vmatpush2.msra.mxu0 %v801
  %910 = vmatprep.subr.mxu0 0.0
  %911 = vmatpush2.msra.mxu0 %v800
  %912 = vmatprep.mubr.f32.mxu0 %v721
  %913 = vmatmul.mubr.f32.gmra.mxu0 %v720
  %v914 = vpop.f32.mrf.mxu0
  %v915 = vadd.f32 0.0, %v914
  %v916 = vpop.f32.mrf.mxu0
  %917 = vmatprep.mubr.f32.mxu0 %v725
  %918 = vmatmul.mubr.f32.gmra.mxu0 %v724
  %v919 = vpop.f32.mrf.mxu0
  %v920 = vadd.f32 0.0, %v919
  %v921 = vpop.f32.mrf.mxu0
  %922 = vmatprep.mubr.f32.mxu0 %v729
  %923 = vmatmul.mubr.f32.gmra.mxu0 %v728
  %v924 = vpop.f32.mrf.mxu0
  %v925 = vadd.f32 0.0, %v924
  %v926 = vpop.f32.mrf.mxu0
  %927 = vmatprep.mubr.f32.mxu0 %v733
  %928 = vmatmul.mubr.f32.gmra.mxu0 %v732
  %v929 = vpop.f32.mrf.mxu0
  %v930 = vadd.f32 0.0, %v929
  %v931 = vpop.f32.mrf.mxu0
  %932 = vmatprep.mubr.f32.mxu0 %v737
  %933 = vmatmul.mubr.f32.gmra.mxu0 %v736
  %v934 = vpop.f32.mrf.mxu0
  %v935 = vadd.f32 0.0, %v934
  %v936 = vpop.f32.mrf.mxu0
  %937 = vmatprep.mubr.f32.mxu0 %v741
  %938 = vmatmul.mubr.f32.gmra.mxu0 %v740
  %v939 = vpop.f32.mrf.mxu0
  %v940 = vadd.f32 0.0, %v939
  %v941 = vpop.f32.mrf.mxu0
  %942 = vmatprep.mubr.f32.mxu0 %v745
  %943 = vmatmul.mubr.f32.gmra.mxu0 %v744
  %v944 = vpop.f32.mrf.mxu0
  %v945 = vadd.f32 0.0, %v944
  %v946 = vpop.f32.mrf.mxu0
  %947 = vmatprep.mubr.f32.mxu0 %v749
  %948 = vmatmul.mubr.f32.gmra.mxu0 %v748
  %v949 = vpop.f32.mrf.mxu0
  %v950 = vadd.f32 0.0, %v949
  %v951 = vpop.f32.mrf.mxu0
  %952 = vmatprep.mubr.f32.mxu0 %v753
  %953 = vmatmul.mubr.f32.gmra.mxu0 %v752
  %v954 = vpop.f32.mrf.mxu0
  %v955 = vadd.f32 0.0, %v954
  %v956 = vpop.f32.mrf.mxu0
  %957 = vmatprep.mubr.f32.mxu0 %v757
  %958 = vmatmul.mubr.f32.gmra.mxu0 %v756
  %v959 = vpop.f32.mrf.mxu0
  %v960 = vadd.f32 0.0, %v959
  %v961 = vpop.f32.mrf.mxu0
  %962 = vmatprep.mubr.f32.mxu0 %v761
  %963 = vmatmul.mubr.f32.gmra.mxu0 %v760
  %v964 = vpop.f32.mrf.mxu0
  %v965 = vadd.f32 0.0, %v964
  %v966 = vpop.f32.mrf.mxu0
  %967 = vmatprep.mubr.f32.mxu0 %v765
  %968 = vmatmul.mubr.f32.gmra.mxu0 %v764
  %v969 = vpop.f32.mrf.mxu0
  %v970 = vadd.f32 0.0, %v969
  %v971 = vpop.f32.mrf.mxu0
  %972 = vmatprep.mubr.f32.mxu0 %v769
  %973 = vmatmul.mubr.f32.gmra.mxu0 %v768
  %v974 = vpop.f32.mrf.mxu0
  %v975 = vadd.f32 0.0, %v974
  %v976 = vpop.f32.mrf.mxu0
  %977 = vmatprep.mubr.f32.mxu0 %v773
  %978 = vmatmul.mubr.f32.gmra.mxu0 %v772
  %v979 = vpop.f32.mrf.mxu0
  %v980 = vadd.f32 0.0, %v979
  %v981 = vpop.f32.mrf.mxu0
  %982 = vmatprep.mubr.f32.mxu0 %v777
  %983 = vmatmul.mubr.f32.gmra.mxu0 %v776
  %v984 = vpop.f32.mrf.mxu0
  %v985 = vadd.f32 0.0, %v984
  %v986 = vpop.f32.mrf.mxu0
  %987 = vmatprep.mubr.f32.mxu0 %v781
  %988 = vmatmul.mubr.f32.gmra.mxu0 %v780
  %v989 = vpop.f32.mrf.mxu0
  %v990 = vadd.f32 0.0, %v989
  %v991 = vpop.f32.mrf.mxu0
  %992 = vdwg.mxu0
  %993 = vmatprep.subr.mxu0 0.0
  %994 = vmatpush1.msra.mxu0 %v831
  %995 = vmatprep.subr.mxu0 0.0
  %996 = vmatpush1.msra.mxu0 %v830
  %997 = vmatprep.subr.mxu0 0.0
  %998 = vmatpush1.msra.mxu0 %v829
  %999 = vmatprep.subr.mxu0 0.0
  %1000 = vmatpush1.msra.mxu0 %v828
  %1001 = vmatprep.subr.mxu0 0.0
  %1002 = vmatpush1.msra.mxu0 %v827
  %1003 = vmatprep.subr.mxu0 0.0
  %1004 = vmatpush1.msra.mxu0 %v826
  %1005 = vmatprep.subr.mxu0 0.0
  %1006 = vmatpush1.msra.mxu0 %v825
  %1007 = vmatprep.subr.mxu0 0.0
  %1008 = vmatpush1.msra.mxu0 %v824
  %1009 = vmatprep.subr.mxu0 0.0
  %1010 = vmatpush1.msra.mxu0 %v823
  %1011 = vmatprep.subr.mxu0 0.0
  %1012 = vmatpush1.msra.mxu0 %v822
  %1013 = vmatprep.subr.mxu0 0.0
  %1014 = vmatpush1.msra.mxu0 %v821
  %1015 = vmatprep.subr.mxu0 0.0
  %1016 = vmatpush1.msra.mxu0 %v820
  %1017 = vmatprep.subr.mxu0 0.0
  %1018 = vmatpush1.msra.mxu0 %v819
  %1019 = vmatprep.subr.mxu0 0.0
  %1020 = vmatpush1.msra.mxu0 %v818
  %1021 = vmatprep.subr.mxu0 0.0
  %1022 = vmatpush1.msra.mxu0 %v817
  %1023 = vmatprep.subr.mxu0 0.0
  %1024 = vmatpush1.msra.mxu0 %v816
  %1025 = vmatprep.subr.mxu0 0.0
  %1026 = vmatpush2.msra.mxu0 %v847
  %1027 = vmatprep.subr.mxu0 0.0
  %1028 = vmatpush2.msra.mxu0 %v846
  %1029 = vmatprep.subr.mxu0 0.0
  %1030 = vmatpush2.msra.mxu0 %v845
  %1031 = vmatprep.subr.mxu0 0.0
  %1032 = vmatpush2.msra.mxu0 %v844
  %1033 = vmatprep.subr.mxu0 0.0
  %1034 = vmatpush2.msra.mxu0 %v843
  %1035 = vmatprep.subr.mxu0 0.0
  %1036 = vmatpush2.msra.mxu0 %v842
  %1037 = vmatprep.subr.mxu0 0.0
  %1038 = vmatpush2.msra.mxu0 %v841
  %1039 = vmatprep.subr.mxu0 0.0
  %1040 = vmatpush2.msra.mxu0 %v840
  %1041 = vmatprep.subr.mxu0 0.0
  %1042 = vmatpush2.msra.mxu0 %v839
  %1043 = vmatprep.subr.mxu0 0.0
  %1044 = vmatpush2.msra.mxu0 %v838
  %1045 = vmatprep.subr.mxu0 0.0
  %1046 = vmatpush2.msra.mxu0 %v837
  %1047 = vmatprep.subr.mxu0 0.0
  %1048 = vmatpush2.msra.mxu0 %v836
  %1049 = vmatprep.subr.mxu0 0.0
  %1050 = vmatpush2.msra.mxu0 %v835
  %1051 = vmatprep.subr.mxu0 0.0
  %1052 = vmatpush2.msra.mxu0 %v834
  %1053 = vmatprep.subr.mxu0 0.0
  %1054 = vmatpush2.msra.mxu0 %v833
  %1055 = vmatprep.subr.mxu0 0.0
  %1056 = vmatpush2.msra.mxu0 %v832
  %1057 = vmatprep.mubr.f32.mxu0 %v723
  %1058 = vmatmul.mubr.f32.gmra.mxu0 %v722
  %v1059 = vpop.f32.mrf.mxu0
  %v1060 = vadd.f32 %v915, %v1059
  %v1061 = vpop.f32.mrf.mxu0
  %1062 = vmatprep.mubr.f32.mxu0 %v727
  %1063 = vmatmul.mubr.f32.gmra.mxu0 %v726
  %v1064 = vpop.f32.mrf.mxu0
  %v1065 = vadd.f32 %v920, %v1064
  %v1066 = vpop.f32.mrf.mxu0
  %1067 = vmatprep.mubr.f32.mxu0 %v731
  %1068 = vmatmul.mubr.f32.gmra.mxu0 %v730
  %v1069 = vpop.f32.mrf.mxu0
  %v1070 = vadd.f32 %v925, %v1069
  %v1071 = vpop.f32.mrf.mxu0
  %1072 = vmatprep.mubr.f32.mxu0 %v735
  %1073 = vmatmul.mubr.f32.gmra.mxu0 %v734
  %v1074 = vpop.f32.mrf.mxu0
  %v1075 = vadd.f32 %v930, %v1074
  %v1076 = vpop.f32.mrf.mxu0
  %1077 = vmatprep.mubr.f32.mxu0 %v739
  %1078 = vmatmul.mubr.f32.gmra.mxu0 %v738
  %v1079 = vpop.f32.mrf.mxu0
  %v1080 = vadd.f32 %v935, %v1079
  %v1081 = vpop.f32.mrf.mxu0
  %1082 = vmatprep.mubr.f32.mxu0 %v743
  %1083 = vmatmul.mubr.f32.gmra.mxu0 %v742
  %v1084 = vpop.f32.mrf.mxu0
  %v1085 = vadd.f32 %v940, %v1084
  %v1086 = vpop.f32.mrf.mxu0
  %1087 = vmatprep.mubr.f32.mxu0 %v747
  %1088 = vmatmul.mubr.f32.gmra.mxu0 %v746
  %v1089 = vpop.f32.mrf.mxu0
  %v1090 = vadd.f32 %v945, %v1089
  %v1091 = vpop.f32.mrf.mxu0
  %1092 = vmatprep.mubr.f32.mxu0 %v751
  %1093 = vmatmul.mubr.f32.gmra.mxu0 %v750
  %v1094 = vpop.f32.mrf.mxu0
  %v1095 = vadd.f32 %v950, %v1094
  %v1096 = vpop.f32.mrf.mxu0
  %1097 = vmatprep.mubr.f32.mxu0 %v755
  %1098 = vmatmul.mubr.f32.gmra.mxu0 %v754
  %v1099 = vpop.f32.mrf.mxu0
  %v1100 = vadd.f32 %v955, %v1099
  %v1101 = vpop.f32.mrf.mxu0
  %1102 = vmatprep.mubr.f32.mxu0 %v759
  %1103 = vmatmul.mubr.f32.gmra.mxu0 %v758
  %v1104 = vpop.f32.mrf.mxu0
  %v1105 = vadd.f32 %v960, %v1104
  %v1106 = vpop.f32.mrf.mxu0
  %1107 = vmatprep.mubr.f32.mxu0 %v763
  %1108 = vmatmul.mubr.f32.gmra.mxu0 %v762
  %v1109 = vpop.f32.mrf.mxu0
  %v1110 = vadd.f32 %v965, %v1109
  %v1111 = vpop.f32.mrf.mxu0
  %1112 = vmatprep.mubr.f32.mxu0 %v767
  %1113 = vmatmul.mubr.f32.gmra.mxu0 %v766
  %v1114 = vpop.f32.mrf.mxu0
  %v1115 = vadd.f32 %v970, %v1114
  %v1116 = vpop.f32.mrf.mxu0
  %1117 = vmatprep.mubr.f32.mxu0 %v771
  %1118 = vmatmul.mubr.f32.gmra.mxu0 %v770
  %v1119 = vpop.f32.mrf.mxu0
  %v1120 = vadd.f32 %v975, %v1119
  %v1121 = vpop.f32.mrf.mxu0
  %1122 = vmatprep.mubr.f32.mxu0 %v775
  %1123 = vmatmul.mubr.f32.gmra.mxu0 %v774
  %v1124 = vpop.f32.mrf.mxu0
  %v1125 = vadd.f32 %v980, %v1124
  %v1126 = vpop.f32.mrf.mxu0
  %1127 = vmatprep.mubr.f32.mxu0 %v779
  %1128 = vmatmul.mubr.f32.gmra.mxu0 %v778
  %v1129 = vpop.f32.mrf.mxu0
  %v1130 = vadd.f32 %v985, %v1129
  %v1131 = vpop.f32.mrf.mxu0
  %1132 = vmatprep.mubr.f32.mxu0 %v783
  %1133 = vmatmul.mubr.f32.gmra.mxu0 %v782
  %v1134 = vpop.f32.mrf.mxu0
  %v1135 = vadd.f32 %v990, %v1134
  %v1136 = vpop.f32.mrf.mxu0
  %1137 = vdwg.mxu0
  %1138 = vmatprep.subr.mxu0 0.0
  %1139 = vmatpush1.msra.mxu0 %v479
  %1140 = vmatprep.subr.mxu0 0.0
  %1141 = vmatpush1.msra.mxu0 %v478
  %1142 = vmatprep.subr.mxu0 0.0
  %1143 = vmatpush1.msra.mxu0 %v477
  %1144 = vmatprep.subr.mxu0 0.0
  %1145 = vmatpush1.msra.mxu0 %v476
  %1146 = vmatprep.subr.mxu0 0.0
  %1147 = vmatpush1.msra.mxu0 %v475
  %1148 = vmatprep.subr.mxu0 0.0
  %1149 = vmatpush1.msra.mxu0 %v474
  %1150 = vmatprep.subr.mxu0 0.0
  %1151 = vmatpush1.msra.mxu0 %v473
  %1152 = vmatprep.subr.mxu0 0.0
  %1153 = vmatpush1.msra.mxu0 %v472
  %1154 = vmatprep.subr.mxu0 0.0
  %1155 = vmatpush1.msra.mxu0 %v471
  %1156 = vmatprep.subr.mxu0 0.0
  %1157 = vmatpush1.msra.mxu0 %v470
  %1158 = vmatprep.subr.mxu0 0.0
  %1159 = vmatpush1.msra.mxu0 %v469
  %1160 = vmatprep.subr.mxu0 0.0
  %1161 = vmatpush1.msra.mxu0 %v468
  %1162 = vmatprep.subr.mxu0 0.0
  %1163 = vmatpush1.msra.mxu0 %v467
  %1164 = vmatprep.subr.mxu0 0.0
  %1165 = vmatpush1.msra.mxu0 %v466
  %1166 = vmatprep.subr.mxu0 0.0
  %1167 = vmatpush1.msra.mxu0 %v465
  %1168 = vmatprep.subr.mxu0 0.0
  %1169 = vmatpush1.msra.mxu0 %v464
  %1170 = vmatprep.subr.mxu0 0.0
  %1171 = vmatpush2.msra.mxu0 %v495
  %1172 = vmatprep.subr.mxu0 0.0
  %1173 = vmatpush2.msra.mxu0 %v494
  %1174 = vmatprep.subr.mxu0 0.0
  %1175 = vmatpush2.msra.mxu0 %v493
  %1176 = vmatprep.subr.mxu0 0.0
  %1177 = vmatpush2.msra.mxu0 %v492
  %1178 = vmatprep.subr.mxu0 0.0
  %1179 = vmatpush2.msra.mxu0 %v491
  %1180 = vmatprep.subr.mxu0 0.0
  %1181 = vmatpush2.msra.mxu0 %v490
  %1182 = vmatprep.subr.mxu0 0.0
  %1183 = vmatpush2.msra.mxu0 %v489
  %1184 = vmatprep.subr.mxu0 0.0
  %1185 = vmatpush2.msra.mxu0 %v488
  %1186 = vmatprep.subr.mxu0 0.0
  %1187 = vmatpush2.msra.mxu0 %v487
  %1188 = vmatprep.subr.mxu0 0.0
  %1189 = vmatpush2.msra.mxu0 %v486
  %1190 = vmatprep.subr.mxu0 0.0
  %1191 = vmatpush2.msra.mxu0 %v485
  %1192 = vmatprep.subr.mxu0 0.0
  %1193 = vmatpush2.msra.mxu0 %v484
  %1194 = vmatprep.subr.mxu0 0.0
  %1195 = vmatpush2.msra.mxu0 %v483
  %1196 = vmatprep.subr.mxu0 0.0
  %1197 = vmatpush2.msra.mxu0 %v482
  %1198 = vmatprep.subr.mxu0 0.0
  %1199 = vmatpush2.msra.mxu0 %v481
  %1200 = vmatprep.subr.mxu0 0.0
  %1201 = vmatpush2.msra.mxu0 %v480
  %1202 = vmatprep.mubr.f32.mxu0 %v401
  %1203 = vmatmul.mubr.f32.gmra.mxu0 %v400
  %v1204 = vpop.f32.mrf.mxu0
  %v1205 = vadd.f32 %v1060, %v1204
  %v1206 = vpop.f32.mrf.mxu0
  %1207 = vmatprep.mubr.f32.mxu0 %v405
  %1208 = vmatmul.mubr.f32.gmra.mxu0 %v404
  %v1209 = vpop.f32.mrf.mxu0
  %v1210 = vadd.f32 %v1065, %v1209
  %v1211 = vpop.f32.mrf.mxu0
  %1212 = vmatprep.mubr.f32.mxu0 %v409
  %1213 = vmatmul.mubr.f32.gmra.mxu0 %v408
  %v1214 = vpop.f32.mrf.mxu0
  %v1215 = vadd.f32 %v1070, %v1214
  %v1216 = vpop.f32.mrf.mxu0
  %1217 = vmatprep.mubr.f32.mxu0 %v413
  %1218 = vmatmul.mubr.f32.gmra.mxu0 %v412
  %v1219 = vpop.f32.mrf.mxu0
  %v1220 = vadd.f32 %v1075, %v1219
  %v1221 = vpop.f32.mrf.mxu0
  %1222 = vmatprep.mubr.f32.mxu0 %v417
  %1223 = vmatmul.mubr.f32.gmra.mxu0 %v416
  %v1224 = vpop.f32.mrf.mxu0
  %v1225 = vadd.f32 %v1080, %v1224
  %v1226 = vpop.f32.mrf.mxu0
  %1227 = vmatprep.mubr.f32.mxu0 %v421
  %1228 = vmatmul.mubr.f32.gmra.mxu0 %v420
  %v1229 = vpop.f32.mrf.mxu0
  %v1230 = vadd.f32 %v1085, %v1229
  %v1231 = vpop.f32.mrf.mxu0
  %1232 = vmatprep.mubr.f32.mxu0 %v425
  %1233 = vmatmul.mubr.f32.gmra.mxu0 %v424
  %v1234 = vpop.f32.mrf.mxu0
  %v1235 = vadd.f32 %v1090, %v1234
  %v1236 = vpop.f32.mrf.mxu0
  %1237 = vmatprep.mubr.f32.mxu0 %v429
  %1238 = vmatmul.mubr.f32.gmra.mxu0 %v428
  %v1239 = vpop.f32.mrf.mxu0
  %v1240 = vadd.f32 %v1095, %v1239
  %v1241 = vpop.f32.mrf.mxu0
  %1242 = vmatprep.mubr.f32.mxu0 %v433
  %1243 = vmatmul.mubr.f32.gmra.mxu0 %v432
  %v1244 = vpop.f32.mrf.mxu0
  %v1245 = vadd.f32 %v1100, %v1244
  %v1246 = vpop.f32.mrf.mxu0
  %1247 = vmatprep.mubr.f32.mxu0 %v437
  %1248 = vmatmul.mubr.f32.gmra.mxu0 %v436
  %v1249 = vpop.f32.mrf.mxu0
  %v1250 = vadd.f32 %v1105, %v1249
  %v1251 = vpop.f32.mrf.mxu0
  %1252 = vmatprep.mubr.f32.mxu0 %v441
  %1253 = vmatmul.mubr.f32.gmra.mxu0 %v440
  %v1254 = vpop.f32.mrf.mxu0
  %v1255 = vadd.f32 %v1110, %v1254
  %v1256 = vpop.f32.mrf.mxu0
  %1257 = vmatprep.mubr.f32.mxu0 %v445
  %1258 = vmatmul.mubr.f32.gmra.mxu0 %v444
  %v1259 = vpop.f32.mrf.mxu0
  %v1260 = vadd.f32 %v1115, %v1259
  %v1261 = vpop.f32.mrf.mxu0
  %1262 = vmatprep.mubr.f32.mxu0 %v449
  %1263 = vmatmul.mubr.f32.gmra.mxu0 %v448
  %v1264 = vpop.f32.mrf.mxu0
  %v1265 = vadd.f32 %v1120, %v1264
  %v1266 = vpop.f32.mrf.mxu0
  %1267 = vmatprep.mubr.f32.mxu0 %v453
  %1268 = vmatmul.mubr.f32.gmra.mxu0 %v452
  %v1269 = vpop.f32.mrf.mxu0
  %v1270 = vadd.f32 %v1125, %v1269
  %v1271 = vpop.f32.mrf.mxu0
  %1272 = vmatprep.mubr.f32.mxu0 %v457
  %1273 = vmatmul.mubr.f32.gmra.mxu0 %v456
  %v1274 = vpop.f32.mrf.mxu0
  %v1275 = vadd.f32 %v1130, %v1274
  %v1276 = vpop.f32.mrf.mxu0
  %1277 = vmatprep.mubr.f32.mxu0 %v461
  %1278 = vmatmul.mubr.f32.gmra.mxu0 %v460
  %v1279 = vpop.f32.mrf.mxu0
  %v1280 = vadd.f32 %v1135, %v1279
  %v1281 = vpop.f32.mrf.mxu0
  %1282 = vdwg.mxu0
  %1283 = vmatprep.subr.mxu0 0.0
  %1284 = vmatpush1.msra.mxu0 %v511
  %1285 = vmatprep.subr.mxu0 0.0
  %1286 = vmatpush1.msra.mxu0 %v510
  %1287 = vmatprep.subr.mxu0 0.0
  %1288 = vmatpush1.msra.mxu0 %v509
  %1289 = vmatprep.subr.mxu0 0.0
  %1290 = vmatpush1.msra.mxu0 %v508
  %1291 = vmatprep.subr.mxu0 0.0
  %1292 = vmatpush1.msra.mxu0 %v507
  %1293 = vmatprep.subr.mxu0 0.0
  %1294 = vmatpush1.msra.mxu0 %v506
  %1295 = vmatprep.subr.mxu0 0.0
  %1296 = vmatpush1.msra.mxu0 %v505
  %1297 = vmatprep.subr.mxu0 0.0
  %1298 = vmatpush1.msra.mxu0 %v504
  %1299 = vmatprep.subr.mxu0 0.0
  %1300 = vmatpush1.msra.mxu0 %v503
  %1301 = vmatprep.subr.mxu0 0.0
  %1302 = vmatpush1.msra.mxu0 %v502
  %1303 = vmatprep.subr.mxu0 0.0
  %1304 = vmatpush1.msra.mxu0 %v501
  %1305 = vmatprep.subr.mxu0 0.0
  %1306 = vmatpush1.msra.mxu0 %v500
  %1307 = vmatprep.subr.mxu0 0.0
  %1308 = vmatpush1.msra.mxu0 %v499
  %1309 = vmatprep.subr.mxu0 0.0
  %1310 = vmatpush1.msra.mxu0 %v498
  %1311 = vmatprep.subr.mxu0 0.0
  %1312 = vmatpush1.msra.mxu0 %v497
  %1313 = vmatprep.subr.mxu0 0.0
  %1314 = vmatpush1.msra.mxu0 %v496
  %1315 = vmatprep.subr.mxu0 0.0
  %1316 = vmatpush2.msra.mxu0 %v527
  %1317 = vmatprep.subr.mxu0 0.0
  %1318 = vmatpush2.msra.mxu0 %v526
  %1319 = vmatprep.subr.mxu0 0.0
  %1320 = vmatpush2.msra.mxu0 %v525
  %1321 = vmatprep.subr.mxu0 0.0
  %1322 = vmatpush2.msra.mxu0 %v524
  %1323 = vmatprep.subr.mxu0 0.0
  %1324 = vmatpush2.msra.mxu0 %v523
  %1325 = vmatprep.subr.mxu0 0.0
  %1326 = vmatpush2.msra.mxu0 %v522
  %1327 = vmatprep.subr.mxu0 0.0
  %1328 = vmatpush2.msra.mxu0 %v521
  %1329 = vmatprep.subr.mxu0 0.0
  %1330 = vmatpush2.msra.mxu0 %v520
  %1331 = vmatprep.subr.mxu0 0.0
  %1332 = vmatpush2.msra.mxu0 %v519
  %1333 = vmatprep.subr.mxu0 0.0
  %1334 = vmatpush2.msra.mxu0 %v518
  %1335 = vmatprep.subr.mxu0 0.0
  %1336 = vmatpush2.msra.mxu0 %v517
  %1337 = vmatprep.subr.mxu0 0.0
  %1338 = vmatpush2.msra.mxu0 %v516
  %1339 = vmatprep.subr.mxu0 0.0
  %1340 = vmatpush2.msra.mxu0 %v515
  %1341 = vmatprep.subr.mxu0 0.0
  %1342 = vmatpush2.msra.mxu0 %v514
  %1343 = vmatprep.subr.mxu0 0.0
  %1344 = vmatpush2.msra.mxu0 %v513
  %1345 = vmatprep.subr.mxu0 0.0
  %1346 = vmatpush2.msra.mxu0 %v512
  %1347 = vmatprep.mubr.f32.mxu0 %v403
  %1348 = vmatmul.mubr.f32.gmra.mxu0 %v402
  %v1349 = vpop.f32.mrf.mxu0
  %v1350 = vadd.f32 %v1205, %v1349
  %v1351 = vpop.f32.mrf.mxu0
  %1352 = vmatprep.mubr.f32.mxu0 %v407
  %1353 = vmatmul.mubr.f32.gmra.mxu0 %v406
  %v1354 = vpop.f32.mrf.mxu0
  %v1355 = vadd.f32 %v1210, %v1354
  %v1356 = vpop.f32.mrf.mxu0
  %1357 = vmatprep.mubr.f32.mxu0 %v411
  %1358 = vmatmul.mubr.f32.gmra.mxu0 %v410
  %v1359 = vpop.f32.mrf.mxu0
  %v1360 = vadd.f32 %v1215, %v1359
  %v1361 = vpop.f32.mrf.mxu0
  %1362 = vmatprep.mubr.f32.mxu0 %v415
  %1363 = vmatmul.mubr.f32.gmra.mxu0 %v414
  %v1364 = vpop.f32.mrf.mxu0
  %v1365 = vadd.f32 %v1220, %v1364
  %v1366 = vpop.f32.mrf.mxu0
  %1367 = vmatprep.mubr.f32.mxu0 %v419
  %1368 = vmatmul.mubr.f32.gmra.mxu0 %v418
  %v1369 = vpop.f32.mrf.mxu0
  %v1370 = vadd.f32 %v1225, %v1369
  %v1371 = vpop.f32.mrf.mxu0
  %1372 = vmatprep.mubr.f32.mxu0 %v423
  %1373 = vmatmul.mubr.f32.gmra.mxu0 %v422
  %v1374 = vpop.f32.mrf.mxu0
  %v1375 = vadd.f32 %v1230, %v1374
  %v1376 = vpop.f32.mrf.mxu0
  %1377 = vmatprep.mubr.f32.mxu0 %v427
  %1378 = vmatmul.mubr.f32.gmra.mxu0 %v426
  %v1379 = vpop.f32.mrf.mxu0
  %v1380 = vadd.f32 %v1235, %v1379
  %v1381 = vpop.f32.mrf.mxu0
  %1382 = vmatprep.mubr.f32.mxu0 %v431
  %1383 = vmatmul.mubr.f32.gmra.mxu0 %v430
  %v1384 = vpop.f32.mrf.mxu0
  %v1385 = vadd.f32 %v1240, %v1384
  %v1386 = vpop.f32.mrf.mxu0
  %1387 = vmatprep.mubr.f32.mxu0 %v435
  %1388 = vmatmul.mubr.f32.gmra.mxu0 %v434
  %v1389 = vpop.f32.mrf.mxu0
  %v1390 = vadd.f32 %v1245, %v1389
  %v1391 = vpop.f32.mrf.mxu0
  %1392 = vmatprep.mubr.f32.mxu0 %v439
  %1393 = vmatmul.mubr.f32.gmra.mxu0 %v438
  %v1394 = vpop.f32.mrf.mxu0
  %v1395 = vadd.f32 %v1250, %v1394
  %v1396 = vpop.f32.mrf.mxu0
  %1397 = vmatprep.mubr.f32.mxu0 %v443
  %1398 = vmatmul.mubr.f32.gmra.mxu0 %v442
  %v1399 = vpop.f32.mrf.mxu0
  %v1400 = vadd.f32 %v1255, %v1399
  %v1401 = vpop.f32.mrf.mxu0
  %1402 = vmatprep.mubr.f32.mxu0 %v447
  %1403 = vmatmul.mubr.f32.gmra.mxu0 %v446
  %v1404 = vpop.f32.mrf.mxu0
  %v1405 = vadd.f32 %v1260, %v1404
  %v1406 = vpop.f32.mrf.mxu0
  %1407 = vmatprep.mubr.f32.mxu0 %v451
  %1408 = vmatmul.mubr.f32.gmra.mxu0 %v450
  %v1409 = vpop.f32.mrf.mxu0
  %v1410 = vadd.f32 %v1265, %v1409
  %v1411 = vpop.f32.mrf.mxu0
  %1412 = vmatprep.mubr.f32.mxu0 %v455
  %1413 = vmatmul.mubr.f32.gmra.mxu0 %v454
  %v1414 = vpop.f32.mrf.mxu0
  %v1415 = vadd.f32 %v1270, %v1414
  %v1416 = vpop.f32.mrf.mxu0
  %1417 = vmatprep.mubr.f32.mxu0 %v459
  %1418 = vmatmul.mubr.f32.gmra.mxu0 %v458
  %v1419 = vpop.f32.mrf.mxu0
  %v1420 = vadd.f32 %v1275, %v1419
  %v1421 = vpop.f32.mrf.mxu0
  %1422 = vmatprep.mubr.f32.mxu0 %v463
  %1423 = vmatmul.mubr.f32.gmra.mxu0 %v462
  %v1424 = vpop.f32.mrf.mxu0
  %v1425 = vadd.f32 %v1280, %v1424
  %v1426 = vpop.f32.mrf.mxu0
  %1427 = vdwg.mxu0
  %vm1428 = vcmask 31744
  %1429 = vst.msk [vmem:[%s2] sm:$0xff] %vm1428, %v1350
  %1430 = vst.msk [vmem:[%s2 + $0x8] sm:$0xff] %vm1428, %v1355
  %1431 = vst.msk [vmem:[%s2 + $0x10] sm:$0xff] %vm1428, %v1360
  %1432 = vst.msk [vmem:[%s2 + $0x18] sm:$0xff] %vm1428, %v1365
  %1433 = vst.msk [vmem:[%s2 + $0x20] sm:$0xff] %vm1428, %v1370
  %1434 = vst.msk [vmem:[%s2 + $0x28] sm:$0xff] %vm1428, %v1375
  %1435 = vst.msk [vmem:[%s2 + $0x30] sm:$0xff] %vm1428, %v1380
  %1436 = vst.msk [vmem:[%s2 + $0x38] sm:$0xff] %vm1428, %v1385
  %1437 = vst.msk [vmem:[%s2 + $0x40] sm:$0xff] %vm1428, %v1390
  %1438 = vst.msk [vmem:[%s2 + $0x48] sm:$0xff] %vm1428, %v1395
  %1439 = vst.msk [vmem:[%s2 + $0x50] sm:$0xff] %vm1428, %v1400
  %1440 = vst.msk [vmem:[%s2 + $0x58] sm:$0xff] %vm1428, %v1405
  %1441 = vst.msk [vmem:[%s2 + $0x60] sm:$0xff] %vm1428, %v1410
  %1442 = vst.msk [vmem:[%s2 + $0x68] sm:$0xff] %vm1428, %v1415
  %1443 = vst.msk [vmem:[%s2 + $0x70] sm:$0xff] %vm1428, %v1420
  %1444 = vst.msk [vmem:[%s2 + $0x78] sm:$0xff] %vm1428, %v1425
  %v1445 = vmul.f32 %v11, 32.0
  %v1446 = vmul.f32 %v12, 32.0
  %v1447 = vmul.f32 %v13, 32.0
  %v1448 = vmul.f32 %v14, 32.0
  %v1449 = vmul.f32 %v15, 32.0
  %v1450 = vmul.f32 %v16, 32.0
  %v1451 = vmul.f32 %v17, 32.0
  %v1452 = vmul.f32 %v18, 32.0
  %v1453 = vmul.f32 %v19, 32.0
  %v1454 = vmul.f32 %v20, 32.0
  %v1455 = vmul.f32 %v21, 32.0
  %v1456 = vmul.f32 %v22, 32.0
  %v1457 = vmul.f32 %v23, 32.0
  %v1458 = vmul.f32 %v24, 32.0
  %v1459 = vmul.f32 %v25, 32.0
  %v1460 = vmul.f32 %v26, 32.0
  %v1461 = vfloor.f32 %v1445
  %v1462 = vfloor.f32 %v1446
  %v1463 = vfloor.f32 %v1447
  %v1464 = vfloor.f32 %v1448
  %v1465 = vfloor.f32 %v1449
  %v1466 = vfloor.f32 %v1450
  %v1467 = vfloor.f32 %v1451
  %v1468 = vfloor.f32 %v1452
  %v1469 = vfloor.f32 %v1453
  %v1470 = vfloor.f32 %v1454
  %v1471 = vfloor.f32 %v1455
  %v1472 = vfloor.f32 %v1456
  %v1473 = vfloor.f32 %v1457
  %v1474 = vfloor.f32 %v1458
  %v1475 = vfloor.f32 %v1459
  %v1476 = vfloor.f32 %v1460
  %v1477 = vcvt.f32.s32.to.zero.pseudo %v1461
  %v1478 = vcvt.f32.s32.to.zero.pseudo %v1462
  %v1479 = vcvt.f32.s32.to.zero.pseudo %v1463
  %v1480 = vcvt.f32.s32.to.zero.pseudo %v1464
  %v1481 = vcvt.f32.s32.to.zero.pseudo %v1465
  %v1482 = vcvt.f32.s32.to.zero.pseudo %v1466
  %v1483 = vcvt.f32.s32.to.zero.pseudo %v1467
  %v1484 = vcvt.f32.s32.to.zero.pseudo %v1468
  %v1485 = vcvt.f32.s32.to.zero.pseudo %v1469
  %v1486 = vcvt.f32.s32.to.zero.pseudo %v1470
  %v1487 = vcvt.f32.s32.to.zero.pseudo %v1471
  %v1488 = vcvt.f32.s32.to.zero.pseudo %v1472
  %v1489 = vcvt.f32.s32.to.zero.pseudo %v1473
  %v1490 = vcvt.f32.s32.to.zero.pseudo %v1474
  %v1491 = vcvt.f32.s32.to.zero.pseudo %v1475
  %v1492 = vcvt.f32.s32.to.zero.pseudo %v1476
  %v1493 = vmul.u32 %v1477, 2654435761
  %v1494 = vmul.u32 %v1478, 2654435761
  %v1495 = vmul.u32 %v1479, 2654435761
  %v1496 = vmul.u32 %v1480, 2654435761
  %v1497 = vmul.u32 %v1481, 2654435761
  %v1498 = vmul.u32 %v1482, 2654435761
  %v1499 = vmul.u32 %v1483, 2654435761
  %v1500 = vmul.u32 %v1484, 2654435761
  %v1501 = vmul.u32 %v1485, 2654435761
  %v1502 = vmul.u32 %v1486, 2654435761
  %v1503 = vmul.u32 %v1487, 2654435761
  %v1504 = vmul.u32 %v1488, 2654435761
  %v1505 = vmul.u32 %v1489, 2654435761
  %v1506 = vmul.u32 %v1490, 2654435761
  %v1507 = vmul.u32 %v1491, 2654435761
  %v1508 = vmul.u32 %v1492, 2654435761
  %1509 = vrot.lane.b32.xlu0 %v1493, 127
  %v1510 = vpop.permute.xlu0 %1509
  %1511 = vrot.lane.b32.xlu0 %v1494, 127
  %v1512 = vpop.permute.xlu0 %1511
  %1513 = vrot.lane.b32.xlu0 %v1495, 127
  %v1514 = vpop.permute.xlu0 %1513
  %1515 = vrot.lane.b32.xlu0 %v1496, 127
  %v1516 = vpop.permute.xlu0 %1515
  %1517 = vrot.lane.b32.xlu0 %v1497, 127
  %v1518 = vpop.permute.xlu0 %1517
  %1519 = vrot.lane.b32.xlu0 %v1498, 127
  %v1520 = vpop.permute.xlu0 %1519
  %1521 = vrot.lane.b32.xlu0 %v1499, 127
  %v1522 = vpop.permute.xlu0 %1521
  %1523 = vrot.lane.b32.xlu0 %v1500, 127
  %v1524 = vpop.permute.xlu0 %1523
  %1525 = vrot.lane.b32.xlu0 %v1501, 127
  %v1526 = vpop.permute.xlu0 %1525
  %1527 = vrot.lane.b32.xlu0 %v1502, 127
  %v1528 = vpop.permute.xlu0 %1527
  %1529 = vrot.lane.b32.xlu0 %v1503, 127
  %v1530 = vpop.permute.xlu0 %1529
  %1531 = vrot.lane.b32.xlu0 %v1504, 127
  %v1532 = vpop.permute.xlu0 %1531
  %1533 = vrot.lane.b32.xlu0 %v1505, 127
  %v1534 = vpop.permute.xlu0 %1533
  %1535 = vrot.lane.b32.xlu0 %v1506, 127
  %v1536 = vpop.permute.xlu0 %1535
  %1537 = vrot.lane.b32.xlu0 %v1507, 127
  %v1538 = vpop.permute.xlu0 %1537
  %1539 = vrot.lane.b32.xlu0 %v1508, 127
  %v1540 = vpop.permute.xlu0 %1539
  %v1541 = vxor.u32 %v1477, %v1510
  %v1542 = vxor.u32 %v1478, %v1512
  %v1543 = vxor.u32 %v1479, %v1514
  %v1544 = vxor.u32 %v1480, %v1516
  %v1545 = vxor.u32 %v1481, %v1518
  %v1546 = vxor.u32 %v1482, %v1520
  %v1547 = vxor.u32 %v1483, %v1522
  %v1548 = vxor.u32 %v1484, %v1524
  %v1549 = vxor.u32 %v1485, %v1526
  %v1550 = vxor.u32 %v1486, %v1528
  %v1551 = vxor.u32 %v1487, %v1530
  %v1552 = vxor.u32 %v1488, %v1532
  %v1553 = vxor.u32 %v1489, %v1534
  %v1554 = vxor.u32 %v1490, %v1536
  %v1555 = vxor.u32 %v1491, %v1538
  %v1556 = vxor.u32 %v1492, %v1540
  %v1557 = vmul.u32 %v1477, 805459861
  %v1558 = vmul.u32 %v1478, 805459861
  %v1559 = vmul.u32 %v1479, 805459861
  %v1560 = vmul.u32 %v1480, 805459861
  %v1561 = vmul.u32 %v1481, 805459861
  %v1562 = vmul.u32 %v1482, 805459861
  %v1563 = vmul.u32 %v1483, 805459861
  %v1564 = vmul.u32 %v1484, 805459861
  %v1565 = vmul.u32 %v1485, 805459861
  %v1566 = vmul.u32 %v1486, 805459861
  %v1567 = vmul.u32 %v1487, 805459861
  %v1568 = vmul.u32 %v1488, 805459861
  %v1569 = vmul.u32 %v1489, 805459861
  %v1570 = vmul.u32 %v1490, 805459861
  %v1571 = vmul.u32 %v1491, 805459861
  %v1572 = vmul.u32 %v1492, 805459861
  %1573 = vrot.lane.b32.xlu0 %v1557, 126
  %v1574 = vpop.permute.xlu0 %1573
  %1575 = vrot.lane.b32.xlu0 %v1558, 126
  %v1576 = vpop.permute.xlu0 %1575
  %1577 = vrot.lane.b32.xlu0 %v1559, 126
  %v1578 = vpop.permute.xlu0 %1577
  %1579 = vrot.lane.b32.xlu0 %v1560, 126
  %v1580 = vpop.permute.xlu0 %1579
  %1581 = vrot.lane.b32.xlu0 %v1561, 126
  %v1582 = vpop.permute.xlu0 %1581
  %1583 = vrot.lane.b32.xlu0 %v1562, 126
  %v1584 = vpop.permute.xlu0 %1583
  %1585 = vrot.lane.b32.xlu0 %v1563, 126
  %v1586 = vpop.permute.xlu0 %1585
  %1587 = vrot.lane.b32.xlu0 %v1564, 126
  %v1588 = vpop.permute.xlu0 %1587
  %1589 = vrot.lane.b32.xlu0 %v1565, 126
  %v1590 = vpop.permute.xlu0 %1589
  %1591 = vrot.lane.b32.xlu0 %v1566, 126
  %v1592 = vpop.permute.xlu0 %1591
  %1593 = vrot.lane.b32.xlu0 %v1567, 126
  %v1594 = vpop.permute.xlu0 %1593
  %1595 = vrot.lane.b32.xlu0 %v1568, 126
  %v1596 = vpop.permute.xlu0 %1595
  %1597 = vrot.lane.b32.xlu0 %v1569, 126
  %v1598 = vpop.permute.xlu0 %1597
  %1599 = vrot.lane.b32.xlu0 %v1570, 126
  %v1600 = vpop.permute.xlu0 %1599
  %1601 = vrot.lane.b32.xlu0 %v1571, 126
  %v1602 = vpop.permute.xlu0 %1601
  %1603 = vrot.lane.b32.xlu0 %v1572, 126
  %v1604 = vpop.permute.xlu0 %1603
  %v1605 = vxor.u32 %v1541, %v1574
  %v1606 = vxor.u32 %v1542, %v1576
  %v1607 = vxor.u32 %v1543, %v1578
  %v1608 = vxor.u32 %v1544, %v1580
  %v1609 = vxor.u32 %v1545, %v1582
  %v1610 = vxor.u32 %v1546, %v1584
  %v1611 = vxor.u32 %v1547, %v1586
  %v1612 = vxor.u32 %v1548, %v1588
  %v1613 = vxor.u32 %v1549, %v1590
  %v1614 = vxor.u32 %v1550, %v1592
  %v1615 = vxor.u32 %v1551, %v1594
  %v1616 = vxor.u32 %v1552, %v1596
  %v1617 = vxor.u32 %v1553, %v1598
  %v1618 = vxor.u32 %v1554, %v1600
  %v1619 = vxor.u32 %v1555, %v1602
  %v1620 = vxor.u32 %v1556, %v1604
  %v1621 = vand.u32 %v1605, 1023
  %v1622 = vand.u32 %v1606, 1023
  %v1623 = vand.u32 %v1607, 1023
  %v1624 = vand.u32 %v1608, 1023
  %v1625 = vand.u32 %v1609, 1023
  %v1626 = vand.u32 %v1610, 1023
  %v1627 = vand.u32 %v1611, 1023
  %v1628 = vand.u32 %v1612, 1023
  %v1629 = vand.u32 %v1613, 1023
  %v1630 = vand.u32 %v1614, 1023
  %v1631 = vand.u32 %v1615, 1023
  %v1632 = vand.u32 %v1616, 1023
  %v1633 = vand.u32 %v1617, 1023
  %v1634 = vand.u32 %v1618, 1023
  %v1635 = vand.u32 %v1619, 1023
  %v1636 = vand.u32 %v1620, 1023
  %1637 = vset.pattern.permute.xlu0 0
  %1638 = vperm.xlu0 %1637, %v1621
  %v1639 = vpop.permute.xlu0 %1638
  %1640 = vset.pattern.permute.xlu0 0
  %1641 = vperm.xlu0 %1640, %v1622
  %v1642 = vpop.permute.xlu0 %1641
  %1643 = vset.pattern.permute.xlu0 0
  %1644 = vperm.xlu0 %1643, %v1623
  %v1645 = vpop.permute.xlu0 %1644
  %1646 = vset.pattern.permute.xlu0 0
  %1647 = vperm.xlu0 %1646, %v1624
  %v1648 = vpop.permute.xlu0 %1647
  %1649 = vset.pattern.permute.xlu0 0
  %1650 = vperm.xlu0 %1649, %v1625
  %v1651 = vpop.permute.xlu0 %1650
  %1652 = vset.pattern.permute.xlu0 0
  %1653 = vperm.xlu0 %1652, %v1626
  %v1654 = vpop.permute.xlu0 %1653
  %1655 = vset.pattern.permute.xlu0 0
  %1656 = vperm.xlu0 %1655, %v1627
  %v1657 = vpop.permute.xlu0 %1656
  %1658 = vset.pattern.permute.xlu0 0
  %1659 = vperm.xlu0 %1658, %v1628
  %v1660 = vpop.permute.xlu0 %1659
  %1661 = vset.pattern.permute.xlu0 0
  %1662 = vperm.xlu0 %1661, %v1629
  %v1663 = vpop.permute.xlu0 %1662
  %1664 = vset.pattern.permute.xlu0 0
  %1665 = vperm.xlu0 %1664, %v1630
  %v1666 = vpop.permute.xlu0 %1665
  %1667 = vset.pattern.permute.xlu0 0
  %1668 = vperm.xlu0 %1667, %v1631
  %v1669 = vpop.permute.xlu0 %1668
  %1670 = vset.pattern.permute.xlu0 0
  %1671 = vperm.xlu0 %1670, %v1632
  %v1672 = vpop.permute.xlu0 %1671
  %1673 = vset.pattern.permute.xlu0 0
  %1674 = vperm.xlu0 %1673, %v1633
  %v1675 = vpop.permute.xlu0 %1674
  %1676 = vset.pattern.permute.xlu0 0
  %1677 = vperm.xlu0 %1676, %v1634
  %v1678 = vpop.permute.xlu0 %1677
  %1679 = vset.pattern.permute.xlu0 0
  %1680 = vperm.xlu0 %1679, %v1635
  %v1681 = vpop.permute.xlu0 %1680
  %1682 = vset.pattern.permute.xlu0 0
  %1683 = vperm.xlu0 %1682, %v1636
  %v1684 = vpop.permute.xlu0 %1683
  %vm1685 = vcmp.eq.s32.totalorder %v28, %v1639
  %vm1686 = vcmp.eq.s32.totalorder %v29, %v1639
  %vm1687 = vcmp.eq.s32.totalorder %v30, %v1639
  %vm1688 = vcmp.eq.s32.totalorder %v31, %v1639
  %vm1689 = vcmp.eq.s32.totalorder %v28, %v1642
  %vm1690 = vcmp.eq.s32.totalorder %v29, %v1642
  %vm1691 = vcmp.eq.s32.totalorder %v30, %v1642
  %vm1692 = vcmp.eq.s32.totalorder %v31, %v1642
  %vm1693 = vcmp.eq.s32.totalorder %v28, %v1645
  %vm1694 = vcmp.eq.s32.totalorder %v29, %v1645
  %vm1695 = vcmp.eq.s32.totalorder %v30, %v1645
  %vm1696 = vcmp.eq.s32.totalorder %v31, %v1645
  %vm1697 = vcmp.eq.s32.totalorder %v28, %v1648
  %vm1698 = vcmp.eq.s32.totalorder %v29, %v1648
  %vm1699 = vcmp.eq.s32.totalorder %v30, %v1648
  %vm1700 = vcmp.eq.s32.totalorder %v31, %v1648
  %vm1701 = vcmp.eq.s32.totalorder %v28, %v1651
  %vm1702 = vcmp.eq.s32.totalorder %v29, %v1651
  %vm1703 = vcmp.eq.s32.totalorder %v30, %v1651
  %vm1704 = vcmp.eq.s32.totalorder %v31, %v1651
  %vm1705 = vcmp.eq.s32.totalorder %v28, %v1654
  %vm1706 = vcmp.eq.s32.totalorder %v29, %v1654
  %vm1707 = vcmp.eq.s32.totalorder %v30, %v1654
  %vm1708 = vcmp.eq.s32.totalorder %v31, %v1654
  %vm1709 = vcmp.eq.s32.totalorder %v28, %v1657
  %vm1710 = vcmp.eq.s32.totalorder %v29, %v1657
  %vm1711 = vcmp.eq.s32.totalorder %v30, %v1657
  %vm1712 = vcmp.eq.s32.totalorder %v31, %v1657
  %vm1713 = vcmp.eq.s32.totalorder %v28, %v1660
  %vm1714 = vcmp.eq.s32.totalorder %v29, %v1660
  %vm1715 = vcmp.eq.s32.totalorder %v30, %v1660
  %vm1716 = vcmp.eq.s32.totalorder %v31, %v1660
  %vm1717 = vcmp.eq.s32.totalorder %v28, %v1663
  %vm1718 = vcmp.eq.s32.totalorder %v29, %v1663
  %vm1719 = vcmp.eq.s32.totalorder %v30, %v1663
  %vm1720 = vcmp.eq.s32.totalorder %v31, %v1663
  %vm1721 = vcmp.eq.s32.totalorder %v28, %v1666
  %vm1722 = vcmp.eq.s32.totalorder %v29, %v1666
  %vm1723 = vcmp.eq.s32.totalorder %v30, %v1666
  %vm1724 = vcmp.eq.s32.totalorder %v31, %v1666
  %vm1725 = vcmp.eq.s32.totalorder %v28, %v1669
  %vm1726 = vcmp.eq.s32.totalorder %v29, %v1669
  %vm1727 = vcmp.eq.s32.totalorder %v30, %v1669
  %vm1728 = vcmp.eq.s32.totalorder %v31, %v1669
  %vm1729 = vcmp.eq.s32.totalorder %v28, %v1672
  %vm1730 = vcmp.eq.s32.totalorder %v29, %v1672
  %vm1731 = vcmp.eq.s32.totalorder %v30, %v1672
  %vm1732 = vcmp.eq.s32.totalorder %v31, %v1672
  %vm1733 = vcmp.eq.s32.totalorder %v28, %v1675
  %vm1734 = vcmp.eq.s32.totalorder %v29, %v1675
  %vm1735 = vcmp.eq.s32.totalorder %v30, %v1675
  %vm1736 = vcmp.eq.s32.totalorder %v31, %v1675
  %vm1737 = vcmp.eq.s32.totalorder %v28, %v1678
  %vm1738 = vcmp.eq.s32.totalorder %v29, %v1678
  %vm1739 = vcmp.eq.s32.totalorder %v30, %v1678
  %vm1740 = vcmp.eq.s32.totalorder %v31, %v1678
  %vm1741 = vcmp.eq.s32.totalorder %v28, %v1681
  %vm1742 = vcmp.eq.s32.totalorder %v29, %v1681
  %vm1743 = vcmp.eq.s32.totalorder %v30, %v1681
  %vm1744 = vcmp.eq.s32.totalorder %v31, %v1681
  %vm1745 = vcmp.eq.s32.totalorder %v28, %v1684
  %vm1746 = vcmp.eq.s32.totalorder %v29, %v1684
  %vm1747 = vcmp.eq.s32.totalorder %v30, %v1684
  %vm1748 = vcmp.eq.s32.totalorder %v31, %v1684
  %v1749 = vsel %vm1685, 1, 0
  %v1750 = vsel %vm1686, 1, 0
  %v1751 = vsel %vm1687, 1, 0
  %v1752 = vsel %vm1688, 1, 0
  %v1753 = vsel %vm1689, 1, 0
  %v1754 = vsel %vm1690, 1, 0
  %v1755 = vsel %vm1691, 1, 0
  %v1756 = vsel %vm1692, 1, 0
  %v1757 = vsel %vm1693, 1, 0
  %v1758 = vsel %vm1694, 1, 0
  %v1759 = vsel %vm1695, 1, 0
  %v1760 = vsel %vm1696, 1, 0
  %v1761 = vsel %vm1697, 1, 0
  %v1762 = vsel %vm1698, 1, 0
  %v1763 = vsel %vm1699, 1, 0
  %v1764 = vsel %vm1700, 1, 0
  %v1765 = vsel %vm1701, 1, 0
  %v1766 = vsel %vm1702, 1, 0
  %v1767 = vsel %vm1703, 1, 0
  %v1768 = vsel %vm1704, 1, 0
  %v1769 = vsel %vm1705, 1, 0
  %v1770 = vsel %vm1706, 1, 0
  %v1771 = vsel %vm1707, 1, 0
  %v1772 = vsel %vm1708, 1, 0
  %v1773 = vsel %vm1709, 1, 0
  %v1774 = vsel %vm1710, 1, 0
  %v1775 = vsel %vm1711, 1, 0
  %v1776 = vsel %vm1712, 1, 0
  %v1777 = vsel %vm1713, 1, 0
  %v1778 = vsel %vm1714, 1, 0
  %v1779 = vsel %vm1715, 1, 0
  %v1780 = vsel %vm1716, 1, 0
  %v1781 = vsel %vm1717, 1, 0
  %v1782 = vsel %vm1718, 1, 0
  %v1783 = vsel %vm1719, 1, 0
  %v1784 = vsel %vm1720, 1, 0
  %v1785 = vsel %vm1721, 1, 0
  %v1786 = vsel %vm1722, 1, 0
  %v1787 = vsel %vm1723, 1, 0
  %v1788 = vsel %vm1724, 1, 0
  %v1789 = vsel %vm1725, 1, 0
  %v1790 = vsel %vm1726, 1, 0
  %v1791 = vsel %vm1727, 1, 0
  %v1792 = vsel %vm1728, 1, 0
  %v1793 = vsel %vm1729, 1, 0
  %v1794 = vsel %vm1730, 1, 0
  %v1795 = vsel %vm1731, 1, 0
  %v1796 = vsel %vm1732, 1, 0
  %v1797 = vsel %vm1733, 1, 0
  %v1798 = vsel %vm1734, 1, 0
  %v1799 = vsel %vm1735, 1, 0
  %v1800 = vsel %vm1736, 1, 0
  %v1801 = vsel %vm1737, 1, 0
  %v1802 = vsel %vm1738, 1, 0
  %v1803 = vsel %vm1739, 1, 0
  %v1804 = vsel %vm1740, 1, 0
  %v1805 = vsel %vm1741, 1, 0
  %v1806 = vsel %vm1742, 1, 0
  %v1807 = vsel %vm1743, 1, 0
  %v1808 = vsel %vm1744, 1, 0
  %v1809 = vsel %vm1745, 1, 0
  %v1810 = vsel %vm1746, 1, 0
  %v1811 = vsel %vm1747, 1, 0
  %v1812 = vsel %vm1748, 1, 0
  %v1813 = vcvt.s32.f32 %v1749
  %v1814 = vcvt.s32.f32 %v1750
  %v1815 = vcvt.s32.f32 %v1751
  %v1816 = vcvt.s32.f32 %v1752
  %v1817 = vcvt.s32.f32 %v1753
  %v1818 = vcvt.s32.f32 %v1754
  %v1819 = vcvt.s32.f32 %v1755
  %v1820 = vcvt.s32.f32 %v1756
  %v1821 = vcvt.s32.f32 %v1757
  %v1822 = vcvt.s32.f32 %v1758
  %v1823 = vcvt.s32.f32 %v1759
  %v1824 = vcvt.s32.f32 %v1760
  %v1825 = vcvt.s32.f32 %v1761
  %v1826 = vcvt.s32.f32 %v1762
  %v1827 = vcvt.s32.f32 %v1763
  %v1828 = vcvt.s32.f32 %v1764
  %v1829 = vcvt.s32.f32 %v1765
  %v1830 = vcvt.s32.f32 %v1766
  %v1831 = vcvt.s32.f32 %v1767
  %v1832 = vcvt.s32.f32 %v1768
  %v1833 = vcvt.s32.f32 %v1769
  %v1834 = vcvt.s32.f32 %v1770
  %v1835 = vcvt.s32.f32 %v1771
  %v1836 = vcvt.s32.f32 %v1772
  %v1837 = vcvt.s32.f32 %v1773
  %v1838 = vcvt.s32.f32 %v1774
  %v1839 = vcvt.s32.f32 %v1775
  %v1840 = vcvt.s32.f32 %v1776
  %v1841 = vcvt.s32.f32 %v1777
  %v1842 = vcvt.s32.f32 %v1778
  %v1843 = vcvt.s32.f32 %v1779
  %v1844 = vcvt.s32.f32 %v1780
  %v1845 = vcvt.s32.f32 %v1781
  %v1846 = vcvt.s32.f32 %v1782
  %v1847 = vcvt.s32.f32 %v1783
  %v1848 = vcvt.s32.f32 %v1784
  %v1849 = vcvt.s32.f32 %v1785
  %v1850 = vcvt.s32.f32 %v1786
  %v1851 = vcvt.s32.f32 %v1787
  %v1852 = vcvt.s32.f32 %v1788
  %v1853 = vcvt.s32.f32 %v1789
  %v1854 = vcvt.s32.f32 %v1790
  %v1855 = vcvt.s32.f32 %v1791
  %v1856 = vcvt.s32.f32 %v1792
  %v1857 = vcvt.s32.f32 %v1793
  %v1858 = vcvt.s32.f32 %v1794
  %v1859 = vcvt.s32.f32 %v1795
  %v1860 = vcvt.s32.f32 %v1796
  %v1861 = vcvt.s32.f32 %v1797
  %v1862 = vcvt.s32.f32 %v1798
  %v1863 = vcvt.s32.f32 %v1799
  %v1864 = vcvt.s32.f32 %v1800
  %v1865 = vcvt.s32.f32 %v1801
  %v1866 = vcvt.s32.f32 %v1802
  %v1867 = vcvt.s32.f32 %v1803
  %v1868 = vcvt.s32.f32 %v1804
  %v1869 = vcvt.s32.f32 %v1805
  %v1870 = vcvt.s32.f32 %v1806
  %v1871 = vcvt.s32.f32 %v1807
  %v1872 = vcvt.s32.f32 %v1808
  %v1873 = vcvt.s32.f32 %v1809
  %v1874 = vcvt.s32.f32 %v1810
  %v1875 = vcvt.s32.f32 %v1811
  %v1876 = vcvt.s32.f32 %v1812
  %v1877 = vld [vmem:[%s1] sm:$0xff]
  %v1878 = vld [vmem:[%s1 + $0x8] sm:$0xff]
  %v1879 = vld [vmem:[%s1 + $0x10] sm:$0xff]
  %v1880 = vld [vmem:[%s1 + $0x18] sm:$0xff]
  %v1881 = vld [vmem:[%s1 + $0x20] sm:$0xff]
  %v1882 = vld [vmem:[%s1 + $0x28] sm:$0xff]
  %v1883 = vld [vmem:[%s1 + $0x30] sm:$0xff]
  %v1884 = vld [vmem:[%s1 + $0x38] sm:$0xff]
  %v1885 = vld [vmem:[%s1 + $0x40] sm:$0xff]
  %v1886 = vld [vmem:[%s1 + $0x48] sm:$0xff]
  %v1887 = vld [vmem:[%s1 + $0x50] sm:$0xff]
  %v1888 = vld [vmem:[%s1 + $0x58] sm:$0xff]
  %v1889 = vld [vmem:[%s1 + $0x60] sm:$0xff]
  %v1890 = vld [vmem:[%s1 + $0x68] sm:$0xff]
  %v1891 = vld [vmem:[%s1 + $0x70] sm:$0xff]
  %v1892 = vld [vmem:[%s1 + $0x78] sm:$0xff]
  %v1893 = vld [vmem:[%s1 + $0x80] sm:$0xff]
  %v1894 = vld [vmem:[%s1 + $0x88] sm:$0xff]
  %v1895 = vld [vmem:[%s1 + $0x90] sm:$0xff]
  %v1896 = vld [vmem:[%s1 + $0x98] sm:$0xff]
  %v1897 = vld [vmem:[%s1 + $0xa0] sm:$0xff]
  %v1898 = vld [vmem:[%s1 + $0xa8] sm:$0xff]
  %v1899 = vld [vmem:[%s1 + $0xb0] sm:$0xff]
  %v1900 = vld [vmem:[%s1 + $0xb8] sm:$0xff]
  %v1901 = vld [vmem:[%s1 + $0xc0] sm:$0xff]
  %v1902 = vld [vmem:[%s1 + $0xc8] sm:$0xff]
  %v1903 = vld [vmem:[%s1 + $0xd0] sm:$0xff]
  %v1904 = vld [vmem:[%s1 + $0xd8] sm:$0xff]
  %v1905 = vld [vmem:[%s1 + $0xe0] sm:$0xff]
  %v1906 = vld [vmem:[%s1 + $0xe8] sm:$0xff]
  %v1907 = vld [vmem:[%s1 + $0xf0] sm:$0xff]
  %v1908 = vld [vmem:[%s1 + $0xf8] sm:$0xff]
  %v1909 = vld [vmem:[%s1 + $0x100] sm:$0xff]
  %v1910 = vld [vmem:[%s1 + $0x108] sm:$0xff]
  %v1911 = vld [vmem:[%s1 + $0x110] sm:$0xff]
  %v1912 = vld [vmem:[%s1 + $0x118] sm:$0xff]
  %v1913 = vld [vmem:[%s1 + $0x120] sm:$0xff]
  %v1914 = vld [vmem:[%s1 + $0x128] sm:$0xff]
  %v1915 = vld [vmem:[%s1 + $0x130] sm:$0xff]
  %v1916 = vld [vmem:[%s1 + $0x138] sm:$0xff]
  %v1917 = vld [vmem:[%s1 + $0x140] sm:$0xff]
  %v1918 = vld [vmem:[%s1 + $0x148] sm:$0xff]
  %v1919 = vld [vmem:[%s1 + $0x150] sm:$0xff]
  %v1920 = vld [vmem:[%s1 + $0x158] sm:$0xff]
  %v1921 = vld [vmem:[%s1 + $0x160] sm:$0xff]
  %v1922 = vld [vmem:[%s1 + $0x168] sm:$0xff]
  %v1923 = vld [vmem:[%s1 + $0x170] sm:$0xff]
  %v1924 = vld [vmem:[%s1 + $0x178] sm:$0xff]
  %v1925 = vld [vmem:[%s1 + $0x180] sm:$0xff]
  %v1926 = vld [vmem:[%s1 + $0x188] sm:$0xff]
  %v1927 = vld [vmem:[%s1 + $0x190] sm:$0xff]
  %v1928 = vld [vmem:[%s1 + $0x198] sm:$0xff]
  %v1929 = vld [vmem:[%s1 + $0x1a0] sm:$0xff]
  %v1930 = vld [vmem:[%s1 + $0x1a8] sm:$0xff]
  %v1931 = vld [vmem:[%s1 + $0x1b0] sm:$0xff]
  %v1932 = vld [vmem:[%s1 + $0x1b8] sm:$0xff]
  %v1933 = vld [vmem:[%s1 + $0x1c0] sm:$0xff]
  %v1934 = vld [vmem:[%s1 + $0x1c8] sm:$0xff]
  %v1935 = vld [vmem:[%s1 + $0x1d0] sm:$0xff]
  %v1936 = vld [vmem:[%s1 + $0x1d8] sm:$0xff]
  %v1937 = vld [vmem:[%s1 + $0x1e0] sm:$0xff]
  %v1938 = vld [vmem:[%s1 + $0x1e8] sm:$0xff]
  %v1939 = vld [vmem:[%s1 + $0x1f0] sm:$0xff]
  %v1940 = vld [vmem:[%s1 + $0x1f8] sm:$0xff]
  %v1941 = vsub.s32 %v1621, 512
  %v1942 = vsub.s32 %v1622, 512
  %v1943 = vsub.s32 %v1623, 512
  %v1944 = vsub.s32 %v1624, 512
  %v1945 = vsub.s32 %v1625, 512
  %v1946 = vsub.s32 %v1626, 512
  %v1947 = vsub.s32 %v1627, 512
  %v1948 = vsub.s32 %v1628, 512
  %v1949 = vsub.s32 %v1629, 512
  %v1950 = vsub.s32 %v1630, 512
  %v1951 = vsub.s32 %v1631, 512
  %v1952 = vsub.s32 %v1632, 512
  %v1953 = vsub.s32 %v1633, 512
  %v1954 = vsub.s32 %v1634, 512
  %v1955 = vsub.s32 %v1635, 512
  %v1956 = vsub.s32 %v1636, 512
  %1957 = vset.pattern.permute.xlu0 0
  %1958 = vperm.xlu0 %1957, %v1941
  %v1959 = vpop.permute.xlu0 %1958
  %1960 = vset.pattern.permute.xlu0 0
  %1961 = vperm.xlu0 %1960, %v1942
  %v1962 = vpop.permute.xlu0 %1961
  %1963 = vset.pattern.permute.xlu0 0
  %1964 = vperm.xlu0 %1963, %v1943
  %v1965 = vpop.permute.xlu0 %1964
  %1966 = vset.pattern.permute.xlu0 0
  %1967 = vperm.xlu0 %1966, %v1944
  %v1968 = vpop.permute.xlu0 %1967
  %1969 = vset.pattern.permute.xlu0 0
  %1970 = vperm.xlu0 %1969, %v1945
  %v1971 = vpop.permute.xlu0 %1970
  %1972 = vset.pattern.permute.xlu0 0
  %1973 = vperm.xlu0 %1972, %v1946
  %v1974 = vpop.permute.xlu0 %1973
  %1975 = vset.pattern.permute.xlu0 0
  %1976 = vperm.xlu0 %1975, %v1947
  %v1977 = vpop.permute.xlu0 %1976
  %1978 = vset.pattern.permute.xlu0 0
  %1979 = vperm.xlu0 %1978, %v1948
  %v1980 = vpop.permute.xlu0 %1979
  %1981 = vset.pattern.permute.xlu0 0
  %1982 = vperm.xlu0 %1981, %v1949
  %v1983 = vpop.permute.xlu0 %1982
  %1984 = vset.pattern.permute.xlu0 0
  %1985 = vperm.xlu0 %1984, %v1950
  %v1986 = vpop.permute.xlu0 %1985
  %1987 = vset.pattern.permute.xlu0 0
  %1988 = vperm.xlu0 %1987, %v1951
  %v1989 = vpop.permute.xlu0 %1988
  %1990 = vset.pattern.permute.xlu0 0
  %1991 = vperm.xlu0 %1990, %v1952
  %v1992 = vpop.permute.xlu0 %1991
  %1993 = vset.pattern.permute.xlu0 0
  %1994 = vperm.xlu0 %1993, %v1953
  %v1995 = vpop.permute.xlu0 %1994
  %1996 = vset.pattern.permute.xlu0 0
  %1997 = vperm.xlu0 %1996, %v1954
  %v1998 = vpop.permute.xlu0 %1997
  %1999 = vset.pattern.permute.xlu0 0
  %2000 = vperm.xlu0 %1999, %v1955
  %v2001 = vpop.permute.xlu0 %2000
  %2002 = vset.pattern.permute.xlu0 0
  %2003 = vperm.xlu0 %2002, %v1956
  %v2004 = vpop.permute.xlu0 %2003
  %vm2005 = vcmp.eq.s32.totalorder %v28, %v1959
  %vm2006 = vcmp.eq.s32.totalorder %v29, %v1959
  %vm2007 = vcmp.eq.s32.totalorder %v30, %v1959
  %vm2008 = vcmp.eq.s32.totalorder %v31, %v1959
  %vm2009 = vcmp.eq.s32.totalorder %v28, %v1962
  %vm2010 = vcmp.eq.s32.totalorder %v29, %v1962
  %vm2011 = vcmp.eq.s32.totalorder %v30, %v1962
  %vm2012 = vcmp.eq.s32.totalorder %v31, %v1962
  %vm2013 = vcmp.eq.s32.totalorder %v28, %v1965
  %vm2014 = vcmp.eq.s32.totalorder %v29, %v1965
  %vm2015 = vcmp.eq.s32.totalorder %v30, %v1965
  %vm2016 = vcmp.eq.s32.totalorder %v31, %v1965
  %vm2017 = vcmp.eq.s32.totalorder %v28, %v1968
  %vm2018 = vcmp.eq.s32.totalorder %v29, %v1968
  %vm2019 = vcmp.eq.s32.totalorder %v30, %v1968
  %vm2020 = vcmp.eq.s32.totalorder %v31, %v1968
  %vm2021 = vcmp.eq.s32.totalorder %v28, %v1971
  %vm2022 = vcmp.eq.s32.totalorder %v29, %v1971
  %vm2023 = vcmp.eq.s32.totalorder %v30, %v1971
  %vm2024 = vcmp.eq.s32.totalorder %v31, %v1971
  %vm2025 = vcmp.eq.s32.totalorder %v28, %v1974
  %vm2026 = vcmp.eq.s32.totalorder %v29, %v1974
  %vm2027 = vcmp.eq.s32.totalorder %v30, %v1974
  %vm2028 = vcmp.eq.s32.totalorder %v31, %v1974
  %vm2029 = vcmp.eq.s32.totalorder %v28, %v1977
  %vm2030 = vcmp.eq.s32.totalorder %v29, %v1977
  %vm2031 = vcmp.eq.s32.totalorder %v30, %v1977
  %vm2032 = vcmp.eq.s32.totalorder %v31, %v1977
  %vm2033 = vcmp.eq.s32.totalorder %v28, %v1980
  %vm2034 = vcmp.eq.s32.totalorder %v29, %v1980
  %vm2035 = vcmp.eq.s32.totalorder %v30, %v1980
  %vm2036 = vcmp.eq.s32.totalorder %v31, %v1980
  %vm2037 = vcmp.eq.s32.totalorder %v28, %v1983
  %vm2038 = vcmp.eq.s32.totalorder %v29, %v1983
  %vm2039 = vcmp.eq.s32.totalorder %v30, %v1983
  %vm2040 = vcmp.eq.s32.totalorder %v31, %v1983
  %vm2041 = vcmp.eq.s32.totalorder %v28, %v1986
  %vm2042 = vcmp.eq.s32.totalorder %v29, %v1986
  %vm2043 = vcmp.eq.s32.totalorder %v30, %v1986
  %vm2044 = vcmp.eq.s32.totalorder %v31, %v1986
  %vm2045 = vcmp.eq.s32.totalorder %v28, %v1989
  %vm2046 = vcmp.eq.s32.totalorder %v29, %v1989
  %vm2047 = vcmp.eq.s32.totalorder %v30, %v1989
  %vm2048 = vcmp.eq.s32.totalorder %v31, %v1989
  %vm2049 = vcmp.eq.s32.totalorder %v28, %v1992
  %vm2050 = vcmp.eq.s32.totalorder %v29, %v1992
  %vm2051 = vcmp.eq.s32.totalorder %v30, %v1992
  %vm2052 = vcmp.eq.s32.totalorder %v31, %v1992
  %vm2053 = vcmp.eq.s32.totalorder %v28, %v1995
  %vm2054 = vcmp.eq.s32.totalorder %v29, %v1995
  %vm2055 = vcmp.eq.s32.totalorder %v30, %v1995
  %vm2056 = vcmp.eq.s32.totalorder %v31, %v1995
  %vm2057 = vcmp.eq.s32.totalorder %v28, %v1998
  %vm2058 = vcmp.eq.s32.totalorder %v29, %v1998
  %vm2059 = vcmp.eq.s32.totalorder %v30, %v1998
  %vm2060 = vcmp.eq.s32.totalorder %v31, %v1998
  %vm2061 = vcmp.eq.s32.totalorder %v28, %v2001
  %vm2062 = vcmp.eq.s32.totalorder %v29, %v2001
  %vm2063 = vcmp.eq.s32.totalorder %v30, %v2001
  %vm2064 = vcmp.eq.s32.totalorder %v31, %v2001
  %vm2065 = vcmp.eq.s32.totalorder %v28, %v2004
  %vm2066 = vcmp.eq.s32.totalorder %v29, %v2004
  %vm2067 = vcmp.eq.s32.totalorder %v30, %v2004
  %vm2068 = vcmp.eq.s32.totalorder %v31, %v2004
  %v2069 = vsel %vm2005, 1, 0
  %v2070 = vsel %vm2006, 1, 0
  %v2071 = vsel %vm2007, 1, 0
  %v2072 = vsel %vm2008, 1, 0
  %v2073 = vsel %vm2009, 1, 0
  %v2074 = vsel %vm2010, 1, 0
  %v2075 = vsel %vm2011, 1, 0
  %v2076 = vsel %vm2012, 1, 0
  %v2077 = vsel %vm2013, 1, 0
  %v2078 = vsel %vm2014, 1, 0
  %v2079 = vsel %vm2015, 1, 0
  %v2080 = vsel %vm2016, 1, 0
  %v2081 = vsel %vm2017, 1, 0
  %v2082 = vsel %vm2018, 1, 0
  %v2083 = vsel %vm2019, 1, 0
  %v2084 = vsel %vm2020, 1, 0
  %v2085 = vsel %vm2021, 1, 0
  %v2086 = vsel %vm2022, 1, 0
  %v2087 = vsel %vm2023, 1, 0
  %v2088 = vsel %vm2024, 1, 0
  %v2089 = vsel %vm2025, 1, 0
  %v2090 = vsel %vm2026, 1, 0
  %v2091 = vsel %vm2027, 1, 0
  %v2092 = vsel %vm2028, 1, 0
  %v2093 = vsel %vm2029, 1, 0
  %v2094 = vsel %vm2030, 1, 0
  %v2095 = vsel %vm2031, 1, 0
  %v2096 = vsel %vm2032, 1, 0
  %v2097 = vsel %vm2033, 1, 0
  %v2098 = vsel %vm2034, 1, 0
  %v2099 = vsel %vm2035, 1, 0
  %v2100 = vsel %vm2036, 1, 0
  %v2101 = vsel %vm2037, 1, 0
  %v2102 = vsel %vm2038, 1, 0
  %v2103 = vsel %vm2039, 1, 0
  %v2104 = vsel %vm2040, 1, 0
  %v2105 = vsel %vm2041, 1, 0
  %v2106 = vsel %vm2042, 1, 0
  %v2107 = vsel %vm2043, 1, 0
  %v2108 = vsel %vm2044, 1, 0
  %v2109 = vsel %vm2045, 1, 0
  %v2110 = vsel %vm2046, 1, 0
  %v2111 = vsel %vm2047, 1, 0
  %v2112 = vsel %vm2048, 1, 0
  %v2113 = vsel %vm2049, 1, 0
  %v2114 = vsel %vm2050, 1, 0
  %v2115 = vsel %vm2051, 1, 0
  %v2116 = vsel %vm2052, 1, 0
  %v2117 = vsel %vm2053, 1, 0
  %v2118 = vsel %vm2054, 1, 0
  %v2119 = vsel %vm2055, 1, 0
  %v2120 = vsel %vm2056, 1, 0
  %v2121 = vsel %vm2057, 1, 0
  %v2122 = vsel %vm2058, 1, 0
  %v2123 = vsel %vm2059, 1, 0
  %v2124 = vsel %vm2060, 1, 0
  %v2125 = vsel %vm2061, 1, 0
  %v2126 = vsel %vm2062, 1, 0
  %v2127 = vsel %vm2063, 1, 0
  %v2128 = vsel %vm2064, 1, 0
  %v2129 = vsel %vm2065, 1, 0
  %v2130 = vsel %vm2066, 1, 0
  %v2131 = vsel %vm2067, 1, 0
  %v2132 = vsel %vm2068, 1, 0
  %v2133 = vcvt.s32.f32 %v2069
  %v2134 = vcvt.s32.f32 %v2070
  %v2135 = vcvt.s32.f32 %v2071
  %v2136 = vcvt.s32.f32 %v2072
  %v2137 = vcvt.s32.f32 %v2073
  %v2138 = vcvt.s32.f32 %v2074
  %v2139 = vcvt.s32.f32 %v2075
  %v2140 = vcvt.s32.f32 %v2076
  %v2141 = vcvt.s32.f32 %v2077
  %v2142 = vcvt.s32.f32 %v2078
  %v2143 = vcvt.s32.f32 %v2079
  %v2144 = vcvt.s32.f32 %v2080
  %v2145 = vcvt.s32.f32 %v2081
  %v2146 = vcvt.s32.f32 %v2082
  %v2147 = vcvt.s32.f32 %v2083
  %v2148 = vcvt.s32.f32 %v2084
  %v2149 = vcvt.s32.f32 %v2085
  %v2150 = vcvt.s32.f32 %v2086
  %v2151 = vcvt.s32.f32 %v2087
  %v2152 = vcvt.s32.f32 %v2088
  %v2153 = vcvt.s32.f32 %v2089
  %v2154 = vcvt.s32.f32 %v2090
  %v2155 = vcvt.s32.f32 %v2091
  %v2156 = vcvt.s32.f32 %v2092
  %v2157 = vcvt.s32.f32 %v2093
  %v2158 = vcvt.s32.f32 %v2094
  %v2159 = vcvt.s32.f32 %v2095
  %v2160 = vcvt.s32.f32 %v2096
  %v2161 = vcvt.s32.f32 %v2097
  %v2162 = vcvt.s32.f32 %v2098
  %v2163 = vcvt.s32.f32 %v2099
  %v2164 = vcvt.s32.f32 %v2100
  %v2165 = vcvt.s32.f32 %v2101
  %v2166 = vcvt.s32.f32 %v2102
  %v2167 = vcvt.s32.f32 %v2103
  %v2168 = vcvt.s32.f32 %v2104
  %v2169 = vcvt.s32.f32 %v2105
  %v2170 = vcvt.s32.f32 %v2106
  %v2171 = vcvt.s32.f32 %v2107
  %v2172 = vcvt.s32.f32 %v2108
  %v2173 = vcvt.s32.f32 %v2109
  %v2174 = vcvt.s32.f32 %v2110
  %v2175 = vcvt.s32.f32 %v2111
  %v2176 = vcvt.s32.f32 %v2112
  %v2177 = vcvt.s32.f32 %v2113
  %v2178 = vcvt.s32.f32 %v2114
  %v2179 = vcvt.s32.f32 %v2115
  %v2180 = vcvt.s32.f32 %v2116
  %v2181 = vcvt.s32.f32 %v2117
  %v2182 = vcvt.s32.f32 %v2118
  %v2183 = vcvt.s32.f32 %v2119
  %v2184 = vcvt.s32.f32 %v2120
  %v2185 = vcvt.s32.f32 %v2121
  %v2186 = vcvt.s32.f32 %v2122
  %v2187 = vcvt.s32.f32 %v2123
  %v2188 = vcvt.s32.f32 %v2124
  %v2189 = vcvt.s32.f32 %v2125
  %v2190 = vcvt.s32.f32 %v2126
  %v2191 = vcvt.s32.f32 %v2127
  %v2192 = vcvt.s32.f32 %v2128
  %v2193 = vcvt.s32.f32 %v2129
  %v2194 = vcvt.s32.f32 %v2130
  %v2195 = vcvt.s32.f32 %v2131
  %v2196 = vcvt.s32.f32 %v2132
  %v2197 = vld [vmem:[%s1 + $0x200] sm:$0xff]
  %v2198 = vld [vmem:[%s1 + $0x208] sm:$0xff]
  %v2199 = vld [vmem:[%s1 + $0x210] sm:$0xff]
  %v2200 = vld [vmem:[%s1 + $0x218] sm:$0xff]
  %v2201 = vld [vmem:[%s1 + $0x220] sm:$0xff]
  %v2202 = vld [vmem:[%s1 + $0x228] sm:$0xff]
  %v2203 = vld [vmem:[%s1 + $0x230] sm:$0xff]
  %v2204 = vld [vmem:[%s1 + $0x238] sm:$0xff]
  %v2205 = vld [vmem:[%s1 + $0x240] sm:$0xff]
  %v2206 = vld [vmem:[%s1 + $0x248] sm:$0xff]
  %v2207 = vld [vmem:[%s1 + $0x250] sm:$0xff]
  %v2208 = vld [vmem:[%s1 + $0x258] sm:$0xff]
  %v2209 = vld [vmem:[%s1 + $0x260] sm:$0xff]
  %v2210 = vld [vmem:[%s1 + $0x268] sm:$0xff]
  %v2211 = vld [vmem:[%s1 + $0x270] sm:$0xff]
  %v2212 = vld [vmem:[%s1 + $0x278] sm:$0xff]
  %v2213 = vld [vmem:[%s1 + $0x280] sm:$0xff]
  %v2214 = vld [vmem:[%s1 + $0x288] sm:$0xff]
  %v2215 = vld [vmem:[%s1 + $0x290] sm:$0xff]
  %v2216 = vld [vmem:[%s1 + $0x298] sm:$0xff]
  %v2217 = vld [vmem:[%s1 + $0x2a0] sm:$0xff]
  %v2218 = vld [vmem:[%s1 + $0x2a8] sm:$0xff]
  %v2219 = vld [vmem:[%s1 + $0x2b0] sm:$0xff]
  %v2220 = vld [vmem:[%s1 + $0x2b8] sm:$0xff]
  %v2221 = vld [vmem:[%s1 + $0x2c0] sm:$0xff]
  %v2222 = vld [vmem:[%s1 + $0x2c8] sm:$0xff]
  %v2223 = vld [vmem:[%s1 + $0x2d0] sm:$0xff]
  %v2224 = vld [vmem:[%s1 + $0x2d8] sm:$0xff]
  %v2225 = vld [vmem:[%s1 + $0x2e0] sm:$0xff]
  %v2226 = vld [vmem:[%s1 + $0x2e8] sm:$0xff]
  %v2227 = vld [vmem:[%s1 + $0x2f0] sm:$0xff]
  %v2228 = vld [vmem:[%s1 + $0x2f8] sm:$0xff]
  %v2229 = vld [vmem:[%s1 + $0x300] sm:$0xff]
  %v2230 = vld [vmem:[%s1 + $0x308] sm:$0xff]
  %v2231 = vld [vmem:[%s1 + $0x310] sm:$0xff]
  %v2232 = vld [vmem:[%s1 + $0x318] sm:$0xff]
  %v2233 = vld [vmem:[%s1 + $0x320] sm:$0xff]
  %v2234 = vld [vmem:[%s1 + $0x328] sm:$0xff]
  %v2235 = vld [vmem:[%s1 + $0x330] sm:$0xff]
  %v2236 = vld [vmem:[%s1 + $0x338] sm:$0xff]
  %v2237 = vld [vmem:[%s1 + $0x340] sm:$0xff]
  %v2238 = vld [vmem:[%s1 + $0x348] sm:$0xff]
  %v2239 = vld [vmem:[%s1 + $0x350] sm:$0xff]
  %v2240 = vld [vmem:[%s1 + $0x358] sm:$0xff]
  %v2241 = vld [vmem:[%s1 + $0x360] sm:$0xff]
  %v2242 = vld [vmem:[%s1 + $0x368] sm:$0xff]
  %v2243 = vld [vmem:[%s1 + $0x370] sm:$0xff]
  %v2244 = vld [vmem:[%s1 + $0x378] sm:$0xff]
  %v2245 = vld [vmem:[%s1 + $0x380] sm:$0xff]
  %v2246 = vld [vmem:[%s1 + $0x388] sm:$0xff]
  %v2247 = vld [vmem:[%s1 + $0x390] sm:$0xff]
  %v2248 = vld [vmem:[%s1 + $0x398] sm:$0xff]
  %v2249 = vld [vmem:[%s1 + $0x3a0] sm:$0xff]
  %v2250 = vld [vmem:[%s1 + $0x3a8] sm:$0xff]
  %v2251 = vld [vmem:[%s1 + $0x3b0] sm:$0xff]
  %v2252 = vld [vmem:[%s1 + $0x3b8] sm:$0xff]
  %v2253 = vld [vmem:[%s1 + $0x3c0] sm:$0xff]
  %v2254 = vld [vmem:[%s1 + $0x3c8] sm:$0xff]
  %v2255 = vld [vmem:[%s1 + $0x3d0] sm:$0xff]
  %v2256 = vld [vmem:[%s1 + $0x3d8] sm:$0xff]
  %v2257 = vld [vmem:[%s1 + $0x3e0] sm:$0xff]
  %v2258 = vld [vmem:[%s1 + $0x3e8] sm:$0xff]
  %v2259 = vld [vmem:[%s1 + $0x3f0] sm:$0xff]
  %v2260 = vld [vmem:[%s1 + $0x3f8] sm:$0xff]
  %2325 = vrot.lane.b32.xlu0 %v2197, 124
  %v2326 = vpop.permute.xlu0 %2325
  %2327 = vrot.lane.b32.xlu0 %v2198, 124
  %v2328 = vpop.permute.xlu0 %2327
  %2329 = vrot.lane.b32.xlu0 %v2199, 124
  %v2330 = vpop.permute.xlu0 %2329
  %2331 = vrot.lane.b32.xlu0 %v2200, 124
  %v2332 = vpop.permute.xlu0 %2331
  %2333 = vrot.lane.b32.xlu0 %v2201, 124
  %v2334 = vpop.permute.xlu0 %2333
  %2335 = vrot.lane.b32.xlu0 %v2202, 124
  %v2336 = vpop.permute.xlu0 %2335
  %2337 = vrot.lane.b32.xlu0 %v2203, 124
  %v2338 = vpop.permute.xlu0 %2337
  %2339 = vrot.lane.b32.xlu0 %v2204, 124
  %v2340 = vpop.permute.xlu0 %2339
  %2341 = vrot.lane.b32.xlu0 %v2205, 124
  %v2342 = vpop.permute.xlu0 %2341
  %2343 = vrot.lane.b32.xlu0 %v2206, 124
  %v2344 = vpop.permute.xlu0 %2343
  %2345 = vrot.lane.b32.xlu0 %v2207, 124
  %v2346 = vpop.permute.xlu0 %2345
  %2347 = vrot.lane.b32.xlu0 %v2208, 124
  %v2348 = vpop.permute.xlu0 %2347
  %2349 = vrot.lane.b32.xlu0 %v2209, 124
  %v2350 = vpop.permute.xlu0 %2349
  %2351 = vrot.lane.b32.xlu0 %v2210, 124
  %v2352 = vpop.permute.xlu0 %2351
  %2353 = vrot.lane.b32.xlu0 %v2211, 124
  %v2354 = vpop.permute.xlu0 %2353
  %2355 = vrot.lane.b32.xlu0 %v2212, 124
  %v2356 = vpop.permute.xlu0 %2355
  %2357 = vrot.lane.b32.xlu0 %v2213, 124
  %v2358 = vpop.permute.xlu0 %2357
  %2359 = vrot.lane.b32.xlu0 %v2214, 124
  %v2360 = vpop.permute.xlu0 %2359
  %2361 = vrot.lane.b32.xlu0 %v2215, 124
  %v2362 = vpop.permute.xlu0 %2361
  %2363 = vrot.lane.b32.xlu0 %v2216, 124
  %v2364 = vpop.permute.xlu0 %2363
  %2365 = vrot.lane.b32.xlu0 %v2217, 124
  %v2366 = vpop.permute.xlu0 %2365
  %2367 = vrot.lane.b32.xlu0 %v2218, 124
  %v2368 = vpop.permute.xlu0 %2367
  %2369 = vrot.lane.b32.xlu0 %v2219, 124
  %v2370 = vpop.permute.xlu0 %2369
  %2371 = vrot.lane.b32.xlu0 %v2220, 124
  %v2372 = vpop.permute.xlu0 %2371
  %2373 = vrot.lane.b32.xlu0 %v2221, 124
  %v2374 = vpop.permute.xlu0 %2373
  %2375 = vrot.lane.b32.xlu0 %v2222, 124
  %v2376 = vpop.permute.xlu0 %2375
  %2377 = vrot.lane.b32.xlu0 %v2223, 124
  %v2378 = vpop.permute.xlu0 %2377
  %2379 = vrot.lane.b32.xlu0 %v2224, 124
  %v2380 = vpop.permute.xlu0 %2379
  %2381 = vrot.lane.b32.xlu0 %v2225, 124
  %v2382 = vpop.permute.xlu0 %2381
  %2383 = vrot.lane.b32.xlu0 %v2226, 124
  %v2384 = vpop.permute.xlu0 %2383
  %2385 = vrot.lane.b32.xlu0 %v2227, 124
  %v2386 = vpop.permute.xlu0 %2385
  %2387 = vrot.lane.b32.xlu0 %v2228, 124
  %v2388 = vpop.permute.xlu0 %2387
  %2389 = vrot.lane.b32.xlu0 %v2229, 124
  %v2390 = vpop.permute.xlu0 %2389
  %2391 = vrot.lane.b32.xlu0 %v2230, 124
  %v2392 = vpop.permute.xlu0 %2391
  %2393 = vrot.lane.b32.xlu0 %v2231, 124
  %v2394 = vpop.permute.xlu0 %2393
  %2395 = vrot.lane.b32.xlu0 %v2232, 124
  %v2396 = vpop.permute.xlu0 %2395
  %2397 = vrot.lane.b32.xlu0 %v2233, 124
  %v2398 = vpop.permute.xlu0 %2397
  %2399 = vrot.lane.b32.xlu0 %v2234, 124
  %v2400 = vpop.permute.xlu0 %2399
  %2401 = vrot.lane.b32.xlu0 %v2235, 124
  %v2402 = vpop.permute.xlu0 %2401
  %2403 = vrot.lane.b32.xlu0 %v2236, 124
  %v2404 = vpop.permute.xlu0 %2403
  %2405 = vrot.lane.b32.xlu0 %v2237, 124
  %v2406 = vpop.permute.xlu0 %2405
  %2407 = vrot.lane.b32.xlu0 %v2238, 124
  %v2408 = vpop.permute.xlu0 %2407
  %2409 = vrot.lane.b32.xlu0 %v2239, 124
  %v2410 = vpop.permute.xlu0 %2409
  %2411 = vrot.lane.b32.xlu0 %v2240, 124
  %v2412 = vpop.permute.xlu0 %2411
  %2413 = vrot.lane.b32.xlu0 %v2241, 124
  %v2414 = vpop.permute.xlu0 %2413
  %2415 = vrot.lane.b32.xlu0 %v2242, 124
  %v2416 = vpop.permute.xlu0 %2415
  %2417 = vrot.lane.b32.xlu0 %v2243, 124
  %v2418 = vpop.permute.xlu0 %2417
  %2419 = vrot.lane.b32.xlu0 %v2244, 124
  %v2420 = vpop.permute.xlu0 %2419
  %2421 = vrot.lane.b32.xlu0 %v2245, 124
  %v2422 = vpop.permute.xlu0 %2421
  %2423 = vrot.lane.b32.xlu0 %v2246, 124
  %v2424 = vpop.permute.xlu0 %2423
  %2425 = vrot.lane.b32.xlu0 %v2247, 124
  %v2426 = vpop.permute.xlu0 %2425
  %2427 = vrot.lane.b32.xlu0 %v2248, 124
  %v2428 = vpop.permute.xlu0 %2427
  %2429 = vrot.lane.b32.xlu0 %v2249, 124
  %v2430 = vpop.permute.xlu0 %2429
  %2431 = vrot.lane.b32.xlu0 %v2250, 124
  %v2432 = vpop.permute.xlu0 %2431
  %2433 = vrot.lane.b32.xlu0 %v2251, 124
  %v2434 = vpop.permute.xlu0 %2433
  %2435 = vrot.lane.b32.xlu0 %v2252, 124
  %v2436 = vpop.permute.xlu0 %2435
  %2437 = vrot.lane.b32.xlu0 %v2253, 124
  %v2438 = vpop.permute.xlu0 %2437
  %2439 = vrot.lane.b32.xlu0 %v2254, 124
  %v2440 = vpop.permute.xlu0 %2439
  %2441 = vrot.lane.b32.xlu0 %v2255, 124
  %v2442 = vpop.permute.xlu0 %2441
  %2443 = vrot.lane.b32.xlu0 %v2256, 124
  %v2444 = vpop.permute.xlu0 %2443
  %2445 = vrot.lane.b32.xlu0 %v2257, 124
  %v2446 = vpop.permute.xlu0 %2445
  %2447 = vrot.lane.b32.xlu0 %v2258, 124
  %v2448 = vpop.permute.xlu0 %2447
  %2449 = vrot.lane.b32.xlu0 %v2259, 124
  %v2450 = vpop.permute.xlu0 %2449
  %2451 = vrot.lane.b32.xlu0 %v2260, 124
  %v2452 = vpop.permute.xlu0 %2451
  %2517 = vmatprep.subr.mxu0 0.0
  %2518 = vmatpush1.msra.mxu0 %v2356
  %2519 = vmatprep.subr.mxu0 0.0
  %2520 = vmatpush1.msra.mxu0 %v2354
  %2521 = vmatprep.subr.mxu0 0.0
  %2522 = vmatpush1.msra.mxu0 %v2352
  %2523 = vmatprep.subr.mxu0 0.0
  %2524 = vmatpush1.msra.mxu0 %v2350
  %2525 = vmatprep.subr.mxu0 0.0
  %2526 = vmatpush1.msra.mxu0 %v2348
  %2527 = vmatprep.subr.mxu0 0.0
  %2528 = vmatpush1.msra.mxu0 %v2346
  %2529 = vmatprep.subr.mxu0 0.0
  %2530 = vmatpush1.msra.mxu0 %v2344
  %2531 = vmatprep.subr.mxu0 0.0
  %2532 = vmatpush1.msra.mxu0 %v2342
  %2533 = vmatprep.subr.mxu0 0.0
  %2534 = vmatpush1.msra.mxu0 %v2340
  %2535 = vmatprep.subr.mxu0 0.0
  %2536 = vmatpush1.msra.mxu0 %v2338
  %2537 = vmatprep.subr.mxu0 0.0
  %2538 = vmatpush1.msra.mxu0 %v2336
  %2539 = vmatprep.subr.mxu0 0.0
  %2540 = vmatpush1.msra.mxu0 %v2334
  %2541 = vmatprep.subr.mxu0 0.0
  %2542 = vmatpush1.msra.mxu0 %v2332
  %2543 = vmatprep.subr.mxu0 0.0
  %2544 = vmatpush1.msra.mxu0 %v2330
  %2545 = vmatprep.subr.mxu0 0.0
  %2546 = vmatpush1.msra.mxu0 %v2328
  %2547 = vmatprep.subr.mxu0 0.0
  %2548 = vmatpush1.msra.mxu0 %v2326
  %2549 = vmatprep.subr.mxu0 0.0
  %2550 = vmatpush2.msra.mxu0 %v2388
  %2551 = vmatprep.subr.mxu0 0.0
  %2552 = vmatpush2.msra.mxu0 %v2386
  %2553 = vmatprep.subr.mxu0 0.0
  %2554 = vmatpush2.msra.mxu0 %v2384
  %2555 = vmatprep.subr.mxu0 0.0
  %2556 = vmatpush2.msra.mxu0 %v2382
  %2557 = vmatprep.subr.mxu0 0.0
  %2558 = vmatpush2.msra.mxu0 %v2380
  %2559 = vmatprep.subr.mxu0 0.0
  %2560 = vmatpush2.msra.mxu0 %v2378
  %2561 = vmatprep.subr.mxu0 0.0
  %2562 = vmatpush2.msra.mxu0 %v2376
  %2563 = vmatprep.subr.mxu0 0.0
  %2564 = vmatpush2.msra.mxu0 %v2374
  %2565 = vmatprep.subr.mxu0 0.0
  %2566 = vmatpush2.msra.mxu0 %v2372
  %2567 = vmatprep.subr.mxu0 0.0
  %2568 = vmatpush2.msra.mxu0 %v2370
  %2569 = vmatprep.subr.mxu0 0.0
  %2570 = vmatpush2.msra.mxu0 %v2368
  %2571 = vmatprep.subr.mxu0 0.0
  %2572 = vmatpush2.msra.mxu0 %v2366
  %2573 = vmatprep.subr.mxu0 0.0
  %2574 = vmatpush2.msra.mxu0 %v2364
  %2575 = vmatprep.subr.mxu0 0.0
  %2576 = vmatpush2.msra.mxu0 %v2362
  %2577 = vmatprep.subr.mxu0 0.0
  %2578 = vmatpush2.msra.mxu0 %v2360
  %2579 = vmatprep.subr.mxu0 0.0
  %2580 = vmatpush2.msra.mxu0 %v2358
  %2581 = vmatprep.mubr.f32.mxu0 %v2134
  %2582 = vmatmul.mubr.f32.gmra.mxu0 %v2133
  %v2583 = vpop.f32.mrf.mxu0
  %v2584 = vadd.f32 0.0, %v2583
  %v2585 = vpop.f32.mrf.mxu0
  %2586 = vmatprep.mubr.f32.mxu0 %v2138
  %2587 = vmatmul.mubr.f32.gmra.mxu0 %v2137
  %v2588 = vpop.f32.mrf.mxu0
  %v2589 = vadd.f32 0.0, %v2588
  %v2590 = vpop.f32.mrf.mxu0
  %2591 = vmatprep.mubr.f32.mxu0 %v2142
  %2592 = vmatmul.mubr.f32.gmra.mxu0 %v2141
  %v2593 = vpop.f32.mrf.mxu0
  %v2594 = vadd.f32 0.0, %v2593
  %v2595 = vpop.f32.mrf.mxu0
  %2596 = vmatprep.mubr.f32.mxu0 %v2146
  %2597 = vmatmul.mubr.f32.gmra.mxu0 %v2145
  %v2598 = vpop.f32.mrf.mxu0
  %v2599 = vadd.f32 0.0, %v2598
  %v2600 = vpop.f32.mrf.mxu0
  %2601 = vmatprep.mubr.f32.mxu0 %v2150
  %2602 = vmatmul.mubr.f32.gmra.mxu0 %v2149
  %v2603 = vpop.f32.mrf.mxu0
  %v2604 = vadd.f32 0.0, %v2603
  %v2605 = vpop.f32.mrf.mxu0
  %2606 = vmatprep.mubr.f32.mxu0 %v2154
  %2607 = vmatmul.mubr.f32.gmra.mxu0 %v2153
  %v2608 = vpop.f32.mrf.mxu0
  %v2609 = vadd.f32 0.0, %v2608
  %v2610 = vpop.f32.mrf.mxu0
  %2611 = vmatprep.mubr.f32.mxu0 %v2158
  %2612 = vmatmul.mubr.f32.gmra.mxu0 %v2157
  %v2613 = vpop.f32.mrf.mxu0
  %v2614 = vadd.f32 0.0, %v2613
  %v2615 = vpop.f32.mrf.mxu0
  %2616 = vmatprep.mubr.f32.mxu0 %v2162
  %2617 = vmatmul.mubr.f32.gmra.mxu0 %v2161
  %v2618 = vpop.f32.mrf.mxu0
  %v2619 = vadd.f32 0.0, %v2618
  %v2620 = vpop.f32.mrf.mxu0
  %2621 = vmatprep.mubr.f32.mxu0 %v2166
  %2622 = vmatmul.mubr.f32.gmra.mxu0 %v2165
  %v2623 = vpop.f32.mrf.mxu0
  %v2624 = vadd.f32 0.0, %v2623
  %v2625 = vpop.f32.mrf.mxu0
  %2626 = vmatprep.mubr.f32.mxu0 %v2170
  %2627 = vmatmul.mubr.f32.gmra.mxu0 %v2169
  %v2628 = vpop.f32.mrf.mxu0
  %v2629 = vadd.f32 0.0, %v2628
  %v2630 = vpop.f32.mrf.mxu0
  %2631 = vmatprep.mubr.f32.mxu0 %v2174
  %2632 = vmatmul.mubr.f32.gmra.mxu0 %v2173
  %v2633 = vpop.f32.mrf.mxu0
  %v2634 = vadd.f32 0.0, %v2633
  %v2635 = vpop.f32.mrf.mxu0
  %2636 = vmatprep.mubr.f32.mxu0 %v2178
  %2637 = vmatmul.mubr.f32.gmra.mxu0 %v2177
  %v2638 = vpop.f32.mrf.mxu0
  %v2639 = vadd.f32 0.0, %v2638
  %v2640 = vpop.f32.mrf.mxu0
  %2641 = vmatprep.mubr.f32.mxu0 %v2182
  %2642 = vmatmul.mubr.f32.gmra.mxu0 %v2181
  %v2643 = vpop.f32.mrf.mxu0
  %v2644 = vadd.f32 0.0, %v2643
  %v2645 = vpop.f32.mrf.mxu0
  %2646 = vmatprep.mubr.f32.mxu0 %v2186
  %2647 = vmatmul.mubr.f32.gmra.mxu0 %v2185
  %v2648 = vpop.f32.mrf.mxu0
  %v2649 = vadd.f32 0.0, %v2648
  %v2650 = vpop.f32.mrf.mxu0
  %2651 = vmatprep.mubr.f32.mxu0 %v2190
  %2652 = vmatmul.mubr.f32.gmra.mxu0 %v2189
  %v2653 = vpop.f32.mrf.mxu0
  %v2654 = vadd.f32 0.0, %v2653
  %v2655 = vpop.f32.mrf.mxu0
  %2656 = vmatprep.mubr.f32.mxu0 %v2194
  %2657 = vmatmul.mubr.f32.gmra.mxu0 %v2193
  %v2658 = vpop.f32.mrf.mxu0
  %v2659 = vadd.f32 0.0, %v2658
  %v2660 = vpop.f32.mrf.mxu0
  %2661 = vdwg.mxu0
  %2662 = vmatprep.subr.mxu0 0.0
  %2663 = vmatpush1.msra.mxu0 %v2420
  %2664 = vmatprep.subr.mxu0 0.0
  %2665 = vmatpush1.msra.mxu0 %v2418
  %2666 = vmatprep.subr.mxu0 0.0
  %2667 = vmatpush1.msra.mxu0 %v2416
  %2668 = vmatprep.subr.mxu0 0.0
  %2669 = vmatpush1.msra.mxu0 %v2414
  %2670 = vmatprep.subr.mxu0 0.0
  %2671 = vmatpush1.msra.mxu0 %v2412
  %2672 = vmatprep.subr.mxu0 0.0
  %2673 = vmatpush1.msra.mxu0 %v2410
  %2674 = vmatprep.subr.mxu0 0.0
  %2675 = vmatpush1.msra.mxu0 %v2408
  %2676 = vmatprep.subr.mxu0 0.0
  %2677 = vmatpush1.msra.mxu0 %v2406
  %2678 = vmatprep.subr.mxu0 0.0
  %2679 = vmatpush1.msra.mxu0 %v2404
  %2680 = vmatprep.subr.mxu0 0.0
  %2681 = vmatpush1.msra.mxu0 %v2402
  %2682 = vmatprep.subr.mxu0 0.0
  %2683 = vmatpush1.msra.mxu0 %v2400
  %2684 = vmatprep.subr.mxu0 0.0
  %2685 = vmatpush1.msra.mxu0 %v2398
  %2686 = vmatprep.subr.mxu0 0.0
  %2687 = vmatpush1.msra.mxu0 %v2396
  %2688 = vmatprep.subr.mxu0 0.0
  %2689 = vmatpush1.msra.mxu0 %v2394
  %2690 = vmatprep.subr.mxu0 0.0
  %2691 = vmatpush1.msra.mxu0 %v2392
  %2692 = vmatprep.subr.mxu0 0.0
  %2693 = vmatpush1.msra.mxu0 %v2390
  %2694 = vmatprep.subr.mxu0 0.0
  %2695 = vmatpush2.msra.mxu0 %v2452
  %2696 = vmatprep.subr.mxu0 0.0
  %2697 = vmatpush2.msra.mxu0 %v2450
  %2698 = vmatprep.subr.mxu0 0.0
  %2699 = vmatpush2.msra.mxu0 %v2448
  %2700 = vmatprep.subr.mxu0 0.0
  %2701 = vmatpush2.msra.mxu0 %v2446
  %2702 = vmatprep.subr.mxu0 0.0
  %2703 = vmatpush2.msra.mxu0 %v2444
  %2704 = vmatprep.subr.mxu0 0.0
  %2705 = vmatpush2.msra.mxu0 %v2442
  %2706 = vmatprep.subr.mxu0 0.0
  %2707 = vmatpush2.msra.mxu0 %v2440
  %2708 = vmatprep.subr.mxu0 0.0
  %2709 = vmatpush2.msra.mxu0 %v2438
  %2710 = vmatprep.subr.mxu0 0.0
  %2711 = vmatpush2.msra.mxu0 %v2436
  %2712 = vmatprep.subr.mxu0 0.0
  %2713 = vmatpush2.msra.mxu0 %v2434
  %2714 = vmatprep.subr.mxu0 0.0
  %2715 = vmatpush2.msra.mxu0 %v2432
  %2716 = vmatprep.subr.mxu0 0.0
  %2717 = vmatpush2.msra.mxu0 %v2430
  %2718 = vmatprep.subr.mxu0 0.0
  %2719 = vmatpush2.msra.mxu0 %v2428
  %2720 = vmatprep.subr.mxu0 0.0
  %2721 = vmatpush2.msra.mxu0 %v2426
  %2722 = vmatprep.subr.mxu0 0.0
  %2723 = vmatpush2.msra.mxu0 %v2424
  %2724 = vmatprep.subr.mxu0 0.0
  %2725 = vmatpush2.msra.mxu0 %v2422
  %2726 = vmatprep.mubr.f32.mxu0 %v2136
  %2727 = vmatmul.mubr.f32.gmra.mxu0 %v2135
  %v2728 = vpop.f32.mrf.mxu0
  %v2729 = vadd.f32 %v2584, %v2728
  %v2730 = vpop.f32.mrf.mxu0
  %2731 = vmatprep.mubr.f32.mxu0 %v2140
  %2732 = vmatmul.mubr.f32.gmra.mxu0 %v2139
  %v2733 = vpop.f32.mrf.mxu0
  %v2734 = vadd.f32 %v2589, %v2733
  %v2735 = vpop.f32.mrf.mxu0
  %2736 = vmatprep.mubr.f32.mxu0 %v2144
  %2737 = vmatmul.mubr.f32.gmra.mxu0 %v2143
  %v2738 = vpop.f32.mrf.mxu0
  %v2739 = vadd.f32 %v2594, %v2738
  %v2740 = vpop.f32.mrf.mxu0
  %2741 = vmatprep.mubr.f32.mxu0 %v2148
  %2742 = vmatmul.mubr.f32.gmra.mxu0 %v2147
  %v2743 = vpop.f32.mrf.mxu0
  %v2744 = vadd.f32 %v2599, %v2743
  %v2745 = vpop.f32.mrf.mxu0
  %2746 = vmatprep.mubr.f32.mxu0 %v2152
  %2747 = vmatmul.mubr.f32.gmra.mxu0 %v2151
  %v2748 = vpop.f32.mrf.mxu0
  %v2749 = vadd.f32 %v2604, %v2748
  %v2750 = vpop.f32.mrf.mxu0
  %2751 = vmatprep.mubr.f32.mxu0 %v2156
  %2752 = vmatmul.mubr.f32.gmra.mxu0 %v2155
  %v2753 = vpop.f32.mrf.mxu0
  %v2754 = vadd.f32 %v2609, %v2753
  %v2755 = vpop.f32.mrf.mxu0
  %2756 = vmatprep.mubr.f32.mxu0 %v2160
  %2757 = vmatmul.mubr.f32.gmra.mxu0 %v2159
  %v2758 = vpop.f32.mrf.mxu0
  %v2759 = vadd.f32 %v2614, %v2758
  %v2760 = vpop.f32.mrf.mxu0
  %2761 = vmatprep.mubr.f32.mxu0 %v2164
  %2762 = vmatmul.mubr.f32.gmra.mxu0 %v2163
  %v2763 = vpop.f32.mrf.mxu0
  %v2764 = vadd.f32 %v2619, %v2763
  %v2765 = vpop.f32.mrf.mxu0
  %2766 = vmatprep.mubr.f32.mxu0 %v2168
  %2767 = vmatmul.mubr.f32.gmra.mxu0 %v2167
  %v2768 = vpop.f32.mrf.mxu0
  %v2769 = vadd.f32 %v2624, %v2768
  %v2770 = vpop.f32.mrf.mxu0
  %2771 = vmatprep.mubr.f32.mxu0 %v2172
  %2772 = vmatmul.mubr.f32.gmra.mxu0 %v2171
  %v2773 = vpop.f32.mrf.mxu0
  %v2774 = vadd.f32 %v2629, %v2773
  %v2775 = vpop.f32.mrf.mxu0
  %2776 = vmatprep.mubr.f32.mxu0 %v2176
  %2777 = vmatmul.mubr.f32.gmra.mxu0 %v2175
  %v2778 = vpop.f32.mrf.mxu0
  %v2779 = vadd.f32 %v2634, %v2778
  %v2780 = vpop.f32.mrf.mxu0
  %2781 = vmatprep.mubr.f32.mxu0 %v2180
  %2782 = vmatmul.mubr.f32.gmra.mxu0 %v2179
  %v2783 = vpop.f32.mrf.mxu0
  %v2784 = vadd.f32 %v2639, %v2783
  %v2785 = vpop.f32.mrf.mxu0
  %2786 = vmatprep.mubr.f32.mxu0 %v2184
  %2787 = vmatmul.mubr.f32.gmra.mxu0 %v2183
  %v2788 = vpop.f32.mrf.mxu0
  %v2789 = vadd.f32 %v2644, %v2788
  %v2790 = vpop.f32.mrf.mxu0
  %2791 = vmatprep.mubr.f32.mxu0 %v2188
  %2792 = vmatmul.mubr.f32.gmra.mxu0 %v2187
  %v2793 = vpop.f32.mrf.mxu0
  %v2794 = vadd.f32 %v2649, %v2793
  %v2795 = vpop.f32.mrf.mxu0
  %2796 = vmatprep.mubr.f32.mxu0 %v2192
  %2797 = vmatmul.mubr.f32.gmra.mxu0 %v2191
  %v2798 = vpop.f32.mrf.mxu0
  %v2799 = vadd.f32 %v2654, %v2798
  %v2800 = vpop.f32.mrf.mxu0
  %2801 = vmatprep.mubr.f32.mxu0 %v2196
  %2802 = vmatmul.mubr.f32.gmra.mxu0 %v2195
  %v2803 = vpop.f32.mrf.mxu0
  %v2804 = vadd.f32 %v2659, %v2803
  %v2805 = vpop.f32.mrf.mxu0
  %2806 = vdwg.mxu0
  %2871 = vrot.lane.b32.xlu0 %v1877, 124
  %v2872 = vpop.permute.xlu0 %2871
  %2873 = vrot.lane.b32.xlu0 %v1878, 124
  %v2874 = vpop.permute.xlu0 %2873
  %2875 = vrot.lane.b32.xlu0 %v1879, 124
  %v2876 = vpop.permute.xlu0 %2875
  %2877 = vrot.lane.b32.xlu0 %v1880, 124
  %v2878 = vpop.permute.xlu0 %2877
  %2879 = vrot.lane.b32.xlu0 %v1881, 124
  %v2880 = vpop.permute.xlu0 %2879
  %2881 = vrot.lane.b32.xlu0 %v1882, 124
  %v2882 = vpop.permute.xlu0 %2881
  %2883 = vrot.lane.b32.xlu0 %v1883, 124
  %v2884 = vpop.permute.xlu0 %2883
  %2885 = vrot.lane.b32.xlu0 %v1884, 124
  %v2886 = vpop.permute.xlu0 %2885
  %2887 = vrot.lane.b32.xlu0 %v1885, 124
  %v2888 = vpop.permute.xlu0 %2887
  %2889 = vrot.lane.b32.xlu0 %v1886, 124
  %v2890 = vpop.permute.xlu0 %2889
  %2891 = vrot.lane.b32.xlu0 %v1887, 124
  %v2892 = vpop.permute.xlu0 %2891
  %2893 = vrot.lane.b32.xlu0 %v1888, 124
  %v2894 = vpop.permute.xlu0 %2893
  %2895 = vrot.lane.b32.xlu0 %v1889, 124
  %v2896 = vpop.permute.xlu0 %2895
  %2897 = vrot.lane.b32.xlu0 %v1890, 124
  %v2898 = vpop.permute.xlu0 %2897
  %2899 = vrot.lane.b32.xlu0 %v1891, 124
  %v2900 = vpop.permute.xlu0 %2899
  %2901 = vrot.lane.b32.xlu0 %v1892, 124
  %v2902 = vpop.permute.xlu0 %2901
  %2903 = vrot.lane.b32.xlu0 %v1893, 124
  %v2904 = vpop.permute.xlu0 %2903
  %2905 = vrot.lane.b32.xlu0 %v1894, 124
  %v2906 = vpop.permute.xlu0 %2905
  %2907 = vrot.lane.b32.xlu0 %v1895, 124
  %v2908 = vpop.permute.xlu0 %2907
  %2909 = vrot.lane.b32.xlu0 %v1896, 124
  %v2910 = vpop.permute.xlu0 %2909
  %2911 = vrot.lane.b32.xlu0 %v1897, 124
  %v2912 = vpop.permute.xlu0 %2911
  %2913 = vrot.lane.b32.xlu0 %v1898, 124
  %v2914 = vpop.permute.xlu0 %2913
  %2915 = vrot.lane.b32.xlu0 %v1899, 124
  %v2916 = vpop.permute.xlu0 %2915
  %2917 = vrot.lane.b32.xlu0 %v1900, 124
  %v2918 = vpop.permute.xlu0 %2917
  %2919 = vrot.lane.b32.xlu0 %v1901, 124
  %v2920 = vpop.permute.xlu0 %2919
  %2921 = vrot.lane.b32.xlu0 %v1902, 124
  %v2922 = vpop.permute.xlu0 %2921
  %2923 = vrot.lane.b32.xlu0 %v1903, 124
  %v2924 = vpop.permute.xlu0 %2923
  %2925 = vrot.lane.b32.xlu0 %v1904, 124
  %v2926 = vpop.permute.xlu0 %2925
  %2927 = vrot.lane.b32.xlu0 %v1905, 124
  %v2928 = vpop.permute.xlu0 %2927
  %2929 = vrot.lane.b32.xlu0 %v1906, 124
  %v2930 = vpop.permute.xlu0 %2929
  %2931 = vrot.lane.b32.xlu0 %v1907, 124
  %v2932 = vpop.permute.xlu0 %2931
  %2933 = vrot.lane.b32.xlu0 %v1908, 124
  %v2934 = vpop.permute.xlu0 %2933
  %2935 = vrot.lane.b32.xlu0 %v1909, 124
  %v2936 = vpop.permute.xlu0 %2935
  %2937 = vrot.lane.b32.xlu0 %v1910, 124
  %v2938 = vpop.permute.xlu0 %2937
  %2939 = vrot.lane.b32.xlu0 %v1911, 124
  %v2940 = vpop.permute.xlu0 %2939
  %2941 = vrot.lane.b32.xlu0 %v1912, 124
  %v2942 = vpop.permute.xlu0 %2941
  %2943 = vrot.lane.b32.xlu0 %v1913, 124
  %v2944 = vpop.permute.xlu0 %2943
  %2945 = vrot.lane.b32.xlu0 %v1914, 124
  %v2946 = vpop.permute.xlu0 %2945
  %2947 = vrot.lane.b32.xlu0 %v1915, 124
  %v2948 = vpop.permute.xlu0 %2947
  %2949 = vrot.lane.b32.xlu0 %v1916, 124
  %v2950 = vpop.permute.xlu0 %2949
  %2951 = vrot.lane.b32.xlu0 %v1917, 124
  %v2952 = vpop.permute.xlu0 %2951
  %2953 = vrot.lane.b32.xlu0 %v1918, 124
  %v2954 = vpop.permute.xlu0 %2953
  %2955 = vrot.lane.b32.xlu0 %v1919, 124
  %v2956 = vpop.permute.xlu0 %2955
  %2957 = vrot.lane.b32.xlu0 %v1920, 124
  %v2958 = vpop.permute.xlu0 %2957
  %2959 = vrot.lane.b32.xlu0 %v1921, 124
  %v2960 = vpop.permute.xlu0 %2959
  %2961 = vrot.lane.b32.xlu0 %v1922, 124
  %v2962 = vpop.permute.xlu0 %2961
  %2963 = vrot.lane.b32.xlu0 %v1923, 124
  %v2964 = vpop.permute.xlu0 %2963
  %2965 = vrot.lane.b32.xlu0 %v1924, 124
  %v2966 = vpop.permute.xlu0 %2965
  %2967 = vrot.lane.b32.xlu0 %v1925, 124
  %v2968 = vpop.permute.xlu0 %2967
  %2969 = vrot.lane.b32.xlu0 %v1926, 124
  %v2970 = vpop.permute.xlu0 %2969
  %2971 = vrot.lane.b32.xlu0 %v1927, 124
  %v2972 = vpop.permute.xlu0 %2971
  %2973 = vrot.lane.b32.xlu0 %v1928, 124
  %v2974 = vpop.permute.xlu0 %2973
  %2975 = vrot.lane.b32.xlu0 %v1929, 124
  %v2976 = vpop.permute.xlu0 %2975
  %2977 = vrot.lane.b32.xlu0 %v1930, 124
  %v2978 = vpop.permute.xlu0 %2977
  %2979 = vrot.lane.b32.xlu0 %v1931, 124
  %v2980 = vpop.permute.xlu0 %2979
  %2981 = vrot.lane.b32.xlu0 %v1932, 124
  %v2982 = vpop.permute.xlu0 %2981
  %2983 = vrot.lane.b32.xlu0 %v1933, 124
  %v2984 = vpop.permute.xlu0 %2983
  %2985 = vrot.lane.b32.xlu0 %v1934, 124
  %v2986 = vpop.permute.xlu0 %2985
  %2987 = vrot.lane.b32.xlu0 %v1935, 124
  %v2988 = vpop.permute.xlu0 %2987
  %2989 = vrot.lane.b32.xlu0 %v1936, 124
  %v2990 = vpop.permute.xlu0 %2989
  %2991 = vrot.lane.b32.xlu0 %v1937, 124
  %v2992 = vpop.permute.xlu0 %2991
  %2993 = vrot.lane.b32.xlu0 %v1938, 124
  %v2994 = vpop.permute.xlu0 %2993
  %2995 = vrot.lane.b32.xlu0 %v1939, 124
  %v2996 = vpop.permute.xlu0 %2995
  %2997 = vrot.lane.b32.xlu0 %v1940, 124
  %v2998 = vpop.permute.xlu0 %2997
  %3063 = vmatprep.subr.mxu0 0.0
  %3064 = vmatpush1.msra.mxu0 %v2902
  %3065 = vmatprep.subr.mxu0 0.0
  %3066 = vmatpush1.msra.mxu0 %v2900
  %3067 = vmatprep.subr.mxu0 0.0
  %3068 = vmatpush1.msra.mxu0 %v2898
  %3069 = vmatprep.subr.mxu0 0.0
  %3070 = vmatpush1.msra.mxu0 %v2896
  %3071 = vmatprep.subr.mxu0 0.0
  %3072 = vmatpush1.msra.mxu0 %v2894
  %3073 = vmatprep.subr.mxu0 0.0
  %3074 = vmatpush1.msra.mxu0 %v2892
  %3075 = vmatprep.subr.mxu0 0.0
  %3076 = vmatpush1.msra.mxu0 %v2890
  %3077 = vmatprep.subr.mxu0 0.0
  %3078 = vmatpush1.msra.mxu0 %v2888
  %3079 = vmatprep.subr.mxu0 0.0
  %3080 = vmatpush1.msra.mxu0 %v2886
  %3081 = vmatprep.subr.mxu0 0.0
  %3082 = vmatpush1.msra.mxu0 %v2884
  %3083 = vmatprep.subr.mxu0 0.0
  %3084 = vmatpush1.msra.mxu0 %v2882
  %3085 = vmatprep.subr.mxu0 0.0
  %3086 = vmatpush1.msra.mxu0 %v2880
  %3087 = vmatprep.subr.mxu0 0.0
  %3088 = vmatpush1.msra.mxu0 %v2878
  %3089 = vmatprep.subr.mxu0 0.0
  %3090 = vmatpush1.msra.mxu0 %v2876
  %3091 = vmatprep.subr.mxu0 0.0
  %3092 = vmatpush1.msra.mxu0 %v2874
  %3093 = vmatprep.subr.mxu0 0.0
  %3094 = vmatpush1.msra.mxu0 %v2872
  %3095 = vmatprep.subr.mxu0 0.0
  %3096 = vmatpush2.msra.mxu0 %v2934
  %3097 = vmatprep.subr.mxu0 0.0
  %3098 = vmatpush2.msra.mxu0 %v2932
  %3099 = vmatprep.subr.mxu0 0.0
  %3100 = vmatpush2.msra.mxu0 %v2930
  %3101 = vmatprep.subr.mxu0 0.0
  %3102 = vmatpush2.msra.mxu0 %v2928
  %3103 = vmatprep.subr.mxu0 0.0
  %3104 = vmatpush2.msra.mxu0 %v2926
  %3105 = vmatprep.subr.mxu0 0.0
  %3106 = vmatpush2.msra.mxu0 %v2924
  %3107 = vmatprep.subr.mxu0 0.0
  %3108 = vmatpush2.msra.mxu0 %v2922
  %3109 = vmatprep.subr.mxu0 0.0
  %3110 = vmatpush2.msra.mxu0 %v2920
  %3111 = vmatprep.subr.mxu0 0.0
  %3112 = vmatpush2.msra.mxu0 %v2918
  %3113 = vmatprep.subr.mxu0 0.0
  %3114 = vmatpush2.msra.mxu0 %v2916
  %3115 = vmatprep.subr.mxu0 0.0
  %3116 = vmatpush2.msra.mxu0 %v2914
  %3117 = vmatprep.subr.mxu0 0.0
  %3118 = vmatpush2.msra.mxu0 %v2912
  %3119 = vmatprep.subr.mxu0 0.0
  %3120 = vmatpush2.msra.mxu0 %v2910
  %3121 = vmatprep.subr.mxu0 0.0
  %3122 = vmatpush2.msra.mxu0 %v2908
  %3123 = vmatprep.subr.mxu0 0.0
  %3124 = vmatpush2.msra.mxu0 %v2906
  %3125 = vmatprep.subr.mxu0 0.0
  %3126 = vmatpush2.msra.mxu0 %v2904
  %3127 = vmatprep.mubr.f32.mxu0 %v1814
  %3128 = vmatmul.mubr.f32.gmra.mxu0 %v1813
  %v3129 = vpop.f32.mrf.mxu0
  %v3130 = vadd.f32 %v2729, %v3129
  %v3131 = vpop.f32.mrf.mxu0
  %3132 = vmatprep.mubr.f32.mxu0 %v1818
  %3133 = vmatmul.mubr.f32.gmra.mxu0 %v1817
  %v3134 = vpop.f32.mrf.mxu0
  %v3135 = vadd.f32 %v2734, %v3134
  %v3136 = vpop.f32.mrf.mxu0
  %3137 = vmatprep.mubr.f32.mxu0 %v1822
  %3138 = vmatmul.mubr.f32.gmra.mxu0 %v1821
  %v3139 = vpop.f32.mrf.mxu0
  %v3140 = vadd.f32 %v2739, %v3139
  %v3141 = vpop.f32.mrf.mxu0
  %3142 = vmatprep.mubr.f32.mxu0 %v1826
  %3143 = vmatmul.mubr.f32.gmra.mxu0 %v1825
  %v3144 = vpop.f32.mrf.mxu0
  %v3145 = vadd.f32 %v2744, %v3144
  %v3146 = vpop.f32.mrf.mxu0
  %3147 = vmatprep.mubr.f32.mxu0 %v1830
  %3148 = vmatmul.mubr.f32.gmra.mxu0 %v1829
  %v3149 = vpop.f32.mrf.mxu0
  %v3150 = vadd.f32 %v2749, %v3149
  %v3151 = vpop.f32.mrf.mxu0
  %3152 = vmatprep.mubr.f32.mxu0 %v1834
  %3153 = vmatmul.mubr.f32.gmra.mxu0 %v1833
  %v3154 = vpop.f32.mrf.mxu0
  %v3155 = vadd.f32 %v2754, %v3154
  %v3156 = vpop.f32.mrf.mxu0
  %3157 = vmatprep.mubr.f32.mxu0 %v1838
  %3158 = vmatmul.mubr.f32.gmra.mxu0 %v1837
  %v3159 = vpop.f32.mrf.mxu0
  %v3160 = vadd.f32 %v2759, %v3159
  %v3161 = vpop.f32.mrf.mxu0
  %3162 = vmatprep.mubr.f32.mxu0 %v1842
  %3163 = vmatmul.mubr.f32.gmra.mxu0 %v1841
  %v3164 = vpop.f32.mrf.mxu0
  %v3165 = vadd.f32 %v2764, %v3164
  %v3166 = vpop.f32.mrf.mxu0
  %3167 = vmatprep.mubr.f32.mxu0 %v1846
  %3168 = vmatmul.mubr.f32.gmra.mxu0 %v1845
  %v3169 = vpop.f32.mrf.mxu0
  %v3170 = vadd.f32 %v2769, %v3169
  %v3171 = vpop.f32.mrf.mxu0
  %3172 = vmatprep.mubr.f32.mxu0 %v1850
  %3173 = vmatmul.mubr.f32.gmra.mxu0 %v1849
  %v3174 = vpop.f32.mrf.mxu0
  %v3175 = vadd.f32 %v2774, %v3174
  %v3176 = vpop.f32.mrf.mxu0
  %3177 = vmatprep.mubr.f32.mxu0 %v1854
  %3178 = vmatmul.mubr.f32.gmra.mxu0 %v1853
  %v3179 = vpop.f32.mrf.mxu0
  %v3180 = vadd.f32 %v2779, %v3179
  %v3181 = vpop.f32.mrf.mxu0
  %3182 = vmatprep.mubr.f32.mxu0 %v1858
  %3183 = vmatmul.mubr.f32.gmra.mxu0 %v1857
  %v3184 = vpop.f32.mrf.mxu0
  %v3185 = vadd.f32 %v2784, %v3184
  %v3186 = vpop.f32.mrf.mxu0
  %3187 = vmatprep.mubr.f32.mxu0 %v1862
  %3188 = vmatmul.mubr.f32.gmra.mxu0 %v1861
  %v3189 = vpop.f32.mrf.mxu0
  %v3190 = vadd.f32 %v2789, %v3189
  %v3191 = vpop.f32.mrf.mxu0
  %3192 = vmatprep.mubr.f32.mxu0 %v1866
  %3193 = vmatmul.mubr.f32.gmra.mxu0 %v1865
  %v3194 = vpop.f32.mrf.mxu0
  %v3195 = vadd.f32 %v2794, %v3194
  %v3196 = vpop.f32.mrf.mxu0
  %3197 = vmatprep.mubr.f32.mxu0 %v1870
  %3198 = vmatmul.mubr.f32.gmra.mxu0 %v1869
  %v3199 = vpop.f32.mrf.mxu0
  %v3200 = vadd.f32 %v2799, %v3199
  %v3201 = vpop.f32.mrf.mxu0
  %3202 = vmatprep.mubr.f32.mxu0 %v1874
  %3203 = vmatmul.mubr.f32.gmra.mxu0 %v1873
  %v3204 = vpop.f32.mrf.mxu0
  %v3205 = vadd.f32 %v2804, %v3204
  %v3206 = vpop.f32.mrf.mxu0
  %3207 = vdwg.mxu0
  %3208 = vmatprep.subr.mxu0 0.0
  %3209 = vmatpush1.msra.mxu0 %v2966
  %3210 = vmatprep.subr.mxu0 0.0
  %3211 = vmatpush1.msra.mxu0 %v2964
  %3212 = vmatprep.subr.mxu0 0.0
  %3213 = vmatpush1.msra.mxu0 %v2962
  %3214 = vmatprep.subr.mxu0 0.0
  %3215 = vmatpush1.msra.mxu0 %v2960
  %3216 = vmatprep.subr.mxu0 0.0
  %3217 = vmatpush1.msra.mxu0 %v2958
  %3218 = vmatprep.subr.mxu0 0.0
  %3219 = vmatpush1.msra.mxu0 %v2956
  %3220 = vmatprep.subr.mxu0 0.0
  %3221 = vmatpush1.msra.mxu0 %v2954
  %3222 = vmatprep.subr.mxu0 0.0
  %3223 = vmatpush1.msra.mxu0 %v2952
  %3224 = vmatprep.subr.mxu0 0.0
  %3225 = vmatpush1.msra.mxu0 %v2950
  %3226 = vmatprep.subr.mxu0 0.0
  %3227 = vmatpush1.msra.mxu0 %v2948
  %3228 = vmatprep.subr.mxu0 0.0
  %3229 = vmatpush1.msra.mxu0 %v2946
  %3230 = vmatprep.subr.mxu0 0.0
  %3231 = vmatpush1.msra.mxu0 %v2944
  %3232 = vmatprep.subr.mxu0 0.0
  %3233 = vmatpush1.msra.mxu0 %v2942
  %3234 = vmatprep.subr.mxu0 0.0
  %3235 = vmatpush1.msra.mxu0 %v2940
  %3236 = vmatprep.subr.mxu0 0.0
  %3237 = vmatpush1.msra.mxu0 %v2938
  %3238 = vmatprep.subr.mxu0 0.0
  %3239 = vmatpush1.msra.mxu0 %v2936
  %3240 = vmatprep.subr.mxu0 0.0
  %3241 = vmatpush2.msra.mxu0 %v2998
  %3242 = vmatprep.subr.mxu0 0.0
  %3243 = vmatpush2.msra.mxu0 %v2996
  %3244 = vmatprep.subr.mxu0 0.0
  %3245 = vmatpush2.msra.mxu0 %v2994
  %3246 = vmatprep.subr.mxu0 0.0
  %3247 = vmatpush2.msra.mxu0 %v2992
  %3248 = vmatprep.subr.mxu0 0.0
  %3249 = vmatpush2.msra.mxu0 %v2990
  %3250 = vmatprep.subr.mxu0 0.0
  %3251 = vmatpush2.msra.mxu0 %v2988
  %3252 = vmatprep.subr.mxu0 0.0
  %3253 = vmatpush2.msra.mxu0 %v2986
  %3254 = vmatprep.subr.mxu0 0.0
  %3255 = vmatpush2.msra.mxu0 %v2984
  %3256 = vmatprep.subr.mxu0 0.0
  %3257 = vmatpush2.msra.mxu0 %v2982
  %3258 = vmatprep.subr.mxu0 0.0
  %3259 = vmatpush2.msra.mxu0 %v2980
  %3260 = vmatprep.subr.mxu0 0.0
  %3261 = vmatpush2.msra.mxu0 %v2978
  %3262 = vmatprep.subr.mxu0 0.0
  %3263 = vmatpush2.msra.mxu0 %v2976
  %3264 = vmatprep.subr.mxu0 0.0
  %3265 = vmatpush2.msra.mxu0 %v2974
  %3266 = vmatprep.subr.mxu0 0.0
  %3267 = vmatpush2.msra.mxu0 %v2972
  %3268 = vmatprep.subr.mxu0 0.0
  %3269 = vmatpush2.msra.mxu0 %v2970
  %3270 = vmatprep.subr.mxu0 0.0
  %3271 = vmatpush2.msra.mxu0 %v2968
  %3272 = vmatprep.mubr.f32.mxu0 %v1816
  %3273 = vmatmul.mubr.f32.gmra.mxu0 %v1815
  %v3274 = vpop.f32.mrf.mxu0
  %v3275 = vadd.f32 %v3130, %v3274
  %v3276 = vpop.f32.mrf.mxu0
  %3277 = vmatprep.mubr.f32.mxu0 %v1820
  %3278 = vmatmul.mubr.f32.gmra.mxu0 %v1819
  %v3279 = vpop.f32.mrf.mxu0
  %v3280 = vadd.f32 %v3135, %v3279
  %v3281 = vpop.f32.mrf.mxu0
  %3282 = vmatprep.mubr.f32.mxu0 %v1824
  %3283 = vmatmul.mubr.f32.gmra.mxu0 %v1823
  %v3284 = vpop.f32.mrf.mxu0
  %v3285 = vadd.f32 %v3140, %v3284
  %v3286 = vpop.f32.mrf.mxu0
  %3287 = vmatprep.mubr.f32.mxu0 %v1828
  %3288 = vmatmul.mubr.f32.gmra.mxu0 %v1827
  %v3289 = vpop.f32.mrf.mxu0
  %v3290 = vadd.f32 %v3145, %v3289
  %v3291 = vpop.f32.mrf.mxu0
  %3292 = vmatprep.mubr.f32.mxu0 %v1832
  %3293 = vmatmul.mubr.f32.gmra.mxu0 %v1831
  %v3294 = vpop.f32.mrf.mxu0
  %v3295 = vadd.f32 %v3150, %v3294
  %v3296 = vpop.f32.mrf.mxu0
  %3297 = vmatprep.mubr.f32.mxu0 %v1836
  %3298 = vmatmul.mubr.f32.gmra.mxu0 %v1835
  %v3299 = vpop.f32.mrf.mxu0
  %v3300 = vadd.f32 %v3155, %v3299
  %v3301 = vpop.f32.mrf.mxu0
  %3302 = vmatprep.mubr.f32.mxu0 %v1840
  %3303 = vmatmul.mubr.f32.gmra.mxu0 %v1839
  %v3304 = vpop.f32.mrf.mxu0
  %v3305 = vadd.f32 %v3160, %v3304
  %v3306 = vpop.f32.mrf.mxu0
  %3307 = vmatprep.mubr.f32.mxu0 %v1844
  %3308 = vmatmul.mubr.f32.gmra.mxu0 %v1843
  %v3309 = vpop.f32.mrf.mxu0
  %v3310 = vadd.f32 %v3165, %v3309
  %v3311 = vpop.f32.mrf.mxu0
  %3312 = vmatprep.mubr.f32.mxu0 %v1848
  %3313 = vmatmul.mubr.f32.gmra.mxu0 %v1847
  %v3314 = vpop.f32.mrf.mxu0
  %v3315 = vadd.f32 %v3170, %v3314
  %v3316 = vpop.f32.mrf.mxu0
  %3317 = vmatprep.mubr.f32.mxu0 %v1852
  %3318 = vmatmul.mubr.f32.gmra.mxu0 %v1851
  %v3319 = vpop.f32.mrf.mxu0
  %v3320 = vadd.f32 %v3175, %v3319
  %v3321 = vpop.f32.mrf.mxu0
  %3322 = vmatprep.mubr.f32.mxu0 %v1856
  %3323 = vmatmul.mubr.f32.gmra.mxu0 %v1855
  %v3324 = vpop.f32.mrf.mxu0
  %v3325 = vadd.f32 %v3180, %v3324
  %v3326 = vpop.f32.mrf.mxu0
  %3327 = vmatprep.mubr.f32.mxu0 %v1860
  %3328 = vmatmul.mubr.f32.gmra.mxu0 %v1859
  %v3329 = vpop.f32.mrf.mxu0
  %v3330 = vadd.f32 %v3185, %v3329
  %v3331 = vpop.f32.mrf.mxu0
  %3332 = vmatprep.mubr.f32.mxu0 %v1864
  %3333 = vmatmul.mubr.f32.gmra.mxu0 %v1863
  %v3334 = vpop.f32.mrf.mxu0
  %v3335 = vadd.f32 %v3190, %v3334
  %v3336 = vpop.f32.mrf.mxu0
  %3337 = vmatprep.mubr.f32.mxu0 %v1868
  %3338 = vmatmul.mubr.f32.gmra.mxu0 %v1867
  %v3339 = vpop.f32.mrf.mxu0
  %v3340 = vadd.f32 %v3195, %v3339
  %v3341 = vpop.f32.mrf.mxu0
  %3342 = vmatprep.mubr.f32.mxu0 %v1872
  %3343 = vmatmul.mubr.f32.gmra.mxu0 %v1871
  %v3344 = vpop.f32.mrf.mxu0
  %v3345 = vadd.f32 %v3200, %v3344
  %v3346 = vpop.f32.mrf.mxu0
  %3347 = vmatprep.mubr.f32.mxu0 %v1876
  %3348 = vmatmul.mubr.f32.gmra.mxu0 %v1875
  %v3349 = vpop.f32.mrf.mxu0
  %v3350 = vadd.f32 %v3205, %v3349
  %v3351 = vpop.f32.mrf.mxu0
  %3352 = vdwg.mxu0
  %3369 = vrot.lane.b32.xlu0 %v3275, 4
  %v3370 = vpop.permute.xlu0 %3369
  %3371 = vrot.lane.b32.xlu0 %v3280, 4
  %v3372 = vpop.permute.xlu0 %3371
  %3373 = vrot.lane.b32.xlu0 %v3285, 4
  %v3374 = vpop.permute.xlu0 %3373
  %3375 = vrot.lane.b32.xlu0 %v3290, 4
  %v3376 = vpop.permute.xlu0 %3375
  %3377 = vrot.lane.b32.xlu0 %v3295, 4
  %v3378 = vpop.permute.xlu0 %3377
  %3379 = vrot.lane.b32.xlu0 %v3300, 4
  %v3380 = vpop.permute.xlu0 %3379
  %3381 = vrot.lane.b32.xlu0 %v3305, 4
  %v3382 = vpop.permute.xlu0 %3381
  %3383 = vrot.lane.b32.xlu0 %v3310, 4
  %v3384 = vpop.permute.xlu0 %3383
  %3385 = vrot.lane.b32.xlu0 %v3315, 4
  %v3386 = vpop.permute.xlu0 %3385
  %3387 = vrot.lane.b32.xlu0 %v3320, 4
  %v3388 = vpop.permute.xlu0 %3387
  %3389 = vrot.lane.b32.xlu0 %v3325, 4
  %v3390 = vpop.permute.xlu0 %3389
  %3391 = vrot.lane.b32.xlu0 %v3330, 4
  %v3392 = vpop.permute.xlu0 %3391
  %3393 = vrot.lane.b32.xlu0 %v3335, 4
  %v3394 = vpop.permute.xlu0 %3393
  %3395 = vrot.lane.b32.xlu0 %v3340, 4
  %v3396 = vpop.permute.xlu0 %3395
  %3397 = vrot.lane.b32.xlu0 %v3345, 4
  %v3398 = vpop.permute.xlu0 %3397
  %3399 = vrot.lane.b32.xlu0 %v3350, 4
  %v3400 = vpop.permute.xlu0 %3399
  %vm3417 = vcmask 64544
  %3418 = vst.msk [vmem:[%s2] sm:$0xff] %vm3417, %v3370
  %3419 = vst.msk [vmem:[%s2 + $0x8] sm:$0xff] %vm3417, %v3372
  %3420 = vst.msk [vmem:[%s2 + $0x10] sm:$0xff] %vm3417, %v3374
  %3421 = vst.msk [vmem:[%s2 + $0x18] sm:$0xff] %vm3417, %v3376
  %3422 = vst.msk [vmem:[%s2 + $0x20] sm:$0xff] %vm3417, %v3378
  %3423 = vst.msk [vmem:[%s2 + $0x28] sm:$0xff] %vm3417, %v3380
  %3424 = vst.msk [vmem:[%s2 + $0x30] sm:$0xff] %vm3417, %v3382
  %3425 = vst.msk [vmem:[%s2 + $0x38] sm:$0xff] %vm3417, %v3384
  %3426 = vst.msk [vmem:[%s2 + $0x40] sm:$0xff] %vm3417, %v3386
  %3427 = vst.msk [vmem:[%s2 + $0x48] sm:$0xff] %vm3417, %v3388
  %3428 = vst.msk [vmem:[%s2 + $0x50] sm:$0xff] %vm3417, %v3390
  %3429 = vst.msk [vmem:[%s2 + $0x58] sm:$0xff] %vm3417, %v3392
  %3430 = vst.msk [vmem:[%s2 + $0x60] sm:$0xff] %vm3417, %v3394
  %3431 = vst.msk [vmem:[%s2 + $0x68] sm:$0xff] %vm3417, %v3396
  %3432 = vst.msk [vmem:[%s2 + $0x70] sm:$0xff] %vm3417, %v3398
  %3433 = vst.msk [vmem:[%s2 + $0x78] sm:$0xff] %vm3417, %v3400
  %v3434 = vmul.f32 %v11, 64.0
  %v3435 = vmul.f32 %v12, 64.0
  %v3436 = vmul.f32 %v13, 64.0
  %v3437 = vmul.f32 %v14, 64.0
  %v3438 = vmul.f32 %v15, 64.0
  %v3439 = vmul.f32 %v16, 64.0
  %v3440 = vmul.f32 %v17, 64.0
  %v3441 = vmul.f32 %v18, 64.0
  %v3442 = vmul.f32 %v19, 64.0
  %v3443 = vmul.f32 %v20, 64.0
  %v3444 = vmul.f32 %v21, 64.0
  %v3445 = vmul.f32 %v22, 64.0
  %v3446 = vmul.f32 %v23, 64.0
  %v3447 = vmul.f32 %v24, 64.0
  %v3448 = vmul.f32 %v25, 64.0
  %v3449 = vmul.f32 %v26, 64.0
  %v3450 = vfloor.f32 %v3434
  %v3451 = vfloor.f32 %v3435
  %v3452 = vfloor.f32 %v3436
  %v3453 = vfloor.f32 %v3437
  %v3454 = vfloor.f32 %v3438
  %v3455 = vfloor.f32 %v3439
  %v3456 = vfloor.f32 %v3440
  %v3457 = vfloor.f32 %v3441
  %v3458 = vfloor.f32 %v3442
  %v3459 = vfloor.f32 %v3443
  %v3460 = vfloor.f32 %v3444
  %v3461 = vfloor.f32 %v3445
  %v3462 = vfloor.f32 %v3446
  %v3463 = vfloor.f32 %v3447
  %v3464 = vfloor.f32 %v3448
  %v3465 = vfloor.f32 %v3449
  %v3466 = vcvt.f32.s32.to.zero.pseudo %v3450
  %v3467 = vcvt.f32.s32.to.zero.pseudo %v3451
  %v3468 = vcvt.f32.s32.to.zero.pseudo %v3452
  %v3469 = vcvt.f32.s32.to.zero.pseudo %v3453
  %v3470 = vcvt.f32.s32.to.zero.pseudo %v3454
  %v3471 = vcvt.f32.s32.to.zero.pseudo %v3455
  %v3472 = vcvt.f32.s32.to.zero.pseudo %v3456
  %v3473 = vcvt.f32.s32.to.zero.pseudo %v3457
  %v3474 = vcvt.f32.s32.to.zero.pseudo %v3458
  %v3475 = vcvt.f32.s32.to.zero.pseudo %v3459
  %v3476 = vcvt.f32.s32.to.zero.pseudo %v3460
  %v3477 = vcvt.f32.s32.to.zero.pseudo %v3461
  %v3478 = vcvt.f32.s32.to.zero.pseudo %v3462
  %v3479 = vcvt.f32.s32.to.zero.pseudo %v3463
  %v3480 = vcvt.f32.s32.to.zero.pseudo %v3464
  %v3481 = vcvt.f32.s32.to.zero.pseudo %v3465
  %v3482 = vmul.u32 %v3466, 2654435761
  %v3483 = vmul.u32 %v3467, 2654435761
  %v3484 = vmul.u32 %v3468, 2654435761
  %v3485 = vmul.u32 %v3469, 2654435761
  %v3486 = vmul.u32 %v3470, 2654435761
  %v3487 = vmul.u32 %v3471, 2654435761
  %v3488 = vmul.u32 %v3472, 2654435761
  %v3489 = vmul.u32 %v3473, 2654435761
  %v3490 = vmul.u32 %v3474, 2654435761
  %v3491 = vmul.u32 %v3475, 2654435761
  %v3492 = vmul.u32 %v3476, 2654435761
  %v3493 = vmul.u32 %v3477, 2654435761
  %v3494 = vmul.u32 %v3478, 2654435761
  %v3495 = vmul.u32 %v3479, 2654435761
  %v3496 = vmul.u32 %v3480, 2654435761
  %v3497 = vmul.u32 %v3481, 2654435761
  %3498 = vrot.lane.b32.xlu0 %v3482, 127
  %v3499 = vpop.permute.xlu0 %3498
  %3500 = vrot.lane.b32.xlu0 %v3483, 127
  %v3501 = vpop.permute.xlu0 %3500
  %3502 = vrot.lane.b32.xlu0 %v3484, 127
  %v3503 = vpop.permute.xlu0 %3502
  %3504 = vrot.lane.b32.xlu0 %v3485, 127
  %v3505 = vpop.permute.xlu0 %3504
  %3506 = vrot.lane.b32.xlu0 %v3486, 127
  %v3507 = vpop.permute.xlu0 %3506
  %3508 = vrot.lane.b32.xlu0 %v3487, 127
  %v3509 = vpop.permute.xlu0 %3508
  %3510 = vrot.lane.b32.xlu0 %v3488, 127
  %v3511 = vpop.permute.xlu0 %3510
  %3512 = vrot.lane.b32.xlu0 %v3489, 127
  %v3513 = vpop.permute.xlu0 %3512
  %3514 = vrot.lane.b32.xlu0 %v3490, 127
  %v3515 = vpop.permute.xlu0 %3514
  %3516 = vrot.lane.b32.xlu0 %v3491, 127
  %v3517 = vpop.permute.xlu0 %3516
  %3518 = vrot.lane.b32.xlu0 %v3492, 127
  %v3519 = vpop.permute.xlu0 %3518
  %3520 = vrot.lane.b32.xlu0 %v3493, 127
  %v3521 = vpop.permute.xlu0 %3520
  %3522 = vrot.lane.b32.xlu0 %v3494, 127
  %v3523 = vpop.permute.xlu0 %3522
  %3524 = vrot.lane.b32.xlu0 %v3495, 127
  %v3525 = vpop.permute.xlu0 %3524
  %3526 = vrot.lane.b32.xlu0 %v3496, 127
  %v3527 = vpop.permute.xlu0 %3526
  %3528 = vrot.lane.b32.xlu0 %v3497, 127
  %v3529 = vpop.permute.xlu0 %3528
  %v3530 = vxor.u32 %v3466, %v3499
  %v3531 = vxor.u32 %v3467, %v3501
  %v3532 = vxor.u32 %v3468, %v3503
  %v3533 = vxor.u32 %v3469, %v3505
  %v3534 = vxor.u32 %v3470, %v3507
  %v3535 = vxor.u32 %v3471, %v3509
  %v3536 = vxor.u32 %v3472, %v3511
  %v3537 = vxor.u32 %v3473, %v3513
  %v3538 = vxor.u32 %v3474, %v3515
  %v3539 = vxor.u32 %v3475, %v3517
  %v3540 = vxor.u32 %v3476, %v3519
  %v3541 = vxor.u32 %v3477, %v3521
  %v3542 = vxor.u32 %v3478, %v3523
  %v3543 = vxor.u32 %v3479, %v3525
  %v3544 = vxor.u32 %v3480, %v3527
  %v3545 = vxor.u32 %v3481, %v3529
  %v3546 = vmul.u32 %v3466, 805459861
  %v3547 = vmul.u32 %v3467, 805459861
  %v3548 = vmul.u32 %v3468, 805459861
  %v3549 = vmul.u32 %v3469, 805459861
  %v3550 = vmul.u32 %v3470, 805459861
  %v3551 = vmul.u32 %v3471, 805459861
  %v3552 = vmul.u32 %v3472, 805459861
  %v3553 = vmul.u32 %v3473, 805459861
  %v3554 = vmul.u32 %v3474, 805459861
  %v3555 = vmul.u32 %v3475, 805459861
  %v3556 = vmul.u32 %v3476, 805459861
  %v3557 = vmul.u32 %v3477, 805459861
  %v3558 = vmul.u32 %v3478, 805459861
  %v3559 = vmul.u32 %v3479, 805459861
  %v3560 = vmul.u32 %v3480, 805459861
  %v3561 = vmul.u32 %v3481, 805459861
  %3562 = vrot.lane.b32.xlu0 %v3546, 126
  %v3563 = vpop.permute.xlu0 %3562
  %3564 = vrot.lane.b32.xlu0 %v3547, 126
  %v3565 = vpop.permute.xlu0 %3564
  %3566 = vrot.lane.b32.xlu0 %v3548, 126
  %v3567 = vpop.permute.xlu0 %3566
  %3568 = vrot.lane.b32.xlu0 %v3549, 126
  %v3569 = vpop.permute.xlu0 %3568
  %3570 = vrot.lane.b32.xlu0 %v3550, 126
  %v3571 = vpop.permute.xlu0 %3570
  %3572 = vrot.lane.b32.xlu0 %v3551, 126
  %v3573 = vpop.permute.xlu0 %3572
  %3574 = vrot.lane.b32.xlu0 %v3552, 126
  %v3575 = vpop.permute.xlu0 %3574
  %3576 = vrot.lane.b32.xlu0 %v3553, 126
  %v3577 = vpop.permute.xlu0 %3576
  %3578 = vrot.lane.b32.xlu0 %v3554, 126
  %v3579 = vpop.permute.xlu0 %3578
  %3580 = vrot.lane.b32.xlu0 %v3555, 126
  %v3581 = vpop.permute.xlu0 %3580
  %3582 = vrot.lane.b32.xlu0 %v3556, 126
  %v3583 = vpop.permute.xlu0 %3582
  %3584 = vrot.lane.b32.xlu0 %v3557, 126
  %v3585 = vpop.permute.xlu0 %3584
  %3586 = vrot.lane.b32.xlu0 %v3558, 126
  %v3587 = vpop.permute.xlu0 %3586
  %3588 = vrot.lane.b32.xlu0 %v3559, 126
  %v3589 = vpop.permute.xlu0 %3588
  %3590 = vrot.lane.b32.xlu0 %v3560, 126
  %v3591 = vpop.permute.xlu0 %3590
  %3592 = vrot.lane.b32.xlu0 %v3561, 126
  %v3593 = vpop.permute.xlu0 %3592
  %v3594 = vxor.u32 %v3530, %v3563
  %v3595 = vxor.u32 %v3531, %v3565
  %v3596 = vxor.u32 %v3532, %v3567
  %v3597 = vxor.u32 %v3533, %v3569
  %v3598 = vxor.u32 %v3534, %v3571
  %v3599 = vxor.u32 %v3535, %v3573
  %v3600 = vxor.u32 %v3536, %v3575
  %v3601 = vxor.u32 %v3537, %v3577
  %v3602 = vxor.u32 %v3538, %v3579
  %v3603 = vxor.u32 %v3539, %v3581
  %v3604 = vxor.u32 %v3540, %v3583
  %v3605 = vxor.u32 %v3541, %v3585
  %v3606 = vxor.u32 %v3542, %v3587
  %v3607 = vxor.u32 %v3543, %v3589
  %v3608 = vxor.u32 %v3544, %v3591
  %v3609 = vxor.u32 %v3545, %v3593
  %v3610 = vand.u32 %v3594, 1023
  %v3611 = vand.u32 %v3595, 1023
  %v3612 = vand.u32 %v3596, 1023
  %v3613 = vand.u32 %v3597, 1023
  %v3614 = vand.u32 %v3598, 1023
  %v3615 = vand.u32 %v3599, 1023
  %v3616 = vand.u32 %v3600, 1023
  %v3617 = vand.u32 %v3601, 1023
  %v3618 = vand.u32 %v3602, 1023
  %v3619 = vand.u32 %v3603, 1023
  %v3620 = vand.u32 %v3604, 1023
  %v3621 = vand.u32 %v3605, 1023
  %v3622 = vand.u32 %v3606, 1023
  %v3623 = vand.u32 %v3607, 1023
  %v3624 = vand.u32 %v3608, 1023
  %v3625 = vand.u32 %v3609, 1023
  %3626 = vset.pattern.permute.xlu0 0
  %3627 = vperm.xlu0 %3626, %v3610
  %v3628 = vpop.permute.xlu0 %3627
  %3629 = vset.pattern.permute.xlu0 0
  %3630 = vperm.xlu0 %3629, %v3611
  %v3631 = vpop.permute.xlu0 %3630
  %3632 = vset.pattern.permute.xlu0 0
  %3633 = vperm.xlu0 %3632, %v3612
  %v3634 = vpop.permute.xlu0 %3633
  %3635 = vset.pattern.permute.xlu0 0
  %3636 = vperm.xlu0 %3635, %v3613
  %v3637 = vpop.permute.xlu0 %3636
  %3638 = vset.pattern.permute.xlu0 0
  %3639 = vperm.xlu0 %3638, %v3614
  %v3640 = vpop.permute.xlu0 %3639
  %3641 = vset.pattern.permute.xlu0 0
  %3642 = vperm.xlu0 %3641, %v3615
  %v3643 = vpop.permute.xlu0 %3642
  %3644 = vset.pattern.permute.xlu0 0
  %3645 = vperm.xlu0 %3644, %v3616
  %v3646 = vpop.permute.xlu0 %3645
  %3647 = vset.pattern.permute.xlu0 0
  %3648 = vperm.xlu0 %3647, %v3617
  %v3649 = vpop.permute.xlu0 %3648
  %3650 = vset.pattern.permute.xlu0 0
  %3651 = vperm.xlu0 %3650, %v3618
  %v3652 = vpop.permute.xlu0 %3651
  %3653 = vset.pattern.permute.xlu0 0
  %3654 = vperm.xlu0 %3653, %v3619
  %v3655 = vpop.permute.xlu0 %3654
  %3656 = vset.pattern.permute.xlu0 0
  %3657 = vperm.xlu0 %3656, %v3620
  %v3658 = vpop.permute.xlu0 %3657
  %3659 = vset.pattern.permute.xlu0 0
  %3660 = vperm.xlu0 %3659, %v3621
  %v3661 = vpop.permute.xlu0 %3660
  %3662 = vset.pattern.permute.xlu0 0
  %3663 = vperm.xlu0 %3662, %v3622
  %v3664 = vpop.permute.xlu0 %3663
  %3665 = vset.pattern.permute.xlu0 0
  %3666 = vperm.xlu0 %3665, %v3623
  %v3667 = vpop.permute.xlu0 %3666
  %3668 = vset.pattern.permute.xlu0 0
  %3669 = vperm.xlu0 %3668, %v3624
  %v3670 = vpop.permute.xlu0 %3669
  %3671 = vset.pattern.permute.xlu0 0
  %3672 = vperm.xlu0 %3671, %v3625
  %v3673 = vpop.permute.xlu0 %3672
  %vm3674 = vcmp.eq.s32.totalorder %v28, %v3628
  %vm3675 = vcmp.eq.s32.totalorder %v29, %v3628
  %vm3676 = vcmp.eq.s32.totalorder %v30, %v3628
  %vm3677 = vcmp.eq.s32.totalorder %v31, %v3628
  %vm3678 = vcmp.eq.s32.totalorder %v28, %v3631
  %vm3679 = vcmp.eq.s32.totalorder %v29, %v3631
  %vm3680 = vcmp.eq.s32.totalorder %v30, %v3631
  %vm3681 = vcmp.eq.s32.totalorder %v31, %v3631
  %vm3682 = vcmp.eq.s32.totalorder %v28, %v3634
  %vm3683 = vcmp.eq.s32.totalorder %v29, %v3634
  %vm3684 = vcmp.eq.s32.totalorder %v30, %v3634
  %vm3685 = vcmp.eq.s32.totalorder %v31, %v3634
  %vm3686 = vcmp.eq.s32.totalorder %v28, %v3637
  %vm3687 = vcmp.eq.s32.totalorder %v29, %v3637
  %vm3688 = vcmp.eq.s32.totalorder %v30, %v3637
  %vm3689 = vcmp.eq.s32.totalorder %v31, %v3637
  %vm3690 = vcmp.eq.s32.totalorder %v28, %v3640
  %vm3691 = vcmp.eq.s32.totalorder %v29, %v3640
  %vm3692 = vcmp.eq.s32.totalorder %v30, %v3640
  %vm3693 = vcmp.eq.s32.totalorder %v31, %v3640
  %vm3694 = vcmp.eq.s32.totalorder %v28, %v3643
  %vm3695 = vcmp.eq.s32.totalorder %v29, %v3643
  %vm3696 = vcmp.eq.s32.totalorder %v30, %v3643
  %vm3697 = vcmp.eq.s32.totalorder %v31, %v3643
  %vm3698 = vcmp.eq.s32.totalorder %v28, %v3646
  %vm3699 = vcmp.eq.s32.totalorder %v29, %v3646
  %vm3700 = vcmp.eq.s32.totalorder %v30, %v3646
  %vm3701 = vcmp.eq.s32.totalorder %v31, %v3646
  %vm3702 = vcmp.eq.s32.totalorder %v28, %v3649
  %vm3703 = vcmp.eq.s32.totalorder %v29, %v3649
  %vm3704 = vcmp.eq.s32.totalorder %v30, %v3649
  %vm3705 = vcmp.eq.s32.totalorder %v31, %v3649
  %vm3706 = vcmp.eq.s32.totalorder %v28, %v3652
  %vm3707 = vcmp.eq.s32.totalorder %v29, %v3652
  %vm3708 = vcmp.eq.s32.totalorder %v30, %v3652
  %vm3709 = vcmp.eq.s32.totalorder %v31, %v3652
  %vm3710 = vcmp.eq.s32.totalorder %v28, %v3655
  %vm3711 = vcmp.eq.s32.totalorder %v29, %v3655
  %vm3712 = vcmp.eq.s32.totalorder %v30, %v3655
  %vm3713 = vcmp.eq.s32.totalorder %v31, %v3655
  %vm3714 = vcmp.eq.s32.totalorder %v28, %v3658
  %vm3715 = vcmp.eq.s32.totalorder %v29, %v3658
  %vm3716 = vcmp.eq.s32.totalorder %v30, %v3658
  %vm3717 = vcmp.eq.s32.totalorder %v31, %v3658
  %vm3718 = vcmp.eq.s32.totalorder %v28, %v3661
  %vm3719 = vcmp.eq.s32.totalorder %v29, %v3661
  %vm3720 = vcmp.eq.s32.totalorder %v30, %v3661
  %vm3721 = vcmp.eq.s32.totalorder %v31, %v3661
  %vm3722 = vcmp.eq.s32.totalorder %v28, %v3664
  %vm3723 = vcmp.eq.s32.totalorder %v29, %v3664
  %vm3724 = vcmp.eq.s32.totalorder %v30, %v3664
  %vm3725 = vcmp.eq.s32.totalorder %v31, %v3664
  %vm3726 = vcmp.eq.s32.totalorder %v28, %v3667
  %vm3727 = vcmp.eq.s32.totalorder %v29, %v3667
  %vm3728 = vcmp.eq.s32.totalorder %v30, %v3667
  %vm3729 = vcmp.eq.s32.totalorder %v31, %v3667
  %vm3730 = vcmp.eq.s32.totalorder %v28, %v3670
  %vm3731 = vcmp.eq.s32.totalorder %v29, %v3670
  %vm3732 = vcmp.eq.s32.totalorder %v30, %v3670
  %vm3733 = vcmp.eq.s32.totalorder %v31, %v3670
  %vm3734 = vcmp.eq.s32.totalorder %v28, %v3673
  %vm3735 = vcmp.eq.s32.totalorder %v29, %v3673
  %vm3736 = vcmp.eq.s32.totalorder %v30, %v3673
  %vm3737 = vcmp.eq.s32.totalorder %v31, %v3673
  %v3738 = vsel %vm3674, 1, 0
  %v3739 = vsel %vm3675, 1, 0
  %v3740 = vsel %vm3676, 1, 0
  %v3741 = vsel %vm3677, 1, 0
  %v3742 = vsel %vm3678, 1, 0
  %v3743 = vsel %vm3679, 1, 0
  %v3744 = vsel %vm3680, 1, 0
  %v3745 = vsel %vm3681, 1, 0
  %v3746 = vsel %vm3682, 1, 0
  %v3747 = vsel %vm3683, 1, 0
  %v3748 = vsel %vm3684, 1, 0
  %v3749 = vsel %vm3685, 1, 0
  %v3750 = vsel %vm3686, 1, 0
  %v3751 = vsel %vm3687, 1, 0
  %v3752 = vsel %vm3688, 1, 0
  %v3753 = vsel %vm3689, 1, 0
  %v3754 = vsel %vm3690, 1, 0
  %v3755 = vsel %vm3691, 1, 0
  %v3756 = vsel %vm3692, 1, 0
  %v3757 = vsel %vm3693, 1, 0
  %v3758 = vsel %vm3694, 1, 0
  %v3759 = vsel %vm3695, 1, 0
  %v3760 = vsel %vm3696, 1, 0
  %v3761 = vsel %vm3697, 1, 0
  %v3762 = vsel %vm3698, 1, 0
  %v3763 = vsel %vm3699, 1, 0
  %v3764 = vsel %vm3700, 1, 0
  %v3765 = vsel %vm3701, 1, 0
  %v3766 = vsel %vm3702, 1, 0
  %v3767 = vsel %vm3703, 1, 0
  %v3768 = vsel %vm3704, 1, 0
  %v3769 = vsel %vm3705, 1, 0
  %v3770 = vsel %vm3706, 1, 0
  %v3771 = vsel %vm3707, 1, 0
  %v3772 = vsel %vm3708, 1, 0
  %v3773 = vsel %vm3709, 1, 0
  %v3774 = vsel %vm3710, 1, 0
  %v3775 = vsel %vm3711, 1, 0
  %v3776 = vsel %vm3712, 1, 0
  %v3777 = vsel %vm3713, 1, 0
  %v3778 = vsel %vm3714, 1, 0
  %v3779 = vsel %vm3715, 1, 0
  %v3780 = vsel %vm3716, 1, 0
  %v3781 = vsel %vm3717, 1, 0
  %v3782 = vsel %vm3718, 1, 0
  %v3783 = vsel %vm3719, 1, 0
  %v3784 = vsel %vm3720, 1, 0
  %v3785 = vsel %vm3721, 1, 0
  %v3786 = vsel %vm3722, 1, 0
  %v3787 = vsel %vm3723, 1, 0
  %v3788 = vsel %vm3724, 1, 0
  %v3789 = vsel %vm3725, 1, 0
  %v3790 = vsel %vm3726, 1, 0
  %v3791 = vsel %vm3727, 1, 0
  %v3792 = vsel %vm3728, 1, 0
  %v3793 = vsel %vm3729, 1, 0
  %v3794 = vsel %vm3730, 1, 0
  %v3795 = vsel %vm3731, 1, 0
  %v3796 = vsel %vm3732, 1, 0
  %v3797 = vsel %vm3733, 1, 0
  %v3798 = vsel %vm3734, 1, 0
  %v3799 = vsel %vm3735, 1, 0
  %v3800 = vsel %vm3736, 1, 0
  %v3801 = vsel %vm3737, 1, 0
  %v3802 = vcvt.s32.f32 %v3738
  %v3803 = vcvt.s32.f32 %v3739
  %v3804 = vcvt.s32.f32 %v3740
  %v3805 = vcvt.s32.f32 %v3741
  %v3806 = vcvt.s32.f32 %v3742
  %v3807 = vcvt.s32.f32 %v3743
  %v3808 = vcvt.s32.f32 %v3744
  %v3809 = vcvt.s32.f32 %v3745
  %v3810 = vcvt.s32.f32 %v3746
  %v3811 = vcvt.s32.f32 %v3747
  %v3812 = vcvt.s32.f32 %v3748
  %v3813 = vcvt.s32.f32 %v3749
  %v3814 = vcvt.s32.f32 %v3750
  %v3815 = vcvt.s32.f32 %v3751
  %v3816 = vcvt.s32.f32 %v3752
  %v3817 = vcvt.s32.f32 %v3753
  %v3818 = vcvt.s32.f32 %v3754
  %v3819 = vcvt.s32.f32 %v3755
  %v3820 = vcvt.s32.f32 %v3756
  %v3821 = vcvt.s32.f32 %v3757
  %v3822 = vcvt.s32.f32 %v3758
  %v3823 = vcvt.s32.f32 %v3759
  %v3824 = vcvt.s32.f32 %v3760
  %v3825 = vcvt.s32.f32 %v3761
  %v3826 = vcvt.s32.f32 %v3762
  %v3827 = vcvt.s32.f32 %v3763
  %v3828 = vcvt.s32.f32 %v3764
  %v3829 = vcvt.s32.f32 %v3765
  %v3830 = vcvt.s32.f32 %v3766
  %v3831 = vcvt.s32.f32 %v3767
  %v3832 = vcvt.s32.f32 %v3768
  %v3833 = vcvt.s32.f32 %v3769
  %v3834 = vcvt.s32.f32 %v3770
  %v3835 = vcvt.s32.f32 %v3771
  %v3836 = vcvt.s32.f32 %v3772
  %v3837 = vcvt.s32.f32 %v3773
  %v3838 = vcvt.s32.f32 %v3774
  %v3839 = vcvt.s32.f32 %v3775
  %v3840 = vcvt.s32.f32 %v3776
  %v3841 = vcvt.s32.f32 %v3777
  %v3842 = vcvt.s32.f32 %v3778
  %v3843 = vcvt.s32.f32 %v3779
  %v3844 = vcvt.s32.f32 %v3780
  %v3845 = vcvt.s32.f32 %v3781
  %v3846 = vcvt.s32.f32 %v3782
  %v3847 = vcvt.s32.f32 %v3783
  %v3848 = vcvt.s32.f32 %v3784
  %v3849 = vcvt.s32.f32 %v3785
  %v3850 = vcvt.s32.f32 %v3786
  %v3851 = vcvt.s32.f32 %v3787
  %v3852 = vcvt.s32.f32 %v3788
  %v3853 = vcvt.s32.f32 %v3789
  %v3854 = vcvt.s32.f32 %v3790
  %v3855 = vcvt.s32.f32 %v3791
  %v3856 = vcvt.s32.f32 %v3792
  %v3857 = vcvt.s32.f32 %v3793
  %v3858 = vcvt.s32.f32 %v3794
  %v3859 = vcvt.s32.f32 %v3795
  %v3860 = vcvt.s32.f32 %v3796
  %v3861 = vcvt.s32.f32 %v3797
  %v3862 = vcvt.s32.f32 %v3798
  %v3863 = vcvt.s32.f32 %v3799
  %v3864 = vcvt.s32.f32 %v3800
  %v3865 = vcvt.s32.f32 %v3801
  %v3866 = vld [vmem:[%s1] sm:$0xff]
  %v3867 = vld [vmem:[%s1 + $0x8] sm:$0xff]
  %v3868 = vld [vmem:[%s1 + $0x10] sm:$0xff]
  %v3869 = vld [vmem:[%s1 + $0x18] sm:$0xff]
  %v3870 = vld [vmem:[%s1 + $0x20] sm:$0xff]
  %v3871 = vld [vmem:[%s1 + $0x28] sm:$0xff]
  %v3872 = vld [vmem:[%s1 + $0x30] sm:$0xff]
  %v3873 = vld [vmem:[%s1 + $0x38] sm:$0xff]
  %v3874 = vld [vmem:[%s1 + $0x40] sm:$0xff]
  %v3875 = vld [vmem:[%s1 + $0x48] sm:$0xff]
  %v3876 = vld [vmem:[%s1 + $0x50] sm:$0xff]
  %v3877 = vld [vmem:[%s1 + $0x58] sm:$0xff]
  %v3878 = vld [vmem:[%s1 + $0x60] sm:$0xff]
  %v3879 = vld [vmem:[%s1 + $0x68] sm:$0xff]
  %v3880 = vld [vmem:[%s1 + $0x70] sm:$0xff]
  %v3881 = vld [vmem:[%s1 + $0x78] sm:$0xff]
  %v3882 = vld [vmem:[%s1 + $0x80] sm:$0xff]
  %v3883 = vld [vmem:[%s1 + $0x88] sm:$0xff]
  %v3884 = vld [vmem:[%s1 + $0x90] sm:$0xff]
  %v3885 = vld [vmem:[%s1 + $0x98] sm:$0xff]
  %v3886 = vld [vmem:[%s1 + $0xa0] sm:$0xff]
  %v3887 = vld [vmem:[%s1 + $0xa8] sm:$0xff]
  %v3888 = vld [vmem:[%s1 + $0xb0] sm:$0xff]
  %v3889 = vld [vmem:[%s1 + $0xb8] sm:$0xff]
  %v3890 = vld [vmem:[%s1 + $0xc0] sm:$0xff]
  %v3891 = vld [vmem:[%s1 + $0xc8] sm:$0xff]
  %v3892 = vld [vmem:[%s1 + $0xd0] sm:$0xff]
  %v3893 = vld [vmem:[%s1 + $0xd8] sm:$0xff]
  %v3894 = vld [vmem:[%s1 + $0xe0] sm:$0xff]
  %v3895 = vld [vmem:[%s1 + $0xe8] sm:$0xff]
  %v3896 = vld [vmem:[%s1 + $0xf0] sm:$0xff]
  %v3897 = vld [vmem:[%s1 + $0xf8] sm:$0xff]
  %v3898 = vld [vmem:[%s1 + $0x100] sm:$0xff]
  %v3899 = vld [vmem:[%s1 + $0x108] sm:$0xff]
  %v3900 = vld [vmem:[%s1 + $0x110] sm:$0xff]
  %v3901 = vld [vmem:[%s1 + $0x118] sm:$0xff]
  %v3902 = vld [vmem:[%s1 + $0x120] sm:$0xff]
  %v3903 = vld [vmem:[%s1 + $0x128] sm:$0xff]
  %v3904 = vld [vmem:[%s1 + $0x130] sm:$0xff]
  %v3905 = vld [vmem:[%s1 + $0x138] sm:$0xff]
  %v3906 = vld [vmem:[%s1 + $0x140] sm:$0xff]
  %v3907 = vld [vmem:[%s1 + $0x148] sm:$0xff]
  %v3908 = vld [vmem:[%s1 + $0x150] sm:$0xff]
  %v3909 = vld [vmem:[%s1 + $0x158] sm:$0xff]
  %v3910 = vld [vmem:[%s1 + $0x160] sm:$0xff]
  %v3911 = vld [vmem:[%s1 + $0x168] sm:$0xff]
  %v3912 = vld [vmem:[%s1 + $0x170] sm:$0xff]
  %v3913 = vld [vmem:[%s1 + $0x178] sm:$0xff]
  %v3914 = vld [vmem:[%s1 + $0x180] sm:$0xff]
  %v3915 = vld [vmem:[%s1 + $0x188] sm:$0xff]
  %v3916 = vld [vmem:[%s1 + $0x190] sm:$0xff]
  %v3917 = vld [vmem:[%s1 + $0x198] sm:$0xff]
  %v3918 = vld [vmem:[%s1 + $0x1a0] sm:$0xff]
  %v3919 = vld [vmem:[%s1 + $0x1a8] sm:$0xff]
  %v3920 = vld [vmem:[%s1 + $0x1b0] sm:$0xff]
  %v3921 = vld [vmem:[%s1 + $0x1b8] sm:$0xff]
  %v3922 = vld [vmem:[%s1 + $0x1c0] sm:$0xff]
  %v3923 = vld [vmem:[%s1 + $0x1c8] sm:$0xff]
  %v3924 = vld [vmem:[%s1 + $0x1d0] sm:$0xff]
  %v3925 = vld [vmem:[%s1 + $0x1d8] sm:$0xff]
  %v3926 = vld [vmem:[%s1 + $0x1e0] sm:$0xff]
  %v3927 = vld [vmem:[%s1 + $0x1e8] sm:$0xff]
  %v3928 = vld [vmem:[%s1 + $0x1f0] sm:$0xff]
  %v3929 = vld [vmem:[%s1 + $0x1f8] sm:$0xff]
  %v3930 = vsub.s32 %v3610, 512
  %v3931 = vsub.s32 %v3611, 512
  %v3932 = vsub.s32 %v3612, 512
  %v3933 = vsub.s32 %v3613, 512
  %v3934 = vsub.s32 %v3614, 512
  %v3935 = vsub.s32 %v3615, 512
  %v3936 = vsub.s32 %v3616, 512
  %v3937 = vsub.s32 %v3617, 512
  %v3938 = vsub.s32 %v3618, 512
  %v3939 = vsub.s32 %v3619, 512
  %v3940 = vsub.s32 %v3620, 512
  %v3941 = vsub.s32 %v3621, 512
  %v3942 = vsub.s32 %v3622, 512
  %v3943 = vsub.s32 %v3623, 512
  %v3944 = vsub.s32 %v3624, 512
  %v3945 = vsub.s32 %v3625, 512
  %3946 = vset.pattern.permute.xlu0 0
  %3947 = vperm.xlu0 %3946, %v3930
  %v3948 = vpop.permute.xlu0 %3947
  %3949 = vset.pattern.permute.xlu0 0
  %3950 = vperm.xlu0 %3949, %v3931
  %v3951 = vpop.permute.xlu0 %3950
  %3952 = vset.pattern.permute.xlu0 0
  %3953 = vperm.xlu0 %3952, %v3932
  %v3954 = vpop.permute.xlu0 %3953
  %3955 = vset.pattern.permute.xlu0 0
  %3956 = vperm.xlu0 %3955, %v3933
  %v3957 = vpop.permute.xlu0 %3956
  %3958 = vset.pattern.permute.xlu0 0
  %3959 = vperm.xlu0 %3958, %v3934
  %v3960 = vpop.permute.xlu0 %3959
  %3961 = vset.pattern.permute.xlu0 0
  %3962 = vperm.xlu0 %3961, %v3935
  %v3963 = vpop.permute.xlu0 %3962
  %3964 = vset.pattern.permute.xlu0 0
  %3965 = vperm.xlu0 %3964, %v3936
  %v3966 = vpop.permute.xlu0 %3965
  %3967 = vset.pattern.permute.xlu0 0
  %3968 = vperm.xlu0 %3967, %v3937
  %v3969 = vpop.permute.xlu0 %3968
  %3970 = vset.pattern.permute.xlu0 0
  %3971 = vperm.xlu0 %3970, %v3938
  %v3972 = vpop.permute.xlu0 %3971
  %3973 = vset.pattern.permute.xlu0 0
  %3974 = vperm.xlu0 %3973, %v3939
  %v3975 = vpop.permute.xlu0 %3974
  %3976 = vset.pattern.permute.xlu0 0
  %3977 = vperm.xlu0 %3976, %v3940
  %v3978 = vpop.permute.xlu0 %3977
  %3979 = vset.pattern.permute.xlu0 0
  %3980 = vperm.xlu0 %3979, %v3941
  %v3981 = vpop.permute.xlu0 %3980
  %3982 = vset.pattern.permute.xlu0 0
  %3983 = vperm.xlu0 %3982, %v3942
  %v3984 = vpop.permute.xlu0 %3983
  %3985 = vset.pattern.permute.xlu0 0
  %3986 = vperm.xlu0 %3985, %v3943
  %v3987 = vpop.permute.xlu0 %3986
  %3988 = vset.pattern.permute.xlu0 0
  %3989 = vperm.xlu0 %3988, %v3944
  %v3990 = vpop.permute.xlu0 %3989
  %3991 = vset.pattern.permute.xlu0 0
  %3992 = vperm.xlu0 %3991, %v3945
  %v3993 = vpop.permute.xlu0 %3992
  %vm3994 = vcmp.eq.s32.totalorder %v28, %v3948
  %vm3995 = vcmp.eq.s32.totalorder %v29, %v3948
  %vm3996 = vcmp.eq.s32.totalorder %v30, %v3948
  %vm3997 = vcmp.eq.s32.totalorder %v31, %v3948
  %vm3998 = vcmp.eq.s32.totalorder %v28, %v3951
  %vm3999 = vcmp.eq.s32.totalorder %v29, %v3951
  %vm4000 = vcmp.eq.s32.totalorder %v30, %v3951
  %vm4001 = vcmp.eq.s32.totalorder %v31, %v3951
  %vm4002 = vcmp.eq.s32.totalorder %v28, %v3954
  %vm4003 = vcmp.eq.s32.totalorder %v29, %v3954
  %vm4004 = vcmp.eq.s32.totalorder %v30, %v3954
  %vm4005 = vcmp.eq.s32.totalorder %v31, %v3954
  %vm4006 = vcmp.eq.s32.totalorder %v28, %v3957
  %vm4007 = vcmp.eq.s32.totalorder %v29, %v3957
  %vm4008 = vcmp.eq.s32.totalorder %v30, %v3957
  %vm4009 = vcmp.eq.s32.totalorder %v31, %v3957
  %vm4010 = vcmp.eq.s32.totalorder %v28, %v3960
  %vm4011 = vcmp.eq.s32.totalorder %v29, %v3960
  %vm4012 = vcmp.eq.s32.totalorder %v30, %v3960
  %vm4013 = vcmp.eq.s32.totalorder %v31, %v3960
  %vm4014 = vcmp.eq.s32.totalorder %v28, %v3963
  %vm4015 = vcmp.eq.s32.totalorder %v29, %v3963
  %vm4016 = vcmp.eq.s32.totalorder %v30, %v3963
  %vm4017 = vcmp.eq.s32.totalorder %v31, %v3963
  %vm4018 = vcmp.eq.s32.totalorder %v28, %v3966
  %vm4019 = vcmp.eq.s32.totalorder %v29, %v3966
  %vm4020 = vcmp.eq.s32.totalorder %v30, %v3966
  %vm4021 = vcmp.eq.s32.totalorder %v31, %v3966
  %vm4022 = vcmp.eq.s32.totalorder %v28, %v3969
  %vm4023 = vcmp.eq.s32.totalorder %v29, %v3969
  %vm4024 = vcmp.eq.s32.totalorder %v30, %v3969
  %vm4025 = vcmp.eq.s32.totalorder %v31, %v3969
  %vm4026 = vcmp.eq.s32.totalorder %v28, %v3972
  %vm4027 = vcmp.eq.s32.totalorder %v29, %v3972
  %vm4028 = vcmp.eq.s32.totalorder %v30, %v3972
  %vm4029 = vcmp.eq.s32.totalorder %v31, %v3972
  %vm4030 = vcmp.eq.s32.totalorder %v28, %v3975
  %vm4031 = vcmp.eq.s32.totalorder %v29, %v3975
  %vm4032 = vcmp.eq.s32.totalorder %v30, %v3975
  %vm4033 = vcmp.eq.s32.totalorder %v31, %v3975
  %vm4034 = vcmp.eq.s32.totalorder %v28, %v3978
  %vm4035 = vcmp.eq.s32.totalorder %v29, %v3978
  %vm4036 = vcmp.eq.s32.totalorder %v30, %v3978
  %vm4037 = vcmp.eq.s32.totalorder %v31, %v3978
  %vm4038 = vcmp.eq.s32.totalorder %v28, %v3981
  %vm4039 = vcmp.eq.s32.totalorder %v29, %v3981
  %vm4040 = vcmp.eq.s32.totalorder %v30, %v3981
  %vm4041 = vcmp.eq.s32.totalorder %v31, %v3981
  %vm4042 = vcmp.eq.s32.totalorder %v28, %v3984
  %vm4043 = vcmp.eq.s32.totalorder %v29, %v3984
  %vm4044 = vcmp.eq.s32.totalorder %v30, %v3984
  %vm4045 = vcmp.eq.s32.totalorder %v31, %v3984
  %vm4046 = vcmp.eq.s32.totalorder %v28, %v3987
  %vm4047 = vcmp.eq.s32.totalorder %v29, %v3987
  %vm4048 = vcmp.eq.s32.totalorder %v30, %v3987
  %vm4049 = vcmp.eq.s32.totalorder %v31, %v3987
  %vm4050 = vcmp.eq.s32.totalorder %v28, %v3990
  %vm4051 = vcmp.eq.s32.totalorder %v29, %v3990
  %vm4052 = vcmp.eq.s32.totalorder %v30, %v3990
  %vm4053 = vcmp.eq.s32.totalorder %v31, %v3990
  %vm4054 = vcmp.eq.s32.totalorder %v28, %v3993
  %vm4055 = vcmp.eq.s32.totalorder %v29, %v3993
  %vm4056 = vcmp.eq.s32.totalorder %v30, %v3993
  %vm4057 = vcmp.eq.s32.totalorder %v31, %v3993
  %v4058 = vsel %vm3994, 1, 0
  %v4059 = vsel %vm3995, 1, 0
  %v4060 = vsel %vm3996, 1, 0
  %v4061 = vsel %vm3997, 1, 0
  %v4062 = vsel %vm3998, 1, 0
  %v4063 = vsel %vm3999, 1, 0
  %v4064 = vsel %vm4000, 1, 0
  %v4065 = vsel %vm4001, 1, 0
  %v4066 = vsel %vm4002, 1, 0
  %v4067 = vsel %vm4003, 1, 0
  %v4068 = vsel %vm4004, 1, 0
  %v4069 = vsel %vm4005, 1, 0
  %v4070 = vsel %vm4006, 1, 0
  %v4071 = vsel %vm4007, 1, 0
  %v4072 = vsel %vm4008, 1, 0
  %v4073 = vsel %vm4009, 1, 0
  %v4074 = vsel %vm4010, 1, 0
  %v4075 = vsel %vm4011, 1, 0
  %v4076 = vsel %vm4012, 1, 0
  %v4077 = vsel %vm4013, 1, 0
  %v4078 = vsel %vm4014, 1, 0
  %v4079 = vsel %vm4015, 1, 0
  %v4080 = vsel %vm4016, 1, 0
  %v4081 = vsel %vm4017, 1, 0
  %v4082 = vsel %vm4018, 1, 0
  %v4083 = vsel %vm4019, 1, 0
  %v4084 = vsel %vm4020, 1, 0
  %v4085 = vsel %vm4021, 1, 0
  %v4086 = vsel %vm4022, 1, 0
  %v4087 = vsel %vm4023, 1, 0
  %v4088 = vsel %vm4024, 1, 0
  %v4089 = vsel %vm4025, 1, 0
  %v4090 = vsel %vm4026, 1, 0
  %v4091 = vsel %vm4027, 1, 0
  %v4092 = vsel %vm4028, 1, 0
  %v4093 = vsel %vm4029, 1, 0
  %v4094 = vsel %vm4030, 1, 0
  %v4095 = vsel %vm4031, 1, 0
  %v4096 = vsel %vm4032, 1, 0
  %v4097 = vsel %vm4033, 1, 0
  %v4098 = vsel %vm4034, 1, 0
  %v4099 = vsel %vm4035, 1, 0
  %v4100 = vsel %vm4036, 1, 0
  %v4101 = vsel %vm4037, 1, 0
  %v4102 = vsel %vm4038, 1, 0
  %v4103 = vsel %vm4039, 1, 0
  %v4104 = vsel %vm4040, 1, 0
  %v4105 = vsel %vm4041, 1, 0
  %v4106 = vsel %vm4042, 1, 0
  %v4107 = vsel %vm4043, 1, 0
  %v4108 = vsel %vm4044, 1, 0
  %v4109 = vsel %vm4045, 1, 0
  %v4110 = vsel %vm4046, 1, 0
  %v4111 = vsel %vm4047, 1, 0
  %v4112 = vsel %vm4048, 1, 0
  %v4113 = vsel %vm4049, 1, 0
  %v4114 = vsel %vm4050, 1, 0
  %v4115 = vsel %vm4051, 1, 0
  %v4116 = vsel %vm4052, 1, 0
  %v4117 = vsel %vm4053, 1, 0
  %v4118 = vsel %vm4054, 1, 0
  %v4119 = vsel %vm4055, 1, 0
  %v4120 = vsel %vm4056, 1, 0
  %v4121 = vsel %vm4057, 1, 0
  %v4122 = vcvt.s32.f32 %v4058
  %v4123 = vcvt.s32.f32 %v4059
  %v4124 = vcvt.s32.f32 %v4060
  %v4125 = vcvt.s32.f32 %v4061
  %v4126 = vcvt.s32.f32 %v4062
  %v4127 = vcvt.s32.f32 %v4063
  %v4128 = vcvt.s32.f32 %v4064
  %v4129 = vcvt.s32.f32 %v4065
  %v4130 = vcvt.s32.f32 %v4066
  %v4131 = vcvt.s32.f32 %v4067
  %v4132 = vcvt.s32.f32 %v4068
  %v4133 = vcvt.s32.f32 %v4069
  %v4134 = vcvt.s32.f32 %v4070
  %v4135 = vcvt.s32.f32 %v4071
  %v4136 = vcvt.s32.f32 %v4072
  %v4137 = vcvt.s32.f32 %v4073
  %v4138 = vcvt.s32.f32 %v4074
  %v4139 = vcvt.s32.f32 %v4075
  %v4140 = vcvt.s32.f32 %v4076
  %v4141 = vcvt.s32.f32 %v4077
  %v4142 = vcvt.s32.f32 %v4078
  %v4143 = vcvt.s32.f32 %v4079
  %v4144 = vcvt.s32.f32 %v4080
  %v4145 = vcvt.s32.f32 %v4081
  %v4146 = vcvt.s32.f32 %v4082
  %v4147 = vcvt.s32.f32 %v4083
  %v4148 = vcvt.s32.f32 %v4084
  %v4149 = vcvt.s32.f32 %v4085
  %v4150 = vcvt.s32.f32 %v4086
  %v4151 = vcvt.s32.f32 %v4087
  %v4152 = vcvt.s32.f32 %v4088
  %v4153 = vcvt.s32.f32 %v4089
  %v4154 = vcvt.s32.f32 %v4090
  %v4155 = vcvt.s32.f32 %v4091
  %v4156 = vcvt.s32.f32 %v4092
  %v4157 = vcvt.s32.f32 %v4093
  %v4158 = vcvt.s32.f32 %v4094
  %v4159 = vcvt.s32.f32 %v4095
  %v4160 = vcvt.s32.f32 %v4096
  %v4161 = vcvt.s32.f32 %v4097
  %v4162 = vcvt.s32.f32 %v4098
  %v4163 = vcvt.s32.f32 %v4099
  %v4164 = vcvt.s32.f32 %v4100
  %v4165 = vcvt.s32.f32 %v4101
  %v4166 = vcvt.s32.f32 %v4102
  %v4167 = vcvt.s32.f32 %v4103
  %v4168 = vcvt.s32.f32 %v4104
  %v4169 = vcvt.s32.f32 %v4105
  %v4170 = vcvt.s32.f32 %v4106
  %v4171 = vcvt.s32.f32 %v4107
  %v4172 = vcvt.s32.f32 %v4108
  %v4173 = vcvt.s32.f32 %v4109
  %v4174 = vcvt.s32.f32 %v4110
  %v4175 = vcvt.s32.f32 %v4111
  %v4176 = vcvt.s32.f32 %v4112
  %v4177 = vcvt.s32.f32 %v4113
  %v4178 = vcvt.s32.f32 %v4114
  %v4179 = vcvt.s32.f32 %v4115
  %v4180 = vcvt.s32.f32 %v4116
  %v4181 = vcvt.s32.f32 %v4117
  %v4182 = vcvt.s32.f32 %v4118
  %v4183 = vcvt.s32.f32 %v4119
  %v4184 = vcvt.s32.f32 %v4120
  %v4185 = vcvt.s32.f32 %v4121
  %v4186 = vld [vmem:[%s1 + $0x200] sm:$0xff]
  %v4187 = vld [vmem:[%s1 + $0x208] sm:$0xff]
  %v4188 = vld [vmem:[%s1 + $0x210] sm:$0xff]
  %v4189 = vld [vmem:[%s1 + $0x218] sm:$0xff]
  %v4190 = vld [vmem:[%s1 + $0x220] sm:$0xff]
  %v4191 = vld [vmem:[%s1 + $0x228] sm:$0xff]
  %v4192 = vld [vmem:[%s1 + $0x230] sm:$0xff]
  %v4193 = vld [vmem:[%s1 + $0x238] sm:$0xff]
  %v4194 = vld [vmem:[%s1 + $0x240] sm:$0xff]
  %v4195 = vld [vmem:[%s1 + $0x248] sm:$0xff]
  %v4196 = vld [vmem:[%s1 + $0x250] sm:$0xff]
  %v4197 = vld [vmem:[%s1 + $0x258] sm:$0xff]
  %v4198 = vld [vmem:[%s1 + $0x260] sm:$0xff]
  %v4199 = vld [vmem:[%s1 + $0x268] sm:$0xff]
  %v4200 = vld [vmem:[%s1 + $0x270] sm:$0xff]
  %v4201 = vld [vmem:[%s1 + $0x278] sm:$0xff]
  %v4202 = vld [vmem:[%s1 + $0x280] sm:$0xff]
  %v4203 = vld [vmem:[%s1 + $0x288] sm:$0xff]
  %v4204 = vld [vmem:[%s1 + $0x290] sm:$0xff]
  %v4205 = vld [vmem:[%s1 + $0x298] sm:$0xff]
  %v4206 = vld [vmem:[%s1 + $0x2a0] sm:$0xff]
  %v4207 = vld [vmem:[%s1 + $0x2a8] sm:$0xff]
  %v4208 = vld [vmem:[%s1 + $0x2b0] sm:$0xff]
  %v4209 = vld [vmem:[%s1 + $0x2b8] sm:$0xff]
  %v4210 = vld [vmem:[%s1 + $0x2c0] sm:$0xff]
  %v4211 = vld [vmem:[%s1 + $0x2c8] sm:$0xff]
  %v4212 = vld [vmem:[%s1 + $0x2d0] sm:$0xff]
  %v4213 = vld [vmem:[%s1 + $0x2d8] sm:$0xff]
  %v4214 = vld [vmem:[%s1 + $0x2e0] sm:$0xff]
  %v4215 = vld [vmem:[%s1 + $0x2e8] sm:$0xff]
  %v4216 = vld [vmem:[%s1 + $0x2f0] sm:$0xff]
  %v4217 = vld [vmem:[%s1 + $0x2f8] sm:$0xff]
  %v4218 = vld [vmem:[%s1 + $0x300] sm:$0xff]
  %v4219 = vld [vmem:[%s1 + $0x308] sm:$0xff]
  %v4220 = vld [vmem:[%s1 + $0x310] sm:$0xff]
  %v4221 = vld [vmem:[%s1 + $0x318] sm:$0xff]
  %v4222 = vld [vmem:[%s1 + $0x320] sm:$0xff]
  %v4223 = vld [vmem:[%s1 + $0x328] sm:$0xff]
  %v4224 = vld [vmem:[%s1 + $0x330] sm:$0xff]
  %v4225 = vld [vmem:[%s1 + $0x338] sm:$0xff]
  %v4226 = vld [vmem:[%s1 + $0x340] sm:$0xff]
  %v4227 = vld [vmem:[%s1 + $0x348] sm:$0xff]
  %v4228 = vld [vmem:[%s1 + $0x350] sm:$0xff]
  %v4229 = vld [vmem:[%s1 + $0x358] sm:$0xff]
  %v4230 = vld [vmem:[%s1 + $0x360] sm:$0xff]
  %v4231 = vld [vmem:[%s1 + $0x368] sm:$0xff]
  %v4232 = vld [vmem:[%s1 + $0x370] sm:$0xff]
  %v4233 = vld [vmem:[%s1 + $0x378] sm:$0xff]
  %v4234 = vld [vmem:[%s1 + $0x380] sm:$0xff]
  %v4235 = vld [vmem:[%s1 + $0x388] sm:$0xff]
  %v4236 = vld [vmem:[%s1 + $0x390] sm:$0xff]
  %v4237 = vld [vmem:[%s1 + $0x398] sm:$0xff]
  %v4238 = vld [vmem:[%s1 + $0x3a0] sm:$0xff]
  %v4239 = vld [vmem:[%s1 + $0x3a8] sm:$0xff]
  %v4240 = vld [vmem:[%s1 + $0x3b0] sm:$0xff]
  %v4241 = vld [vmem:[%s1 + $0x3b8] sm:$0xff]
  %v4242 = vld [vmem:[%s1 + $0x3c0] sm:$0xff]
  %v4243 = vld [vmem:[%s1 + $0x3c8] sm:$0xff]
  %v4244 = vld [vmem:[%s1 + $0x3d0] sm:$0xff]
  %v4245 = vld [vmem:[%s1 + $0x3d8] sm:$0xff]
  %v4246 = vld [vmem:[%s1 + $0x3e0] sm:$0xff]
  %v4247 = vld [vmem:[%s1 + $0x3e8] sm:$0xff]
  %v4248 = vld [vmem:[%s1 + $0x3f0] sm:$0xff]
  %v4249 = vld [vmem:[%s1 + $0x3f8] sm:$0xff]
  %4314 = vrot.lane.b32.xlu0 %v4186, 120
  %v4315 = vpop.permute.xlu0 %4314
  %4316 = vrot.lane.b32.xlu0 %v4187, 120
  %v4317 = vpop.permute.xlu0 %4316
  %4318 = vrot.lane.b32.xlu0 %v4188, 120
  %v4319 = vpop.permute.xlu0 %4318
  %4320 = vrot.lane.b32.xlu0 %v4189, 120
  %v4321 = vpop.permute.xlu0 %4320
  %4322 = vrot.lane.b32.xlu0 %v4190, 120
  %v4323 = vpop.permute.xlu0 %4322
  %4324 = vrot.lane.b32.xlu0 %v4191, 120
  %v4325 = vpop.permute.xlu0 %4324
  %4326 = vrot.lane.b32.xlu0 %v4192, 120
  %v4327 = vpop.permute.xlu0 %4326
  %4328 = vrot.lane.b32.xlu0 %v4193, 120
  %v4329 = vpop.permute.xlu0 %4328
  %4330 = vrot.lane.b32.xlu0 %v4194, 120
  %v4331 = vpop.permute.xlu0 %4330
  %4332 = vrot.lane.b32.xlu0 %v4195, 120
  %v4333 = vpop.permute.xlu0 %4332
  %4334 = vrot.lane.b32.xlu0 %v4196, 120
  %v4335 = vpop.permute.xlu0 %4334
  %4336 = vrot.lane.b32.xlu0 %v4197, 120
  %v4337 = vpop.permute.xlu0 %4336
  %4338 = vrot.lane.b32.xlu0 %v4198, 120
  %v4339 = vpop.permute.xlu0 %4338
  %4340 = vrot.lane.b32.xlu0 %v4199, 120
  %v4341 = vpop.permute.xlu0 %4340
  %4342 = vrot.lane.b32.xlu0 %v4200, 120
  %v4343 = vpop.permute.xlu0 %4342
  %4344 = vrot.lane.b32.xlu0 %v4201, 120
  %v4345 = vpop.permute.xlu0 %4344
  %4346 = vrot.lane.b32.xlu0 %v4202, 120
  %v4347 = vpop.permute.xlu0 %4346
  %4348 = vrot.lane.b32.xlu0 %v4203, 120
  %v4349 = vpop.permute.xlu0 %4348
  %4350 = vrot.lane.b32.xlu0 %v4204, 120
  %v4351 = vpop.permute.xlu0 %4350
  %4352 = vrot.lane.b32.xlu0 %v4205, 120
  %v4353 = vpop.permute.xlu0 %4352
  %4354 = vrot.lane.b32.xlu0 %v4206, 120
  %v4355 = vpop.permute.xlu0 %4354
  %4356 = vrot.lane.b32.xlu0 %v4207, 120
  %v4357 = vpop.permute.xlu0 %4356
  %4358 = vrot.lane.b32.xlu0 %v4208, 120
  %v4359 = vpop.permute.xlu0 %4358
  %4360 = vrot.lane.b32.xlu0 %v4209, 120
  %v4361 = vpop.permute.xlu0 %4360
  %4362 = vrot.lane.b32.xlu0 %v4210, 120
  %v4363 = vpop.permute.xlu0 %4362
  %4364 = vrot.lane.b32.xlu0 %v4211, 120
  %v4365 = vpop.permute.xlu0 %4364
  %4366 = vrot.lane.b32.xlu0 %v4212, 120
  %v4367 = vpop.permute.xlu0 %4366
  %4368 = vrot.lane.b32.xlu0 %v4213, 120
  %v4369 = vpop.permute.xlu0 %4368
  %4370 = vrot.lane.b32.xlu0 %v4214, 120
  %v4371 = vpop.permute.xlu0 %4370
  %4372 = vrot.lane.b32.xlu0 %v4215, 120
  %v4373 = vpop.permute.xlu0 %4372
  %4374 = vrot.lane.b32.xlu0 %v4216, 120
  %v4375 = vpop.permute.xlu0 %4374
  %4376 = vrot.lane.b32.xlu0 %v4217, 120
  %v4377 = vpop.permute.xlu0 %4376
  %4378 = vrot.lane.b32.xlu0 %v4218, 120
  %v4379 = vpop.permute.xlu0 %4378
  %4380 = vrot.lane.b32.xlu0 %v4219, 120
  %v4381 = vpop.permute.xlu0 %4380
  %4382 = vrot.lane.b32.xlu0 %v4220, 120
  %v4383 = vpop.permute.xlu0 %4382
  %4384 = vrot.lane.b32.xlu0 %v4221, 120
  %v4385 = vpop.permute.xlu0 %4384
  %4386 = vrot.lane.b32.xlu0 %v4222, 120
  %v4387 = vpop.permute.xlu0 %4386
  %4388 = vrot.lane.b32.xlu0 %v4223, 120
  %v4389 = vpop.permute.xlu0 %4388
  %4390 = vrot.lane.b32.xlu0 %v4224, 120
  %v4391 = vpop.permute.xlu0 %4390
  %4392 = vrot.lane.b32.xlu0 %v4225, 120
  %v4393 = vpop.permute.xlu0 %4392
  %4394 = vrot.lane.b32.xlu0 %v4226, 120
  %v4395 = vpop.permute.xlu0 %4394
  %4396 = vrot.lane.b32.xlu0 %v4227, 120
  %v4397 = vpop.permute.xlu0 %4396
  %4398 = vrot.lane.b32.xlu0 %v4228, 120
  %v4399 = vpop.permute.xlu0 %4398
  %4400 = vrot.lane.b32.xlu0 %v4229, 120
  %v4401 = vpop.permute.xlu0 %4400
  %4402 = vrot.lane.b32.xlu0 %v4230, 120
  %v4403 = vpop.permute.xlu0 %4402
  %4404 = vrot.lane.b32.xlu0 %v4231, 120
  %v4405 = vpop.permute.xlu0 %4404
  %4406 = vrot.lane.b32.xlu0 %v4232, 120
  %v4407 = vpop.permute.xlu0 %4406
  %4408 = vrot.lane.b32.xlu0 %v4233, 120
  %v4409 = vpop.permute.xlu0 %4408
  %4410 = vrot.lane.b32.xlu0 %v4234, 120
  %v4411 = vpop.permute.xlu0 %4410
  %4412 = vrot.lane.b32.xlu0 %v4235, 120
  %v4413 = vpop.permute.xlu0 %4412
  %4414 = vrot.lane.b32.xlu0 %v4236, 120
  %v4415 = vpop.permute.xlu0 %4414
  %4416 = vrot.lane.b32.xlu0 %v4237, 120
  %v4417 = vpop.permute.xlu0 %4416
  %4418 = vrot.lane.b32.xlu0 %v4238, 120
  %v4419 = vpop.permute.xlu0 %4418
  %4420 = vrot.lane.b32.xlu0 %v4239, 120
  %v4421 = vpop.permute.xlu0 %4420
  %4422 = vrot.lane.b32.xlu0 %v4240, 120
  %v4423 = vpop.permute.xlu0 %4422
  %4424 = vrot.lane.b32.xlu0 %v4241, 120
  %v4425 = vpop.permute.xlu0 %4424
  %4426 = vrot.lane.b32.xlu0 %v4242, 120
  %v4427 = vpop.permute.xlu0 %4426
  %4428 = vrot.lane.b32.xlu0 %v4243, 120
  %v4429 = vpop.permute.xlu0 %4428
  %4430 = vrot.lane.b32.xlu0 %v4244, 120
  %v4431 = vpop.permute.xlu0 %4430
  %4432 = vrot.lane.b32.xlu0 %v4245, 120
  %v4433 = vpop.permute.xlu0 %4432
  %4434 = vrot.lane.b32.xlu0 %v4246, 120
  %v4435 = vpop.permute.xlu0 %4434
  %4436 = vrot.lane.b32.xlu0 %v4247, 120
  %v4437 = vpop.permute.xlu0 %4436
  %4438 = vrot.lane.b32.xlu0 %v4248, 120
  %v4439 = vpop.permute.xlu0 %4438
  %4440 = vrot.lane.b32.xlu0 %v4249, 120
  %v4441 = vpop.permute.xlu0 %4440
  %4506 = vmatprep.subr.mxu0 0.0
  %4507 = vmatpush1.msra.mxu0 %v4345
  %4508 = vmatprep.subr.mxu0 0.0
  %4509 = vmatpush1.msra.mxu0 %v4343
  %4510 = vmatprep.subr.mxu0 0.0
  %4511 = vmatpush1.msra.mxu0 %v4341
  %4512 = vmatprep.subr.mxu0 0.0
  %4513 = vmatpush1.msra.mxu0 %v4339
  %4514 = vmatprep.subr.mxu0 0.0
  %4515 = vmatpush1.msra.mxu0 %v4337
  %4516 = vmatprep.subr.mxu0 0.0
  %4517 = vmatpush1.msra.mxu0 %v4335
  %4518 = vmatprep.subr.mxu0 0.0
  %4519 = vmatpush1.msra.mxu0 %v4333
  %4520 = vmatprep.subr.mxu0 0.0
  %4521 = vmatpush1.msra.mxu0 %v4331
  %4522 = vmatprep.subr.mxu0 0.0
  %4523 = vmatpush1.msra.mxu0 %v4329
  %4524 = vmatprep.subr.mxu0 0.0
  %4525 = vmatpush1.msra.mxu0 %v4327
  %4526 = vmatprep.subr.mxu0 0.0
  %4527 = vmatpush1.msra.mxu0 %v4325
  %4528 = vmatprep.subr.mxu0 0.0
  %4529 = vmatpush1.msra.mxu0 %v4323
  %4530 = vmatprep.subr.mxu0 0.0
  %4531 = vmatpush1.msra.mxu0 %v4321
  %4532 = vmatprep.subr.mxu0 0.0
  %4533 = vmatpush1.msra.mxu0 %v4319
  %4534 = vmatprep.subr.mxu0 0.0
  %4535 = vmatpush1.msra.mxu0 %v4317
  %4536 = vmatprep.subr.mxu0 0.0
  %4537 = vmatpush1.msra.mxu0 %v4315
  %4538 = vmatprep.subr.mxu0 0.0
  %4539 = vmatpush2.msra.mxu0 %v4377
  %4540 = vmatprep.subr.mxu0 0.0
  %4541 = vmatpush2.msra.mxu0 %v4375
  %4542 = vmatprep.subr.mxu0 0.0
  %4543 = vmatpush2.msra.mxu0 %v4373
  %4544 = vmatprep.subr.mxu0 0.0
  %4545 = vmatpush2.msra.mxu0 %v4371
  %4546 = vmatprep.subr.mxu0 0.0
  %4547 = vmatpush2.msra.mxu0 %v4369
  %4548 = vmatprep.subr.mxu0 0.0
  %4549 = vmatpush2.msra.mxu0 %v4367
  %4550 = vmatprep.subr.mxu0 0.0
  %4551 = vmatpush2.msra.mxu0 %v4365
  %4552 = vmatprep.subr.mxu0 0.0
  %4553 = vmatpush2.msra.mxu0 %v4363
  %4554 = vmatprep.subr.mxu0 0.0
  %4555 = vmatpush2.msra.mxu0 %v4361
  %4556 = vmatprep.subr.mxu0 0.0
  %4557 = vmatpush2.msra.mxu0 %v4359
  %4558 = vmatprep.subr.mxu0 0.0
  %4559 = vmatpush2.msra.mxu0 %v4357
  %4560 = vmatprep.subr.mxu0 0.0
  %4561 = vmatpush2.msra.mxu0 %v4355
  %4562 = vmatprep.subr.mxu0 0.0
  %4563 = vmatpush2.msra.mxu0 %v4353
  %4564 = vmatprep.subr.mxu0 0.0
  %4565 = vmatpush2.msra.mxu0 %v4351
  %4566 = vmatprep.subr.mxu0 0.0
  %4567 = vmatpush2.msra.mxu0 %v4349
  %4568 = vmatprep.subr.mxu0 0.0
  %4569 = vmatpush2.msra.mxu0 %v4347
  %4570 = vmatprep.mubr.f32.mxu0 %v4123
  %4571 = vmatmul.mubr.f32.gmra.mxu0 %v4122
  %v4572 = vpop.f32.mrf.mxu0
  %v4573 = vadd.f32 0.0, %v4572
  %v4574 = vpop.f32.mrf.mxu0
  %4575 = vmatprep.mubr.f32.mxu0 %v4127
  %4576 = vmatmul.mubr.f32.gmra.mxu0 %v4126
  %v4577 = vpop.f32.mrf.mxu0
  %v4578 = vadd.f32 0.0, %v4577
  %v4579 = vpop.f32.mrf.mxu0
  %4580 = vmatprep.mubr.f32.mxu0 %v4131
  %4581 = vmatmul.mubr.f32.gmra.mxu0 %v4130
  %v4582 = vpop.f32.mrf.mxu0
  %v4583 = vadd.f32 0.0, %v4582
  %v4584 = vpop.f32.mrf.mxu0
  %4585 = vmatprep.mubr.f32.mxu0 %v4135
  %4586 = vmatmul.mubr.f32.gmra.mxu0 %v4134
  %v4587 = vpop.f32.mrf.mxu0
  %v4588 = vadd.f32 0.0, %v4587
  %v4589 = vpop.f32.mrf.mxu0
  %4590 = vmatprep.mubr.f32.mxu0 %v4139
  %4591 = vmatmul.mubr.f32.gmra.mxu0 %v4138
  %v4592 = vpop.f32.mrf.mxu0
  %v4593 = vadd.f32 0.0, %v4592
  %v4594 = vpop.f32.mrf.mxu0
  %4595 = vmatprep.mubr.f32.mxu0 %v4143
  %4596 = vmatmul.mubr.f32.gmra.mxu0 %v4142
  %v4597 = vpop.f32.mrf.mxu0
  %v4598 = vadd.f32 0.0, %v4597
  %v4599 = vpop.f32.mrf.mxu0
  %4600 = vmatprep.mubr.f32.mxu0 %v4147
  %4601 = vmatmul.mubr.f32.gmra.mxu0 %v4146
  %v4602 = vpop.f32.mrf.mxu0
  %v4603 = vadd.f32 0.0, %v4602
  %v4604 = vpop.f32.mrf.mxu0
  %4605 = vmatprep.mubr.f32.mxu0 %v4151
  %4606 = vmatmul.mubr.f32.gmra.mxu0 %v4150
  %v4607 = vpop.f32.mrf.mxu0
  %v4608 = vadd.f32 0.0, %v4607
  %v4609 = vpop.f32.mrf.mxu0
  %4610 = vmatprep.mubr.f32.mxu0 %v4155
  %4611 = vmatmul.mubr.f32.gmra.mxu0 %v4154
  %v4612 = vpop.f32.mrf.mxu0
  %v4613 = vadd.f32 0.0, %v4612
  %v4614 = vpop.f32.mrf.mxu0
  %4615 = vmatprep.mubr.f32.mxu0 %v4159
  %4616 = vmatmul.mubr.f32.gmra.mxu0 %v4158
  %v4617 = vpop.f32.mrf.mxu0
  %v4618 = vadd.f32 0.0, %v4617
  %v4619 = vpop.f32.mrf.mxu0
  %4620 = vmatprep.mubr.f32.mxu0 %v4163
  %4621 = vmatmul.mubr.f32.gmra.mxu0 %v4162
  %v4622 = vpop.f32.mrf.mxu0
  %v4623 = vadd.f32 0.0, %v4622
  %v4624 = vpop.f32.mrf.mxu0
  %4625 = vmatprep.mubr.f32.mxu0 %v4167
  %4626 = vmatmul.mubr.f32.gmra.mxu0 %v4166
  %v4627 = vpop.f32.mrf.mxu0
  %v4628 = vadd.f32 0.0, %v4627
  %v4629 = vpop.f32.mrf.mxu0
  %4630 = vmatprep.mubr.f32.mxu0 %v4171
  %4631 = vmatmul.mubr.f32.gmra.mxu0 %v4170
  %v4632 = vpop.f32.mrf.mxu0
  %v4633 = vadd.f32 0.0, %v4632
  %v4634 = vpop.f32.mrf.mxu0
  %4635 = vmatprep.mubr.f32.mxu0 %v4175
  %4636 = vmatmul.mubr.f32.gmra.mxu0 %v4174
  %v4637 = vpop.f32.mrf.mxu0
  %v4638 = vadd.f32 0.0, %v4637
  %v4639 = vpop.f32.mrf.mxu0
  %4640 = vmatprep.mubr.f32.mxu0 %v4179
  %4641 = vmatmul.mubr.f32.gmra.mxu0 %v4178
  %v4642 = vpop.f32.mrf.mxu0
  %v4643 = vadd.f32 0.0, %v4642
  %v4644 = vpop.f32.mrf.mxu0
  %4645 = vmatprep.mubr.f32.mxu0 %v4183
  %4646 = vmatmul.mubr.f32.gmra.mxu0 %v4182
  %v4647 = vpop.f32.mrf.mxu0
  %v4648 = vadd.f32 0.0, %v4647
  %v4649 = vpop.f32.mrf.mxu0
  %4650 = vdwg.mxu0
  %4651 = vmatprep.subr.mxu0 0.0
  %4652 = vmatpush1.msra.mxu0 %v4409
  %4653 = vmatprep.subr.mxu0 0.0
  %4654 = vmatpush1.msra.mxu0 %v4407
  %4655 = vmatprep.subr.mxu0 0.0
  %4656 = vmatpush1.msra.mxu0 %v4405
  %4657 = vmatprep.subr.mxu0 0.0
  %4658 = vmatpush1.msra.mxu0 %v4403
  %4659 = vmatprep.subr.mxu0 0.0
  %4660 = vmatpush1.msra.mxu0 %v4401
  %4661 = vmatprep.subr.mxu0 0.0
  %4662 = vmatpush1.msra.mxu0 %v4399
  %4663 = vmatprep.subr.mxu0 0.0
  %4664 = vmatpush1.msra.mxu0 %v4397
  %4665 = vmatprep.subr.mxu0 0.0
  %4666 = vmatpush1.msra.mxu0 %v4395
  %4667 = vmatprep.subr.mxu0 0.0
  %4668 = vmatpush1.msra.mxu0 %v4393
  %4669 = vmatprep.subr.mxu0 0.0
  %4670 = vmatpush1.msra.mxu0 %v4391
  %4671 = vmatprep.subr.mxu0 0.0
  %4672 = vmatpush1.msra.mxu0 %v4389
  %4673 = vmatprep.subr.mxu0 0.0
  %4674 = vmatpush1.msra.mxu0 %v4387
  %4675 = vmatprep.subr.mxu0 0.0
  %4676 = vmatpush1.msra.mxu0 %v4385
  %4677 = vmatprep.subr.mxu0 0.0
  %4678 = vmatpush1.msra.mxu0 %v4383
  %4679 = vmatprep.subr.mxu0 0.0
  %4680 = vmatpush1.msra.mxu0 %v4381
  %4681 = vmatprep.subr.mxu0 0.0
  %4682 = vmatpush1.msra.mxu0 %v4379
  %4683 = vmatprep.subr.mxu0 0.0
  %4684 = vmatpush2.msra.mxu0 %v4441
  %4685 = vmatprep.subr.mxu0 0.0
  %4686 = vmatpush2.msra.mxu0 %v4439
  %4687 = vmatprep.subr.mxu0 0.0
  %4688 = vmatpush2.msra.mxu0 %v4437
  %4689 = vmatprep.subr.mxu0 0.0
  %4690 = vmatpush2.msra.mxu0 %v4435
  %4691 = vmatprep.subr.mxu0 0.0
  %4692 = vmatpush2.msra.mxu0 %v4433
  %4693 = vmatprep.subr.mxu0 0.0
  %4694 = vmatpush2.msra.mxu0 %v4431
  %4695 = vmatprep.subr.mxu0 0.0
  %4696 = vmatpush2.msra.mxu0 %v4429
  %4697 = vmatprep.subr.mxu0 0.0
  %4698 = vmatpush2.msra.mxu0 %v4427
  %4699 = vmatprep.subr.mxu0 0.0
  %4700 = vmatpush2.msra.mxu0 %v4425
  %4701 = vmatprep.subr.mxu0 0.0
  %4702 = vmatpush2.msra.mxu0 %v4423
  %4703 = vmatprep.subr.mxu0 0.0
  %4704 = vmatpush2.msra.mxu0 %v4421
  %4705 = vmatprep.subr.mxu0 0.0
  %4706 = vmatpush2.msra.mxu0 %v4419
  %4707 = vmatprep.subr.mxu0 0.0
  %4708 = vmatpush2.msra.mxu0 %v4417
  %4709 = vmatprep.subr.mxu0 0.0
  %4710 = vmatpush2.msra.mxu0 %v4415
  %4711 = vmatprep.subr.mxu0 0.0
  %4712 = vmatpush2.msra.mxu0 %v4413
  %4713 = vmatprep.subr.mxu0 0.0
  %4714 = vmatpush2.msra.mxu0 %v4411
  %4715 = vmatprep.mubr.f32.mxu0 %v4125
  %4716 = vmatmul.mubr.f32.gmra.mxu0 %v4124
  %v4717 = vpop.f32.mrf.mxu0
  %v4718 = vadd.f32 %v4573, %v4717
  %v4719 = vpop.f32.mrf.mxu0
  %4720 = vmatprep.mubr.f32.mxu0 %v4129
  %4721 = vmatmul.mubr.f32.gmra.mxu0 %v4128
  %v4722 = vpop.f32.mrf.mxu0
  %v4723 = vadd.f32 %v4578, %v4722
  %v4724 = vpop.f32.mrf.mxu0
  %4725 = vmatprep.mubr.f32.mxu0 %v4133
  %4726 = vmatmul.mubr.f32.gmra.mxu0 %v4132
  %v4727 = vpop.f32.mrf.mxu0
  %v4728 = vadd.f32 %v4583, %v4727
  %v4729 = vpop.f32.mrf.mxu0
  %4730 = vmatprep.mubr.f32.mxu0 %v4137
  %4731 = vmatmul.mubr.f32.gmra.mxu0 %v4136
  %v4732 = vpop.f32.mrf.mxu0
  %v4733 = vadd.f32 %v4588, %v4732
  %v4734 = vpop.f32.mrf.mxu0
  %4735 = vmatprep.mubr.f32.mxu0 %v4141
  %4736 = vmatmul.mubr.f32.gmra.mxu0 %v4140
  %v4737 = vpop.f32.mrf.mxu0
  %v4738 = vadd.f32 %v4593, %v4737
  %v4739 = vpop.f32.mrf.mxu0
  %4740 = vmatprep.mubr.f32.mxu0 %v4145
  %4741 = vmatmul.mubr.f32.gmra.mxu0 %v4144
  %v4742 = vpop.f32.mrf.mxu0
  %v4743 = vadd.f32 %v4598, %v4742
  %v4744 = vpop.f32.mrf.mxu0
  %4745 = vmatprep.mubr.f32.mxu0 %v4149
  %4746 = vmatmul.mubr.f32.gmra.mxu0 %v4148
  %v4747 = vpop.f32.mrf.mxu0
  %v4748 = vadd.f32 %v4603, %v4747
  %v4749 = vpop.f32.mrf.mxu0
  %4750 = vmatprep.mubr.f32.mxu0 %v4153
  %4751 = vmatmul.mubr.f32.gmra.mxu0 %v4152
  %v4752 = vpop.f32.mrf.mxu0
  %v4753 = vadd.f32 %v4608, %v4752
  %v4754 = vpop.f32.mrf.mxu0
  %4755 = vmatprep.mubr.f32.mxu0 %v4157
  %4756 = vmatmul.mubr.f32.gmra.mxu0 %v4156
  %v4757 = vpop.f32.mrf.mxu0
  %v4758 = vadd.f32 %v4613, %v4757
  %v4759 = vpop.f32.mrf.mxu0
  %4760 = vmatprep.mubr.f32.mxu0 %v4161
  %4761 = vmatmul.mubr.f32.gmra.mxu0 %v4160
  %v4762 = vpop.f32.mrf.mxu0
  %v4763 = vadd.f32 %v4618, %v4762
  %v4764 = vpop.f32.mrf.mxu0
  %4765 = vmatprep.mubr.f32.mxu0 %v4165
  %4766 = vmatmul.mubr.f32.gmra.mxu0 %v4164
  %v4767 = vpop.f32.mrf.mxu0
  %v4768 = vadd.f32 %v4623, %v4767
  %v4769 = vpop.f32.mrf.mxu0
  %4770 = vmatprep.mubr.f32.mxu0 %v4169
  %4771 = vmatmul.mubr.f32.gmra.mxu0 %v4168
  %v4772 = vpop.f32.mrf.mxu0
  %v4773 = vadd.f32 %v4628, %v4772
  %v4774 = vpop.f32.mrf.mxu0
  %4775 = vmatprep.mubr.f32.mxu0 %v4173
  %4776 = vmatmul.mubr.f32.gmra.mxu0 %v4172
  %v4777 = vpop.f32.mrf.mxu0
  %v4778 = vadd.f32 %v4633, %v4777
  %v4779 = vpop.f32.mrf.mxu0
  %4780 = vmatprep.mubr.f32.mxu0 %v4177
  %4781 = vmatmul.mubr.f32.gmra.mxu0 %v4176
  %v4782 = vpop.f32.mrf.mxu0
  %v4783 = vadd.f32 %v4638, %v4782
  %v4784 = vpop.f32.mrf.mxu0
  %4785 = vmatprep.mubr.f32.mxu0 %v4181
  %4786 = vmatmul.mubr.f32.gmra.mxu0 %v4180
  %v4787 = vpop.f32.mrf.mxu0
  %v4788 = vadd.f32 %v4643, %v4787
  %v4789 = vpop.f32.mrf.mxu0
  %4790 = vmatprep.mubr.f32.mxu0 %v4185
  %4791 = vmatmul.mubr.f32.gmra.mxu0 %v4184
  %v4792 = vpop.f32.mrf.mxu0
  %v4793 = vadd.f32 %v4648, %v4792
  %v4794 = vpop.f32.mrf.mxu0
  %4795 = vdwg.mxu0
  %4860 = vrot.lane.b32.xlu0 %v3866, 120
  %v4861 = vpop.permute.xlu0 %4860
  %4862 = vrot.lane.b32.xlu0 %v3867, 120
  %v4863 = vpop.permute.xlu0 %4862
  %4864 = vrot.lane.b32.xlu0 %v3868, 120
  %v4865 = vpop.permute.xlu0 %4864
  %4866 = vrot.lane.b32.xlu0 %v3869, 120
  %v4867 = vpop.permute.xlu0 %4866
  %4868 = vrot.lane.b32.xlu0 %v3870, 120
  %v4869 = vpop.permute.xlu0 %4868
  %4870 = vrot.lane.b32.xlu0 %v3871, 120
  %v4871 = vpop.permute.xlu0 %4870
  %4872 = vrot.lane.b32.xlu0 %v3872, 120
  %v4873 = vpop.permute.xlu0 %4872
  %4874 = vrot.lane.b32.xlu0 %v3873, 120
  %v4875 = vpop.permute.xlu0 %4874
  %4876 = vrot.lane.b32.xlu0 %v3874, 120
  %v4877 = vpop.permute.xlu0 %4876
  %4878 = vrot.lane.b32.xlu0 %v3875, 120
  %v4879 = vpop.permute.xlu0 %4878
  %4880 = vrot.lane.b32.xlu0 %v3876, 120
  %v4881 = vpop.permute.xlu0 %4880
  %4882 = vrot.lane.b32.xlu0 %v3877, 120
  %v4883 = vpop.permute.xlu0 %4882
  %4884 = vrot.lane.b32.xlu0 %v3878, 120
  %v4885 = vpop.permute.xlu0 %4884
  %4886 = vrot.lane.b32.xlu0 %v3879, 120
  %v4887 = vpop.permute.xlu0 %4886
  %4888 = vrot.lane.b32.xlu0 %v3880, 120
  %v4889 = vpop.permute.xlu0 %4888
  %4890 = vrot.lane.b32.xlu0 %v3881, 120
  %v4891 = vpop.permute.xlu0 %4890
  %4892 = vrot.lane.b32.xlu0 %v3882, 120
  %v4893 = vpop.permute.xlu0 %4892
  %4894 = vrot.lane.b32.xlu0 %v3883, 120
  %v4895 = vpop.permute.xlu0 %4894
  %4896 = vrot.lane.b32.xlu0 %v3884, 120
  %v4897 = vpop.permute.xlu0 %4896
  %4898 = vrot.lane.b32.xlu0 %v3885, 120
  %v4899 = vpop.permute.xlu0 %4898
  %4900 = vrot.lane.b32.xlu0 %v3886, 120
  %v4901 = vpop.permute.xlu0 %4900
  %4902 = vrot.lane.b32.xlu0 %v3887, 120
  %v4903 = vpop.permute.xlu0 %4902
  %4904 = vrot.lane.b32.xlu0 %v3888, 120
  %v4905 = vpop.permute.xlu0 %4904
  %4906 = vrot.lane.b32.xlu0 %v3889, 120
  %v4907 = vpop.permute.xlu0 %4906
  %4908 = vrot.lane.b32.xlu0 %v3890, 120
  %v4909 = vpop.permute.xlu0 %4908
  %4910 = vrot.lane.b32.xlu0 %v3891, 120
  %v4911 = vpop.permute.xlu0 %4910
  %4912 = vrot.lane.b32.xlu0 %v3892, 120
  %v4913 = vpop.permute.xlu0 %4912
  %4914 = vrot.lane.b32.xlu0 %v3893, 120
  %v4915 = vpop.permute.xlu0 %4914
  %4916 = vrot.lane.b32.xlu0 %v3894, 120
  %v4917 = vpop.permute.xlu0 %4916
  %4918 = vrot.lane.b32.xlu0 %v3895, 120
  %v4919 = vpop.permute.xlu0 %4918
  %4920 = vrot.lane.b32.xlu0 %v3896, 120
  %v4921 = vpop.permute.xlu0 %4920
  %4922 = vrot.lane.b32.xlu0 %v3897, 120
  %v4923 = vpop.permute.xlu0 %4922
  %4924 = vrot.lane.b32.xlu0 %v3898, 120
  %v4925 = vpop.permute.xlu0 %4924
  %4926 = vrot.lane.b32.xlu0 %v3899, 120
  %v4927 = vpop.permute.xlu0 %4926
  %4928 = vrot.lane.b32.xlu0 %v3900, 120
  %v4929 = vpop.permute.xlu0 %4928
  %4930 = vrot.lane.b32.xlu0 %v3901, 120
  %v4931 = vpop.permute.xlu0 %4930
  %4932 = vrot.lane.b32.xlu0 %v3902, 120
  %v4933 = vpop.permute.xlu0 %4932
  %4934 = vrot.lane.b32.xlu0 %v3903, 120
  %v4935 = vpop.permute.xlu0 %4934
  %4936 = vrot.lane.b32.xlu0 %v3904, 120
  %v4937 = vpop.permute.xlu0 %4936
  %4938 = vrot.lane.b32.xlu0 %v3905, 120
  %v4939 = vpop.permute.xlu0 %4938
  %4940 = vrot.lane.b32.xlu0 %v3906, 120
  %v4941 = vpop.permute.xlu0 %4940
  %4942 = vrot.lane.b32.xlu0 %v3907, 120
  %v4943 = vpop.permute.xlu0 %4942
  %4944 = vrot.lane.b32.xlu0 %v3908, 120
  %v4945 = vpop.permute.xlu0 %4944
  %4946 = vrot.lane.b32.xlu0 %v3909, 120
  %v4947 = vpop.permute.xlu0 %4946
  %4948 = vrot.lane.b32.xlu0 %v3910, 120
  %v4949 = vpop.permute.xlu0 %4948
  %4950 = vrot.lane.b32.xlu0 %v3911, 120
  %v4951 = vpop.permute.xlu0 %4950
  %4952 = vrot.lane.b32.xlu0 %v3912, 120
  %v4953 = vpop.permute.xlu0 %4952
  %4954 = vrot.lane.b32.xlu0 %v3913, 120
  %v4955 = vpop.permute.xlu0 %4954
  %4956 = vrot.lane.b32.xlu0 %v3914, 120
  %v4957 = vpop.permute.xlu0 %4956
  %4958 = vrot.lane.b32.xlu0 %v3915, 120
  %v4959 = vpop.permute.xlu0 %4958
  %4960 = vrot.lane.b32.xlu0 %v3916, 120
  %v4961 = vpop.permute.xlu0 %4960
  %4962 = vrot.lane.b32.xlu0 %v3917, 120
  %v4963 = vpop.permute.xlu0 %4962
  %4964 = vrot.lane.b32.xlu0 %v3918, 120
  %v4965 = vpop.permute.xlu0 %4964
  %4966 = vrot.lane.b32.xlu0 %v3919, 120
  %v4967 = vpop.permute.xlu0 %4966
  %4968 = vrot.lane.b32.xlu0 %v3920, 120
  %v4969 = vpop.permute.xlu0 %4968
  %4970 = vrot.lane.b32.xlu0 %v3921, 120
  %v4971 = vpop.permute.xlu0 %4970
  %4972 = vrot.lane.b32.xlu0 %v3922, 120
  %v4973 = vpop.permute.xlu0 %4972
  %4974 = vrot.lane.b32.xlu0 %v3923, 120
  %v4975 = vpop.permute.xlu0 %4974
  %4976 = vrot.lane.b32.xlu0 %v3924, 120
  %v4977 = vpop.permute.xlu0 %4976
  %4978 = vrot.lane.b32.xlu0 %v3925, 120
  %v4979 = vpop.permute.xlu0 %4978
  %4980 = vrot.lane.b32.xlu0 %v3926, 120
  %v4981 = vpop.permute.xlu0 %4980
  %4982 = vrot.lane.b32.xlu0 %v3927, 120
  %v4983 = vpop.permute.xlu0 %4982
  %4984 = vrot.lane.b32.xlu0 %v3928, 120
  %v4985 = vpop.permute.xlu0 %4984
  %4986 = vrot.lane.b32.xlu0 %v3929, 120
  %v4987 = vpop.permute.xlu0 %4986
  %5052 = vmatprep.subr.mxu0 0.0
  %5053 = vmatpush1.msra.mxu0 %v4891
  %5054 = vmatprep.subr.mxu0 0.0
  %5055 = vmatpush1.msra.mxu0 %v4889
  %5056 = vmatprep.subr.mxu0 0.0
  %5057 = vmatpush1.msra.mxu0 %v4887
  %5058 = vmatprep.subr.mxu0 0.0
  %5059 = vmatpush1.msra.mxu0 %v4885
  %5060 = vmatprep.subr.mxu0 0.0
  %5061 = vmatpush1.msra.mxu0 %v4883
  %5062 = vmatprep.subr.mxu0 0.0
  %5063 = vmatpush1.msra.mxu0 %v4881
  %5064 = vmatprep.subr.mxu0 0.0
  %5065 = vmatpush1.msra.mxu0 %v4879
  %5066 = vmatprep.subr.mxu0 0.0
  %5067 = vmatpush1.msra.mxu0 %v4877
  %5068 = vmatprep.subr.mxu0 0.0
  %5069 = vmatpush1.msra.mxu0 %v4875
  %5070 = vmatprep.subr.mxu0 0.0
  %5071 = vmatpush1.msra.mxu0 %v4873
  %5072 = vmatprep.subr.mxu0 0.0
  %5073 = vmatpush1.msra.mxu0 %v4871
  %5074 = vmatprep.subr.mxu0 0.0
  %5075 = vmatpush1.msra.mxu0 %v4869
  %5076 = vmatprep.subr.mxu0 0.0
  %5077 = vmatpush1.msra.mxu0 %v4867
  %5078 = vmatprep.subr.mxu0 0.0
  %5079 = vmatpush1.msra.mxu0 %v4865
  %5080 = vmatprep.subr.mxu0 0.0
  %5081 = vmatpush1.msra.mxu0 %v4863
  %5082 = vmatprep.subr.mxu0 0.0
  %5083 = vmatpush1.msra.mxu0 %v4861
  %5084 = vmatprep.subr.mxu0 0.0
  %5085 = vmatpush2.msra.mxu0 %v4923
  %5086 = vmatprep.subr.mxu0 0.0
  %5087 = vmatpush2.msra.mxu0 %v4921
  %5088 = vmatprep.subr.mxu0 0.0
  %5089 = vmatpush2.msra.mxu0 %v4919
  %5090 = vmatprep.subr.mxu0 0.0
  %5091 = vmatpush2.msra.mxu0 %v4917
  %5092 = vmatprep.subr.mxu0 0.0
  %5093 = vmatpush2.msra.mxu0 %v4915
  %5094 = vmatprep.subr.mxu0 0.0
  %5095 = vmatpush2.msra.mxu0 %v4913
  %5096 = vmatprep.subr.mxu0 0.0
  %5097 = vmatpush2.msra.mxu0 %v4911
  %5098 = vmatprep.subr.mxu0 0.0
  %5099 = vmatpush2.msra.mxu0 %v4909
  %5100 = vmatprep.subr.mxu0 0.0
  %5101 = vmatpush2.msra.mxu0 %v4907
  %5102 = vmatprep.subr.mxu0 0.0
  %5103 = vmatpush2.msra.mxu0 %v4905
  %5104 = vmatprep.subr.mxu0 0.0
  %5105 = vmatpush2.msra.mxu0 %v4903
  %5106 = vmatprep.subr.mxu0 0.0
  %5107 = vmatpush2.msra.mxu0 %v4901
  %5108 = vmatprep.subr.mxu0 0.0
  %5109 = vmatpush2.msra.mxu0 %v4899
  %5110 = vmatprep.subr.mxu0 0.0
  %5111 = vmatpush2.msra.mxu0 %v4897
  %5112 = vmatprep.subr.mxu0 0.0
  %5113 = vmatpush2.msra.mxu0 %v4895
  %5114 = vmatprep.subr.mxu0 0.0
  %5115 = vmatpush2.msra.mxu0 %v4893
  %5116 = vmatprep.mubr.f32.mxu0 %v3803
  %5117 = vmatmul.mubr.f32.gmra.mxu0 %v3802
  %v5118 = vpop.f32.mrf.mxu0
  %v5119 = vadd.f32 %v4718, %v5118
  %v5120 = vpop.f32.mrf.mxu0
  %5121 = vmatprep.mubr.f32.mxu0 %v3807
  %5122 = vmatmul.mubr.f32.gmra.mxu0 %v3806
  %v5123 = vpop.f32.mrf.mxu0
  %v5124 = vadd.f32 %v4723, %v5123
  %v5125 = vpop.f32.mrf.mxu0
  %5126 = vmatprep.mubr.f32.mxu0 %v3811
  %5127 = vmatmul.mubr.f32.gmra.mxu0 %v3810
  %v5128 = vpop.f32.mrf.mxu0
  %v5129 = vadd.f32 %v4728, %v5128
  %v5130 = vpop.f32.mrf.mxu0
  %5131 = vmatprep.mubr.f32.mxu0 %v3815
  %5132 = vmatmul.mubr.f32.gmra.mxu0 %v3814
  %v5133 = vpop.f32.mrf.mxu0
  %v5134 = vadd.f32 %v4733, %v5133
  %v5135 = vpop.f32.mrf.mxu0
  %5136 = vmatprep.mubr.f32.mxu0 %v3819
  %5137 = vmatmul.mubr.f32.gmra.mxu0 %v3818
  %v5138 = vpop.f32.mrf.mxu0
  %v5139 = vadd.f32 %v4738, %v5138
  %v5140 = vpop.f32.mrf.mxu0
  %5141 = vmatprep.mubr.f32.mxu0 %v3823
  %5142 = vmatmul.mubr.f32.gmra.mxu0 %v3822
  %v5143 = vpop.f32.mrf.mxu0
  %v5144 = vadd.f32 %v4743, %v5143
  %v5145 = vpop.f32.mrf.mxu0
  %5146 = vmatprep.mubr.f32.mxu0 %v3827
  %5147 = vmatmul.mubr.f32.gmra.mxu0 %v3826
  %v5148 = vpop.f32.mrf.mxu0
  %v5149 = vadd.f32 %v4748, %v5148
  %v5150 = vpop.f32.mrf.mxu0
  %5151 = vmatprep.mubr.f32.mxu0 %v3831
  %5152 = vmatmul.mubr.f32.gmra.mxu0 %v3830
  %v5153 = vpop.f32.mrf.mxu0
  %v5154 = vadd.f32 %v4753, %v5153
  %v5155 = vpop.f32.mrf.mxu0
  %5156 = vmatprep.mubr.f32.mxu0 %v3835
  %5157 = vmatmul.mubr.f32.gmra.mxu0 %v3834
  %v5158 = vpop.f32.mrf.mxu0
  %v5159 = vadd.f32 %v4758, %v5158
  %v5160 = vpop.f32.mrf.mxu0
  %5161 = vmatprep.mubr.f32.mxu0 %v3839
  %5162 = vmatmul.mubr.f32.gmra.mxu0 %v3838
  %v5163 = vpop.f32.mrf.mxu0
  %v5164 = vadd.f32 %v4763, %v5163
  %v5165 = vpop.f32.mrf.mxu0
  %5166 = vmatprep.mubr.f32.mxu0 %v3843
  %5167 = vmatmul.mubr.f32.gmra.mxu0 %v3842
  %v5168 = vpop.f32.mrf.mxu0
  %v5169 = vadd.f32 %v4768, %v5168
  %v5170 = vpop.f32.mrf.mxu0
  %5171 = vmatprep.mubr.f32.mxu0 %v3847
  %5172 = vmatmul.mubr.f32.gmra.mxu0 %v3846
  %v5173 = vpop.f32.mrf.mxu0
  %v5174 = vadd.f32 %v4773, %v5173
  %v5175 = vpop.f32.mrf.mxu0
  %5176 = vmatprep.mubr.f32.mxu0 %v3851
  %5177 = vmatmul.mubr.f32.gmra.mxu0 %v3850
  %v5178 = vpop.f32.mrf.mxu0
  %v5179 = vadd.f32 %v4778, %v5178
  %v5180 = vpop.f32.mrf.mxu0
  %5181 = vmatprep.mubr.f32.mxu0 %v3855
  %5182 = vmatmul.mubr.f32.gmra.mxu0 %v3854
  %v5183 = vpop.f32.mrf.mxu0
  %v5184 = vadd.f32 %v4783, %v5183
  %v5185 = vpop.f32.mrf.mxu0
  %5186 = vmatprep.mubr.f32.mxu0 %v3859
  %5187 = vmatmul.mubr.f32.gmra.mxu0 %v3858
  %v5188 = vpop.f32.mrf.mxu0
  %v5189 = vadd.f32 %v4788, %v5188
  %v5190 = vpop.f32.mrf.mxu0
  %5191 = vmatprep.mubr.f32.mxu0 %v3863
  %5192 = vmatmul.mubr.f32.gmra.mxu0 %v3862
  %v5193 = vpop.f32.mrf.mxu0
  %v5194 = vadd.f32 %v4793, %v5193
  %v5195 = vpop.f32.mrf.mxu0
  %5196 = vdwg.mxu0
  %5197 = vmatprep.subr.mxu0 0.0
  %5198 = vmatpush1.msra.mxu0 %v4955
  %5199 = vmatprep.subr.mxu0 0.0
  %5200 = vmatpush1.msra.mxu0 %v4953
  %5201 = vmatprep.subr.mxu0 0.0
  %5202 = vmatpush1.msra.mxu0 %v4951
  %5203 = vmatprep.subr.mxu0 0.0
  %5204 = vmatpush1.msra.mxu0 %v4949
  %5205 = vmatprep.subr.mxu0 0.0
  %5206 = vmatpush1.msra.mxu0 %v4947
  %5207 = vmatprep.subr.mxu0 0.0
  %5208 = vmatpush1.msra.mxu0 %v4945
  %5209 = vmatprep.subr.mxu0 0.0
  %5210 = vmatpush1.msra.mxu0 %v4943
  %5211 = vmatprep.subr.mxu0 0.0
  %5212 = vmatpush1.msra.mxu0 %v4941
  %5213 = vmatprep.subr.mxu0 0.0
  %5214 = vmatpush1.msra.mxu0 %v4939
  %5215 = vmatprep.subr.mxu0 0.0
  %5216 = vmatpush1.msra.mxu0 %v4937
  %5217 = vmatprep.subr.mxu0 0.0
  %5218 = vmatpush1.msra.mxu0 %v4935
  %5219 = vmatprep.subr.mxu0 0.0
  %5220 = vmatpush1.msra.mxu0 %v4933
  %5221 = vmatprep.subr.mxu0 0.0
  %5222 = vmatpush1.msra.mxu0 %v4931
  %5223 = vmatprep.subr.mxu0 0.0
  %5224 = vmatpush1.msra.mxu0 %v4929
  %5225 = vmatprep.subr.mxu0 0.0
  %5226 = vmatpush1.msra.mxu0 %v4927
  %5227 = vmatprep.subr.mxu0 0.0
  %5228 = vmatpush1.msra.mxu0 %v4925
  %5229 = vmatprep.subr.mxu0 0.0
  %5230 = vmatpush2.msra.mxu0 %v4987
  %5231 = vmatprep.subr.mxu0 0.0
  %5232 = vmatpush2.msra.mxu0 %v4985
  %5233 = vmatprep.subr.mxu0 0.0
  %5234 = vmatpush2.msra.mxu0 %v4983
  %5235 = vmatprep.subr.mxu0 0.0
  %5236 = vmatpush2.msra.mxu0 %v4981
  %5237 = vmatprep.subr.mxu0 0.0
  %5238 = vmatpush2.msra.mxu0 %v4979
  %5239 = vmatprep.subr.mxu0 0.0
  %5240 = vmatpush2.msra.mxu0 %v4977
  %5241 = vmatprep.subr.mxu0 0.0
  %5242 = vmatpush2.msra.mxu0 %v4975
  %5243 = vmatprep.subr.mxu0 0.0
  %5244 = vmatpush2.msra.mxu0 %v4973
  %5245 = vmatprep.subr.mxu0 0.0
  %5246 = vmatpush2.msra.mxu0 %v4971
  %5247 = vmatprep.subr.mxu0 0.0
  %5248 = vmatpush2.msra.mxu0 %v4969
  %5249 = vmatprep.subr.mxu0 0.0
  %5250 = vmatpush2.msra.mxu0 %v4967
  %5251 = vmatprep.subr.mxu0 0.0
  %5252 = vmatpush2.msra.mxu0 %v4965
  %5253 = vmatprep.subr.mxu0 0.0
  %5254 = vmatpush2.msra.mxu0 %v4963
  %5255 = vmatprep.subr.mxu0 0.0
  %5256 = vmatpush2.msra.mxu0 %v4961
  %5257 = vmatprep.subr.mxu0 0.0
  %5258 = vmatpush2.msra.mxu0 %v4959
  %5259 = vmatprep.subr.mxu0 0.0
  %5260 = vmatpush2.msra.mxu0 %v4957
  %5261 = vmatprep.mubr.f32.mxu0 %v3805
  %5262 = vmatmul.mubr.f32.gmra.mxu0 %v3804
  %v5263 = vpop.f32.mrf.mxu0
  %v5264 = vadd.f32 %v5119, %v5263
  %v5265 = vpop.f32.mrf.mxu0
  %5266 = vmatprep.mubr.f32.mxu0 %v3809
  %5267 = vmatmul.mubr.f32.gmra.mxu0 %v3808
  %v5268 = vpop.f32.mrf.mxu0
  %v5269 = vadd.f32 %v5124, %v5268
  %v5270 = vpop.f32.mrf.mxu0
  %5271 = vmatprep.mubr.f32.mxu0 %v3813
  %5272 = vmatmul.mubr.f32.gmra.mxu0 %v3812
  %v5273 = vpop.f32.mrf.mxu0
  %v5274 = vadd.f32 %v5129, %v5273
  %v5275 = vpop.f32.mrf.mxu0
  %5276 = vmatprep.mubr.f32.mxu0 %v3817
  %5277 = vmatmul.mubr.f32.gmra.mxu0 %v3816
  %v5278 = vpop.f32.mrf.mxu0
  %v5279 = vadd.f32 %v5134, %v5278
  %v5280 = vpop.f32.mrf.mxu0
  %5281 = vmatprep.mubr.f32.mxu0 %v3821
  %5282 = vmatmul.mubr.f32.gmra.mxu0 %v3820
  %v5283 = vpop.f32.mrf.mxu0
  %v5284 = vadd.f32 %v5139, %v5283
  %v5285 = vpop.f32.mrf.mxu0
  %5286 = vmatprep.mubr.f32.mxu0 %v3825
  %5287 = vmatmul.mubr.f32.gmra.mxu0 %v3824
  %v5288 = vpop.f32.mrf.mxu0
  %v5289 = vadd.f32 %v5144, %v5288
  %v5290 = vpop.f32.mrf.mxu0
  %5291 = vmatprep.mubr.f32.mxu0 %v3829
  %5292 = vmatmul.mubr.f32.gmra.mxu0 %v3828
  %v5293 = vpop.f32.mrf.mxu0
  %v5294 = vadd.f32 %v5149, %v5293
  %v5295 = vpop.f32.mrf.mxu0
  %5296 = vmatprep.mubr.f32.mxu0 %v3833
  %5297 = vmatmul.mubr.f32.gmra.mxu0 %v3832
  %v5298 = vpop.f32.mrf.mxu0
  %v5299 = vadd.f32 %v5154, %v5298
  %v5300 = vpop.f32.mrf.mxu0
  %5301 = vmatprep.mubr.f32.mxu0 %v3837
  %5302 = vmatmul.mubr.f32.gmra.mxu0 %v3836
  %v5303 = vpop.f32.mrf.mxu0
  %v5304 = vadd.f32 %v5159, %v5303
  %v5305 = vpop.f32.mrf.mxu0
  %5306 = vmatprep.mubr.f32.mxu0 %v3841
  %5307 = vmatmul.mubr.f32.gmra.mxu0 %v3840
  %v5308 = vpop.f32.mrf.mxu0
  %v5309 = vadd.f32 %v5164, %v5308
  %v5310 = vpop.f32.mrf.mxu0
  %5311 = vmatprep.mubr.f32.mxu0 %v3845
  %5312 = vmatmul.mubr.f32.gmra.mxu0 %v3844
  %v5313 = vpop.f32.mrf.mxu0
  %v5314 = vadd.f32 %v5169, %v5313
  %v5315 = vpop.f32.mrf.mxu0
  %5316 = vmatprep.mubr.f32.mxu0 %v3849
  %5317 = vmatmul.mubr.f32.gmra.mxu0 %v3848
  %v5318 = vpop.f32.mrf.mxu0
  %v5319 = vadd.f32 %v5174, %v5318
  %v5320 = vpop.f32.mrf.mxu0
  %5321 = vmatprep.mubr.f32.mxu0 %v3853
  %5322 = vmatmul.mubr.f32.gmra.mxu0 %v3852
  %v5323 = vpop.f32.mrf.mxu0
  %v5324 = vadd.f32 %v5179, %v5323
  %v5325 = vpop.f32.mrf.mxu0
  %5326 = vmatprep.mubr.f32.mxu0 %v3857
  %5327 = vmatmul.mubr.f32.gmra.mxu0 %v3856
  %v5328 = vpop.f32.mrf.mxu0
  %v5329 = vadd.f32 %v5184, %v5328
  %v5330 = vpop.f32.mrf.mxu0
  %5331 = vmatprep.mubr.f32.mxu0 %v3861
  %5332 = vmatmul.mubr.f32.gmra.mxu0 %v3860
  %v5333 = vpop.f32.mrf.mxu0
  %v5334 = vadd.f32 %v5189, %v5333
  %v5335 = vpop.f32.mrf.mxu0
  %5336 = vmatprep.mubr.f32.mxu0 %v3865
  %5337 = vmatmul.mubr.f32.gmra.mxu0 %v3864
  %v5338 = vpop.f32.mrf.mxu0
  %v5339 = vadd.f32 %v5194, %v5338
  %v5340 = vpop.f32.mrf.mxu0
  %5341 = vdwg.mxu0
  %5358 = vrot.lane.b32.xlu0 %v5264, 8
  %v5359 = vpop.permute.xlu0 %5358
  %5360 = vrot.lane.b32.xlu0 %v5269, 8
  %v5361 = vpop.permute.xlu0 %5360
  %5362 = vrot.lane.b32.xlu0 %v5274, 8
  %v5363 = vpop.permute.xlu0 %5362
  %5364 = vrot.lane.b32.xlu0 %v5279, 8
  %v5365 = vpop.permute.xlu0 %5364
  %5366 = vrot.lane.b32.xlu0 %v5284, 8
  %v5367 = vpop.permute.xlu0 %5366
  %5368 = vrot.lane.b32.xlu0 %v5289, 8
  %v5369 = vpop.permute.xlu0 %5368
  %5370 = vrot.lane.b32.xlu0 %v5294, 8
  %v5371 = vpop.permute.xlu0 %5370
  %5372 = vrot.lane.b32.xlu0 %v5299, 8
  %v5373 = vpop.permute.xlu0 %5372
  %5374 = vrot.lane.b32.xlu0 %v5304, 8
  %v5375 = vpop.permute.xlu0 %5374
  %5376 = vrot.lane.b32.xlu0 %v5309, 8
  %v5377 = vpop.permute.xlu0 %5376
  %5378 = vrot.lane.b32.xlu0 %v5314, 8
  %v5379 = vpop.permute.xlu0 %5378
  %5380 = vrot.lane.b32.xlu0 %v5319, 8
  %v5381 = vpop.permute.xlu0 %5380
  %5382 = vrot.lane.b32.xlu0 %v5324, 8
  %v5383 = vpop.permute.xlu0 %5382
  %5384 = vrot.lane.b32.xlu0 %v5329, 8
  %v5385 = vpop.permute.xlu0 %5384
  %5386 = vrot.lane.b32.xlu0 %v5334, 8
  %v5387 = vpop.permute.xlu0 %5386
  %5388 = vrot.lane.b32.xlu0 %v5339, 8
  %v5389 = vpop.permute.xlu0 %5388
  %vm5406 = vcmask 97344
  %5407 = vst.msk [vmem:[%s2] sm:$0xff] %vm5406, %v5359
  %5408 = vst.msk [vmem:[%s2 + $0x8] sm:$0xff] %vm5406, %v5361
  %5409 = vst.msk [vmem:[%s2 + $0x10] sm:$0xff] %vm5406, %v5363
  %5410 = vst.msk [vmem:[%s2 + $0x18] sm:$0xff] %vm5406, %v5365
  %5411 = vst.msk [vmem:[%s2 + $0x20] sm:$0xff] %vm5406, %v5367
  %5412 = vst.msk [vmem:[%s2 + $0x28] sm:$0xff] %vm5406, %v5369
  %5413 = vst.msk [vmem:[%s2 + $0x30] sm:$0xff] %vm5406, %v5371
  %5414 = vst.msk [vmem:[%s2 + $0x38] sm:$0xff] %vm5406, %v5373
  %5415 = vst.msk [vmem:[%s2 + $0x40] sm:$0xff] %vm5406, %v5375
  %5416 = vst.msk [vmem:[%s2 + $0x48] sm:$0xff] %vm5406, %v5377
  %5417 = vst.msk [vmem:[%s2 + $0x50] sm:$0xff] %vm5406, %v5379
  %5418 = vst.msk [vmem:[%s2 + $0x58] sm:$0xff] %vm5406, %v5381
  %5419 = vst.msk [vmem:[%s2 + $0x60] sm:$0xff] %vm5406, %v5383
  %5420 = vst.msk [vmem:[%s2 + $0x68] sm:$0xff] %vm5406, %v5385
  %5421 = vst.msk [vmem:[%s2 + $0x70] sm:$0xff] %vm5406, %v5387
  %5422 = vst.msk [vmem:[%s2 + $0x78] sm:$0xff] %vm5406, %v5389
  %v5423 = vmul.f32 %v11, 128.0
  %v5424 = vmul.f32 %v12, 128.0
  %v5425 = vmul.f32 %v13, 128.0
  %v5426 = vmul.f32 %v14, 128.0
  %v5427 = vmul.f32 %v15, 128.0
  %v5428 = vmul.f32 %v16, 128.0
  %v5429 = vmul.f32 %v17, 128.0
  %v5430 = vmul.f32 %v18, 128.0
  %v5431 = vmul.f32 %v19, 128.0
  %v5432 = vmul.f32 %v20, 128.0
  %v5433 = vmul.f32 %v21, 128.0
  %v5434 = vmul.f32 %v22, 128.0
  %v5435 = vmul.f32 %v23, 128.0
  %v5436 = vmul.f32 %v24, 128.0
  %v5437 = vmul.f32 %v25, 128.0
  %v5438 = vmul.f32 %v26, 128.0
  %v5439 = vfloor.f32 %v5423
  %v5440 = vfloor.f32 %v5424
  %v5441 = vfloor.f32 %v5425
  %v5442 = vfloor.f32 %v5426
  %v5443 = vfloor.f32 %v5427
  %v5444 = vfloor.f32 %v5428
  %v5445 = vfloor.f32 %v5429
  %v5446 = vfloor.f32 %v5430
  %v5447 = vfloor.f32 %v5431
  %v5448 = vfloor.f32 %v5432
  %v5449 = vfloor.f32 %v5433
  %v5450 = vfloor.f32 %v5434
  %v5451 = vfloor.f32 %v5435
  %v5452 = vfloor.f32 %v5436
  %v5453 = vfloor.f32 %v5437
  %v5454 = vfloor.f32 %v5438
  %v5455 = vcvt.f32.s32.to.zero.pseudo %v5439
  %v5456 = vcvt.f32.s32.to.zero.pseudo %v5440
  %v5457 = vcvt.f32.s32.to.zero.pseudo %v5441
  %v5458 = vcvt.f32.s32.to.zero.pseudo %v5442
  %v5459 = vcvt.f32.s32.to.zero.pseudo %v5443
  %v5460 = vcvt.f32.s32.to.zero.pseudo %v5444
  %v5461 = vcvt.f32.s32.to.zero.pseudo %v5445
  %v5462 = vcvt.f32.s32.to.zero.pseudo %v5446
  %v5463 = vcvt.f32.s32.to.zero.pseudo %v5447
  %v5464 = vcvt.f32.s32.to.zero.pseudo %v5448
  %v5465 = vcvt.f32.s32.to.zero.pseudo %v5449
  %v5466 = vcvt.f32.s32.to.zero.pseudo %v5450
  %v5467 = vcvt.f32.s32.to.zero.pseudo %v5451
  %v5468 = vcvt.f32.s32.to.zero.pseudo %v5452
  %v5469 = vcvt.f32.s32.to.zero.pseudo %v5453
  %v5470 = vcvt.f32.s32.to.zero.pseudo %v5454
  %v5471 = vmul.u32 %v5455, 2654435761
  %v5472 = vmul.u32 %v5456, 2654435761
  %v5473 = vmul.u32 %v5457, 2654435761
  %v5474 = vmul.u32 %v5458, 2654435761
  %v5475 = vmul.u32 %v5459, 2654435761
  %v5476 = vmul.u32 %v5460, 2654435761
  %v5477 = vmul.u32 %v5461, 2654435761
  %v5478 = vmul.u32 %v5462, 2654435761
  %v5479 = vmul.u32 %v5463, 2654435761
  %v5480 = vmul.u32 %v5464, 2654435761
  %v5481 = vmul.u32 %v5465, 2654435761
  %v5482 = vmul.u32 %v5466, 2654435761
  %v5483 = vmul.u32 %v5467, 2654435761
  %v5484 = vmul.u32 %v5468, 2654435761
  %v5485 = vmul.u32 %v5469, 2654435761
  %v5486 = vmul.u32 %v5470, 2654435761
  %5487 = vrot.lane.b32.xlu0 %v5471, 127
  %v5488 = vpop.permute.xlu0 %5487
  %5489 = vrot.lane.b32.xlu0 %v5472, 127
  %v5490 = vpop.permute.xlu0 %5489
  %5491 = vrot.lane.b32.xlu0 %v5473, 127
  %v5492 = vpop.permute.xlu0 %5491
  %5493 = vrot.lane.b32.xlu0 %v5474, 127
  %v5494 = vpop.permute.xlu0 %5493
  %5495 = vrot.lane.b32.xlu0 %v5475, 127
  %v5496 = vpop.permute.xlu0 %5495
  %5497 = vrot.lane.b32.xlu0 %v5476, 127
  %v5498 = vpop.permute.xlu0 %5497
  %5499 = vrot.lane.b32.xlu0 %v5477, 127
  %v5500 = vpop.permute.xlu0 %5499
  %5501 = vrot.lane.b32.xlu0 %v5478, 127
  %v5502 = vpop.permute.xlu0 %5501
  %5503 = vrot.lane.b32.xlu0 %v5479, 127
  %v5504 = vpop.permute.xlu0 %5503
  %5505 = vrot.lane.b32.xlu0 %v5480, 127
  %v5506 = vpop.permute.xlu0 %5505
  %5507 = vrot.lane.b32.xlu0 %v5481, 127
  %v5508 = vpop.permute.xlu0 %5507
  %5509 = vrot.lane.b32.xlu0 %v5482, 127
  %v5510 = vpop.permute.xlu0 %5509
  %5511 = vrot.lane.b32.xlu0 %v5483, 127
  %v5512 = vpop.permute.xlu0 %5511
  %5513 = vrot.lane.b32.xlu0 %v5484, 127
  %v5514 = vpop.permute.xlu0 %5513
  %5515 = vrot.lane.b32.xlu0 %v5485, 127
  %v5516 = vpop.permute.xlu0 %5515
  %5517 = vrot.lane.b32.xlu0 %v5486, 127
  %v5518 = vpop.permute.xlu0 %5517
  %v5519 = vxor.u32 %v5455, %v5488
  %v5520 = vxor.u32 %v5456, %v5490
  %v5521 = vxor.u32 %v5457, %v5492
  %v5522 = vxor.u32 %v5458, %v5494
  %v5523 = vxor.u32 %v5459, %v5496
  %v5524 = vxor.u32 %v5460, %v5498
  %v5525 = vxor.u32 %v5461, %v5500
  %v5526 = vxor.u32 %v5462, %v5502
  %v5527 = vxor.u32 %v5463, %v5504
  %v5528 = vxor.u32 %v5464, %v5506
  %v5529 = vxor.u32 %v5465, %v5508
  %v5530 = vxor.u32 %v5466, %v5510
  %v5531 = vxor.u32 %v5467, %v5512
  %v5532 = vxor.u32 %v5468, %v5514
  %v5533 = vxor.u32 %v5469, %v5516
  %v5534 = vxor.u32 %v5470, %v5518
  %v5535 = vmul.u32 %v5455, 805459861
  %v5536 = vmul.u32 %v5456, 805459861
  %v5537 = vmul.u32 %v5457, 805459861
  %v5538 = vmul.u32 %v5458, 805459861
  %v5539 = vmul.u32 %v5459, 805459861
  %v5540 = vmul.u32 %v5460, 805459861
  %v5541 = vmul.u32 %v5461, 805459861
  %v5542 = vmul.u32 %v5462, 805459861
  %v5543 = vmul.u32 %v5463, 805459861
  %v5544 = vmul.u32 %v5464, 805459861
  %v5545 = vmul.u32 %v5465, 805459861
  %v5546 = vmul.u32 %v5466, 805459861
  %v5547 = vmul.u32 %v5467, 805459861
  %v5548 = vmul.u32 %v5468, 805459861
  %v5549 = vmul.u32 %v5469, 805459861
  %v5550 = vmul.u32 %v5470, 805459861
  %5551 = vrot.lane.b32.xlu0 %v5535, 126
  %v5552 = vpop.permute.xlu0 %5551
  %5553 = vrot.lane.b32.xlu0 %v5536, 126
  %v5554 = vpop.permute.xlu0 %5553
  %5555 = vrot.lane.b32.xlu0 %v5537, 126
  %v5556 = vpop.permute.xlu0 %5555
  %5557 = vrot.lane.b32.xlu0 %v5538, 126
  %v5558 = vpop.permute.xlu0 %5557
  %5559 = vrot.lane.b32.xlu0 %v5539, 126
  %v5560 = vpop.permute.xlu0 %5559
  %5561 = vrot.lane.b32.xlu0 %v5540, 126
  %v5562 = vpop.permute.xlu0 %5561
  %5563 = vrot.lane.b32.xlu0 %v5541, 126
  %v5564 = vpop.permute.xlu0 %5563
  %5565 = vrot.lane.b32.xlu0 %v5542, 126
  %v5566 = vpop.permute.xlu0 %5565
  %5567 = vrot.lane.b32.xlu0 %v5543, 126
  %v5568 = vpop.permute.xlu0 %5567
  %5569 = vrot.lane.b32.xlu0 %v5544, 126
  %v5570 = vpop.permute.xlu0 %5569
  %5571 = vrot.lane.b32.xlu0 %v5545, 126
  %v5572 = vpop.permute.xlu0 %5571
  %5573 = vrot.lane.b32.xlu0 %v5546, 126
  %v5574 = vpop.permute.xlu0 %5573
  %5575 = vrot.lane.b32.xlu0 %v5547, 126
  %v5576 = vpop.permute.xlu0 %5575
  %5577 = vrot.lane.b32.xlu0 %v5548, 126
  %v5578 = vpop.permute.xlu0 %5577
  %5579 = vrot.lane.b32.xlu0 %v5549, 126
  %v5580 = vpop.permute.xlu0 %5579
  %5581 = vrot.lane.b32.xlu0 %v5550, 126
  %v5582 = vpop.permute.xlu0 %5581
  %v5583 = vxor.u32 %v5519, %v5552
  %v5584 = vxor.u32 %v5520, %v5554
  %v5585 = vxor.u32 %v5521, %v5556
  %v5586 = vxor.u32 %v5522, %v5558
  %v5587 = vxor.u32 %v5523, %v5560
  %v5588 = vxor.u32 %v5524, %v5562
  %v5589 = vxor.u32 %v5525, %v5564
  %v5590 = vxor.u32 %v5526, %v5566
  %v5591 = vxor.u32 %v5527, %v5568
  %v5592 = vxor.u32 %v5528, %v5570
  %v5593 = vxor.u32 %v5529, %v5572
  %v5594 = vxor.u32 %v5530, %v5574
  %v5595 = vxor.u32 %v5531, %v5576
  %v5596 = vxor.u32 %v5532, %v5578
  %v5597 = vxor.u32 %v5533, %v5580
  %v5598 = vxor.u32 %v5534, %v5582
  %v5599 = vand.u32 %v5583, 1023
  %v5600 = vand.u32 %v5584, 1023
  %v5601 = vand.u32 %v5585, 1023
  %v5602 = vand.u32 %v5586, 1023
  %v5603 = vand.u32 %v5587, 1023
  %v5604 = vand.u32 %v5588, 1023
  %v5605 = vand.u32 %v5589, 1023
  %v5606 = vand.u32 %v5590, 1023
  %v5607 = vand.u32 %v5591, 1023
  %v5608 = vand.u32 %v5592, 1023
  %v5609 = vand.u32 %v5593, 1023
  %v5610 = vand.u32 %v5594, 1023
  %v5611 = vand.u32 %v5595, 1023
  %v5612 = vand.u32 %v5596, 1023
  %v5613 = vand.u32 %v5597, 1023
  %v5614 = vand.u32 %v5598, 1023
  %5615 = vset.pattern.permute.xlu0 0
  %5616 = vperm.xlu0 %5615, %v5599
  %v5617 = vpop.permute.xlu0 %5616
  %5618 = vset.pattern.permute.xlu0 0
  %5619 = vperm.xlu0 %5618, %v5600
  %v5620 = vpop.permute.xlu0 %5619
  %5621 = vset.pattern.permute.xlu0 0
  %5622 = vperm.xlu0 %5621, %v5601
  %v5623 = vpop.permute.xlu0 %5622
  %5624 = vset.pattern.permute.xlu0 0
  %5625 = vperm.xlu0 %5624, %v5602
  %v5626 = vpop.permute.xlu0 %5625
  %5627 = vset.pattern.permute.xlu0 0
  %5628 = vperm.xlu0 %5627, %v5603
  %v5629 = vpop.permute.xlu0 %5628
  %5630 = vset.pattern.permute.xlu0 0
  %5631 = vperm.xlu0 %5630, %v5604
  %v5632 = vpop.permute.xlu0 %5631
  %5633 = vset.pattern.permute.xlu0 0
  %5634 = vperm.xlu0 %5633, %v5605
  %v5635 = vpop.permute.xlu0 %5634
  %5636 = vset.pattern.permute.xlu0 0
  %5637 = vperm.xlu0 %5636, %v5606
  %v5638 = vpop.permute.xlu0 %5637
  %5639 = vset.pattern.permute.xlu0 0
  %5640 = vperm.xlu0 %5639, %v5607
  %v5641 = vpop.permute.xlu0 %5640
  %5642 = vset.pattern.permute.xlu0 0
  %5643 = vperm.xlu0 %5642, %v5608
  %v5644 = vpop.permute.xlu0 %5643
  %5645 = vset.pattern.permute.xlu0 0
  %5646 = vperm.xlu0 %5645, %v5609
  %v5647 = vpop.permute.xlu0 %5646
  %5648 = vset.pattern.permute.xlu0 0
  %5649 = vperm.xlu0 %5648, %v5610
  %v5650 = vpop.permute.xlu0 %5649
  %5651 = vset.pattern.permute.xlu0 0
  %5652 = vperm.xlu0 %5651, %v5611
  %v5653 = vpop.permute.xlu0 %5652
  %5654 = vset.pattern.permute.xlu0 0
  %5655 = vperm.xlu0 %5654, %v5612
  %v5656 = vpop.permute.xlu0 %5655
  %5657 = vset.pattern.permute.xlu0 0
  %5658 = vperm.xlu0 %5657, %v5613
  %v5659 = vpop.permute.xlu0 %5658
  %5660 = vset.pattern.permute.xlu0 0
  %5661 = vperm.xlu0 %5660, %v5614
  %v5662 = vpop.permute.xlu0 %5661
  %vm5663 = vcmp.eq.s32.totalorder %v28, %v5617
  %vm5664 = vcmp.eq.s32.totalorder %v29, %v5617
  %vm5665 = vcmp.eq.s32.totalorder %v30, %v5617
  %vm5666 = vcmp.eq.s32.totalorder %v31, %v5617
  %vm5667 = vcmp.eq.s32.totalorder %v28, %v5620
  %vm5668 = vcmp.eq.s32.totalorder %v29, %v5620
  %vm5669 = vcmp.eq.s32.totalorder %v30, %v5620
  %vm5670 = vcmp.eq.s32.totalorder %v31, %v5620
  %vm5671 = vcmp.eq.s32.totalorder %v28, %v5623
  %vm5672 = vcmp.eq.s32.totalorder %v29, %v5623
  %vm5673 = vcmp.eq.s32.totalorder %v30, %v5623
  %vm5674 = vcmp.eq.s32.totalorder %v31, %v5623
  %vm5675 = vcmp.eq.s32.totalorder %v28, %v5626
  %vm5676 = vcmp.eq.s32.totalorder %v29, %v5626
  %vm5677 = vcmp.eq.s32.totalorder %v30, %v5626
  %vm5678 = vcmp.eq.s32.totalorder %v31, %v5626
  %vm5679 = vcmp.eq.s32.totalorder %v28, %v5629
  %vm5680 = vcmp.eq.s32.totalorder %v29, %v5629
  %vm5681 = vcmp.eq.s32.totalorder %v30, %v5629
  %vm5682 = vcmp.eq.s32.totalorder %v31, %v5629
  %vm5683 = vcmp.eq.s32.totalorder %v28, %v5632
  %vm5684 = vcmp.eq.s32.totalorder %v29, %v5632
  %vm5685 = vcmp.eq.s32.totalorder %v30, %v5632
  %vm5686 = vcmp.eq.s32.totalorder %v31, %v5632
  %vm5687 = vcmp.eq.s32.totalorder %v28, %v5635
  %vm5688 = vcmp.eq.s32.totalorder %v29, %v5635
  %vm5689 = vcmp.eq.s32.totalorder %v30, %v5635
  %vm5690 = vcmp.eq.s32.totalorder %v31, %v5635
  %vm5691 = vcmp.eq.s32.totalorder %v28, %v5638
  %vm5692 = vcmp.eq.s32.totalorder %v29, %v5638
  %vm5693 = vcmp.eq.s32.totalorder %v30, %v5638
  %vm5694 = vcmp.eq.s32.totalorder %v31, %v5638
  %vm5695 = vcmp.eq.s32.totalorder %v28, %v5641
  %vm5696 = vcmp.eq.s32.totalorder %v29, %v5641
  %vm5697 = vcmp.eq.s32.totalorder %v30, %v5641
  %vm5698 = vcmp.eq.s32.totalorder %v31, %v5641
  %vm5699 = vcmp.eq.s32.totalorder %v28, %v5644
  %vm5700 = vcmp.eq.s32.totalorder %v29, %v5644
  %vm5701 = vcmp.eq.s32.totalorder %v30, %v5644
  %vm5702 = vcmp.eq.s32.totalorder %v31, %v5644
  %vm5703 = vcmp.eq.s32.totalorder %v28, %v5647
  %vm5704 = vcmp.eq.s32.totalorder %v29, %v5647
  %vm5705 = vcmp.eq.s32.totalorder %v30, %v5647
  %vm5706 = vcmp.eq.s32.totalorder %v31, %v5647
  %vm5707 = vcmp.eq.s32.totalorder %v28, %v5650
  %vm5708 = vcmp.eq.s32.totalorder %v29, %v5650
  %vm5709 = vcmp.eq.s32.totalorder %v30, %v5650
  %vm5710 = vcmp.eq.s32.totalorder %v31, %v5650
  %vm5711 = vcmp.eq.s32.totalorder %v28, %v5653
  %vm5712 = vcmp.eq.s32.totalorder %v29, %v5653
  %vm5713 = vcmp.eq.s32.totalorder %v30, %v5653
  %vm5714 = vcmp.eq.s32.totalorder %v31, %v5653
  %vm5715 = vcmp.eq.s32.totalorder %v28, %v5656
  %vm5716 = vcmp.eq.s32.totalorder %v29, %v5656
  %vm5717 = vcmp.eq.s32.totalorder %v30, %v5656
  %vm5718 = vcmp.eq.s32.totalorder %v31, %v5656
  %vm5719 = vcmp.eq.s32.totalorder %v28, %v5659
  %vm5720 = vcmp.eq.s32.totalorder %v29, %v5659
  %vm5721 = vcmp.eq.s32.totalorder %v30, %v5659
  %vm5722 = vcmp.eq.s32.totalorder %v31, %v5659
  %vm5723 = vcmp.eq.s32.totalorder %v28, %v5662
  %vm5724 = vcmp.eq.s32.totalorder %v29, %v5662
  %vm5725 = vcmp.eq.s32.totalorder %v30, %v5662
  %vm5726 = vcmp.eq.s32.totalorder %v31, %v5662
  %v5727 = vsel %vm5663, 1, 0
  %v5728 = vsel %vm5664, 1, 0
  %v5729 = vsel %vm5665, 1, 0
  %v5730 = vsel %vm5666, 1, 0
  %v5731 = vsel %vm5667, 1, 0
  %v5732 = vsel %vm5668, 1, 0
  %v5733 = vsel %vm5669, 1, 0
  %v5734 = vsel %vm5670, 1, 0
  %v5735 = vsel %vm5671, 1, 0
  %v5736 = vsel %vm5672, 1, 0
  %v5737 = vsel %vm5673, 1, 0
  %v5738 = vsel %vm5674, 1, 0
  %v5739 = vsel %vm5675, 1, 0
  %v5740 = vsel %vm5676, 1, 0
  %v5741 = vsel %vm5677, 1, 0
  %v5742 = vsel %vm5678, 1, 0
  %v5743 = vsel %vm5679, 1, 0
  %v5744 = vsel %vm5680, 1, 0
  %v5745 = vsel %vm5681, 1, 0
  %v5746 = vsel %vm5682, 1, 0
  %v5747 = vsel %vm5683, 1, 0
  %v5748 = vsel %vm5684, 1, 0
  %v5749 = vsel %vm5685, 1, 0
  %v5750 = vsel %vm5686, 1, 0
  %v5751 = vsel %vm5687, 1, 0
  %v5752 = vsel %vm5688, 1, 0
  %v5753 = vsel %vm5689, 1, 0
  %v5754 = vsel %vm5690, 1, 0
  %v5755 = vsel %vm5691, 1, 0
  %v5756 = vsel %vm5692, 1, 0
  %v5757 = vsel %vm5693, 1, 0
  %v5758 = vsel %vm5694, 1, 0
  %v5759 = vsel %vm5695, 1, 0
  %v5760 = vsel %vm5696, 1, 0
  %v5761 = vsel %vm5697, 1, 0
  %v5762 = vsel %vm5698, 1, 0
  %v5763 = vsel %vm5699, 1, 0
  %v5764 = vsel %vm5700, 1, 0
  %v5765 = vsel %vm5701, 1, 0
  %v5766 = vsel %vm5702, 1, 0
  %v5767 = vsel %vm5703, 1, 0
  %v5768 = vsel %vm5704, 1, 0
  %v5769 = vsel %vm5705, 1, 0
  %v5770 = vsel %vm5706, 1, 0
  %v5771 = vsel %vm5707, 1, 0
  %v5772 = vsel %vm5708, 1, 0
  %v5773 = vsel %vm5709, 1, 0
  %v5774 = vsel %vm5710, 1, 0
  %v5775 = vsel %vm5711, 1, 0
  %v5776 = vsel %vm5712, 1, 0
  %v5777 = vsel %vm5713, 1, 0
  %v5778 = vsel %vm5714, 1, 0
  %v5779 = vsel %vm5715, 1, 0
  %v5780 = vsel %vm5716, 1, 0
  %v5781 = vsel %vm5717, 1, 0
  %v5782 = vsel %vm5718, 1, 0
  %v5783 = vsel %vm5719, 1, 0
  %v5784 = vsel %vm5720, 1, 0
  %v5785 = vsel %vm5721, 1, 0
  %v5786 = vsel %vm5722, 1, 0
  %v5787 = vsel %vm5723, 1, 0
  %v5788 = vsel %vm5724, 1, 0
  %v5789 = vsel %vm5725, 1, 0
  %v5790 = vsel %vm5726, 1, 0
  %v5791 = vcvt.s32.f32 %v5727
  %v5792 = vcvt.s32.f32 %v5728
  %v5793 = vcvt.s32.f32 %v5729
  %v5794 = vcvt.s32.f32 %v5730
  %v5795 = vcvt.s32.f32 %v5731
  %v5796 = vcvt.s32.f32 %v5732
  %v5797 = vcvt.s32.f32 %v5733
  %v5798 = vcvt.s32.f32 %v5734
  %v5799 = vcvt.s32.f32 %v5735
  %v5800 = vcvt.s32.f32 %v5736
  %v5801 = vcvt.s32.f32 %v5737
  %v5802 = vcvt.s32.f32 %v5738
  %v5803 = vcvt.s32.f32 %v5739
  %v5804 = vcvt.s32.f32 %v5740
  %v5805 = vcvt.s32.f32 %v5741
  %v5806 = vcvt.s32.f32 %v5742
  %v5807 = vcvt.s32.f32 %v5743
  %v5808 = vcvt.s32.f32 %v5744
  %v5809 = vcvt.s32.f32 %v5745
  %v5810 = vcvt.s32.f32 %v5746
  %v5811 = vcvt.s32.f32 %v5747
  %v5812 = vcvt.s32.f32 %v5748
  %v5813 = vcvt.s32.f32 %v5749
  %v5814 = vcvt.s32.f32 %v5750
  %v5815 = vcvt.s32.f32 %v5751
  %v5816 = vcvt.s32.f32 %v5752
  %v5817 = vcvt.s32.f32 %v5753
  %v5818 = vcvt.s32.f32 %v5754
  %v5819 = vcvt.s32.f32 %v5755
  %v5820 = vcvt.s32.f32 %v5756
  %v5821 = vcvt.s32.f32 %v5757
  %v5822 = vcvt.s32.f32 %v5758
  %v5823 = vcvt.s32.f32 %v5759
  %v5824 = vcvt.s32.f32 %v5760
  %v5825 = vcvt.s32.f32 %v5761
  %v5826 = vcvt.s32.f32 %v5762
  %v5827 = vcvt.s32.f32 %v5763
  %v5828 = vcvt.s32.f32 %v5764
  %v5829 = vcvt.s32.f32 %v5765
  %v5830 = vcvt.s32.f32 %v5766
  %v5831 = vcvt.s32.f32 %v5767
  %v5832 = vcvt.s32.f32 %v5768
  %v5833 = vcvt.s32.f32 %v5769
  %v5834 = vcvt.s32.f32 %v5770
  %v5835 = vcvt.s32.f32 %v5771
  %v5836 = vcvt.s32.f32 %v5772
  %v5837 = vcvt.s32.f32 %v5773
  %v5838 = vcvt.s32.f32 %v5774
  %v5839 = vcvt.s32.f32 %v5775
  %v5840 = vcvt.s32.f32 %v5776
  %v5841 = vcvt.s32.f32 %v5777
  %v5842 = vcvt.s32.f32 %v5778
  %v5843 = vcvt.s32.f32 %v5779
  %v5844 = vcvt.s32.f32 %v5780
  %v5845 = vcvt.s32.f32 %v5781
  %v5846 = vcvt.s32.f32 %v5782
  %v5847 = vcvt.s32.f32 %v5783
  %v5848 = vcvt.s32.f32 %v5784
  %v5849 = vcvt.s32.f32 %v5785
  %v5850 = vcvt.s32.f32 %v5786
  %v5851 = vcvt.s32.f32 %v5787
  %v5852 = vcvt.s32.f32 %v5788
  %v5853 = vcvt.s32.f32 %v5789
  %v5854 = vcvt.s32.f32 %v5790
  %v5855 = vld [vmem:[%s1] sm:$0xff]
  %v5856 = vld [vmem:[%s1 + $0x8] sm:$0xff]
  %v5857 = vld [vmem:[%s1 + $0x10] sm:$0xff]
  %v5858 = vld [vmem:[%s1 + $0x18] sm:$0xff]
  %v5859 = vld [vmem:[%s1 + $0x20] sm:$0xff]
  %v5860 = vld [vmem:[%s1 + $0x28] sm:$0xff]
  %v5861 = vld [vmem:[%s1 + $0x30] sm:$0xff]
  %v5862 = vld [vmem:[%s1 + $0x38] sm:$0xff]
  %v5863 = vld [vmem:[%s1 + $0x40] sm:$0xff]
  %v5864 = vld [vmem:[%s1 + $0x48] sm:$0xff]
  %v5865 = vld [vmem:[%s1 + $0x50] sm:$0xff]
  %v5866 = vld [vmem:[%s1 + $0x58] sm:$0xff]
  %v5867 = vld [vmem:[%s1 + $0x60] sm:$0xff]
  %v5868 = vld [vmem:[%s1 + $0x68] sm:$0xff]
  %v5869 = vld [vmem:[%s1 + $0x70] sm:$0xff]
  %v5870 = vld [vmem:[%s1 + $0x78] sm:$0xff]
  %v5871 = vld [vmem:[%s1 + $0x80] sm:$0xff]
  %v5872 = vld [vmem:[%s1 + $0x88] sm:$0xff]
  %v5873 = vld [vmem:[%s1 + $0x90] sm:$0xff]
  %v5874 = vld [vmem:[%s1 + $0x98] sm:$0xff]
  %v5875 = vld [vmem:[%s1 + $0xa0] sm:$0xff]
  %v5876 = vld [vmem:[%s1 + $0xa8] sm:$0xff]
  %v5877 = vld [vmem:[%s1 + $0xb0] sm:$0xff]
  %v5878 = vld [vmem:[%s1 + $0xb8] sm:$0xff]
  %v5879 = vld [vmem:[%s1 + $0xc0] sm:$0xff]
  %v5880 = vld [vmem:[%s1 + $0xc8] sm:$0xff]
  %v5881 = vld [vmem:[%s1 + $0xd0] sm:$0xff]
  %v5882 = vld [vmem:[%s1 + $0xd8] sm:$0xff]
  %v5883 = vld [vmem:[%s1 + $0xe0] sm:$0xff]
  %v5884 = vld [vmem:[%s1 + $0xe8] sm:$0xff]
  %v5885 = vld [vmem:[%s1 + $0xf0] sm:$0xff]
  %v5886 = vld [vmem:[%s1 + $0xf8] sm:$0xff]
  %v5887 = vld [vmem:[%s1 + $0x100] sm:$0xff]
  %v5888 = vld [vmem:[%s1 + $0x108] sm:$0xff]
  %v5889 = vld [vmem:[%s1 + $0x110] sm:$0xff]
  %v5890 = vld [vmem:[%s1 + $0x118] sm:$0xff]
  %v5891 = vld [vmem:[%s1 + $0x120] sm:$0xff]
  %v5892 = vld [vmem:[%s1 + $0x128] sm:$0xff]
  %v5893 = vld [vmem:[%s1 + $0x130] sm:$0xff]
  %v5894 = vld [vmem:[%s1 + $0x138] sm:$0xff]
  %v5895 = vld [vmem:[%s1 + $0x140] sm:$0xff]
  %v5896 = vld [vmem:[%s1 + $0x148] sm:$0xff]
  %v5897 = vld [vmem:[%s1 + $0x150] sm:$0xff]
  %v5898 = vld [vmem:[%s1 + $0x158] sm:$0xff]
  %v5899 = vld [vmem:[%s1 + $0x160] sm:$0xff]
  %v5900 = vld [vmem:[%s1 + $0x168] sm:$0xff]
  %v5901 = vld [vmem:[%s1 + $0x170] sm:$0xff]
  %v5902 = vld [vmem:[%s1 + $0x178] sm:$0xff]
  %v5903 = vld [vmem:[%s1 + $0x180] sm:$0xff]
  %v5904 = vld [vmem:[%s1 + $0x188] sm:$0xff]
  %v5905 = vld [vmem:[%s1 + $0x190] sm:$0xff]
  %v5906 = vld [vmem:[%s1 + $0x198] sm:$0xff]
  %v5907 = vld [vmem:[%s1 + $0x1a0] sm:$0xff]
  %v5908 = vld [vmem:[%s1 + $0x1a8] sm:$0xff]
  %v5909 = vld [vmem:[%s1 + $0x1b0] sm:$0xff]
  %v5910 = vld [vmem:[%s1 + $0x1b8] sm:$0xff]
  %v5911 = vld [vmem:[%s1 + $0x1c0] sm:$0xff]
  %v5912 = vld [vmem:[%s1 + $0x1c8] sm:$0xff]
  %v5913 = vld [vmem:[%s1 + $0x1d0] sm:$0xff]
  %v5914 = vld [vmem:[%s1 + $0x1d8] sm:$0xff]
  %v5915 = vld [vmem:[%s1 + $0x1e0] sm:$0xff]
  %v5916 = vld [vmem:[%s1 + $0x1e8] sm:$0xff]
  %v5917 = vld [vmem:[%s1 + $0x1f0] sm:$0xff]
  %v5918 = vld [vmem:[%s1 + $0x1f8] sm:$0xff]
  %v5919 = vsub.s32 %v5599, 512
  %v5920 = vsub.s32 %v5600, 512
  %v5921 = vsub.s32 %v5601, 512
  %v5922 = vsub.s32 %v5602, 512
  %v5923 = vsub.s32 %v5603, 512
  %v5924 = vsub.s32 %v5604, 512
  %v5925 = vsub.s32 %v5605, 512
  %v5926 = vsub.s32 %v5606, 512
  %v5927 = vsub.s32 %v5607, 512
  %v5928 = vsub.s32 %v5608, 512
  %v5929 = vsub.s32 %v5609, 512
  %v5930 = vsub.s32 %v5610, 512
  %v5931 = vsub.s32 %v5611, 512
  %v5932 = vsub.s32 %v5612, 512
  %v5933 = vsub.s32 %v5613, 512
  %v5934 = vsub.s32 %v5614, 512
  %5935 = vset.pattern.permute.xlu0 0
  %5936 = vperm.xlu0 %5935, %v5919
  %v5937 = vpop.permute.xlu0 %5936
  %5938 = vset.pattern.permute.xlu0 0
  %5939 = vperm.xlu0 %5938, %v5920
  %v5940 = vpop.permute.xlu0 %5939
  %5941 = vset.pattern.permute.xlu0 0
  %5942 = vperm.xlu0 %5941, %v5921
  %v5943 = vpop.permute.xlu0 %5942
  %5944 = vset.pattern.permute.xlu0 0
  %5945 = vperm.xlu0 %5944, %v5922
  %v5946 = vpop.permute.xlu0 %5945
  %5947 = vset.pattern.permute.xlu0 0
  %5948 = vperm.xlu0 %5947, %v5923
  %v5949 = vpop.permute.xlu0 %5948
  %5950 = vset.pattern.permute.xlu0 0
  %5951 = vperm.xlu0 %5950, %v5924
  %v5952 = vpop.permute.xlu0 %5951
  %5953 = vset.pattern.permute.xlu0 0
  %5954 = vperm.xlu0 %5953, %v5925
  %v5955 = vpop.permute.xlu0 %5954
  %5956 = vset.pattern.permute.xlu0 0
  %5957 = vperm.xlu0 %5956, %v5926
  %v5958 = vpop.permute.xlu0 %5957
  %5959 = vset.pattern.permute.xlu0 0
  %5960 = vperm.xlu0 %5959, %v5927
  %v5961 = vpop.permute.xlu0 %5960
  %5962 = vset.pattern.permute.xlu0 0
  %5963 = vperm.xlu0 %5962, %v5928
  %v5964 = vpop.permute.xlu0 %5963
  %5965 = vset.pattern.permute.xlu0 0
  %5966 = vperm.xlu0 %5965, %v5929
  %v5967 = vpop.permute.xlu0 %5966
  %5968 = vset.pattern.permute.xlu0 0
  %5969 = vperm.xlu0 %5968, %v5930
  %v5970 = vpop.permute.xlu0 %5969
  %5971 = vset.pattern.permute.xlu0 0
  %5972 = vperm.xlu0 %5971, %v5931
  %v5973 = vpop.permute.xlu0 %5972
  %5974 = vset.pattern.permute.xlu0 0
  %5975 = vperm.xlu0 %5974, %v5932
  %v5976 = vpop.permute.xlu0 %5975
  %5977 = vset.pattern.permute.xlu0 0
  %5978 = vperm.xlu0 %5977, %v5933
  %v5979 = vpop.permute.xlu0 %5978
  %5980 = vset.pattern.permute.xlu0 0
  %5981 = vperm.xlu0 %5980, %v5934
  %v5982 = vpop.permute.xlu0 %5981
  %vm5983 = vcmp.eq.s32.totalorder %v28, %v5937
  %vm5984 = vcmp.eq.s32.totalorder %v29, %v5937
  %vm5985 = vcmp.eq.s32.totalorder %v30, %v5937
  %vm5986 = vcmp.eq.s32.totalorder %v31, %v5937
  %vm5987 = vcmp.eq.s32.totalorder %v28, %v5940
  %vm5988 = vcmp.eq.s32.totalorder %v29, %v5940
  %vm5989 = vcmp.eq.s32.totalorder %v30, %v5940
  %vm5990 = vcmp.eq.s32.totalorder %v31, %v5940
  %vm5991 = vcmp.eq.s32.totalorder %v28, %v5943
  %vm5992 = vcmp.eq.s32.totalorder %v29, %v5943
  %vm5993 = vcmp.eq.s32.totalorder %v30, %v5943
  %vm5994 = vcmp.eq.s32.totalorder %v31, %v5943
  %vm5995 = vcmp.eq.s32.totalorder %v28, %v5946
  %vm5996 = vcmp.eq.s32.totalorder %v29, %v5946
  %vm5997 = vcmp.eq.s32.totalorder %v30, %v5946
  %vm5998 = vcmp.eq.s32.totalorder %v31, %v5946
  %vm5999 = vcmp.eq.s32.totalorder %v28, %v5949
  %vm6000 = vcmp.eq.s32.totalorder %v29, %v5949
  %vm6001 = vcmp.eq.s32.totalorder %v30, %v5949
  %vm6002 = vcmp.eq.s32.totalorder %v31, %v5949
  %vm6003 = vcmp.eq.s32.totalorder %v28, %v5952
  %vm6004 = vcmp.eq.s32.totalorder %v29, %v5952
  %vm6005 = vcmp.eq.s32.totalorder %v30, %v5952
  %vm6006 = vcmp.eq.s32.totalorder %v31, %v5952
  %vm6007 = vcmp.eq.s32.totalorder %v28, %v5955
  %vm6008 = vcmp.eq.s32.totalorder %v29, %v5955
  %vm6009 = vcmp.eq.s32.totalorder %v30, %v5955
  %vm6010 = vcmp.eq.s32.totalorder %v31, %v5955
  %vm6011 = vcmp.eq.s32.totalorder %v28, %v5958
  %vm6012 = vcmp.eq.s32.totalorder %v29, %v5958
  %vm6013 = vcmp.eq.s32.totalorder %v30, %v5958
  %vm6014 = vcmp.eq.s32.totalorder %v31, %v5958
  %vm6015 = vcmp.eq.s32.totalorder %v28, %v5961
  %vm6016 = vcmp.eq.s32.totalorder %v29, %v5961
  %vm6017 = vcmp.eq.s32.totalorder %v30, %v5961
  %vm6018 = vcmp.eq.s32.totalorder %v31, %v5961
  %vm6019 = vcmp.eq.s32.totalorder %v28, %v5964
  %vm6020 = vcmp.eq.s32.totalorder %v29, %v5964
  %vm6021 = vcmp.eq.s32.totalorder %v30, %v5964
  %vm6022 = vcmp.eq.s32.totalorder %v31, %v5964
  %vm6023 = vcmp.eq.s32.totalorder %v28, %v5967
  %vm6024 = vcmp.eq.s32.totalorder %v29, %v5967
  %vm6025 = vcmp.eq.s32.totalorder %v30, %v5967
  %vm6026 = vcmp.eq.s32.totalorder %v31, %v5967
  %vm6027 = vcmp.eq.s32.totalorder %v28, %v5970
  %vm6028 = vcmp.eq.s32.totalorder %v29, %v5970
  %vm6029 = vcmp.eq.s32.totalorder %v30, %v5970
  %vm6030 = vcmp.eq.s32.totalorder %v31, %v5970
  %vm6031 = vcmp.eq.s32.totalorder %v28, %v5973
  %vm6032 = vcmp.eq.s32.totalorder %v29, %v5973
  %vm6033 = vcmp.eq.s32.totalorder %v30, %v5973
  %vm6034 = vcmp.eq.s32.totalorder %v31, %v5973
  %vm6035 = vcmp.eq.s32.totalorder %v28, %v5976
  %vm6036 = vcmp.eq.s32.totalorder %v29, %v5976
  %vm6037 = vcmp.eq.s32.totalorder %v30, %v5976
  %vm6038 = vcmp.eq.s32.totalorder %v31, %v5976
  %vm6039 = vcmp.eq.s32.totalorder %v28, %v5979
  %vm6040 = vcmp.eq.s32.totalorder %v29, %v5979
  %vm6041 = vcmp.eq.s32.totalorder %v30, %v5979
  %vm6042 = vcmp.eq.s32.totalorder %v31, %v5979
  %vm6043 = vcmp.eq.s32.totalorder %v28, %v5982
  %vm6044 = vcmp.eq.s32.totalorder %v29, %v5982
  %vm6045 = vcmp.eq.s32.totalorder %v30, %v5982
  %vm6046 = vcmp.eq.s32.totalorder %v31, %v5982
  %v6047 = vsel %vm5983, 1, 0
  %v6048 = vsel %vm5984, 1, 0
  %v6049 = vsel %vm5985, 1, 0
  %v6050 = vsel %vm5986, 1, 0
  %v6051 = vsel %vm5987, 1, 0
  %v6052 = vsel %vm5988, 1, 0
  %v6053 = vsel %vm5989, 1, 0
  %v6054 = vsel %vm5990, 1, 0
  %v6055 = vsel %vm5991, 1, 0
  %v6056 = vsel %vm5992, 1, 0
  %v6057 = vsel %vm5993, 1, 0
  %v6058 = vsel %vm5994, 1, 0
  %v6059 = vsel %vm5995, 1, 0
  %v6060 = vsel %vm5996, 1, 0
  %v6061 = vsel %vm5997, 1, 0
  %v6062 = vsel %vm5998, 1, 0
  %v6063 = vsel %vm5999, 1, 0
  %v6064 = vsel %vm6000, 1, 0
  %v6065 = vsel %vm6001, 1, 0
  %v6066 = vsel %vm6002, 1, 0
  %v6067 = vsel %vm6003, 1, 0
  %v6068 = vsel %vm6004, 1, 0
  %v6069 = vsel %vm6005, 1, 0
  %v6070 = vsel %vm6006, 1, 0
  %v6071 = vsel %vm6007, 1, 0
  %v6072 = vsel %vm6008, 1, 0
  %v6073 = vsel %vm6009, 1, 0
  %v6074 = vsel %vm6010, 1, 0
  %v6075 = vsel %vm6011, 1, 0
  %v6076 = vsel %vm6012, 1, 0
  %v6077 = vsel %vm6013, 1, 0
  %v6078 = vsel %vm6014, 1, 0
  %v6079 = vsel %vm6015, 1, 0
  %v6080 = vsel %vm6016, 1, 0
  %v6081 = vsel %vm6017, 1, 0
  %v6082 = vsel %vm6018, 1, 0
  %v6083 = vsel %vm6019, 1, 0
  %v6084 = vsel %vm6020, 1, 0
  %v6085 = vsel %vm6021, 1, 0
  %v6086 = vsel %vm6022, 1, 0
  %v6087 = vsel %vm6023, 1, 0
  %v6088 = vsel %vm6024, 1, 0
  %v6089 = vsel %vm6025, 1, 0
  %v6090 = vsel %vm6026, 1, 0
  %v6091 = vsel %vm6027, 1, 0
  %v6092 = vsel %vm6028, 1, 0
  %v6093 = vsel %vm6029, 1, 0
  %v6094 = vsel %vm6030, 1, 0
  %v6095 = vsel %vm6031, 1, 0
  %v6096 = vsel %vm6032, 1, 0
  %v6097 = vsel %vm6033, 1, 0
  %v6098 = vsel %vm6034, 1, 0
  %v6099 = vsel %vm6035, 1, 0
  %v6100 = vsel %vm6036, 1, 0
  %v6101 = vsel %vm6037, 1, 0
  %v6102 = vsel %vm6038, 1, 0
  %v6103 = vsel %vm6039, 1, 0
  %v6104 = vsel %vm6040, 1, 0
  %v6105 = vsel %vm6041, 1, 0
  %v6106 = vsel %vm6042, 1, 0
  %v6107 = vsel %vm6043, 1, 0
  %v6108 = vsel %vm6044, 1, 0
  %v6109 = vsel %vm6045, 1, 0
  %v6110 = vsel %vm6046, 1, 0
  %v6111 = vcvt.s32.f32 %v6047
  %v6112 = vcvt.s32.f32 %v6048
  %v6113 = vcvt.s32.f32 %v6049
  %v6114 = vcvt.s32.f32 %v6050
  %v6115 = vcvt.s32.f32 %v6051
  %v6116 = vcvt.s32.f32 %v6052
  %v6117 = vcvt.s32.f32 %v6053
  %v6118 = vcvt.s32.f32 %v6054
  %v6119 = vcvt.s32.f32 %v6055
  %v6120 = vcvt.s32.f32 %v6056
  %v6121 = vcvt.s32.f32 %v6057
  %v6122 = vcvt.s32.f32 %v6058
  %v6123 = vcvt.s32.f32 %v6059
  %v6124 = vcvt.s32.f32 %v6060
  %v6125 = vcvt.s32.f32 %v6061
  %v6126 = vcvt.s32.f32 %v6062
  %v6127 = vcvt.s32.f32 %v6063
  %v6128 = vcvt.s32.f32 %v6064
  %v6129 = vcvt.s32.f32 %v6065
  %v6130 = vcvt.s32.f32 %v6066
  %v6131 = vcvt.s32.f32 %v6067
  %v6132 = vcvt.s32.f32 %v6068
  %v6133 = vcvt.s32.f32 %v6069
  %v6134 = vcvt.s32.f32 %v6070
  %v6135 = vcvt.s32.f32 %v6071
  %v6136 = vcvt.s32.f32 %v6072
  %v6137 = vcvt.s32.f32 %v6073
  %v6138 = vcvt.s32.f32 %v6074
  %v6139 = vcvt.s32.f32 %v6075
  %v6140 = vcvt.s32.f32 %v6076
  %v6141 = vcvt.s32.f32 %v6077
  %v6142 = vcvt.s32.f32 %v6078
  %v6143 = vcvt.s32.f32 %v6079
  %v6144 = vcvt.s32.f32 %v6080
  %v6145 = vcvt.s32.f32 %v6081
  %v6146 = vcvt.s32.f32 %v6082
  %v6147 = vcvt.s32.f32 %v6083
  %v6148 = vcvt.s32.f32 %v6084
  %v6149 = vcvt.s32.f32 %v6085
  %v6150 = vcvt.s32.f32 %v6086
  %v6151 = vcvt.s32.f32 %v6087
  %v6152 = vcvt.s32.f32 %v6088
  %v6153 = vcvt.s32.f32 %v6089
  %v6154 = vcvt.s32.f32 %v6090
  %v6155 = vcvt.s32.f32 %v6091
  %v6156 = vcvt.s32.f32 %v6092
  %v6157 = vcvt.s32.f32 %v6093
  %v6158 = vcvt.s32.f32 %v6094
  %v6159 = vcvt.s32.f32 %v6095
  %v6160 = vcvt.s32.f32 %v6096
  %v6161 = vcvt.s32.f32 %v6097
  %v6162 = vcvt.s32.f32 %v6098
  %v6163 = vcvt.s32.f32 %v6099
  %v6164 = vcvt.s32.f32 %v6100
  %v6165 = vcvt.s32.f32 %v6101
  %v6166 = vcvt.s32.f32 %v6102
  %v6167 = vcvt.s32.f32 %v6103
  %v6168 = vcvt.s32.f32 %v6104
  %v6169 = vcvt.s32.f32 %v6105
  %v6170 = vcvt.s32.f32 %v6106
  %v6171 = vcvt.s32.f32 %v6107
  %v6172 = vcvt.s32.f32 %v6108
  %v6173 = vcvt.s32.f32 %v6109
  %v6174 = vcvt.s32.f32 %v6110
  %v6175 = vld [vmem:[%s1 + $0x200] sm:$0xff]
  %v6176 = vld [vmem:[%s1 + $0x208] sm:$0xff]
  %v6177 = vld [vmem:[%s1 + $0x210] sm:$0xff]
  %v6178 = vld [vmem:[%s1 + $0x218] sm:$0xff]
  %v6179 = vld [vmem:[%s1 + $0x220] sm:$0xff]
  %v6180 = vld [vmem:[%s1 + $0x228] sm:$0xff]
  %v6181 = vld [vmem:[%s1 + $0x230] sm:$0xff]
  %v6182 = vld [vmem:[%s1 + $0x238] sm:$0xff]
  %v6183 = vld [vmem:[%s1 + $0x240] sm:$0xff]
  %v6184 = vld [vmem:[%s1 + $0x248] sm:$0xff]
  %v6185 = vld [vmem:[%s1 + $0x250] sm:$0xff]
  %v6186 = vld [vmem:[%s1 + $0x258] sm:$0xff]
  %v6187 = vld [vmem:[%s1 + $0x260] sm:$0xff]
  %v6188 = vld [vmem:[%s1 + $0x268] sm:$0xff]
  %v6189 = vld [vmem:[%s1 + $0x270] sm:$0xff]
  %v6190 = vld [vmem:[%s1 + $0x278] sm:$0xff]
  %v6191 = vld [vmem:[%s1 + $0x280] sm:$0xff]
  %v6192 = vld [vmem:[%s1 + $0x288] sm:$0xff]
  %v6193 = vld [vmem:[%s1 + $0x290] sm:$0xff]
  %v6194 = vld [vmem:[%s1 + $0x298] sm:$0xff]
  %v6195 = vld [vmem:[%s1 + $0x2a0] sm:$0xff]
  %v6196 = vld [vmem:[%s1 + $0x2a8] sm:$0xff]
  %v6197 = vld [vmem:[%s1 + $0x2b0] sm:$0xff]
  %v6198 = vld [vmem:[%s1 + $0x2b8] sm:$0xff]
  %v6199 = vld [vmem:[%s1 + $0x2c0] sm:$0xff]
  %v6200 = vld [vmem:[%s1 + $0x2c8] sm:$0xff]
  %v6201 = vld [vmem:[%s1 + $0x2d0] sm:$0xff]
  %v6202 = vld [vmem:[%s1 + $0x2d8] sm:$0xff]
  %v6203 = vld [vmem:[%s1 + $0x2e0] sm:$0xff]
  %v6204 = vld [vmem:[%s1 + $0x2e8] sm:$0xff]
  %v6205 = vld [vmem:[%s1 + $0x2f0] sm:$0xff]
  %v6206 = vld [vmem:[%s1 + $0x2f8] sm:$0xff]
  %v6207 = vld [vmem:[%s1 + $0x300] sm:$0xff]
  %v6208 = vld [vmem:[%s1 + $0x308] sm:$0xff]
  %v6209 = vld [vmem:[%s1 + $0x310] sm:$0xff]
  %v6210 = vld [vmem:[%s1 + $0x318] sm:$0xff]
  %v6211 = vld [vmem:[%s1 + $0x320] sm:$0xff]
  %v6212 = vld [vmem:[%s1 + $0x328] sm:$0xff]
  %v6213 = vld [vmem:[%s1 + $0x330] sm:$0xff]
  %v6214 = vld [vmem:[%s1 + $0x338] sm:$0xff]
  %v6215 = vld [vmem:[%s1 + $0x340] sm:$0xff]
  %v6216 = vld [vmem:[%s1 + $0x348] sm:$0xff]
  %v6217 = vld [vmem:[%s1 + $0x350] sm:$0xff]
  %v6218 = vld [vmem:[%s1 + $0x358] sm:$0xff]
  %v6219 = vld [vmem:[%s1 + $0x360] sm:$0xff]
  %v6220 = vld [vmem:[%s1 + $0x368] sm:$0xff]
  %v6221 = vld [vmem:[%s1 + $0x370] sm:$0xff]
  %v6222 = vld [vmem:[%s1 + $0x378] sm:$0xff]
  %v6223 = vld [vmem:[%s1 + $0x380] sm:$0xff]
  %v6224 = vld [vmem:[%s1 + $0x388] sm:$0xff]
  %v6225 = vld [vmem:[%s1 + $0x390] sm:$0xff]
  %v6226 = vld [vmem:[%s1 + $0x398] sm:$0xff]
  %v6227 = vld [vmem:[%s1 + $0x3a0] sm:$0xff]
  %v6228 = vld [vmem:[%s1 + $0x3a8] sm:$0xff]
  %v6229 = vld [vmem:[%s1 + $0x3b0] sm:$0xff]
  %v6230 = vld [vmem:[%s1 + $0x3b8] sm:$0xff]
  %v6231 = vld [vmem:[%s1 + $0x3c0] sm:$0xff]
  %v6232 = vld [vmem:[%s1 + $0x3c8] sm:$0xff]
  %v6233 = vld [vmem:[%s1 + $0x3d0] sm:$0xff]
  %v6234 = vld [vmem:[%s1 + $0x3d8] sm:$0xff]
  %v6235 = vld [vmem:[%s1 + $0x3e0] sm:$0xff]
  %v6236 = vld [vmem:[%s1 + $0x3e8] sm:$0xff]
  %v6237 = vld [vmem:[%s1 + $0x3f0] sm:$0xff]
  %v6238 = vld [vmem:[%s1 + $0x3f8] sm:$0xff]
  %6303 = vrot.lane.b32.xlu0 %v6175, 116
  %v6304 = vpop.permute.xlu0 %6303
  %6305 = vrot.lane.b32.xlu0 %v6176, 116
  %v6306 = vpop.permute.xlu0 %6305
  %6307 = vrot.lane.b32.xlu0 %v6177, 116
  %v6308 = vpop.permute.xlu0 %6307
  %6309 = vrot.lane.b32.xlu0 %v6178, 116
  %v6310 = vpop.permute.xlu0 %6309
  %6311 = vrot.lane.b32.xlu0 %v6179, 116
  %v6312 = vpop.permute.xlu0 %6311
  %6313 = vrot.lane.b32.xlu0 %v6180, 116
  %v6314 = vpop.permute.xlu0 %6313
  %6315 = vrot.lane.b32.xlu0 %v6181, 116
  %v6316 = vpop.permute.xlu0 %6315
  %6317 = vrot.lane.b32.xlu0 %v6182, 116
  %v6318 = vpop.permute.xlu0 %6317
  %6319 = vrot.lane.b32.xlu0 %v6183, 116
  %v6320 = vpop.permute.xlu0 %6319
  %6321 = vrot.lane.b32.xlu0 %v6184, 116
  %v6322 = vpop.permute.xlu0 %6321
  %6323 = vrot.lane.b32.xlu0 %v6185, 116
  %v6324 = vpop.permute.xlu0 %6323
  %6325 = vrot.lane.b32.xlu0 %v6186, 116
  %v6326 = vpop.permute.xlu0 %6325
  %6327 = vrot.lane.b32.xlu0 %v6187, 116
  %v6328 = vpop.permute.xlu0 %6327
  %6329 = vrot.lane.b32.xlu0 %v6188, 116
  %v6330 = vpop.permute.xlu0 %6329
  %6331 = vrot.lane.b32.xlu0 %v6189, 116
  %v6332 = vpop.permute.xlu0 %6331
  %6333 = vrot.lane.b32.xlu0 %v6190, 116
  %v6334 = vpop.permute.xlu0 %6333
  %6335 = vrot.lane.b32.xlu0 %v6191, 116
  %v6336 = vpop.permute.xlu0 %6335
  %6337 = vrot.lane.b32.xlu0 %v6192, 116
  %v6338 = vpop.permute.xlu0 %6337
  %6339 = vrot.lane.b32.xlu0 %v6193, 116
  %v6340 = vpop.permute.xlu0 %6339
  %6341 = vrot.lane.b32.xlu0 %v6194, 116
  %v6342 = vpop.permute.xlu0 %6341
  %6343 = vrot.lane.b32.xlu0 %v6195, 116
  %v6344 = vpop.permute.xlu0 %6343
  %6345 = vrot.lane.b32.xlu0 %v6196, 116
  %v6346 = vpop.permute.xlu0 %6345
  %6347 = vrot.lane.b32.xlu0 %v6197, 116
  %v6348 = vpop.permute.xlu0 %6347
  %6349 = vrot.lane.b32.xlu0 %v6198, 116
  %v6350 = vpop.permute.xlu0 %6349
  %6351 = vrot.lane.b32.xlu0 %v6199, 116
  %v6352 = vpop.permute.xlu0 %6351
  %6353 = vrot.lane.b32.xlu0 %v6200, 116
  %v6354 = vpop.permute.xlu0 %6353
  %6355 = vrot.lane.b32.xlu0 %v6201, 116
  %v6356 = vpop.permute.xlu0 %6355
  %6357 = vrot.lane.b32.xlu0 %v6202, 116
  %v6358 = vpop.permute.xlu0 %6357
  %6359 = vrot.lane.b32.xlu0 %v6203, 116
  %v6360 = vpop.permute.xlu0 %6359
  %6361 = vrot.lane.b32.xlu0 %v6204, 116
  %v6362 = vpop.permute.xlu0 %6361
  %6363 = vrot.lane.b32.xlu0 %v6205, 116
  %v6364 = vpop.permute.xlu0 %6363
  %6365 = vrot.lane.b32.xlu0 %v6206, 116
  %v6366 = vpop.permute.xlu0 %6365
  %6367 = vrot.lane.b32.xlu0 %v6207, 116
  %v6368 = vpop.permute.xlu0 %6367
  %6369 = vrot.lane.b32.xlu0 %v6208, 116
  %v6370 = vpop.permute.xlu0 %6369
  %6371 = vrot.lane.b32.xlu0 %v6209, 116
  %v6372 = vpop.permute.xlu0 %6371
  %6373 = vrot.lane.b32.xlu0 %v6210, 116
  %v6374 = vpop.permute.xlu0 %6373
  %6375 = vrot.lane.b32.xlu0 %v6211, 116
  %v6376 = vpop.permute.xlu0 %6375
  %6377 = vrot.lane.b32.xlu0 %v6212, 116
  %v6378 = vpop.permute.xlu0 %6377
  %6379 = vrot.lane.b32.xlu0 %v6213, 116
  %v6380 = vpop.permute.xlu0 %6379
  %6381 = vrot.lane.b32.xlu0 %v6214, 116
  %v6382 = vpop.permute.xlu0 %6381
  %6383 = vrot.lane.b32.xlu0 %v6215, 116
  %v6384 = vpop.permute.xlu0 %6383
  %6385 = vrot.lane.b32.xlu0 %v6216, 116
  %v6386 = vpop.permute.xlu0 %6385
  %6387 = vrot.lane.b32.xlu0 %v6217, 116
  %v6388 = vpop.permute.xlu0 %6387
  %6389 = vrot.lane.b32.xlu0 %v6218, 116
  %v6390 = vpop.permute.xlu0 %6389
  %6391 = vrot.lane.b32.xlu0 %v6219, 116
  %v6392 = vpop.permute.xlu0 %6391
  %6393 = vrot.lane.b32.xlu0 %v6220, 116
  %v6394 = vpop.permute.xlu0 %6393
  %6395 = vrot.lane.b32.xlu0 %v6221, 116
  %v6396 = vpop.permute.xlu0 %6395
  %6397 = vrot.lane.b32.xlu0 %v6222, 116
  %v6398 = vpop.permute.xlu0 %6397
  %6399 = vrot.lane.b32.xlu0 %v6223, 116
  %v6400 = vpop.permute.xlu0 %6399
  %6401 = vrot.lane.b32.xlu0 %v6224, 116
  %v6402 = vpop.permute.xlu0 %6401
  %6403 = vrot.lane.b32.xlu0 %v6225, 116
  %v6404 = vpop.permute.xlu0 %6403
  %6405 = vrot.lane.b32.xlu0 %v6226, 116
  %v6406 = vpop.permute.xlu0 %6405
  %6407 = vrot.lane.b32.xlu0 %v6227, 116
  %v6408 = vpop.permute.xlu0 %6407
  %6409 = vrot.lane.b32.xlu0 %v6228, 116
  %v6410 = vpop.permute.xlu0 %6409
  %6411 = vrot.lane.b32.xlu0 %v6229, 116
  %v6412 = vpop.permute.xlu0 %6411
  %6413 = vrot.lane.b32.xlu0 %v6230, 116
  %v6414 = vpop.permute.xlu0 %6413
  %6415 = vrot.lane.b32.xlu0 %v6231, 116
  %v6416 = vpop.permute.xlu0 %6415
  %6417 = vrot.lane.b32.xlu0 %v6232, 116
  %v6418 = vpop.permute.xlu0 %6417
  %6419 = vrot.lane.b32.xlu0 %v6233, 116
  %v6420 = vpop.permute.xlu0 %6419
  %6421 = vrot.lane.b32.xlu0 %v6234, 116
  %v6422 = vpop.permute.xlu0 %6421
  %6423 = vrot.lane.b32.xlu0 %v6235, 116
  %v6424 = vpop.permute.xlu0 %6423
  %6425 = vrot.lane.b32.xlu0 %v6236, 116
  %v6426 = vpop.permute.xlu0 %6425
  %6427 = vrot.lane.b32.xlu0 %v6237, 116
  %v6428 = vpop.permute.xlu0 %6427
  %6429 = vrot.lane.b32.xlu0 %v6238, 116
  %v6430 = vpop.permute.xlu0 %6429
  %6495 = vmatprep.subr.mxu0 0.0
  %6496 = vmatpush1.msra.mxu0 %v6334
  %6497 = vmatprep.subr.mxu0 0.0
  %6498 = vmatpush1.msra.mxu0 %v6332
  %6499 = vmatprep.subr.mxu0 0.0
  %6500 = vmatpush1.msra.mxu0 %v6330
  %6501 = vmatprep.subr.mxu0 0.0
  %6502 = vmatpush1.msra.mxu0 %v6328
  %6503 = vmatprep.subr.mxu0 0.0
  %6504 = vmatpush1.msra.mxu0 %v6326
  %6505 = vmatprep.subr.mxu0 0.0
  %6506 = vmatpush1.msra.mxu0 %v6324
  %6507 = vmatprep.subr.mxu0 0.0
  %6508 = vmatpush1.msra.mxu0 %v6322
  %6509 = vmatprep.subr.mxu0 0.0
  %6510 = vmatpush1.msra.mxu0 %v6320
  %6511 = vmatprep.subr.mxu0 0.0
  %6512 = vmatpush1.msra.mxu0 %v6318
  %6513 = vmatprep.subr.mxu0 0.0
  %6514 = vmatpush1.msra.mxu0 %v6316
  %6515 = vmatprep.subr.mxu0 0.0
  %6516 = vmatpush1.msra.mxu0 %v6314
  %6517 = vmatprep.subr.mxu0 0.0
  %6518 = vmatpush1.msra.mxu0 %v6312
  %6519 = vmatprep.subr.mxu0 0.0
  %6520 = vmatpush1.msra.mxu0 %v6310
  %6521 = vmatprep.subr.mxu0 0.0
  %6522 = vmatpush1.msra.mxu0 %v6308
  %6523 = vmatprep.subr.mxu0 0.0
  %6524 = vmatpush1.msra.mxu0 %v6306
  %6525 = vmatprep.subr.mxu0 0.0
  %6526 = vmatpush1.msra.mxu0 %v6304
  %6527 = vmatprep.subr.mxu0 0.0
  %6528 = vmatpush2.msra.mxu0 %v6366
  %6529 = vmatprep.subr.mxu0 0.0
  %6530 = vmatpush2.msra.mxu0 %v6364
  %6531 = vmatprep.subr.mxu0 0.0
  %6532 = vmatpush2.msra.mxu0 %v6362
  %6533 = vmatprep.subr.mxu0 0.0
  %6534 = vmatpush2.msra.mxu0 %v6360
  %6535 = vmatprep.subr.mxu0 0.0
  %6536 = vmatpush2.msra.mxu0 %v6358
  %6537 = vmatprep.subr.mxu0 0.0
  %6538 = vmatpush2.msra.mxu0 %v6356
  %6539 = vmatprep.subr.mxu0 0.0
  %6540 = vmatpush2.msra.mxu0 %v6354
  %6541 = vmatprep.subr.mxu0 0.0
  %6542 = vmatpush2.msra.mxu0 %v6352
  %6543 = vmatprep.subr.mxu0 0.0
  %6544 = vmatpush2.msra.mxu0 %v6350
  %6545 = vmatprep.subr.mxu0 0.0
  %6546 = vmatpush2.msra.mxu0 %v6348
  %6547 = vmatprep.subr.mxu0 0.0
  %6548 = vmatpush2.msra.mxu0 %v6346
  %6549 = vmatprep.subr.mxu0 0.0
  %6550 = vmatpush2.msra.mxu0 %v6344
  %6551 = vmatprep.subr.mxu0 0.0
  %6552 = vmatpush2.msra.mxu0 %v6342
  %6553 = vmatprep.subr.mxu0 0.0
  %6554 = vmatpush2.msra.mxu0 %v6340
  %6555 = vmatprep.subr.mxu0 0.0
  %6556 = vmatpush2.msra.mxu0 %v6338
  %6557 = vmatprep.subr.mxu0 0.0
  %6558 = vmatpush2.msra.mxu0 %v6336
  %6559 = vmatprep.mubr.f32.mxu0 %v6112
  %6560 = vmatmul.mubr.f32.gmra.mxu0 %v6111
  %v6561 = vpop.f32.mrf.mxu0
  %v6562 = vadd.f32 0.0, %v6561
  %v6563 = vpop.f32.mrf.mxu0
  %6564 = vmatprep.mubr.f32.mxu0 %v6116
  %6565 = vmatmul.mubr.f32.gmra.mxu0 %v6115
  %v6566 = vpop.f32.mrf.mxu0
  %v6567 = vadd.f32 0.0, %v6566
  %v6568 = vpop.f32.mrf.mxu0
  %6569 = vmatprep.mubr.f32.mxu0 %v6120
  %6570 = vmatmul.mubr.f32.gmra.mxu0 %v6119
  %v6571 = vpop.f32.mrf.mxu0
  %v6572 = vadd.f32 0.0, %v6571
  %v6573 = vpop.f32.mrf.mxu0
  %6574 = vmatprep.mubr.f32.mxu0 %v6124
  %6575 = vmatmul.mubr.f32.gmra.mxu0 %v6123
  %v6576 = vpop.f32.mrf.mxu0
  %v6577 = vadd.f32 0.0, %v6576
  %v6578 = vpop.f32.mrf.mxu0
  %6579 = vmatprep.mubr.f32.mxu0 %v6128
  %6580 = vmatmul.mubr.f32.gmra.mxu0 %v6127
  %v6581 = vpop.f32.mrf.mxu0
  %v6582 = vadd.f32 0.0, %v6581
  %v6583 = vpop.f32.mrf.mxu0
  %6584 = vmatprep.mubr.f32.mxu0 %v6132
  %6585 = vmatmul.mubr.f32.gmra.mxu0 %v6131
  %v6586 = vpop.f32.mrf.mxu0
  %v6587 = vadd.f32 0.0, %v6586
  %v6588 = vpop.f32.mrf.mxu0
  %6589 = vmatprep.mubr.f32.mxu0 %v6136
  %6590 = vmatmul.mubr.f32.gmra.mxu0 %v6135
  %v6591 = vpop.f32.mrf.mxu0
  %v6592 = vadd.f32 0.0, %v6591
  %v6593 = vpop.f32.mrf.mxu0
  %6594 = vmatprep.mubr.f32.mxu0 %v6140
  %6595 = vmatmul.mubr.f32.gmra.mxu0 %v6139
  %v6596 = vpop.f32.mrf.mxu0
  %v6597 = vadd.f32 0.0, %v6596
  %v6598 = vpop.f32.mrf.mxu0
  %6599 = vmatprep.mubr.f32.mxu0 %v6144
  %6600 = vmatmul.mubr.f32.gmra.mxu0 %v6143
  %v6601 = vpop.f32.mrf.mxu0
  %v6602 = vadd.f32 0.0, %v6601
  %v6603 = vpop.f32.mrf.mxu0
  %6604 = vmatprep.mubr.f32.mxu0 %v6148
  %6605 = vmatmul.mubr.f32.gmra.mxu0 %v6147
  %v6606 = vpop.f32.mrf.mxu0
  %v6607 = vadd.f32 0.0, %v6606
  %v6608 = vpop.f32.mrf.mxu0
  %6609 = vmatprep.mubr.f32.mxu0 %v6152
  %6610 = vmatmul.mubr.f32.gmra.mxu0 %v6151
  %v6611 = vpop.f32.mrf.mxu0
  %v6612 = vadd.f32 0.0, %v6611
  %v6613 = vpop.f32.mrf.mxu0
  %6614 = vmatprep.mubr.f32.mxu0 %v6156
  %6615 = vmatmul.mubr.f32.gmra.mxu0 %v6155
  %v6616 = vpop.f32.mrf.mxu0
  %v6617 = vadd.f32 0.0, %v6616
  %v6618 = vpop.f32.mrf.mxu0
  %6619 = vmatprep.mubr.f32.mxu0 %v6160
  %6620 = vmatmul.mubr.f32.gmra.mxu0 %v6159
  %v6621 = vpop.f32.mrf.mxu0
  %v6622 = vadd.f32 0.0, %v6621
  %v6623 = vpop.f32.mrf.mxu0
  %6624 = vmatprep.mubr.f32.mxu0 %v6164
  %6625 = vmatmul.mubr.f32.gmra.mxu0 %v6163
  %v6626 = vpop.f32.mrf.mxu0
  %v6627 = vadd.f32 0.0, %v6626
  %v6628 = vpop.f32.mrf.mxu0
  %6629 = vmatprep.mubr.f32.mxu0 %v6168
  %6630 = vmatmul.mubr.f32.gmra.mxu0 %v6167
  %v6631 = vpop.f32.mrf.mxu0
  %v6632 = vadd.f32 0.0, %v6631
  %v6633 = vpop.f32.mrf.mxu0
  %6634 = vmatprep.mubr.f32.mxu0 %v6172
  %6635 = vmatmul.mubr.f32.gmra.mxu0 %v6171
  %v6636 = vpop.f32.mrf.mxu0
  %v6637 = vadd.f32 0.0, %v6636
  %v6638 = vpop.f32.mrf.mxu0
  %6639 = vdwg.mxu0
  %6640 = vmatprep.subr.mxu0 0.0
  %6641 = vmatpush1.msra.mxu0 %v6398
  %6642 = vmatprep.subr.mxu0 0.0
  %6643 = vmatpush1.msra.mxu0 %v6396
  %6644 = vmatprep.subr.mxu0 0.0
  %6645 = vmatpush1.msra.mxu0 %v6394
  %6646 = vmatprep.subr.mxu0 0.0
  %6647 = vmatpush1.msra.mxu0 %v6392
  %6648 = vmatprep.subr.mxu0 0.0
  %6649 = vmatpush1.msra.mxu0 %v6390
  %6650 = vmatprep.subr.mxu0 0.0
  %6651 = vmatpush1.msra.mxu0 %v6388
  %6652 = vmatprep.subr.mxu0 0.0
  %6653 = vmatpush1.msra.mxu0 %v6386
  %6654 = vmatprep.subr.mxu0 0.0
  %6655 = vmatpush1.msra.mxu0 %v6384
  %6656 = vmatprep.subr.mxu0 0.0
  %6657 = vmatpush1.msra.mxu0 %v6382
  %6658 = vmatprep.subr.mxu0 0.0
  %6659 = vmatpush1.msra.mxu0 %v6380
  %6660 = vmatprep.subr.mxu0 0.0
  %6661 = vmatpush1.msra.mxu0 %v6378
  %6662 = vmatprep.subr.mxu0 0.0
  %6663 = vmatpush1.msra.mxu0 %v6376
  %6664 = vmatprep.subr.mxu0 0.0
  %6665 = vmatpush1.msra.mxu0 %v6374
  %6666 = vmatprep.subr.mxu0 0.0
  %6667 = vmatpush1.msra.mxu0 %v6372
  %6668 = vmatprep.subr.mxu0 0.0
  %6669 = vmatpush1.msra.mxu0 %v6370
  %6670 = vmatprep.subr.mxu0 0.0
  %6671 = vmatpush1.msra.mxu0 %v6368
  %6672 = vmatprep.subr.mxu0 0.0
  %6673 = vmatpush2.msra.mxu0 %v6430
  %6674 = vmatprep.subr.mxu0 0.0
  %6675 = vmatpush2.msra.mxu0 %v6428
  %6676 = vmatprep.subr.mxu0 0.0
  %6677 = vmatpush2.msra.mxu0 %v6426
  %6678 = vmatprep.subr.mxu0 0.0
  %6679 = vmatpush2.msra.mxu0 %v6424
  %6680 = vmatprep.subr.mxu0 0.0
  %6681 = vmatpush2.msra.mxu0 %v6422
  %6682 = vmatprep.subr.mxu0 0.0
  %6683 = vmatpush2.msra.mxu0 %v6420
  %6684 = vmatprep.subr.mxu0 0.0
  %6685 = vmatpush2.msra.mxu0 %v6418
  %6686 = vmatprep.subr.mxu0 0.0
  %6687 = vmatpush2.msra.mxu0 %v6416
  %6688 = vmatprep.subr.mxu0 0.0
  %6689 = vmatpush2.msra.mxu0 %v6414
  %6690 = vmatprep.subr.mxu0 0.0
  %6691 = vmatpush2.msra.mxu0 %v6412
  %6692 = vmatprep.subr.mxu0 0.0
  %6693 = vmatpush2.msra.mxu0 %v6410
  %6694 = vmatprep.subr.mxu0 0.0
  %6695 = vmatpush2.msra.mxu0 %v6408
  %6696 = vmatprep.subr.mxu0 0.0
  %6697 = vmatpush2.msra.mxu0 %v6406
  %6698 = vmatprep.subr.mxu0 0.0
  %6699 = vmatpush2.msra.mxu0 %v6404
  %6700 = vmatprep.subr.mxu0 0.0
  %6701 = vmatpush2.msra.mxu0 %v6402
  %6702 = vmatprep.subr.mxu0 0.0
  %6703 = vmatpush2.msra.mxu0 %v6400
  %6704 = vmatprep.mubr.f32.mxu0 %v6114
  %6705 = vmatmul.mubr.f32.gmra.mxu0 %v6113
  %v6706 = vpop.f32.mrf.mxu0
  %v6707 = vadd.f32 %v6562, %v6706
  %v6708 = vpop.f32.mrf.mxu0
  %6709 = vmatprep.mubr.f32.mxu0 %v6118
  %6710 = vmatmul.mubr.f32.gmra.mxu0 %v6117
  %v6711 = vpop.f32.mrf.mxu0
  %v6712 = vadd.f32 %v6567, %v6711
  %v6713 = vpop.f32.mrf.mxu0
  %6714 = vmatprep.mubr.f32.mxu0 %v6122
  %6715 = vmatmul.mubr.f32.gmra.mxu0 %v6121
  %v6716 = vpop.f32.mrf.mxu0
  %v6717 = vadd.f32 %v6572, %v6716
  %v6718 = vpop.f32.mrf.mxu0
  %6719 = vmatprep.mubr.f32.mxu0 %v6126
  %6720 = vmatmul.mubr.f32.gmra.mxu0 %v6125
  %v6721 = vpop.f32.mrf.mxu0
  %v6722 = vadd.f32 %v6577, %v6721
  %v6723 = vpop.f32.mrf.mxu0
  %6724 = vmatprep.mubr.f32.mxu0 %v6130
  %6725 = vmatmul.mubr.f32.gmra.mxu0 %v6129
  %v6726 = vpop.f32.mrf.mxu0
  %v6727 = vadd.f32 %v6582, %v6726
  %v6728 = vpop.f32.mrf.mxu0
  %6729 = vmatprep.mubr.f32.mxu0 %v6134
  %6730 = vmatmul.mubr.f32.gmra.mxu0 %v6133
  %v6731 = vpop.f32.mrf.mxu0
  %v6732 = vadd.f32 %v6587, %v6731
  %v6733 = vpop.f32.mrf.mxu0
  %6734 = vmatprep.mubr.f32.mxu0 %v6138
  %6735 = vmatmul.mubr.f32.gmra.mxu0 %v6137
  %v6736 = vpop.f32.mrf.mxu0
  %v6737 = vadd.f32 %v6592, %v6736
  %v6738 = vpop.f32.mrf.mxu0
  %6739 = vmatprep.mubr.f32.mxu0 %v6142
  %6740 = vmatmul.mubr.f32.gmra.mxu0 %v6141
  %v6741 = vpop.f32.mrf.mxu0
  %v6742 = vadd.f32 %v6597, %v6741
  %v6743 = vpop.f32.mrf.mxu0
  %6744 = vmatprep.mubr.f32.mxu0 %v6146
  %6745 = vmatmul.mubr.f32.gmra.mxu0 %v6145
  %v6746 = vpop.f32.mrf.mxu0
  %v6747 = vadd.f32 %v6602, %v6746
  %v6748 = vpop.f32.mrf.mxu0
  %6749 = vmatprep.mubr.f32.mxu0 %v6150
  %6750 = vmatmul.mubr.f32.gmra.mxu0 %v6149
  %v6751 = vpop.f32.mrf.mxu0
  %v6752 = vadd.f32 %v6607, %v6751
  %v6753 = vpop.f32.mrf.mxu0
  %6754 = vmatprep.mubr.f32.mxu0 %v6154
  %6755 = vmatmul.mubr.f32.gmra.mxu0 %v6153
  %v6756 = vpop.f32.mrf.mxu0
  %v6757 = vadd.f32 %v6612, %v6756
  %v6758 = vpop.f32.mrf.mxu0
  %6759 = vmatprep.mubr.f32.mxu0 %v6158
  %6760 = vmatmul.mubr.f32.gmra.mxu0 %v6157
  %v6761 = vpop.f32.mrf.mxu0
  %v6762 = vadd.f32 %v6617, %v6761
  %v6763 = vpop.f32.mrf.mxu0
  %6764 = vmatprep.mubr.f32.mxu0 %v6162
  %6765 = vmatmul.mubr.f32.gmra.mxu0 %v6161
  %v6766 = vpop.f32.mrf.mxu0
  %v6767 = vadd.f32 %v6622, %v6766
  %v6768 = vpop.f32.mrf.mxu0
  %6769 = vmatprep.mubr.f32.mxu0 %v6166
  %6770 = vmatmul.mubr.f32.gmra.mxu0 %v6165
  %v6771 = vpop.f32.mrf.mxu0
  %v6772 = vadd.f32 %v6627, %v6771
  %v6773 = vpop.f32.mrf.mxu0
  %6774 = vmatprep.mubr.f32.mxu0 %v6170
  %6775 = vmatmul.mubr.f32.gmra.mxu0 %v6169
  %v6776 = vpop.f32.mrf.mxu0
  %v6777 = vadd.f32 %v6632, %v6776
  %v6778 = vpop.f32.mrf.mxu0
  %6779 = vmatprep.mubr.f32.mxu0 %v6174
  %6780 = vmatmul.mubr.f32.gmra.mxu0 %v6173
  %v6781 = vpop.f32.mrf.mxu0
  %v6782 = vadd.f32 %v6637, %v6781
  %v6783 = vpop.f32.mrf.mxu0
  %6784 = vdwg.mxu0
  %6849 = vrot.lane.b32.xlu0 %v5855, 116
  %v6850 = vpop.permute.xlu0 %6849
  %6851 = vrot.lane.b32.xlu0 %v5856, 116
  %v6852 = vpop.permute.xlu0 %6851
  %6853 = vrot.lane.b32.xlu0 %v5857, 116
  %v6854 = vpop.permute.xlu0 %6853
  %6855 = vrot.lane.b32.xlu0 %v5858, 116
  %v6856 = vpop.permute.xlu0 %6855
  %6857 = vrot.lane.b32.xlu0 %v5859, 116
  %v6858 = vpop.permute.xlu0 %6857
  %6859 = vrot.lane.b32.xlu0 %v5860, 116
  %v6860 = vpop.permute.xlu0 %6859
  %6861 = vrot.lane.b32.xlu0 %v5861, 116
  %v6862 = vpop.permute.xlu0 %6861
  %6863 = vrot.lane.b32.xlu0 %v5862, 116
  %v6864 = vpop.permute.xlu0 %6863
  %6865 = vrot.lane.b32.xlu0 %v5863, 116
  %v6866 = vpop.permute.xlu0 %6865
  %6867 = vrot.lane.b32.xlu0 %v5864, 116
  %v6868 = vpop.permute.xlu0 %6867
  %6869 = vrot.lane.b32.xlu0 %v5865, 116
  %v6870 = vpop.permute.xlu0 %6869
  %6871 = vrot.lane.b32.xlu0 %v5866, 116
  %v6872 = vpop.permute.xlu0 %6871
  %6873 = vrot.lane.b32.xlu0 %v5867, 116
  %v6874 = vpop.permute.xlu0 %6873
  %6875 = vrot.lane.b32.xlu0 %v5868, 116
  %v6876 = vpop.permute.xlu0 %6875
  %6877 = vrot.lane.b32.xlu0 %v5869, 116
  %v6878 = vpop.permute.xlu0 %6877
  %6879 = vrot.lane.b32.xlu0 %v5870, 116
  %v6880 = vpop.permute.xlu0 %6879
  %6881 = vrot.lane.b32.xlu0 %v5871, 116
  %v6882 = vpop.permute.xlu0 %6881
  %6883 = vrot.lane.b32.xlu0 %v5872, 116
  %v6884 = vpop.permute.xlu0 %6883
  %6885 = vrot.lane.b32.xlu0 %v5873, 116
  %v6886 = vpop.permute.xlu0 %6885
  %6887 = vrot.lane.b32.xlu0 %v5874, 116
  %v6888 = vpop.permute.xlu0 %6887
  %6889 = vrot.lane.b32.xlu0 %v5875, 116
  %v6890 = vpop.permute.xlu0 %6889
  %6891 = vrot.lane.b32.xlu0 %v5876, 116
  %v6892 = vpop.permute.xlu0 %6891
  %6893 = vrot.lane.b32.xlu0 %v5877, 116
  %v6894 = vpop.permute.xlu0 %6893
  %6895 = vrot.lane.b32.xlu0 %v5878, 116
  %v6896 = vpop.permute.xlu0 %6895
  %6897 = vrot.lane.b32.xlu0 %v5879, 116
  %v6898 = vpop.permute.xlu0 %6897
  %6899 = vrot.lane.b32.xlu0 %v5880, 116
  %v6900 = vpop.permute.xlu0 %6899
  %6901 = vrot.lane.b32.xlu0 %v5881, 116
  %v6902 = vpop.permute.xlu0 %6901
  %6903 = vrot.lane.b32.xlu0 %v5882, 116
  %v6904 = vpop.permute.xlu0 %6903
  %6905 = vrot.lane.b32.xlu0 %v5883, 116
  %v6906 = vpop.permute.xlu0 %6905
  %6907 = vrot.lane.b32.xlu0 %v5884, 116
  %v6908 = vpop.permute.xlu0 %6907
  %6909 = vrot.lane.b32.xlu0 %v5885, 116
  %v6910 = vpop.permute.xlu0 %6909
  %6911 = vrot.lane.b32.xlu0 %v5886, 116
  %v6912 = vpop.permute.xlu0 %6911
  %6913 = vrot.lane.b32.xlu0 %v5887, 116
  %v6914 = vpop.permute.xlu0 %6913
  %6915 = vrot.lane.b32.xlu0 %v5888, 116
  %v6916 = vpop.permute.xlu0 %6915
  %6917 = vrot.lane.b32.xlu0 %v5889, 116
  %v6918 = vpop.permute.xlu0 %6917
  %6919 = vrot.lane.b32.xlu0 %v5890, 116
  %v6920 = vpop.permute.xlu0 %6919
  %6921 = vrot.lane.b32.xlu0 %v5891, 116
  %v6922 = vpop.permute.xlu0 %6921
  %6923 = vrot.lane.b32.xlu0 %v5892, 116
  %v6924 = vpop.permute.xlu0 %6923
  %6925 = vrot.lane.b32.xlu0 %v5893, 116
  %v6926 = vpop.permute.xlu0 %6925
  %6927 = vrot.lane.b32.xlu0 %v5894, 116
  %v6928 = vpop.permute.xlu0 %6927
  %6929 = vrot.lane.b32.xlu0 %v5895, 116
  %v6930 = vpop.permute.xlu0 %6929
  %6931 = vrot.lane.b32.xlu0 %v5896, 116
  %v6932 = vpop.permute.xlu0 %6931
  %6933 = vrot.lane.b32.xlu0 %v5897, 116
  %v6934 = vpop.permute.xlu0 %6933
  %6935 = vrot.lane.b32.xlu0 %v5898, 116
  %v6936 = vpop.permute.xlu0 %6935
  %6937 = vrot.lane.b32.xlu0 %v5899, 116
  %v6938 = vpop.permute.xlu0 %6937
  %6939 = vrot.lane.b32.xlu0 %v5900, 116
  %v6940 = vpop.permute.xlu0 %6939
  %6941 = vrot.lane.b32.xlu0 %v5901, 116
  %v6942 = vpop.permute.xlu0 %6941
  %6943 = vrot.lane.b32.xlu0 %v5902, 116
  %v6944 = vpop.permute.xlu0 %6943
  %6945 = vrot.lane.b32.xlu0 %v5903, 116
  %v6946 = vpop.permute.xlu0 %6945
  %6947 = vrot.lane.b32.xlu0 %v5904, 116
  %v6948 = vpop.permute.xlu0 %6947
  %6949 = vrot.lane.b32.xlu0 %v5905, 116
  %v6950 = vpop.permute.xlu0 %6949
  %6951 = vrot.lane.b32.xlu0 %v5906, 116
  %v6952 = vpop.permute.xlu0 %6951
  %6953 = vrot.lane.b32.xlu0 %v5907, 116
  %v6954 = vpop.permute.xlu0 %6953
  %6955 = vrot.lane.b32.xlu0 %v5908, 116
  %v6956 = vpop.permute.xlu0 %6955
  %6957 = vrot.lane.b32.xlu0 %v5909, 116
  %v6958 = vpop.permute.xlu0 %6957
  %6959 = vrot.lane.b32.xlu0 %v5910, 116
  %v6960 = vpop.permute.xlu0 %6959
  %6961 = vrot.lane.b32.xlu0 %v5911, 116
  %v6962 = vpop.permute.xlu0 %6961
  %6963 = vrot.lane.b32.xlu0 %v5912, 116
  %v6964 = vpop.permute.xlu0 %6963
  %6965 = vrot.lane.b32.xlu0 %v5913, 116
  %v6966 = vpop.permute.xlu0 %6965
  %6967 = vrot.lane.b32.xlu0 %v5914, 116
  %v6968 = vpop.permute.xlu0 %6967
  %6969 = vrot.lane.b32.xlu0 %v5915, 116
  %v6970 = vpop.permute.xlu0 %6969
  %6971 = vrot.lane.b32.xlu0 %v5916, 116
  %v6972 = vpop.permute.xlu0 %6971
  %6973 = vrot.lane.b32.xlu0 %v5917, 116
  %v6974 = vpop.permute.xlu0 %6973
  %6975 = vrot.lane.b32.xlu0 %v5918, 116
  %v6976 = vpop.permute.xlu0 %6975
  %7041 = vmatprep.subr.mxu0 0.0
  %7042 = vmatpush1.msra.mxu0 %v6880
  %7043 = vmatprep.subr.mxu0 0.0
  %7044 = vmatpush1.msra.mxu0 %v6878
  %7045 = vmatprep.subr.mxu0 0.0
  %7046 = vmatpush1.msra.mxu0 %v6876
  %7047 = vmatprep.subr.mxu0 0.0
  %7048 = vmatpush1.msra.mxu0 %v6874
  %7049 = vmatprep.subr.mxu0 0.0
  %7050 = vmatpush1.msra.mxu0 %v6872
  %7051 = vmatprep.subr.mxu0 0.0
  %7052 = vmatpush1.msra.mxu0 %v6870
  %7053 = vmatprep.subr.mxu0 0.0
  %7054 = vmatpush1.msra.mxu0 %v6868
  %7055 = vmatprep.subr.mxu0 0.0
  %7056 = vmatpush1.msra.mxu0 %v6866
  %7057 = vmatprep.subr.mxu0 0.0
  %7058 = vmatpush1.msra.mxu0 %v6864
  %7059 = vmatprep.subr.mxu0 0.0
  %7060 = vmatpush1.msra.mxu0 %v6862
  %7061 = vmatprep.subr.mxu0 0.0
  %7062 = vmatpush1.msra.mxu0 %v6860
  %7063 = vmatprep.subr.mxu0 0.0
  %7064 = vmatpush1.msra.mxu0 %v6858
  %7065 = vmatprep.subr.mxu0 0.0
  %7066 = vmatpush1.msra.mxu0 %v6856
  %7067 = vmatprep.subr.mxu0 0.0
  %7068 = vmatpush1.msra.mxu0 %v6854
  %7069 = vmatprep.subr.mxu0 0.0
  %7070 = vmatpush1.msra.mxu0 %v6852
  %7071 = vmatprep.subr.mxu0 0.0
  %7072 = vmatpush1.msra.mxu0 %v6850
  %7073 = vmatprep.subr.mxu0 0.0
  %7074 = vmatpush2.msra.mxu0 %v6912
  %7075 = vmatprep.subr.mxu0 0.0
  %7076 = vmatpush2.msra.mxu0 %v6910
  %7077 = vmatprep.subr.mxu0 0.0
  %7078 = vmatpush2.msra.mxu0 %v6908
  %7079 = vmatprep.subr.mxu0 0.0
  %7080 = vmatpush2.msra.mxu0 %v6906
  %7081 = vmatprep.subr.mxu0 0.0
  %7082 = vmatpush2.msra.mxu0 %v6904
  %7083 = vmatprep.subr.mxu0 0.0
  %7084 = vmatpush2.msra.mxu0 %v6902
  %7085 = vmatprep.subr.mxu0 0.0
  %7086 = vmatpush2.msra.mxu0 %v6900
  %7087 = vmatprep.subr.mxu0 0.0
  %7088 = vmatpush2.msra.mxu0 %v6898
  %7089 = vmatprep.subr.mxu0 0.0
  %7090 = vmatpush2.msra.mxu0 %v6896
  %7091 = vmatprep.subr.mxu0 0.0
  %7092 = vmatpush2.msra.mxu0 %v6894
  %7093 = vmatprep.subr.mxu0 0.0
  %7094 = vmatpush2.msra.mxu0 %v6892
  %7095 = vmatprep.subr.mxu0 0.0
  %7096 = vmatpush2.msra.mxu0 %v6890
  %7097 = vmatprep.subr.mxu0 0.0
  %7098 = vmatpush2.msra.mxu0 %v6888
  %7099 = vmatprep.subr.mxu0 0.0
  %7100 = vmatpush2.msra.mxu0 %v6886
  %7101 = vmatprep.subr.mxu0 0.0
  %7102 = vmatpush2.msra.mxu0 %v6884
  %7103 = vmatprep.subr.mxu0 0.0
  %7104 = vmatpush2.msra.mxu0 %v6882
  %7105 = vmatprep.mubr.f32.mxu0 %v5792
  %7106 = vmatmul.mubr.f32.gmra.mxu0 %v5791
  %v7107 = vpop.f32.mrf.mxu0
  %v7108 = vadd.f32 %v6707, %v7107
  %v7109 = vpop.f32.mrf.mxu0
  %7110 = vmatprep.mubr.f32.mxu0 %v5796
  %7111 = vmatmul.mubr.f32.gmra.mxu0 %v5795
  %v7112 = vpop.f32.mrf.mxu0
  %v7113 = vadd.f32 %v6712, %v7112
  %v7114 = vpop.f32.mrf.mxu0
  %7115 = vmatprep.mubr.f32.mxu0 %v5800
  %7116 = vmatmul.mubr.f32.gmra.mxu0 %v5799
  %v7117 = vpop.f32.mrf.mxu0
  %v7118 = vadd.f32 %v6717, %v7117
  %v7119 = vpop.f32.mrf.mxu0
  %7120 = vmatprep.mubr.f32.mxu0 %v5804
  %7121 = vmatmul.mubr.f32.gmra.mxu0 %v5803
  %v7122 = vpop.f32.mrf.mxu0
  %v7123 = vadd.f32 %v6722, %v7122
  %v7124 = vpop.f32.mrf.mxu0
  %7125 = vmatprep.mubr.f32.mxu0 %v5808
  %7126 = vmatmul.mubr.f32.gmra.mxu0 %v5807
  %v7127 = vpop.f32.mrf.mxu0
  %v7128 = vadd.f32 %v6727, %v7127
  %v7129 = vpop.f32.mrf.mxu0
  %7130 = vmatprep.mubr.f32.mxu0 %v5812
  %7131 = vmatmul.mubr.f32.gmra.mxu0 %v5811
  %v7132 = vpop.f32.mrf.mxu0
  %v7133 = vadd.f32 %v6732, %v7132
  %v7134 = vpop.f32.mrf.mxu0
  %7135 = vmatprep.mubr.f32.mxu0 %v5816
  %7136 = vmatmul.mubr.f32.gmra.mxu0 %v5815
  %v7137 = vpop.f32.mrf.mxu0
  %v7138 = vadd.f32 %v6737, %v7137
  %v7139 = vpop.f32.mrf.mxu0
  %7140 = vmatprep.mubr.f32.mxu0 %v5820
  %7141 = vmatmul.mubr.f32.gmra.mxu0 %v5819
  %v7142 = vpop.f32.mrf.mxu0
  %v7143 = vadd.f32 %v6742, %v7142
  %v7144 = vpop.f32.mrf.mxu0
  %7145 = vmatprep.mubr.f32.mxu0 %v5824
  %7146 = vmatmul.mubr.f32.gmra.mxu0 %v5823
  %v7147 = vpop.f32.mrf.mxu0
  %v7148 = vadd.f32 %v6747, %v7147
  %v7149 = vpop.f32.mrf.mxu0
  %7150 = vmatprep.mubr.f32.mxu0 %v5828
  %7151 = vmatmul.mubr.f32.gmra.mxu0 %v5827
  %v7152 = vpop.f32.mrf.mxu0
  %v7153 = vadd.f32 %v6752, %v7152
  %v7154 = vpop.f32.mrf.mxu0
  %7155 = vmatprep.mubr.f32.mxu0 %v5832
  %7156 = vmatmul.mubr.f32.gmra.mxu0 %v5831
  %v7157 = vpop.f32.mrf.mxu0
  %v7158 = vadd.f32 %v6757, %v7157
  %v7159 = vpop.f32.mrf.mxu0
  %7160 = vmatprep.mubr.f32.mxu0 %v5836
  %7161 = vmatmul.mubr.f32.gmra.mxu0 %v5835
  %v7162 = vpop.f32.mrf.mxu0
  %v7163 = vadd.f32 %v6762, %v7162
  %v7164 = vpop.f32.mrf.mxu0
  %7165 = vmatprep.mubr.f32.mxu0 %v5840
  %7166 = vmatmul.mubr.f32.gmra.mxu0 %v5839
  %v7167 = vpop.f32.mrf.mxu0
  %v7168 = vadd.f32 %v6767, %v7167
  %v7169 = vpop.f32.mrf.mxu0
  %7170 = vmatprep.mubr.f32.mxu0 %v5844
  %7171 = vmatmul.mubr.f32.gmra.mxu0 %v5843
  %v7172 = vpop.f32.mrf.mxu0
  %v7173 = vadd.f32 %v6772, %v7172
  %v7174 = vpop.f32.mrf.mxu0
  %7175 = vmatprep.mubr.f32.mxu0 %v5848
  %7176 = vmatmul.mubr.f32.gmra.mxu0 %v5847
  %v7177 = vpop.f32.mrf.mxu0
  %v7178 = vadd.f32 %v6777, %v7177
  %v7179 = vpop.f32.mrf.mxu0
  %7180 = vmatprep.mubr.f32.mxu0 %v5852
  %7181 = vmatmul.mubr.f32.gmra.mxu0 %v5851
  %v7182 = vpop.f32.mrf.mxu0
  %v7183 = vadd.f32 %v6782, %v7182
  %v7184 = vpop.f32.mrf.mxu0
  %7185 = vdwg.mxu0
  %7186 = vmatprep.subr.mxu0 0.0
  %7187 = vmatpush1.msra.mxu0 %v6944
  %7188 = vmatprep.subr.mxu0 0.0
  %7189 = vmatpush1.msra.mxu0 %v6942
  %7190 = vmatprep.subr.mxu0 0.0
  %7191 = vmatpush1.msra.mxu0 %v6940
  %7192 = vmatprep.subr.mxu0 0.0
  %7193 = vmatpush1.msra.mxu0 %v6938
  %7194 = vmatprep.subr.mxu0 0.0
  %7195 = vmatpush1.msra.mxu0 %v6936
  %7196 = vmatprep.subr.mxu0 0.0
  %7197 = vmatpush1.msra.mxu0 %v6934
  %7198 = vmatprep.subr.mxu0 0.0
  %7199 = vmatpush1.msra.mxu0 %v6932
  %7200 = vmatprep.subr.mxu0 0.0
  %7201 = vmatpush1.msra.mxu0 %v6930
  %7202 = vmatprep.subr.mxu0 0.0
  %7203 = vmatpush1.msra.mxu0 %v6928
  %7204 = vmatprep.subr.mxu0 0.0
  %7205 = vmatpush1.msra.mxu0 %v6926
  %7206 = vmatprep.subr.mxu0 0.0
  %7207 = vmatpush1.msra.mxu0 %v6924
  %7208 = vmatprep.subr.mxu0 0.0
  %7209 = vmatpush1.msra.mxu0 %v6922
  %7210 = vmatprep.subr.mxu0 0.0
  %7211 = vmatpush1.msra.mxu0 %v6920
  %7212 = vmatprep.subr.mxu0 0.0
  %7213 = vmatpush1.msra.mxu0 %v6918
  %7214 = vmatprep.subr.mxu0 0.0
  %7215 = vmatpush1.msra.mxu0 %v6916
  %7216 = vmatprep.subr.mxu0 0.0
  %7217 = vmatpush1.msra.mxu0 %v6914
  %7218 = vmatprep.subr.mxu0 0.0
  %7219 = vmatpush2.msra.mxu0 %v6976
  %7220 = vmatprep.subr.mxu0 0.0
  %7221 = vmatpush2.msra.mxu0 %v6974
  %7222 = vmatprep.subr.mxu0 0.0
  %7223 = vmatpush2.msra.mxu0 %v6972
  %7224 = vmatprep.subr.mxu0 0.0
  %7225 = vmatpush2.msra.mxu0 %v6970
  %7226 = vmatprep.subr.mxu0 0.0
  %7227 = vmatpush2.msra.mxu0 %v6968
  %7228 = vmatprep.subr.mxu0 0.0
  %7229 = vmatpush2.msra.mxu0 %v6966
  %7230 = vmatprep.subr.mxu0 0.0
  %7231 = vmatpush2.msra.mxu0 %v6964
  %7232 = vmatprep.subr.mxu0 0.0
  %7233 = vmatpush2.msra.mxu0 %v6962
  %7234 = vmatprep.subr.mxu0 0.0
  %7235 = vmatpush2.msra.mxu0 %v6960
  %7236 = vmatprep.subr.mxu0 0.0
  %7237 = vmatpush2.msra.mxu0 %v6958
  %7238 = vmatprep.subr.mxu0 0.0
  %7239 = vmatpush2.msra.mxu0 %v6956
  %7240 = vmatprep.subr.mxu0 0.0
  %7241 = vmatpush2.msra.mxu0 %v6954
  %7242 = vmatprep.subr.mxu0 0.0
  %7243 = vmatpush2.msra.mxu0 %v6952
  %7244 = vmatprep.subr.mxu0 0.0
  %7245 = vmatpush2.msra.mxu0 %v6950
  %7246 = vmatprep.subr.mxu0 0.0
  %7247 = vmatpush2.msra.mxu0 %v6948
  %7248 = vmatprep.subr.mxu0 0.0
  %7249 = vmatpush2.msra.mxu0 %v6946
  %7250 = vmatprep.mubr.f32.mxu0 %v5794
  %7251 = vmatmul.mubr.f32.gmra.mxu0 %v5793
  %v7252 = vpop.f32.mrf.mxu0
  %v7253 = vadd.f32 %v7108, %v7252
  %v7254 = vpop.f32.mrf.mxu0
  %7255 = vmatprep.mubr.f32.mxu0 %v5798
  %7256 = vmatmul.mubr.f32.gmra.mxu0 %v5797
  %v7257 = vpop.f32.mrf.mxu0
  %v7258 = vadd.f32 %v7113, %v7257
  %v7259 = vpop.f32.mrf.mxu0
  %7260 = vmatprep.mubr.f32.mxu0 %v5802
  %7261 = vmatmul.mubr.f32.gmra.mxu0 %v5801
  %v7262 = vpop.f32.mrf.mxu0
  %v7263 = vadd.f32 %v7118, %v7262
  %v7264 = vpop.f32.mrf.mxu0
  %7265 = vmatprep.mubr.f32.mxu0 %v5806
  %7266 = vmatmul.mubr.f32.gmra.mxu0 %v5805
  %v7267 = vpop.f32.mrf.mxu0
  %v7268 = vadd.f32 %v7123, %v7267
  %v7269 = vpop.f32.mrf.mxu0
  %7270 = vmatprep.mubr.f32.mxu0 %v5810
  %7271 = vmatmul.mubr.f32.gmra.mxu0 %v5809
  %v7272 = vpop.f32.mrf.mxu0
  %v7273 = vadd.f32 %v7128, %v7272
  %v7274 = vpop.f32.mrf.mxu0
  %7275 = vmatprep.mubr.f32.mxu0 %v5814
  %7276 = vmatmul.mubr.f32.gmra.mxu0 %v5813
  %v7277 = vpop.f32.mrf.mxu0
  %v7278 = vadd.f32 %v7133, %v7277
  %v7279 = vpop.f32.mrf.mxu0
  %7280 = vmatprep.mubr.f32.mxu0 %v5818
  %7281 = vmatmul.mubr.f32.gmra.mxu0 %v5817
  %v7282 = vpop.f32.mrf.mxu0
  %v7283 = vadd.f32 %v7138, %v7282
  %v7284 = vpop.f32.mrf.mxu0
  %7285 = vmatprep.mubr.f32.mxu0 %v5822
  %7286 = vmatmul.mubr.f32.gmra.mxu0 %v5821
  %v7287 = vpop.f32.mrf.mxu0
  %v7288 = vadd.f32 %v7143, %v7287
  %v7289 = vpop.f32.mrf.mxu0
  %7290 = vmatprep.mubr.f32.mxu0 %v5826
  %7291 = vmatmul.mubr.f32.gmra.mxu0 %v5825
  %v7292 = vpop.f32.mrf.mxu0
  %v7293 = vadd.f32 %v7148, %v7292
  %v7294 = vpop.f32.mrf.mxu0
  %7295 = vmatprep.mubr.f32.mxu0 %v5830
  %7296 = vmatmul.mubr.f32.gmra.mxu0 %v5829
  %v7297 = vpop.f32.mrf.mxu0
  %v7298 = vadd.f32 %v7153, %v7297
  %v7299 = vpop.f32.mrf.mxu0
  %7300 = vmatprep.mubr.f32.mxu0 %v5834
  %7301 = vmatmul.mubr.f32.gmra.mxu0 %v5833
  %v7302 = vpop.f32.mrf.mxu0
  %v7303 = vadd.f32 %v7158, %v7302
  %v7304 = vpop.f32.mrf.mxu0
  %7305 = vmatprep.mubr.f32.mxu0 %v5838
  %7306 = vmatmul.mubr.f32.gmra.mxu0 %v5837
  %v7307 = vpop.f32.mrf.mxu0
  %v7308 = vadd.f32 %v7163, %v7307
  %v7309 = vpop.f32.mrf.mxu0
  %7310 = vmatprep.mubr.f32.mxu0 %v5842
  %7311 = vmatmul.mubr.f32.gmra.mxu0 %v5841
  %v7312 = vpop.f32.mrf.mxu0
  %v7313 = vadd.f32 %v7168, %v7312
  %v7314 = vpop.f32.mrf.mxu0
  %7315 = vmatprep.mubr.f32.mxu0 %v5846
  %7316 = vmatmul.mubr.f32.gmra.mxu0 %v5845
  %v7317 = vpop.f32.mrf.mxu0
  %v7318 = vadd.f32 %v7173, %v7317
  %v7319 = vpop.f32.mrf.mxu0
  %7320 = vmatprep.mubr.f32.mxu0 %v5850
  %7321 = vmatmul.mubr.f32.gmra.mxu0 %v5849
  %v7322 = vpop.f32.mrf.mxu0
  %v7323 = vadd.f32 %v7178, %v7322
  %v7324 = vpop.f32.mrf.mxu0
  %7325 = vmatprep.mubr.f32.mxu0 %v5854
  %7326 = vmatmul.mubr.f32.gmra.mxu0 %v5853
  %v7327 = vpop.f32.mrf.mxu0
  %v7328 = vadd.f32 %v7183, %v7327
  %v7329 = vpop.f32.mrf.mxu0
  %7330 = vdwg.mxu0
  %7347 = vrot.lane.b32.xlu0 %v7253, 12
  %v7348 = vpop.permute.xlu0 %7347
  %7349 = vrot.lane.b32.xlu0 %v7258, 12
  %v7350 = vpop.permute.xlu0 %7349
  %7351 = vrot.lane.b32.xlu0 %v7263, 12
  %v7352 = vpop.permute.xlu0 %7351
  %7353 = vrot.lane.b32.xlu0 %v7268, 12
  %v7354 = vpop.permute.xlu0 %7353
  %7355 = vrot.lane.b32.xlu0 %v7273, 12
  %v7356 = vpop.permute.xlu0 %7355
  %7357 = vrot.lane.b32.xlu0 %v7278, 12
  %v7358 = vpop.permute.xlu0 %7357
  %7359 = vrot.lane.b32.xlu0 %v7283, 12
  %v7360 = vpop.permute.xlu0 %7359
  %7361 = vrot.lane.b32.xlu0 %v7288, 12
  %v7362 = vpop.permute.xlu0 %7361
  %7363 = vrot.lane.b32.xlu0 %v7293, 12
  %v7364 = vpop.permute.xlu0 %7363
  %7365 = vrot.lane.b32.xlu0 %v7298, 12
  %v7366 = vpop.permute.xlu0 %7365
  %7367 = vrot.lane.b32.xlu0 %v7303, 12
  %v7368 = vpop.permute.xlu0 %7367
  %7369 = vrot.lane.b32.xlu0 %v7308, 12
  %v7370 = vpop.permute.xlu0 %7369
  %7371 = vrot.lane.b32.xlu0 %v7313, 12
  %v7372 = vpop.permute.xlu0 %7371
  %7373 = vrot.lane.b32.xlu0 %v7318, 12
  %v7374 = vpop.permute.xlu0 %7373
  %7375 = vrot.lane.b32.xlu0 %v7323, 12
  %v7376 = vpop.permute.xlu0 %7375
  %7377 = vrot.lane.b32.xlu0 %v7328, 12
  %v7378 = vpop.permute.xlu0 %7377
  %vm7395 = vcmask 130144
  %7396 = vst.msk [vmem:[%s2] sm:$0xff] %vm7395, %v7348
  %7397 = vst.msk [vmem:[%s2 + $0x8] sm:$0xff] %vm7395, %v7350
  %7398 = vst.msk [vmem:[%s2 + $0x10] sm:$0xff] %vm7395, %v7352
  %7399 = vst.msk [vmem:[%s2 + $0x18] sm:$0xff] %vm7395, %v7354
  %7400 = vst.msk [vmem:[%s2 + $0x20] sm:$0xff] %vm7395, %v7356
  %7401 = vst.msk [vmem:[%s2 + $0x28] sm:$0xff] %vm7395, %v7358
  %7402 = vst.msk [vmem:[%s2 + $0x30] sm:$0xff] %vm7395, %v7360
  %7403 = vst.msk [vmem:[%s2 + $0x38] sm:$0xff] %vm7395, %v7362
  %7404 = vst.msk [vmem:[%s2 + $0x40] sm:$0xff] %vm7395, %v7364
  %7405 = vst.msk [vmem:[%s2 + $0x48] sm:$0xff] %vm7395, %v7366
  %7406 = vst.msk [vmem:[%s2 + $0x50] sm:$0xff] %vm7395, %v7368
  %7407 = vst.msk [vmem:[%s2 + $0x58] sm:$0xff] %vm7395, %v7370
  %7408 = vst.msk [vmem:[%s2 + $0x60] sm:$0xff] %vm7395, %v7372
  %7409 = vst.msk [vmem:[%s2 + $0x68] sm:$0xff] %vm7395, %v7374
  %7410 = vst.msk [vmem:[%s2 + $0x70] sm:$0xff] %vm7395, %v7376
  %7411 = vst.msk [vmem:[%s2 + $0x78] sm:$0xff] %vm7395, %v7378
  // Predicated region
  $region10: #{multi_resolution_hash_encoding.1} parent=0 // pred_check
    _
  $region11: #{multi_resolution_hash_encoding.1} parent=0 // pred_check_branch
    %7413 = sbr.rel (0) target = $region13
  $region12: #{multi_resolution_hash_encoding.1} parent=0 // pred_region
    _
  $region13: #{multi_resolution_hash_encoding.1} parent=0 // pred_fallthru
    _
  // Predicated region
  $region14: #{multi_resolution_hash_encoding.1} parent=0 // pred_check
    _
  $region15: #{multi_resolution_hash_encoding.1} parent=0 // pred_check_branch
    %7415 = sbr.rel (0) target = $region17
  $region16: #{multi_resolution_hash_encoding.1} parent=0 // pred_region
    _
  $region17: #{multi_resolution_hash_encoding.1} parent=0 // pred_fallthru
    _

</llo_original>
